<compile_context>
chip_gen: v7x
topology: tpu7x:2x2x1
jax: 0.10.0
libtpu: 0.0.40
codegen_flags: <defaults>
</compile_context>

<pallas_src>
import jax
import jax.numpy as jnp
from jax.experimental import pallas as pl
from jax.experimental.pallas import tpu as pltpu


def image_to_patches_3d(x, patch_size):
    """Pallas implementation of ImageToPatches3D.forward.

    x: (N, C, D, H, W) array.  patch_size: int (cubic patch, kernel == stride).
    Returns (N, L, C*patch_size**3).
    """
    N, C, D, H, W = x.shape
    p = int(patch_size)
    assert D % p == 0 and H % p == 0 and W % p == 0, "patch must tile the volume"
    nD, nH, nW = D // p, H // p, W // p
    L = nD * nH * nW
    CP3 = C * p * p * p
    # NOTE: the output writeback is only fully lane-dense when CP3 % 128 == 0
    # (true here: C=4, p=4 -> 256); otherwise it silently falls back to partial
    # stores but stays correct.

    def kernel(x_ref, o_ref):
        # x_ref: (1, C, p, H, W)    one (n, bd) slab; minor dims are full (H, W)
        # o_ref: (1, 1, nH, nW, CP3) lane-dense output rows produced by the slab
        for c in range(C):
            for kd in range(p):
                # Dense (H, W) plane load — full sublanes, full lanes.
                plane = x_ref[0, c, kd, :, :]                      # (H, W)
                for bh in range(nH):
                    for kh in range(p):
                        # Static register slice of one W row (lane-dense).
                        h = bh * p + kh
                        row = plane[h:h + 1, :]                    # (1, W)
                        col = ((c * p + kd) * p + kh) * p          # (c,kd,kh,·)
                        for bw in range(nW):
                            o_ref[0, 0, bh, bw:bw + 1, col:col + p] = (
                                row[:, bw * p:(bw + 1) * p]
                            )
        # For large C*p^2 these static loops should become
        # lax.fori_loop(..., unroll=True) to bound live ranges / compile time;
        # at the shapes used here the unrolled body is small.

    # VMEM budget: double-buffered in+out blocks plus slack, clamped to v7x's
    # 64 MiB physical VMEM and floored at the 32 MiB scoped default.
    itemsize = x.dtype.itemsize
    in_block_bytes = C * p * H * W * itemsize
    out_block_bytes = nH * nW * CP3 * itemsize
    vmem_limit = min(64 * 1024 * 1024,
                     max(32 * 1024 * 1024, 3 * (in_block_bytes + out_block_bytes)))

    bytes_accessed = 2 * int(x.size) * itemsize  # pure copy: read + write

    out5 = pl.pallas_call(
        kernel,
        out_shape=jax.ShapeDtypeStruct((N, nD, nH, nW, CP3), x.dtype),
        grid=(N, nD),
        in_specs=[
            pl.BlockSpec(
                (1, C, p, H, W),
                lambda n, bd: (n, 0, bd, 0, 0),
            ),
        ],
        out_specs=pl.BlockSpec(
            (1, 1, nH, nW, CP3),
            lambda n, bd: (n, bd, 0, 0, 0),
        ),
        compiler_params=pltpu.CompilerParams(
            dimension_semantics=("parallel", "parallel"),
            vmem_limit_bytes=vmem_limit,
        ),
        cost_estimate=pl.CostEstimate(
            flops=0, transcendentals=0, bytes_accessed=bytes_accessed
        ),
    )(x)

    # Metadata-only merge of (nD, nH, nW) -> L; row order (bd, bh, bw), bw fastest,
    # exactly the unfoldNd patch ordering.
    return out5.reshape(N, L, CP3)


def _reference(x, patch_size):
    """Pure-JAX reference of unfoldNd(kernel=stride=patch) + permute(0, 2, 1)."""
    N, C, D, H, W = x.shape
    p = int(patch_size)
    nD, nH, nW = D // p, H // p, W // p
    y = x.reshape(N, C, nD, p, nH, p, nW, p)
    y = jnp.transpose(y, (0, 2, 4, 6, 1, 3, 5, 7))  # (N, nD, nH, nW, C, pD, pH, pW)
    return y.reshape(N, nD * nH * nW, C * p * p * p)


if __name__ == "__main__":
    # Small shapes consistent with the module: cubic volume 8^3, patch_size=4,
    # batch=2, channels=4 (leading "parallel" grid axis has even extent for v7x).
    key = jax.random.PRNGKey(0)
    N, C, D, H, W = 2, 4, 8, 8, 8
    patch_size = 4
    x = jax.random.normal(key, (N, C, D, H, W), dtype=jnp.float32)

    out = image_to_patches_3d(x, patch_size)
    out = jax.block_until_ready(out)

    expected_shape = (
        N,
        (D // patch_size) * (H // patch_size) * (W // patch_size),
        C * patch_size ** 3,
    )
    assert out.shape == expected_shape, (out.shape, expected_shape)

    ref = _reference(x, patch_size)
    assert jnp.allclose(out, ref), "Pallas output does not match unfoldNd reference"

    print("KERNEL_OK")
</pallas_src>

<mosaic_0001>
module attributes {stable_mosaic.version = 11 : i64} {
  func.func @kernel(%arg0: i32, %arg1: i32, %arg2: memref<1x4x4x8x8xf32, #tpu.memory_space<vmem>>, %arg3: memref<1x1x2x2x256xf32, #tpu.memory_space<vmem>>) attributes {dimension_semantics = [#tpu.dimension_semantics<parallel>, #tpu.dimension_semantics<parallel>], iteration_bounds = array<i64: 2, 2>, scalar_prefetch = 0 : i64, scratch_operands = 0 : i64, tpu.core_type = #tpu.core_type<tc>, window_params = [{transform_indices = @transform_0, window_bounds = array<i64: 1, 4, 4, 8, 8>}, {transform_indices = @transform_1, window_bounds = array<i64: 1, 1, 2, 2, 256>}]} {
    %c0 = arith.constant 0 : index
    %c0_0 = arith.constant 0 : index
    %c0_1 = arith.constant 0 : index
    %c0_2 = arith.constant 0 : index
    %c0_3 = arith.constant 0 : index
    %0 = vector.load %arg2[%c0, %c0_0, %c0_1, %c0_2, %c0_3] : memref<1x4x4x8x8xf32, #tpu.memory_space<vmem>>, vector<1x1x1x8x8xf32>
    %1 = vector.shape_cast %0 : vector<1x1x1x8x8xf32> to vector<8x8xf32>
    %2 = vector.extract_strided_slice %1 {offsets = [0, 0], sizes = [1, 8], strides = [1, 1]} : vector<8x8xf32> to vector<1x8xf32>
    %3 = vector.extract_strided_slice %2 {offsets = [0, 0], sizes = [1, 4], strides = [1, 1]} : vector<1x8xf32> to vector<1x4xf32>
    %c0_4 = arith.constant 0 : index
    %c0_5 = arith.constant 0 : index
    %c0_6 = arith.constant 0 : index
    %c0_7 = arith.constant 0 : index
    %c0_8 = arith.constant 0 : index
    %4 = vector.load %arg3[%c0_4, %c0_5, %c0_6, %c0_7, %c0_8] : memref<1x1x2x2x256xf32, #tpu.memory_space<vmem>>, vector<1x1x1x1x4xf32>
    %5 = vector.shape_cast %4 : vector<1x1x1x1x4xf32> to vector<1x4xf32>
    %6 = vector.shape_cast %3 : vector<1x4xf32> to vector<1x1x1x1x4xf32>
    tpu.vector_store %arg3[%c0_4, %c0_5, %c0_6, %c0_7, %c0_8], %6 {strides = array<i32>} : memref<1x1x2x2x256xf32, #tpu.memory_space<vmem>>, vector<1x1x1x1x4xf32>,
    %7 = vector.extract_strided_slice %2 {offsets = [0, 4], sizes = [1, 4], strides = [1, 1]} : vector<1x8xf32> to vector<1x4xf32>
    %c0_9 = arith.constant 0 : index
    %c0_10 = arith.constant 0 : index
    %c0_11 = arith.constant 0 : index
    %c1 = arith.constant 1 : index
    %c0_12 = arith.constant 0 : index
    %8 = vector.load %arg3[%c0_9, %c0_10, %c0_11, %c1, %c0_12] : memref<1x1x2x2x256xf32, #tpu.memory_space<vmem>>, vector<1x1x1x1x4xf32>
    %9 = vector.shape_cast %8 : vector<1x1x1x1x4xf32> to vector<1x4xf32>
    %10 = vector.shape_cast %7 : vector<1x4xf32> to vector<1x1x1x1x4xf32>
    tpu.vector_store %arg3[%c0_9, %c0_10, %c0_11, %c1, %c0_12], %10 {strides = array<i32>} : memref<1x1x2x2x256xf32, #tpu.memory_space<vmem>>, vector<1x1x1x1x4xf32>,
    %11 = vector.extract_strided_slice %1 {offsets = [1, 0], sizes = [1, 8], strides = [1, 1]} : vector<8x8xf32> to vector<1x8xf32>
    %12 = vector.extract_strided_slice %11 {offsets = [0, 0], sizes = [1, 4], strides = [1, 1]} : vector<1x8xf32> to vector<1x4xf32>
    %c0_13 = arith.constant 0 : index
    %c0_14 = arith.constant 0 : index
    %c0_15 = arith.constant 0 : index
    %c0_16 = arith.constant 0 : index
    %c4 = arith.constant 4 : index
    %13 = vector.load %arg3[%c0_13, %c0_14, %c0_15, %c0_16, %c4] : memref<1x1x2x2x256xf32, #tpu.memory_space<vmem>>, vector<1x1x1x1x4xf32>
    %14 = vector.shape_cast %13 : vector<1x1x1x1x4xf32> to vector<1x4xf32>
    %15 = vector.shape_cast %12 : vector<1x4xf32> to vector<1x1x1x1x4xf32>
    tpu.vector_store %arg3[%c0_13, %c0_14, %c0_15, %c0_16, %c4], %15 {strides = array<i32>} : memref<1x1x2x2x256xf32, #tpu.memory_space<vmem>>, vector<1x1x1x1x4xf32>,
    %16 = vector.extract_strided_slice %11 {offsets = [0, 4], sizes = [1, 4], strides = [1, 1]} : vector<1x8xf32> to vector<1x4xf32>
    %c0_17 = arith.constant 0 : index
    %c0_18 = arith.constant 0 : index
    %c0_19 = arith.constant 0 : index
    %c1_20 = arith.constant 1 : index
    %c4_21 = arith.constant 4 : index
    %17 = vector.load %arg3[%c0_17, %c0_18, %c0_19, %c1_20, %c4_21] : memref<1x1x2x2x256xf32, #tpu.memory_space<vmem>>, vector<1x1x1x1x4xf32>
    %18 = vector.shape_cast %17 : vector<1x1x1x1x4xf32> to vector<1x4xf32>
    %19 = vector.shape_cast %16 : vector<1x4xf32> to vector<1x1x1x1x4xf32>
    tpu.vector_store %arg3[%c0_17, %c0_18, %c0_19, %c1_20, %c4_21], %19 {strides = array<i32>} : memref<1x1x2x2x256xf32, #tpu.memory_space<vmem>>, vector<1x1x1x1x4xf32>,
    %20 = vector.extract_strided_slice %1 {offsets = [2, 0], sizes = [1, 8], strides = [1, 1]} : vector<8x8xf32> to vector<1x8xf32>
    %21 = vector.extract_strided_slice %20 {offsets = [0, 0], sizes = [1, 4], strides = [1, 1]} : vector<1x8xf32> to vector<1x4xf32>
    %c0_22 = arith.constant 0 : index
    %c0_23 = arith.constant 0 : index
    %c0_24 = arith.constant 0 : index
    %c0_25 = arith.constant 0 : index
    %c8 = arith.constant 8 : index
    %22 = vector.load %arg3[%c0_22, %c0_23, %c0_24, %c0_25, %c8] : memref<1x1x2x2x256xf32, #tpu.memory_space<vmem>>, vector<1x1x1x1x4xf32>
    %23 = vector.shape_cast %22 : vector<1x1x1x1x4xf32> to vector<1x4xf32>
    %24 = vector.shape_cast %21 : vector<1x4xf32> to vector<1x1x1x1x4xf32>
    tpu.vector_store %arg3[%c0_22, %c0_23, %c0_24, %c0_25, %c8], %24 {strides = array<i32>} : memref<1x1x2x2x256xf32, #tpu.memory_space<vmem>>, vector<1x1x1x1x4xf32>,
    %25 = vector.extract_strided_slice %20 {offsets = [0, 4], sizes = [1, 4], strides = [1, 1]} : vector<1x8xf32> to vector<1x4xf32>
    %c0_26 = arith.constant 0 : index
    %c0_27 = arith.constant 0 : index
    %c0_28 = arith.constant 0 : index
    %c1_29 = arith.constant 1 : index
    %c8_30 = arith.constant 8 : index
    %26 = vector.load %arg3[%c0_26, %c0_27, %c0_28, %c1_29, %c8_30] : memref<1x1x2x2x256xf32, #tpu.memory_space<vmem>>, vector<1x1x1x1x4xf32>
    %27 = vector.shape_cast %26 : vector<1x1x1x1x4xf32> to vector<1x4xf32>
    %28 = vector.shape_cast %25 : vector<1x4xf32> to vector<1x1x1x1x4xf32>
    tpu.vector_store %arg3[%c0_26, %c0_27, %c0_28, %c1_29, %c8_30], %28 {strides = array<i32>} : memref<1x1x2x2x256xf32, #tpu.memory_space<vmem>>, vector<1x1x1x1x4xf32>,
    %29 = vector.extract_strided_slice %1 {offsets = [3, 0], sizes = [1, 8], strides = [1, 1]} : vector<8x8xf32> to vector<1x8xf32>
    %30 = vector.extract_strided_slice %29 {offsets = [0, 0], sizes = [1, 4], strides = [1, 1]} : vector<1x8xf32> to vector<1x4xf32>
    %c0_31 = arith.constant 0 : index
    %c0_32 = arith.constant 0 : index
    %c0_33 = arith.constant 0 : index
    %c0_34 = arith.constant 0 : index
    %c12 = arith.constant 12 : index
    %31 = vector.load %arg3[%c0_31, %c0_32, %c0_33, %c0_34, %c12] : memref<1x1x2x2x256xf32, #tpu.memory_space<vmem>>, vector<1x1x1x1x4xf32>
    %32 = vector.shape_cast %31 : vector<1x1x1x1x4xf32> to vector<1x4xf32>
    %33 = vector.shape_cast %30 : vector<1x4xf32> to vector<1x1x1x1x4xf32>
    tpu.vector_store %arg3[%c0_31, %c0_32, %c0_33, %c0_34, %c12], %33 {strides = array<i32>} : memref<1x1x2x2x256xf32, #tpu.memory_space<vmem>>, vector<1x1x1x1x4xf32>,
    %34 = vector.extract_strided_slice %29 {offsets = [0, 4], sizes = [1, 4], strides = [1, 1]} : vector<1x8xf32> to vector<1x4xf32>
    %c0_35 = arith.constant 0 : index
    %c0_36 = arith.constant 0 : index
    %c0_37 = arith.constant 0 : index
    %c1_38 = arith.constant 1 : index
    %c12_39 = arith.constant 12 : index
    %35 = vector.load %arg3[%c0_35, %c0_36, %c0_37, %c1_38, %c12_39] : memref<1x1x2x2x256xf32, #tpu.memory_space<vmem>>, vector<1x1x1x1x4xf32>
    %36 = vector.shape_cast %35 : vector<1x1x1x1x4xf32> to vector<1x4xf32>
    %37 = vector.shape_cast %34 : vector<1x4xf32> to vector<1x1x1x1x4xf32>
    tpu.vector_store %arg3[%c0_35, %c0_36, %c0_37, %c1_38, %c12_39], %37 {strides = array<i32>} : memref<1x1x2x2x256xf32, #tpu.memory_space<vmem>>, vector<1x1x1x1x4xf32>,
    %38 = vector.extract_strided_slice %1 {offsets = [4, 0], sizes = [1, 8], strides = [1, 1]} : vector<8x8xf32> to vector<1x8xf32>
    %39 = vector.extract_strided_slice %38 {offsets = [0, 0], sizes = [1, 4], strides = [1, 1]} : vector<1x8xf32> to vector<1x4xf32>
    %c0_40 = arith.constant 0 : index
    %c0_41 = arith.constant 0 : index
    %c1_42 = arith.constant 1 : index
    %c0_43 = arith.constant 0 : index
    %c0_44 = arith.constant 0 : index
    %40 = vector.load %arg3[%c0_40, %c0_41, %c1_42, %c0_43, %c0_44] : memref<1x1x2x2x256xf32, #tpu.memory_space<vmem>>, vector<1x1x1x1x4xf32>
    %41 = vector.shape_cast %40 : vector<1x1x1x1x4xf32> to vector<1x4xf32>
    %42 = vector.shape_cast %39 : vector<1x4xf32> to vector<1x1x1x1x4xf32>
    tpu.vector_store %arg3[%c0_40, %c0_41, %c1_42, %c0_43, %c0_44], %42 {strides = array<i32>} : memref<1x1x2x2x256xf32, #tpu.memory_space<vmem>>, vector<1x1x1x1x4xf32>,
    %43 = vector.extract_strided_slice %38 {offsets = [0, 4], sizes = [1, 4], strides = [1, 1]} : vector<1x8xf32> to vector<1x4xf32>
    %c0_45 = arith.constant 0 : index
    %c0_46 = arith.constant 0 : index
    %c1_47 = arith.constant 1 : index
    %c1_48 = arith.constant 1 : index
    %c0_49 = arith.constant 0 : index
    %44 = vector.load %arg3[%c0_45, %c0_46, %c1_47, %c1_48, %c0_49] : memref<1x1x2x2x256xf32, #tpu.memory_space<vmem>>, vector<1x1x1x1x4xf32>
    %45 = vector.shape_cast %44 : vector<1x1x1x1x4xf32> to vector<1x4xf32>
    %46 = vector.shape_cast %43 : vector<1x4xf32> to vector<1x1x1x1x4xf32>
    tpu.vector_store %arg3[%c0_45, %c0_46, %c1_47, %c1_48, %c0_49], %46 {strides = array<i32>} : memref<1x1x2x2x256xf32, #tpu.memory_space<vmem>>, vector<1x1x1x1x4xf32>,
    %47 = vector.extract_strided_slice %1 {offsets = [5, 0], sizes = [1, 8], strides = [1, 1]} : vector<8x8xf32> to vector<1x8xf32>
    %48 = vector.extract_strided_slice %47 {offsets = [0, 0], sizes = [1, 4], strides = [1, 1]} : vector<1x8xf32> to vector<1x4xf32>
    %c0_50 = arith.constant 0 : index
    %c0_51 = arith.constant 0 : index
    %c1_52 = arith.constant 1 : index
    %c0_53 = arith.constant 0 : index
    %c4_54 = arith.constant 4 : index
    %49 = vector.load %arg3[%c0_50, %c0_51, %c1_52, %c0_53, %c4_54] : memref<1x1x2x2x256xf32, #tpu.memory_space<vmem>>, vector<1x1x1x1x4xf32>
    %50 = vector.shape_cast %49 : vector<1x1x1x1x4xf32> to vector<1x4xf32>
    %51 = vector.shape_cast %48 : vector<1x4xf32> to vector<1x1x1x1x4xf32>
    tpu.vector_store %arg3[%c0_50, %c0_51, %c1_52, %c0_53, %c4_54], %51 {strides = array<i32>} : memref<1x1x2x2x256xf32, #tpu.memory_space<vmem>>, vector<1x1x1x1x4xf32>,
    %52 = vector.extract_strided_slice %47 {offsets = [0, 4], sizes = [1, 4], strides = [1, 1]} : vector<1x8xf32> to vector<1x4xf32>
    %c0_55 = arith.constant 0 : index
    %c0_56 = arith.constant 0 : index
    %c1_57 = arith.constant 1 : index
    %c1_58 = arith.constant 1 : index
    %c4_59 = arith.constant 4 : index
    %53 = vector.load %arg3[%c0_55, %c0_56, %c1_57, %c1_58, %c4_59] : memref<1x1x2x2x256xf32, #tpu.memory_space<vmem>>, vector<1x1x1x1x4xf32>
    %54 = vector.shape_cast %53 : vector<1x1x1x1x4xf32> to vector<1x4xf32>
    %55 = vector.shape_cast %52 : vector<1x4xf32> to vector<1x1x1x1x4xf32>
    tpu.vector_store %arg3[%c0_55, %c0_56, %c1_57, %c1_58, %c4_59], %55 {strides = array<i32>} : memref<1x1x2x2x256xf32, #tpu.memory_space<vmem>>, vector<1x1x1x1x4xf32>,
    %56 = vector.extract_strided_slice %1 {offsets = [6, 0], sizes = [1, 8], strides = [1, 1]} : vector<8x8xf32> to vector<1x8xf32>
    %57 = vector.extract_strided_slice %56 {offsets = [0, 0], sizes = [1, 4], strides = [1, 1]} : vector<1x8xf32> to vector<1x4xf32>
    %c0_60 = arith.constant 0 : index
    %c0_61 = arith.constant 0 : index
    %c1_62 = arith.constant 1 : index
    %c0_63 = arith.constant 0 : index
    %c8_64 = arith.constant 8 : index
    %58 = vector.load %arg3[%c0_60, %c0_61, %c1_62, %c0_63, %c8_64] : memref<1x1x2x2x256xf32, #tpu.memory_space<vmem>>, vector<1x1x1x1x4xf32>
    %59 = vector.shape_cast %58 : vector<1x1x1x1x4xf32> to vector<1x4xf32>
    %60 = vector.shape_cast %57 : vector<1x4xf32> to vector<1x1x1x1x4xf32>
    tpu.vector_store %arg3[%c0_60, %c0_61, %c1_62, %c0_63, %c8_64], %60 {strides = array<i32>} : memref<1x1x2x2x256xf32, #tpu.memory_space<vmem>>, vector<1x1x1x1x4xf32>,
    %61 = vector.extract_strided_slice %56 {offsets = [0, 4], sizes = [1, 4], strides = [1, 1]} : vector<1x8xf32> to vector<1x4xf32>
    %c0_65 = arith.constant 0 : index
    %c0_66 = arith.constant 0 : index
    %c1_67 = arith.constant 1 : index
    %c1_68 = arith.constant 1 : index
    %c8_69 = arith.constant 8 : index
    %62 = vector.load %arg3[%c0_65, %c0_66, %c1_67, %c1_68, %c8_69] : memref<1x1x2x2x256xf32, #tpu.memory_space<vmem>>, vector<1x1x1x1x4xf32>
    %63 = vector.shape_cast %62 : vector<1x1x1x1x4xf32> to vector<1x4xf32>
    %64 = vector.shape_cast %61 : vector<1x4xf32> to vector<1x1x1x1x4xf32>
    tpu.vector_store %arg3[%c0_65, %c0_66, %c1_67, %c1_68, %c8_69], %64 {strides = array<i32>} : memref<1x1x2x2x256xf32, #tpu.memory_space<vmem>>, vector<1x1x1x1x4xf32>,
    %65 = vector.extract_strided_slice %1 {offsets = [7, 0], sizes = [1, 8], strides = [1, 1]} : vector<8x8xf32> to vector<1x8xf32>
    %66 = vector.extract_strided_slice %65 {offsets = [0, 0], sizes = [1, 4], strides = [1, 1]} : vector<1x8xf32> to vector<1x4xf32>
    %c0_70 = arith.constant 0 : index
    %c0_71 = arith.constant 0 : index
    %c1_72 = arith.constant 1 : index
    %c0_73 = arith.constant 0 : index
    %c12_74 = arith.constant 12 : index
    %67 = vector.load %arg3[%c0_70, %c0_71, %c1_72, %c0_73, %c12_74] : memref<1x1x2x2x256xf32, #tpu.memory_space<vmem>>, vector<1x1x1x1x4xf32>
    %68 = vector.shape_cast %67 : vector<1x1x1x1x4xf32> to vector<1x4xf32>
    %69 = vector.shape_cast %66 : vector<1x4xf32> to vector<1x1x1x1x4xf32>
    tpu.vector_store %arg3[%c0_70, %c0_71, %c1_72, %c0_73, %c12_74], %69 {strides = array<i32>} : memref<1x1x2x2x256xf32, #tpu.memory_space<vmem>>, vector<1x1x1x1x4xf32>,
    %70 = vector.extract_strided_slice %65 {offsets = [0, 4], sizes = [1, 4], strides = [1, 1]} : vector<1x8xf32> to vector<1x4xf32>
    %c0_75 = arith.constant 0 : index
    %c0_76 = arith.constant 0 : index
    %c1_77 = arith.constant 1 : index
    %c1_78 = arith.constant 1 : index
    %c12_79 = arith.constant 12 : index
    %71 = vector.load %arg3[%c0_75, %c0_76, %c1_77, %c1_78, %c12_79] : memref<1x1x2x2x256xf32, #tpu.memory_space<vmem>>, vector<1x1x1x1x4xf32>
    %72 = vector.shape_cast %71 : vector<1x1x1x1x4xf32> to vector<1x4xf32>
    %73 = vector.shape_cast %70 : vector<1x4xf32> to vector<1x1x1x1x4xf32>
    tpu.vector_store %arg3[%c0_75, %c0_76, %c1_77, %c1_78, %c12_79], %73 {strides = array<i32>} : memref<1x1x2x2x256xf32, #tpu.memory_space<vmem>>, vector<1x1x1x1x4xf32>,
    %c0_80 = arith.constant 0 : index
    %c0_81 = arith.constant 0 : index
    %c1_82 = arith.constant 1 : index
    %c0_83 = arith.constant 0 : index
    %c0_84 = arith.constant 0 : index
    %74 = vector.load %arg2[%c0_80, %c0_81, %c1_82, %c0_83, %c0_84] : memref<1x4x4x8x8xf32, #tpu.memory_space<vmem>>, vector<1x1x1x8x8xf32>
    %75 = vector.shape_cast %74 : vector<1x1x1x8x8xf32> to vector<8x8xf32>
    %76 = vector.extract_strided_slice %75 {offsets = [0, 0], sizes = [1, 8], strides = [1, 1]} : vector<8x8xf32> to vector<1x8xf32>
    %77 = vector.extract_strided_slice %76 {offsets = [0, 0], sizes = [1, 4], strides = [1, 1]} : vector<1x8xf32> to vector<1x4xf32>
    %c0_85 = arith.constant 0 : index
    %c0_86 = arith.constant 0 : index
    %c0_87 = arith.constant 0 : index
    %c0_88 = arith.constant 0 : index
    %c16 = arith.constant 16 : index
    %78 = vector.load %arg3[%c0_85, %c0_86, %c0_87, %c0_88, %c16] : memref<1x1x2x2x256xf32, #tpu.memory_space<vmem>>, vector<1x1x1x1x4xf32>
    %79 = vector.shape_cast %78 : vector<1x1x1x1x4xf32> to vector<1x4xf32>
    %80 = vector.shape_cast %77 : vector<1x4xf32> to vector<1x1x1x1x4xf32>
    tpu.vector_store %arg3[%c0_85, %c0_86, %c0_87, %c0_88, %c16], %80 {strides = array<i32>} : memref<1x1x2x2x256xf32, #tpu.memory_space<vmem>>, vector<1x1x1x1x4xf32>,
    %81 = vector.extract_strided_slice %76 {offsets = [0, 4], sizes = [1, 4], strides = [1, 1]} : vector<1x8xf32> to vector<1x4xf32>
    %c0_89 = arith.constant 0 : index
    %c0_90 = arith.constant 0 : index
    %c0_91 = arith.constant 0 : index
    %c1_92 = arith.constant 1 : index
    %c16_93 = arith.constant 16 : index
    %82 = vector.load %arg3[%c0_89, %c0_90, %c0_91, %c1_92, %c16_93] : memref<1x1x2x2x256xf32, #tpu.memory_space<vmem>>, vector<1x1x1x1x4xf32>
    %83 = vector.shape_cast %82 : vector<1x1x1x1x4xf32> to vector<1x4xf32>
    %84 = vector.shape_cast %81 : vector<1x4xf32> to vector<1x1x1x1x4xf32>
    tpu.vector_store %arg3[%c0_89, %c0_90, %c0_91, %c1_92, %c16_93], %84 {strides = array<i32>} : memref<1x1x2x2x256xf32, #tpu.memory_space<vmem>>, vector<1x1x1x1x4xf32>,
    %85 = vector.extract_strided_slice %75 {offsets = [1, 0], sizes = [1, 8], strides = [1, 1]} : vector<8x8xf32> to vector<1x8xf32>
    %86 = vector.extract_strided_slice %85 {offsets = [0, 0], sizes = [1, 4], strides = [1, 1]} : vector<1x8xf32> to vector<1x4xf32>
    %c0_94 = arith.constant 0 : index
    %c0_95 = arith.constant 0 : index
    %c0_96 = arith.constant 0 : index
    %c0_97 = arith.constant 0 : index
    %c20 = arith.constant 20 : index
    %87 = vector.load %arg3[%c0_94, %c0_95, %c0_96, %c0_97, %c20] : memref<1x1x2x2x256xf32, #tpu.memory_space<vmem>>, vector<1x1x1x1x4xf32>
    %88 = vector.shape_cast %87 : vector<1x1x1x1x4xf32> to vector<1x4xf32>
    %89 = vector.shape_cast %86 : vector<1x4xf32> to vector<1x1x1x1x4xf32>
    tpu.vector_store %arg3[%c0_94, %c0_95, %c0_96, %c0_97, %c20], %89 {strides = array<i32>} : memref<1x1x2x2x256xf32, #tpu.memory_space<vmem>>, vector<1x1x1x1x4xf32>,
    %90 = vector.extract_strided_slice %85 {offsets = [0, 4], sizes = [1, 4], strides = [1, 1]} : vector<1x8xf32> to vector<1x4xf32>
    %c0_98 = arith.constant 0 : index
    %c0_99 = arith.constant 0 : index
    %c0_100 = arith.constant 0 : index
    %c1_101 = arith.constant 1 : index
    %c20_102 = arith.constant 20 : index
    %91 = vector.load %arg3[%c0_98, %c0_99, %c0_100, %c1_101, %c20_102] : memref<1x1x2x2x256xf32, #tpu.memory_space<vmem>>, vector<1x1x1x1x4xf32>
    %92 = vector.shape_cast %91 : vector<1x1x1x1x4xf32> to vector<1x4xf32>
    %93 = vector.shape_cast %90 : vector<1x4xf32> to vector<1x1x1x1x4xf32>
    tpu.vector_store %arg3[%c0_98, %c0_99, %c0_100, %c1_101, %c20_102], %93 {strides = array<i32>} : memref<1x1x2x2x256xf32, #tpu.memory_space<vmem>>, vector<1x1x1x1x4xf32>,
    %94 = vector.extract_strided_slice %75 {offsets = [2, 0], sizes = [1, 8], strides = [1, 1]} : vector<8x8xf32> to vector<1x8xf32>
    %95 = vector.extract_strided_slice %94 {offsets = [0, 0], sizes = [1, 4], strides = [1, 1]} : vector<1x8xf32> to vector<1x4xf32>
    %c0_103 = arith.constant 0 : index
    %c0_104 = arith.constant 0 : index
    %c0_105 = arith.constant 0 : index
    %c0_106 = arith.constant 0 : index
    %c24 = arith.constant 24 : index
    %96 = vector.load %arg3[%c0_103, %c0_104, %c0_105, %c0_106, %c24] : memref<1x1x2x2x256xf32, #tpu.memory_space<vmem>>, vector<1x1x1x1x4xf32>
    %97 = vector.shape_cast %96 : vector<1x1x1x1x4xf32> to vector<1x4xf32>
    %98 = vector.shape_cast %95 : vector<1x4xf32> to vector<1x1x1x1x4xf32>
    tpu.vector_store %arg3[%c0_103, %c0_104, %c0_105, %c0_106, %c24], %98 {strides = array<i32>} : memref<1x1x2x2x256xf32, #tpu.memory_space<vmem>>, vector<1x1x1x1x4xf32>,
    %99 = vector.extract_strided_slice %94 {offsets = [0, 4], sizes = [1, 4], strides = [1, 1]} : vector<1x8xf32> to vector<1x4xf32>
    %c0_107 = arith.constant 0 : index
    %c0_108 = arith.constant 0 : index
    %c0_109 = arith.constant 0 : index
    %c1_110 = arith.constant 1 : index
    %c24_111 = arith.constant 24 : index
    %100 = vector.load %arg3[%c0_107, %c0_108, %c0_109, %c1_110, %c24_111] : memref<1x1x2x2x256xf32, #tpu.memory_space<vmem>>, vector<1x1x1x1x4xf32>
    %101 = vector.shape_cast %100 : vector<1x1x1x1x4xf32> to vector<1x4xf32>
    %102 = vector.shape_cast %99 : vector<1x4xf32> to vector<1x1x1x1x4xf32>
    tpu.vector_store %arg3[%c0_107, %c0_108, %c0_109, %c1_110, %c24_111], %102 {strides = array<i32>} : memref<1x1x2x2x256xf32, #tpu.memory_space<vmem>>, vector<1x1x1x1x4xf32>,
    %103 = vector.extract_strided_slice %75 {offsets = [3, 0], sizes = [1, 8], strides = [1, 1]} : vector<8x8xf32> to vector<1x8xf32>
    %104 = vector.extract_strided_slice %103 {offsets = [0, 0], sizes = [1, 4], strides = [1, 1]} : vector<1x8xf32> to vector<1x4xf32>
    %c0_112 = arith.constant 0 : index
    %c0_113 = arith.constant 0 : index
    %c0_114 = arith.constant 0 : index
    %c0_115 = arith.constant 0 : index
    %c28 = arith.constant 28 : index
    %105 = vector.load %arg3[%c0_112, %c0_113, %c0_114, %c0_115, %c28] : memref<1x1x2x2x256xf32, #tpu.memory_space<vmem>>, vector<1x1x1x1x4xf32>
    %106 = vector.shape_cast %105 : vector<1x1x1x1x4xf32> to vector<1x4xf32>
    %107 = vector.shape_cast %104 : vector<1x4xf32> to vector<1x1x1x1x4xf32>
    tpu.vector_store %arg3[%c0_112, %c0_113, %c0_114, %c0_115, %c28], %107 {strides = array<i32>} : memref<1x1x2x2x256xf32, #tpu.memory_space<vmem>>, vector<1x1x1x1x4xf32>,
    %108 = vector.extract_strided_slice %103 {offsets = [0, 4], sizes = [1, 4], strides = [1, 1]} : vector<1x8xf32> to vector<1x4xf32>
    %c0_116 = arith.constant 0 : index
    %c0_117 = arith.constant 0 : index
    %c0_118 = arith.constant 0 : index
    %c1_119 = arith.constant 1 : index
    %c28_120 = arith.constant 28 : index
    %109 = vector.load %arg3[%c0_116, %c0_117, %c0_118, %c1_119, %c28_120] : memref<1x1x2x2x256xf32, #tpu.memory_space<vmem>>, vector<1x1x1x1x4xf32>
    %110 = vector.shape_cast %109 : vector<1x1x1x1x4xf32> to vector<1x4xf32>
    %111 = vector.shape_cast %108 : vector<1x4xf32> to vector<1x1x1x1x4xf32>
    tpu.vector_store %arg3[%c0_116, %c0_117, %c0_118, %c1_119, %c28_120], %111 {strides = array<i32>} : memref<1x1x2x2x256xf32, #tpu.memory_space<vmem>>, vector<1x1x1x1x4xf32>,
    %112 = vector.extract_strided_slice %75 {offsets = [4, 0], sizes = [1, 8], strides = [1, 1]} : vector<8x8xf32> to vector<1x8xf32>
    %113 = vector.extract_strided_slice %112 {offsets = [0, 0], sizes = [1, 4], strides = [1, 1]} : vector<1x8xf32> to vector<1x4xf32>
    %c0_121 = arith.constant 0 : index
    %c0_122 = arith.constant 0 : index
    %c1_123 = arith.constant 1 : index
    %c0_124 = arith.constant 0 : index
    %c16_125 = arith.constant 16 : index
    %114 = vector.load %arg3[%c0_121, %c0_122, %c1_123, %c0_124, %c16_125] : memref<1x1x2x2x256xf32, #tpu.memory_space<vmem>>, vector<1x1x1x1x4xf32>
    %115 = vector.shape_cast %114 : vector<1x1x1x1x4xf32> to vector<1x4xf32>
    %116 = vector.shape_cast %113 : vector<1x4xf32> to vector<1x1x1x1x4xf32>
    tpu.vector_store %arg3[%c0_121, %c0_122, %c1_123, %c0_124, %c16_125], %116 {strides = array<i32>} : memref<1x1x2x2x256xf32, #tpu.memory_space<vmem>>, vector<1x1x1x1x4xf32>,
    %117 = vector.extract_strided_slice %112 {offsets = [0, 4], sizes = [1, 4], strides = [1, 1]} : vector<1x8xf32> to vector<1x4xf32>
    %c0_126 = arith.constant 0 : index
    %c0_127 = arith.constant 0 : index
    %c1_128 = arith.constant 1 : index
    %c1_129 = arith.constant 1 : index
    %c16_130 = arith.constant 16 : index
    %118 = vector.load %arg3[%c0_126, %c0_127, %c1_128, %c1_129, %c16_130] : memref<1x1x2x2x256xf32, #tpu.memory_space<vmem>>, vector<1x1x1x1x4xf32>
    %119 = vector.shape_cast %118 : vector<1x1x1x1x4xf32> to vector<1x4xf32>
    %120 = vector.shape_cast %117 : vector<1x4xf32> to vector<1x1x1x1x4xf32>
    tpu.vector_store %arg3[%c0_126, %c0_127, %c1_128, %c1_129, %c16_130], %120 {strides = array<i32>} : memref<1x1x2x2x256xf32, #tpu.memory_space<vmem>>, vector<1x1x1x1x4xf32>,
    %121 = vector.extract_strided_slice %75 {offsets = [5, 0], sizes = [1, 8], strides = [1, 1]} : vector<8x8xf32> to vector<1x8xf32>
    %122 = vector.extract_strided_slice %121 {offsets = [0, 0], sizes = [1, 4], strides = [1, 1]} : vector<1x8xf32> to vector<1x4xf32>
    %c0_131 = arith.constant 0 : index
    %c0_132 = arith.constant 0 : index
    %c1_133 = arith.constant 1 : index
    %c0_134 = arith.constant 0 : index
    %c20_135 = arith.constant 20 : index
    %123 = vector.load %arg3[%c0_131, %c0_132, %c1_133, %c0_134, %c20_135] : memref<1x1x2x2x256xf32, #tpu.memory_space<vmem>>, vector<1x1x1x1x4xf32>
    %124 = vector.shape_cast %123 : vector<1x1x1x1x4xf32> to vector<1x4xf32>
    %125 = vector.shape_cast %122 : vector<1x4xf32> to vector<1x1x1x1x4xf32>
    tpu.vector_store %arg3[%c0_131, %c0_132, %c1_133, %c0_134, %c20_135], %125 {strides = array<i32>} : memref<1x1x2x2x256xf32, #tpu.memory_space<vmem>>, vector<1x1x1x1x4xf32>,
    %126 = vector.extract_strided_slice %121 {offsets = [0, 4], sizes = [1, 4], strides = [1, 1]} : vector<1x8xf32> to vector<1x4xf32>
    %c0_136 = arith.constant 0 : index
    %c0_137 = arith.constant 0 : index
    %c1_138 = arith.constant 1 : index
    %c1_139 = arith.constant 1 : index
    %c20_140 = arith.constant 20 : index
    %127 = vector.load %arg3[%c0_136, %c0_137, %c1_138, %c1_139, %c20_140] : memref<1x1x2x2x256xf32, #tpu.memory_space<vmem>>, vector<1x1x1x1x4xf32>
    %128 = vector.shape_cast %127 : vector<1x1x1x1x4xf32> to vector<1x4xf32>
    %129 = vector.shape_cast %126 : vector<1x4xf32> to vector<1x1x1x1x4xf32>
    tpu.vector_store %arg3[%c0_136, %c0_137, %c1_138, %c1_139, %c20_140], %129 {strides = array<i32>} : memref<1x1x2x2x256xf32, #tpu.memory_space<vmem>>, vector<1x1x1x1x4xf32>,
    %130 = vector.extract_strided_slice %75 {offsets = [6, 0], sizes = [1, 8], strides = [1, 1]} : vector<8x8xf32> to vector<1x8xf32>
    %131 = vector.extract_strided_slice %130 {offsets = [0, 0], sizes = [1, 4], strides = [1, 1]} : vector<1x8xf32> to vector<1x4xf32>
    %c0_141 = arith.constant 0 : index
    %c0_142 = arith.constant 0 : index
    %c1_143 = arith.constant 1 : index
    %c0_144 = arith.constant 0 : index
    %c24_145 = arith.constant 24 : index
    %132 = vector.load %arg3[%c0_141, %c0_142, %c1_143, %c0_144, %c24_145] : memref<1x1x2x2x256xf32, #tpu.memory_space<vmem>>, vector<1x1x1x1x4xf32>
    %133 = vector.shape_cast %132 : vector<1x1x1x1x4xf32> to vector<1x4xf32>
    %134 = vector.shape_cast %131 : vector<1x4xf32> to vector<1x1x1x1x4xf32>
    tpu.vector_store %arg3[%c0_141, %c0_142, %c1_143, %c0_144, %c24_145], %134 {strides = array<i32>} : memref<1x1x2x2x256xf32, #tpu.memory_space<vmem>>, vector<1x1x1x1x4xf32>,
    %135 = vector.extract_strided_slice %130 {offsets = [0, 4], sizes = [1, 4], strides = [1, 1]} : vector<1x8xf32> to vector<1x4xf32>
    %c0_146 = arith.constant 0 : index
    %c0_147 = arith.constant 0 : index
    %c1_148 = arith.constant 1 : index
    %c1_149 = arith.constant 1 : index
    %c24_150 = arith.constant 24 : index
    %136 = vector.load %arg3[%c0_146, %c0_147, %c1_148, %c1_149, %c24_150] : memref<1x1x2x2x256xf32, #tpu.memory_space<vmem>>, vector<1x1x1x1x4xf32>
    %137 = vector.shape_cast %136 : vector<1x1x1x1x4xf32> to vector<1x4xf32>
    %138 = vector.shape_cast %135 : vector<1x4xf32> to vector<1x1x1x1x4xf32>
    tpu.vector_store %arg3[%c0_146, %c0_147, %c1_148, %c1_149, %c24_150], %138 {strides = array<i32>} : memref<1x1x2x2x256xf32, #tpu.memory_space<vmem>>, vector<1x1x1x1x4xf32>,
    %139 = vector.extract_strided_slice %75 {offsets = [7, 0], sizes = [1, 8], strides = [1, 1]} : vector<8x8xf32> to vector<1x8xf32>
    %140 = vector.extract_strided_slice %139 {offsets = [0, 0], sizes = [1, 4], strides = [1, 1]} : vector<1x8xf32> to vector<1x4xf32>
    %c0_151 = arith.constant 0 : index
    %c0_152 = arith.constant 0 : index
    %c1_153 = arith.constant 1 : index
    %c0_154 = arith.constant 0 : index
    %c28_155 = arith.constant 28 : index
    %141 = vector.load %arg3[%c0_151, %c0_152, %c1_153, %c0_154, %c28_155] : memref<1x1x2x2x256xf32, #tpu.memory_space<vmem>>, vector<1x1x1x1x4xf32>
    %142 = vector.shape_cast %141 : vector<1x1x1x1x4xf32> to vector<1x4xf32>
    %143 = vector.shape_cast %140 : vector<1x4xf32> to vector<1x1x1x1x4xf32>
    tpu.vector_store %arg3[%c0_151, %c0_152, %c1_153, %c0_154, %c28_155], %143 {strides = array<i32>} : memref<1x1x2x2x256xf32, #tpu.memory_space<vmem>>, vector<1x1x1x1x4xf32>,
    %144 = vector.extract_strided_slice %139 {offsets = [0, 4], sizes = [1, 4], strides = [1, 1]} : vector<1x8xf32> to vector<1x4xf32>
    %c0_156 = arith.constant 0 : index
    %c0_157 = arith.constant 0 : index
    %c1_158 = arith.constant 1 : index
    %c1_159 = arith.constant 1 : index
    %c28_160 = arith.constant 28 : index
    %145 = vector.load %arg3[%c0_156, %c0_157, %c1_158, %c1_159, %c28_160] : memref<1x1x2x2x256xf32, #tpu.memory_space<vmem>>, vector<1x1x1x1x4xf32>
    %146 = vector.shape_cast %145 : vector<1x1x1x1x4xf32> to vector<1x4xf32>
    %147 = vector.shape_cast %144 : vector<1x4xf32> to vector<1x1x1x1x4xf32>
    tpu.vector_store %arg3[%c0_156, %c0_157, %c1_158, %c1_159, %c28_160], %147 {strides = array<i32>} : memref<1x1x2x2x256xf32, #tpu.memory_space<vmem>>, vector<1x1x1x1x4xf32>,
    %c0_161 = arith.constant 0 : index
    %c0_162 = arith.constant 0 : index
    %c2 = arith.constant 2 : index
    %c0_163 = arith.constant 0 : index
    %c0_164 = arith.constant 0 : index
    %148 = vector.load %arg2[%c0_161, %c0_162, %c2, %c0_163, %c0_164] : memref<1x4x4x8x8xf32, #tpu.memory_space<vmem>>, vector<1x1x1x8x8xf32>
    %149 = vector.shape_cast %148 : vector<1x1x1x8x8xf32> to vector<8x8xf32>
    %150 = vector.extract_strided_slice %149 {offsets = [0, 0], sizes = [1, 8], strides = [1, 1]} : vector<8x8xf32> to vector<1x8xf32>
    %151 = vector.extract_strided_slice %150 {offsets = [0, 0], sizes = [1, 4], strides = [1, 1]} : vector<1x8xf32> to vector<1x4xf32>
    %c0_165 = arith.constant 0 : index
    %c0_166 = arith.constant 0 : index
    %c0_167 = arith.constant 0 : index
    %c0_168 = arith.constant 0 : index
    %c32 = arith.constant 32 : index
    %152 = vector.load %arg3[%c0_165, %c0_166, %c0_167, %c0_168, %c32] : memref<1x1x2x2x256xf32, #tpu.memory_space<vmem>>, vector<1x1x1x1x4xf32>
    %153 = vector.shape_cast %152 : vector<1x1x1x1x4xf32> to vector<1x4xf32>
    %154 = vector.shape_cast %151 : vector<1x4xf32> to vector<1x1x1x1x4xf32>
    tpu.vector_store %arg3[%c0_165, %c0_166, %c0_167, %c0_168, %c32], %154 {strides = array<i32>} : memref<1x1x2x2x256xf32, #tpu.memory_space<vmem>>, vector<1x1x1x1x4xf32>,
    %155 = vector.extract_strided_slice %150 {offsets = [0, 4], sizes = [1, 4], strides = [1, 1]} : vector<1x8xf32> to vector<1x4xf32>
    %c0_169 = arith.constant 0 : index
    %c0_170 = arith.constant 0 : index
    %c0_171 = arith.constant 0 : index
    %c1_172 = arith.constant 1 : index
    %c32_173 = arith.constant 32 : index
    %156 = vector.load %arg3[%c0_169, %c0_170, %c0_171, %c1_172, %c32_173] : memref<1x1x2x2x256xf32, #tpu.memory_space<vmem>>, vector<1x1x1x1x4xf32>
    %157 = vector.shape_cast %156 : vector<1x1x1x1x4xf32> to vector<1x4xf32>
    %158 = vector.shape_cast %155 : vector<1x4xf32> to vector<1x1x1x1x4xf32>
    tpu.vector_store %arg3[%c0_169, %c0_170, %c0_171, %c1_172, %c32_173], %158 {strides = array<i32>} : memref<1x1x2x2x256xf32, #tpu.memory_space<vmem>>, vector<1x1x1x1x4xf32>,
    %159 = vector.extract_strided_slice %149 {offsets = [1, 0], sizes = [1, 8], strides = [1, 1]} : vector<8x8xf32> to vector<1x8xf32>
    %160 = vector.extract_strided_slice %159 {offsets = [0, 0], sizes = [1, 4], strides = [1, 1]} : vector<1x8xf32> to vector<1x4xf32>
    %c0_174 = arith.constant 0 : index
    %c0_175 = arith.constant 0 : index
    %c0_176 = arith.constant 0 : index
    %c0_177 = arith.constant 0 : index
    %c36 = arith.constant 36 : index
    %161 = vector.load %arg3[%c0_174, %c0_175, %c0_176, %c0_177, %c36] : memref<1x1x2x2x256xf32, #tpu.memory_space<vmem>>, vector<1x1x1x1x4xf32>
    %162 = vector.shape_cast %161 : vector<1x1x1x1x4xf32> to vector<1x4xf32>
    %163 = vector.shape_cast %160 : vector<1x4xf32> to vector<1x1x1x1x4xf32>
    tpu.vector_store %arg3[%c0_174, %c0_175, %c0_176, %c0_177, %c36], %163 {strides = array<i32>} : memref<1x1x2x2x256xf32, #tpu.memory_space<vmem>>, vector<1x1x1x1x4xf32>,
    %164 = vector.extract_strided_slice %159 {offsets = [0, 4], sizes = [1, 4], strides = [1, 1]} : vector<1x8xf32> to vector<1x4xf32>
    %c0_178 = arith.constant 0 : index
    %c0_179 = arith.constant 0 : index
    %c0_180 = arith.constant 0 : index
    %c1_181 = arith.constant 1 : index
    %c36_182 = arith.constant 36 : index
    %165 = vector.load %arg3[%c0_178, %c0_179, %c0_180, %c1_181, %c36_182] : memref<1x1x2x2x256xf32, #tpu.memory_space<vmem>>, vector<1x1x1x1x4xf32>
    %166 = vector.shape_cast %165 : vector<1x1x1x1x4xf32> to vector<1x4xf32>
    %167 = vector.shape_cast %164 : vector<1x4xf32> to vector<1x1x1x1x4xf32>
    tpu.vector_store %arg3[%c0_178, %c0_179, %c0_180, %c1_181, %c36_182], %167 {strides = array<i32>} : memref<1x1x2x2x256xf32, #tpu.memory_space<vmem>>, vector<1x1x1x1x4xf32>,
    %168 = vector.extract_strided_slice %149 {offsets = [2, 0], sizes = [1, 8], strides = [1, 1]} : vector<8x8xf32> to vector<1x8xf32>
    %169 = vector.extract_strided_slice %168 {offsets = [0, 0], sizes = [1, 4], strides = [1, 1]} : vector<1x8xf32> to vector<1x4xf32>
    %c0_183 = arith.constant 0 : index
    %c0_184 = arith.constant 0 : index
    %c0_185 = arith.constant 0 : index
    %c0_186 = arith.constant 0 : index
    %c40 = arith.constant 40 : index
    %170 = vector.load %arg3[%c0_183, %c0_184, %c0_185, %c0_186, %c40] : memref<1x1x2x2x256xf32, #tpu.memory_space<vmem>>, vector<1x1x1x1x4xf32>
    %171 = vector.shape_cast %170 : vector<1x1x1x1x4xf32> to vector<1x4xf32>
    %172 = vector.shape_cast %169 : vector<1x4xf32> to vector<1x1x1x1x4xf32>
    tpu.vector_store %arg3[%c0_183, %c0_184, %c0_185, %c0_186, %c40], %172 {strides = array<i32>} : memref<1x1x2x2x256xf32, #tpu.memory_space<vmem>>, vector<1x1x1x1x4xf32>,
    %173 = vector.extract_strided_slice %168 {offsets = [0, 4], sizes = [1, 4], strides = [1, 1]} : vector<1x8xf32> to vector<1x4xf32>
    %c0_187 = arith.constant 0 : index
    %c0_188 = arith.constant 0 : index
    %c0_189 = arith.constant 0 : index
    %c1_190 = arith.constant 1 : index
    %c40_191 = arith.constant 40 : index
    %174 = vector.load %arg3[%c0_187, %c0_188, %c0_189, %c1_190, %c40_191] : memref<1x1x2x2x256xf32, #tpu.memory_space<vmem>>, vector<1x1x1x1x4xf32>
    %175 = vector.shape_cast %174 : vector<1x1x1x1x4xf32> to vector<1x4xf32>
    %176 = vector.shape_cast %173 : vector<1x4xf32> to vector<1x1x1x1x4xf32>
    tpu.vector_store %arg3[%c0_187, %c0_188, %c0_189, %c1_190, %c40_191], %176 {strides = array<i32>} : memref<1x1x2x2x256xf32, #tpu.memory_space<vmem>>, vector<1x1x1x1x4xf32>,
    %177 = vector.extract_strided_slice %149 {offsets = [3, 0], sizes = [1, 8], strides = [1, 1]} : vector<8x8xf32> to vector<1x8xf32>
    %178 = vector.extract_strided_slice %177 {offsets = [0, 0], sizes = [1, 4], strides = [1, 1]} : vector<1x8xf32> to vector<1x4xf32>
    %c0_192 = arith.constant 0 : index
    %c0_193 = arith.constant 0 : index
    %c0_194 = arith.constant 0 : index
    %c0_195 = arith.constant 0 : index
    %c44 = arith.constant 44 : index
    %179 = vector.load %arg3[%c0_192, %c0_193, %c0_194, %c0_195, %c44] : memref<1x1x2x2x256xf32, #tpu.memory_space<vmem>>, vector<1x1x1x1x4xf32>
    %180 = vector.shape_cast %179 : vector<1x1x1x1x4xf32> to vector<1x4xf32>
    %181 = vector.shape_cast %178 : vector<1x4xf32> to vector<1x1x1x1x4xf32>
    tpu.vector_store %arg3[%c0_192, %c0_193, %c0_194, %c0_195, %c44], %181 {strides = array<i32>} : memref<1x1x2x2x256xf32, #tpu.memory_space<vmem>>, vector<1x1x1x1x4xf32>,
    %182 = vector.extract_strided_slice %177 {offsets = [0, 4], sizes = [1, 4], strides = [1, 1]} : vector<1x8xf32> to vector<1x4xf32>
    %c0_196 = arith.constant 0 : index
    %c0_197 = arith.constant 0 : index
    %c0_198 = arith.constant 0 : index
    %c1_199 = arith.constant 1 : index
    %c44_200 = arith.constant 44 : index
    %183 = vector.load %arg3[%c0_196, %c0_197, %c0_198, %c1_199, %c44_200] : memref<1x1x2x2x256xf32, #tpu.memory_space<vmem>>, vector<1x1x1x1x4xf32>
    %184 = vector.shape_cast %183 : vector<1x1x1x1x4xf32> to vector<1x4xf32>
    %185 = vector.shape_cast %182 : vector<1x4xf32> to vector<1x1x1x1x4xf32>
    tpu.vector_store %arg3[%c0_196, %c0_197, %c0_198, %c1_199, %c44_200], %185 {strides = array<i32>} : memref<1x1x2x2x256xf32, #tpu.memory_space<vmem>>, vector<1x1x1x1x4xf32>,
    %186 = vector.extract_strided_slice %149 {offsets = [4, 0], sizes = [1, 8], strides = [1, 1]} : vector<8x8xf32> to vector<1x8xf32>
    %187 = vector.extract_strided_slice %186 {offsets = [0, 0], sizes = [1, 4], strides = [1, 1]} : vector<1x8xf32> to vector<1x4xf32>
    %c0_201 = arith.constant 0 : index
    %c0_202 = arith.constant 0 : index
    %c1_203 = arith.constant 1 : index
    %c0_204 = arith.constant 0 : index
    %c32_205 = arith.constant 32 : index
    %188 = vector.load %arg3[%c0_201, %c0_202, %c1_203, %c0_204, %c32_205] : memref<1x1x2x2x256xf32, #tpu.memory_space<vmem>>, vector<1x1x1x1x4xf32>
    %189 = vector.shape_cast %188 : vector<1x1x1x1x4xf32> to vector<1x4xf32>
    %190 = vector.shape_cast %187 : vector<1x4xf32> to vector<1x1x1x1x4xf32>
    tpu.vector_store %arg3[%c0_201, %c0_202, %c1_203, %c0_204, %c32_205], %190 {strides = array<i32>} : memref<1x1x2x2x256xf32, #tpu.memory_space<vmem>>, vector<1x1x1x1x4xf32>,
    %191 = vector.extract_strided_slice %186 {offsets = [0, 4], sizes = [1, 4], strides = [1, 1]} : vector<1x8xf32> to vector<1x4xf32>
    %c0_206 = arith.constant 0 : index
    %c0_207 = arith.constant 0 : index
    %c1_208 = arith.constant 1 : index
    %c1_209 = arith.constant 1 : index
    %c32_210 = arith.constant 32 : index
    %192 = vector.load %arg3[%c0_206, %c0_207, %c1_208, %c1_209, %c32_210] : memref<1x1x2x2x256xf32, #tpu.memory_space<vmem>>, vector<1x1x1x1x4xf32>
    %193 = vector.shape_cast %192 : vector<1x1x1x1x4xf32> to vector<1x4xf32>
    %194 = vector.shape_cast %191 : vector<1x4xf32> to vector<1x1x1x1x4xf32>
    tpu.vector_store %arg3[%c0_206, %c0_207, %c1_208, %c1_209, %c32_210], %194 {strides = array<i32>} : memref<1x1x2x2x256xf32, #tpu.memory_space<vmem>>, vector<1x1x1x1x4xf32>,
    %195 = vector.extract_strided_slice %149 {offsets = [5, 0], sizes = [1, 8], strides = [1, 1]} : vector<8x8xf32> to vector<1x8xf32>
    %196 = vector.extract_strided_slice %195 {offsets = [0, 0], sizes = [1, 4], strides = [1, 1]} : vector<1x8xf32> to vector<1x4xf32>
    %c0_211 = arith.constant 0 : index
    %c0_212 = arith.constant 0 : index
    %c1_213 = arith.constant 1 : index
    %c0_214 = arith.constant 0 : index
    %c36_215 = arith.constant 36 : index
    %197 = vector.load %arg3[%c0_211, %c0_212, %c1_213, %c0_214, %c36_215] : memref<1x1x2x2x256xf32, #tpu.memory_space<vmem>>, vector<1x1x1x1x4xf32>
    %198 = vector.shape_cast %197 : vector<1x1x1x1x4xf32> to vector<1x4xf32>
    %199 = vector.shape_cast %196 : vector<1x4xf32> to vector<1x1x1x1x4xf32>
    tpu.vector_store %arg3[%c0_211, %c0_212, %c1_213, %c0_214, %c36_215], %199 {strides = array<i32>} : memref<1x1x2x2x256xf32, #tpu.memory_space<vmem>>, vector<1x1x1x1x4xf32>,
    %200 = vector.extract_strided_slice %195 {offsets = [0, 4], sizes = [1, 4], strides = [1, 1]} : vector<1x8xf32> to vector<1x4xf32>
    %c0_216 = arith.constant 0 : index
    %c0_217 = arith.constant 0 : index
    %c1_218 = arith.constant 1 : index
    %c1_219 = arith.constant 1 : index
    %c36_220 = arith.constant 36 : index
    %201 = vector.load %arg3[%c0_216, %c0_217, %c1_218, %c1_219, %c36_220] : memref<1x1x2x2x256xf32, #tpu.memory_space<vmem>>, vector<1x1x1x1x4xf32>
    %202 = vector.shape_cast %201 : vector<1x1x1x1x4xf32> to vector<1x4xf32>
    %203 = vector.shape_cast %200 : vector<1x4xf32> to vector<1x1x1x1x4xf32>
    tpu.vector_store %arg3[%c0_216, %c0_217, %c1_218, %c1_219, %c36_220], %203 {strides = array<i32>} : memref<1x1x2x2x256xf32, #tpu.memory_space<vmem>>, vector<1x1x1x1x4xf32>,
    %204 = vector.extract_strided_slice %149 {offsets = [6, 0], sizes = [1, 8], strides = [1, 1]} : vector<8x8xf32> to vector<1x8xf32>
    %205 = vector.extract_strided_slice %204 {offsets = [0, 0], sizes = [1, 4], strides = [1, 1]} : vector<1x8xf32> to vector<1x4xf32>
    %c0_221 = arith.constant 0 : index
    %c0_222 = arith.constant 0 : index
    %c1_223 = arith.constant 1 : index
    %c0_224 = arith.constant 0 : index
    %c40_225 = arith.constant 40 : index
    %206 = vector.load %arg3[%c0_221, %c0_222, %c1_223, %c0_224, %c40_225] : memref<1x1x2x2x256xf32, #tpu.memory_space<vmem>>, vector<1x1x1x1x4xf32>
    %207 = vector.shape_cast %206 : vector<1x1x1x1x4xf32> to vector<1x4xf32>
    %208 = vector.shape_cast %205 : vector<1x4xf32> to vector<1x1x1x1x4xf32>
    tpu.vector_store %arg3[%c0_221, %c0_222, %c1_223, %c0_224, %c40_225], %208 {strides = array<i32>} : memref<1x1x2x2x256xf32, #tpu.memory_space<vmem>>, vector<1x1x1x1x4xf32>,
    %209 = vector.extract_strided_slice %204 {offsets = [0, 4], sizes = [1, 4], strides = [1, 1]} : vector<1x8xf32> to vector<1x4xf32>
    %c0_226 = arith.constant 0 : index
    %c0_227 = arith.constant 0 : index
    %c1_228 = arith.constant 1 : index
    %c1_229 = arith.constant 1 : index
    %c40_230 = arith.constant 40 : index
    %210 = vector.load %arg3[%c0_226, %c0_227, %c1_228, %c1_229, %c40_230] : memref<1x1x2x2x256xf32, #tpu.memory_space<vmem>>, vector<1x1x1x1x4xf32>
    %211 = vector.shape_cast %210 : vector<1x1x1x1x4xf32> to vector<1x4xf32>
    %212 = vector.shape_cast %209 : vector<1x4xf32> to vector<1x1x1x1x4xf32>
    tpu.vector_store %arg3[%c0_226, %c0_227, %c1_228, %c1_229, %c40_230], %212 {strides = array<i32>} : memref<1x1x2x2x256xf32, #tpu.memory_space<vmem>>, vector<1x1x1x1x4xf32>,
    %213 = vector.extract_strided_slice %149 {offsets = [7, 0], sizes = [1, 8], strides = [1, 1]} : vector<8x8xf32> to vector<1x8xf32>
    %214 = vector.extract_strided_slice %213 {offsets = [0, 0], sizes = [1, 4], strides = [1, 1]} : vector<1x8xf32> to vector<1x4xf32>
    %c0_231 = arith.constant 0 : index
    %c0_232 = arith.constant 0 : index
    %c1_233 = arith.constant 1 : index
    %c0_234 = arith.constant 0 : index
    %c44_235 = arith.constant 44 : index
    %215 = vector.load %arg3[%c0_231, %c0_232, %c1_233, %c0_234, %c44_235] : memref<1x1x2x2x256xf32, #tpu.memory_space<vmem>>, vector<1x1x1x1x4xf32>
    %216 = vector.shape_cast %215 : vector<1x1x1x1x4xf32> to vector<1x4xf32>
    %217 = vector.shape_cast %214 : vector<1x4xf32> to vector<1x1x1x1x4xf32>
    tpu.vector_store %arg3[%c0_231, %c0_232, %c1_233, %c0_234, %c44_235], %217 {strides = array<i32>} : memref<1x1x2x2x256xf32, #tpu.memory_space<vmem>>, vector<1x1x1x1x4xf32>,
    %218 = vector.extract_strided_slice %213 {offsets = [0, 4], sizes = [1, 4], strides = [1, 1]} : vector<1x8xf32> to vector<1x4xf32>
    %c0_236 = arith.constant 0 : index
    %c0_237 = arith.constant 0 : index
    %c1_238 = arith.constant 1 : index
    %c1_239 = arith.constant 1 : index
    %c44_240 = arith.constant 44 : index
    %219 = vector.load %arg3[%c0_236, %c0_237, %c1_238, %c1_239, %c44_240] : memref<1x1x2x2x256xf32, #tpu.memory_space<vmem>>, vector<1x1x1x1x4xf32>
    %220 = vector.shape_cast %219 : vector<1x1x1x1x4xf32> to vector<1x4xf32>
    %221 = vector.shape_cast %218 : vector<1x4xf32> to vector<1x1x1x1x4xf32>
    tpu.vector_store %arg3[%c0_236, %c0_237, %c1_238, %c1_239, %c44_240], %221 {strides = array<i32>} : memref<1x1x2x2x256xf32, #tpu.memory_space<vmem>>, vector<1x1x1x1x4xf32>,
    %c0_241 = arith.constant 0 : index
    %c0_242 = arith.constant 0 : index
    %c3 = arith.constant 3 : index
    %c0_243 = arith.constant 0 : index
    %c0_244 = arith.constant 0 : index
    %222 = vector.load %arg2[%c0_241, %c0_242, %c3, %c0_243, %c0_244] : memref<1x4x4x8x8xf32, #tpu.memory_space<vmem>>, vector<1x1x1x8x8xf32>
    %223 = vector.shape_cast %222 : vector<1x1x1x8x8xf32> to vector<8x8xf32>
    %224 = vector.extract_strided_slice %223 {offsets = [0, 0], sizes = [1, 8], strides = [1, 1]} : vector<8x8xf32> to vector<1x8xf32>
    %225 = vector.extract_strided_slice %224 {offsets = [0, 0], sizes = [1, 4], strides = [1, 1]} : vector<1x8xf32> to vector<1x4xf32>
    %c0_245 = arith.constant 0 : index
    %c0_246 = arith.constant 0 : index
    %c0_247 = arith.constant 0 : index
    %c0_248 = arith.constant 0 : index
    %c48 = arith.constant 48 : index
    %226 = vector.load %arg3[%c0_245, %c0_246, %c0_247, %c0_248, %c48] : memref<1x1x2x2x256xf32, #tpu.memory_space<vmem>>, vector<1x1x1x1x4xf32>
    %227 = vector.shape_cast %226 : vector<1x1x1x1x4xf32> to vector<1x4xf32>
    %228 = vector.shape_cast %225 : vector<1x4xf32> to vector<1x1x1x1x4xf32>
    tpu.vector_store %arg3[%c0_245, %c0_246, %c0_247, %c0_248, %c48], %228 {strides = array<i32>} : memref<1x1x2x2x256xf32, #tpu.memory_space<vmem>>, vector<1x1x1x1x4xf32>,
    %229 = vector.extract_strided_slice %224 {offsets = [0, 4], sizes = [1, 4], strides = [1, 1]} : vector<1x8xf32> to vector<1x4xf32>
    %c0_249 = arith.constant 0 : index
    %c0_250 = arith.constant 0 : index
    %c0_251 = arith.constant 0 : index
    %c1_252 = arith.constant 1 : index
    %c48_253 = arith.constant 48 : index
    %230 = vector.load %arg3[%c0_249, %c0_250, %c0_251, %c1_252, %c48_253] : memref<1x1x2x2x256xf32, #tpu.memory_space<vmem>>, vector<1x1x1x1x4xf32>
    %231 = vector.shape_cast %230 : vector<1x1x1x1x4xf32> to vector<1x4xf32>
    %232 = vector.shape_cast %229 : vector<1x4xf32> to vector<1x1x1x1x4xf32>
    tpu.vector_store %arg3[%c0_249, %c0_250, %c0_251, %c1_252, %c48_253], %232 {strides = array<i32>} : memref<1x1x2x2x256xf32, #tpu.memory_space<vmem>>, vector<1x1x1x1x4xf32>,
    %233 = vector.extract_strided_slice %223 {offsets = [1, 0], sizes = [1, 8], strides = [1, 1]} : vector<8x8xf32> to vector<1x8xf32>
    %234 = vector.extract_strided_slice %233 {offsets = [0, 0], sizes = [1, 4], strides = [1, 1]} : vector<1x8xf32> to vector<1x4xf32>
    %c0_254 = arith.constant 0 : index
    %c0_255 = arith.constant 0 : index
    %c0_256 = arith.constant 0 : index
    %c0_257 = arith.constant 0 : index
    %c52 = arith.constant 52 : index
    %235 = vector.load %arg3[%c0_254, %c0_255, %c0_256, %c0_257, %c52] : memref<1x1x2x2x256xf32, #tpu.memory_space<vmem>>, vector<1x1x1x1x4xf32>
    %236 = vector.shape_cast %235 : vector<1x1x1x1x4xf32> to vector<1x4xf32>
    %237 = vector.shape_cast %234 : vector<1x4xf32> to vector<1x1x1x1x4xf32>
    tpu.vector_store %arg3[%c0_254, %c0_255, %c0_256, %c0_257, %c52], %237 {strides = array<i32>} : memref<1x1x2x2x256xf32, #tpu.memory_space<vmem>>, vector<1x1x1x1x4xf32>,
    %238 = vector.extract_strided_slice %233 {offsets = [0, 4], sizes = [1, 4], strides = [1, 1]} : vector<1x8xf32> to vector<1x4xf32>
    %c0_258 = arith.constant 0 : index
    %c0_259 = arith.constant 0 : index
    %c0_260 = arith.constant 0 : index
    %c1_261 = arith.constant 1 : index
    %c52_262 = arith.constant 52 : index
    %239 = vector.load %arg3[%c0_258, %c0_259, %c0_260, %c1_261, %c52_262] : memref<1x1x2x2x256xf32, #tpu.memory_space<vmem>>, vector<1x1x1x1x4xf32>
    %240 = vector.shape_cast %239 : vector<1x1x1x1x4xf32> to vector<1x4xf32>
    %241 = vector.shape_cast %238 : vector<1x4xf32> to vector<1x1x1x1x4xf32>
    tpu.vector_store %arg3[%c0_258, %c0_259, %c0_260, %c1_261, %c52_262], %241 {strides = array<i32>} : memref<1x1x2x2x256xf32, #tpu.memory_space<vmem>>, vector<1x1x1x1x4xf32>,
    %242 = vector.extract_strided_slice %223 {offsets = [2, 0], sizes = [1, 8], strides = [1, 1]} : vector<8x8xf32> to vector<1x8xf32>
    %243 = vector.extract_strided_slice %242 {offsets = [0, 0], sizes = [1, 4], strides = [1, 1]} : vector<1x8xf32> to vector<1x4xf32>
    %c0_263 = arith.constant 0 : index
    %c0_264 = arith.constant 0 : index
    %c0_265 = arith.constant 0 : index
    %c0_266 = arith.constant 0 : index
    %c56 = arith.constant 56 : index
    %244 = vector.load %arg3[%c0_263, %c0_264, %c0_265, %c0_266, %c56] : memref<1x1x2x2x256xf32, #tpu.memory_space<vmem>>, vector<1x1x1x1x4xf32>
    %245 = vector.shape_cast %244 : vector<1x1x1x1x4xf32> to vector<1x4xf32>
    %246 = vector.shape_cast %243 : vector<1x4xf32> to vector<1x1x1x1x4xf32>
    tpu.vector_store %arg3[%c0_263, %c0_264, %c0_265, %c0_266, %c56], %246 {strides = array<i32>} : memref<1x1x2x2x256xf32, #tpu.memory_space<vmem>>, vector<1x1x1x1x4xf32>,
    %247 = vector.extract_strided_slice %242 {offsets = [0, 4], sizes = [1, 4], strides = [1, 1]} : vector<1x8xf32> to vector<1x4xf32>
    %c0_267 = arith.constant 0 : index
    %c0_268 = arith.constant 0 : index
    %c0_269 = arith.constant 0 : index
    %c1_270 = arith.constant 1 : index
    %c56_271 = arith.constant 56 : index
    %248 = vector.load %arg3[%c0_267, %c0_268, %c0_269, %c1_270, %c56_271] : memref<1x1x2x2x256xf32, #tpu.memory_space<vmem>>, vector<1x1x1x1x4xf32>
    %249 = vector.shape_cast %248 : vector<1x1x1x1x4xf32> to vector<1x4xf32>
    %250 = vector.shape_cast %247 : vector<1x4xf32> to vector<1x1x1x1x4xf32>
    tpu.vector_store %arg3[%c0_267, %c0_268, %c0_269, %c1_270, %c56_271], %250 {strides = array<i32>} : memref<1x1x2x2x256xf32, #tpu.memory_space<vmem>>, vector<1x1x1x1x4xf32>,
    %251 = vector.extract_strided_slice %223 {offsets = [3, 0], sizes = [1, 8], strides = [1, 1]} : vector<8x8xf32> to vector<1x8xf32>
    %252 = vector.extract_strided_slice %251 {offsets = [0, 0], sizes = [1, 4], strides = [1, 1]} : vector<1x8xf32> to vector<1x4xf32>
    %c0_272 = arith.constant 0 : index
    %c0_273 = arith.constant 0 : index
    %c0_274 = arith.constant 0 : index
    %c0_275 = arith.constant 0 : index
    %c60 = arith.constant 60 : index
    %253 = vector.load %arg3[%c0_272, %c0_273, %c0_274, %c0_275, %c60] : memref<1x1x2x2x256xf32, #tpu.memory_space<vmem>>, vector<1x1x1x1x4xf32>
    %254 = vector.shape_cast %253 : vector<1x1x1x1x4xf32> to vector<1x4xf32>
    %255 = vector.shape_cast %252 : vector<1x4xf32> to vector<1x1x1x1x4xf32>
    tpu.vector_store %arg3[%c0_272, %c0_273, %c0_274, %c0_275, %c60], %255 {strides = array<i32>} : memref<1x1x2x2x256xf32, #tpu.memory_space<vmem>>, vector<1x1x1x1x4xf32>,
    %256 = vector.extract_strided_slice %251 {offsets = [0, 4], sizes = [1, 4], strides = [1, 1]} : vector<1x8xf32> to vector<1x4xf32>
    %c0_276 = arith.constant 0 : index
    %c0_277 = arith.constant 0 : index
    %c0_278 = arith.constant 0 : index
    %c1_279 = arith.constant 1 : index
    %c60_280 = arith.constant 60 : index
    %257 = vector.load %arg3[%c0_276, %c0_277, %c0_278, %c1_279, %c60_280] : memref<1x1x2x2x256xf32, #tpu.memory_space<vmem>>, vector<1x1x1x1x4xf32>
    %258 = vector.shape_cast %257 : vector<1x1x1x1x4xf32> to vector<1x4xf32>
    %259 = vector.shape_cast %256 : vector<1x4xf32> to vector<1x1x1x1x4xf32>
    tpu.vector_store %arg3[%c0_276, %c0_277, %c0_278, %c1_279, %c60_280], %259 {strides = array<i32>} : memref<1x1x2x2x256xf32, #tpu.memory_space<vmem>>, vector<1x1x1x1x4xf32>,
    %260 = vector.extract_strided_slice %223 {offsets = [4, 0], sizes = [1, 8], strides = [1, 1]} : vector<8x8xf32> to vector<1x8xf32>
    %261 = vector.extract_strided_slice %260 {offsets = [0, 0], sizes = [1, 4], strides = [1, 1]} : vector<1x8xf32> to vector<1x4xf32>
    %c0_281 = arith.constant 0 : index
    %c0_282 = arith.constant 0 : index
    %c1_283 = arith.constant 1 : index
    %c0_284 = arith.constant 0 : index
    %c48_285 = arith.constant 48 : index
    %262 = vector.load %arg3[%c0_281, %c0_282, %c1_283, %c0_284, %c48_285] : memref<1x1x2x2x256xf32, #tpu.memory_space<vmem>>, vector<1x1x1x1x4xf32>
    %263 = vector.shape_cast %262 : vector<1x1x1x1x4xf32> to vector<1x4xf32>
    %264 = vector.shape_cast %261 : vector<1x4xf32> to vector<1x1x1x1x4xf32>
    tpu.vector_store %arg3[%c0_281, %c0_282, %c1_283, %c0_284, %c48_285], %264 {strides = array<i32>} : memref<1x1x2x2x256xf32, #tpu.memory_space<vmem>>, vector<1x1x1x1x4xf32>,
    %265 = vector.extract_strided_slice %260 {offsets = [0, 4], sizes = [1, 4], strides = [1, 1]} : vector<1x8xf32> to vector<1x4xf32>
    %c0_286 = arith.constant 0 : index
    %c0_287 = arith.constant 0 : index
    %c1_288 = arith.constant 1 : index
    %c1_289 = arith.constant 1 : index
    %c48_290 = arith.constant 48 : index
    %266 = vector.load %arg3[%c0_286, %c0_287, %c1_288, %c1_289, %c48_290] : memref<1x1x2x2x256xf32, #tpu.memory_space<vmem>>, vector<1x1x1x1x4xf32>
    %267 = vector.shape_cast %266 : vector<1x1x1x1x4xf32> to vector<1x4xf32>
    %268 = vector.shape_cast %265 : vector<1x4xf32> to vector<1x1x1x1x4xf32>
    tpu.vector_store %arg3[%c0_286, %c0_287, %c1_288, %c1_289, %c48_290], %268 {strides = array<i32>} : memref<1x1x2x2x256xf32, #tpu.memory_space<vmem>>, vector<1x1x1x1x4xf32>,
    %269 = vector.extract_strided_slice %223 {offsets = [5, 0], sizes = [1, 8], strides = [1, 1]} : vector<8x8xf32> to vector<1x8xf32>
    %270 = vector.extract_strided_slice %269 {offsets = [0, 0], sizes = [1, 4], strides = [1, 1]} : vector<1x8xf32> to vector<1x4xf32>
    %c0_291 = arith.constant 0 : index
    %c0_292 = arith.constant 0 : index
    %c1_293 = arith.constant 1 : index
    %c0_294 = arith.constant 0 : index
    %c52_295 = arith.constant 52 : index
    %271 = vector.load %arg3[%c0_291, %c0_292, %c1_293, %c0_294, %c52_295] : memref<1x1x2x2x256xf32, #tpu.memory_space<vmem>>, vector<1x1x1x1x4xf32>
    %272 = vector.shape_cast %271 : vector<1x1x1x1x4xf32> to vector<1x4xf32>
    %273 = vector.shape_cast %270 : vector<1x4xf32> to vector<1x1x1x1x4xf32>
    tpu.vector_store %arg3[%c0_291, %c0_292, %c1_293, %c0_294, %c52_295], %273 {strides = array<i32>} : memref<1x1x2x2x256xf32, #tpu.memory_space<vmem>>, vector<1x1x1x1x4xf32>,
    %274 = vector.extract_strided_slice %269 {offsets = [0, 4], sizes = [1, 4], strides = [1, 1]} : vector<1x8xf32> to vector<1x4xf32>
    %c0_296 = arith.constant 0 : index
    %c0_297 = arith.constant 0 : index
    %c1_298 = arith.constant 1 : index
    %c1_299 = arith.constant 1 : index
    %c52_300 = arith.constant 52 : index
    %275 = vector.load %arg3[%c0_296, %c0_297, %c1_298, %c1_299, %c52_300] : memref<1x1x2x2x256xf32, #tpu.memory_space<vmem>>, vector<1x1x1x1x4xf32>
    %276 = vector.shape_cast %275 : vector<1x1x1x1x4xf32> to vector<1x4xf32>
    %277 = vector.shape_cast %274 : vector<1x4xf32> to vector<1x1x1x1x4xf32>
    tpu.vector_store %arg3[%c0_296, %c0_297, %c1_298, %c1_299, %c52_300], %277 {strides = array<i32>} : memref<1x1x2x2x256xf32, #tpu.memory_space<vmem>>, vector<1x1x1x1x4xf32>,
    %278 = vector.extract_strided_slice %223 {offsets = [6, 0], sizes = [1, 8], strides = [1, 1]} : vector<8x8xf32> to vector<1x8xf32>
    %279 = vector.extract_strided_slice %278 {offsets = [0, 0], sizes = [1, 4], strides = [1, 1]} : vector<1x8xf32> to vector<1x4xf32>
    %c0_301 = arith.constant 0 : index
    %c0_302 = arith.constant 0 : index
    %c1_303 = arith.constant 1 : index
    %c0_304 = arith.constant 0 : index
    %c56_305 = arith.constant 56 : index
    %280 = vector.load %arg3[%c0_301, %c0_302, %c1_303, %c0_304, %c56_305] : memref<1x1x2x2x256xf32, #tpu.memory_space<vmem>>, vector<1x1x1x1x4xf32>
    %281 = vector.shape_cast %280 : vector<1x1x1x1x4xf32> to vector<1x4xf32>
    %282 = vector.shape_cast %279 : vector<1x4xf32> to vector<1x1x1x1x4xf32>
    tpu.vector_store %arg3[%c0_301, %c0_302, %c1_303, %c0_304, %c56_305], %282 {strides = array<i32>} : memref<1x1x2x2x256xf32, #tpu.memory_space<vmem>>, vector<1x1x1x1x4xf32>,
    %283 = vector.extract_strided_slice %278 {offsets = [0, 4], sizes = [1, 4], strides = [1, 1]} : vector<1x8xf32> to vector<1x4xf32>
    %c0_306 = arith.constant 0 : index
    %c0_307 = arith.constant 0 : index
    %c1_308 = arith.constant 1 : index
    %c1_309 = arith.constant 1 : index
    %c56_310 = arith.constant 56 : index
    %284 = vector.load %arg3[%c0_306, %c0_307, %c1_308, %c1_309, %c56_310] : memref<1x1x2x2x256xf32, #tpu.memory_space<vmem>>, vector<1x1x1x1x4xf32>
    %285 = vector.shape_cast %284 : vector<1x1x1x1x4xf32> to vector<1x4xf32>
    %286 = vector.shape_cast %283 : vector<1x4xf32> to vector<1x1x1x1x4xf32>
    tpu.vector_store %arg3[%c0_306, %c0_307, %c1_308, %c1_309, %c56_310], %286 {strides = array<i32>} : memref<1x1x2x2x256xf32, #tpu.memory_space<vmem>>, vector<1x1x1x1x4xf32>,
    %287 = vector.extract_strided_slice %223 {offsets = [7, 0], sizes = [1, 8], strides = [1, 1]} : vector<8x8xf32> to vector<1x8xf32>
    %288 = vector.extract_strided_slice %287 {offsets = [0, 0], sizes = [1, 4], strides = [1, 1]} : vector<1x8xf32> to vector<1x4xf32>
    %c0_311 = arith.constant 0 : index
    %c0_312 = arith.constant 0 : index
    %c1_313 = arith.constant 1 : index
    %c0_314 = arith.constant 0 : index
    %c60_315 = arith.constant 60 : index
    %289 = vector.load %arg3[%c0_311, %c0_312, %c1_313, %c0_314, %c60_315] : memref<1x1x2x2x256xf32, #tpu.memory_space<vmem>>, vector<1x1x1x1x4xf32>
    %290 = vector.shape_cast %289 : vector<1x1x1x1x4xf32> to vector<1x4xf32>
    %291 = vector.shape_cast %288 : vector<1x4xf32> to vector<1x1x1x1x4xf32>
    tpu.vector_store %arg3[%c0_311, %c0_312, %c1_313, %c0_314, %c60_315], %291 {strides = array<i32>} : memref<1x1x2x2x256xf32, #tpu.memory_space<vmem>>, vector<1x1x1x1x4xf32>,
    %292 = vector.extract_strided_slice %287 {offsets = [0, 4], sizes = [1, 4], strides = [1, 1]} : vector<1x8xf32> to vector<1x4xf32>
    %c0_316 = arith.constant 0 : index
    %c0_317 = arith.constant 0 : index
    %c1_318 = arith.constant 1 : index
    %c1_319 = arith.constant 1 : index
    %c60_320 = arith.constant 60 : index
    %293 = vector.load %arg3[%c0_316, %c0_317, %c1_318, %c1_319, %c60_320] : memref<1x1x2x2x256xf32, #tpu.memory_space<vmem>>, vector<1x1x1x1x4xf32>
    %294 = vector.shape_cast %293 : vector<1x1x1x1x4xf32> to vector<1x4xf32>
    %295 = vector.shape_cast %292 : vector<1x4xf32> to vector<1x1x1x1x4xf32>
    tpu.vector_store %arg3[%c0_316, %c0_317, %c1_318, %c1_319, %c60_320], %295 {strides = array<i32>} : memref<1x1x2x2x256xf32, #tpu.memory_space<vmem>>, vector<1x1x1x1x4xf32>,
    %c0_321 = arith.constant 0 : index
    %c1_322 = arith.constant 1 : index
    %c0_323 = arith.constant 0 : index
    %c0_324 = arith.constant 0 : index
    %c0_325 = arith.constant 0 : index
    %296 = vector.load %arg2[%c0_321, %c1_322, %c0_323, %c0_324, %c0_325] : memref<1x4x4x8x8xf32, #tpu.memory_space<vmem>>, vector<1x1x1x8x8xf32>
    %297 = vector.shape_cast %296 : vector<1x1x1x8x8xf32> to vector<8x8xf32>
    %298 = vector.extract_strided_slice %297 {offsets = [0, 0], sizes = [1, 8], strides = [1, 1]} : vector<8x8xf32> to vector<1x8xf32>
    %299 = vector.extract_strided_slice %298 {offsets = [0, 0], sizes = [1, 4], strides = [1, 1]} : vector<1x8xf32> to vector<1x4xf32>
    %c0_326 = arith.constant 0 : index
    %c0_327 = arith.constant 0 : index
    %c0_328 = arith.constant 0 : index
    %c0_329 = arith.constant 0 : index
    %c64 = arith.constant 64 : index
    %300 = vector.load %arg3[%c0_326, %c0_327, %c0_328, %c0_329, %c64] : memref<1x1x2x2x256xf32, #tpu.memory_space<vmem>>, vector<1x1x1x1x4xf32>
    %301 = vector.shape_cast %300 : vector<1x1x1x1x4xf32> to vector<1x4xf32>
    %302 = vector.shape_cast %299 : vector<1x4xf32> to vector<1x1x1x1x4xf32>
    tpu.vector_store %arg3[%c0_326, %c0_327, %c0_328, %c0_329, %c64], %302 {strides = array<i32>} : memref<1x1x2x2x256xf32, #tpu.memory_space<vmem>>, vector<1x1x1x1x4xf32>,
    %303 = vector.extract_strided_slice %298 {offsets = [0, 4], sizes = [1, 4], strides = [1, 1]} : vector<1x8xf32> to vector<1x4xf32>
    %c0_330 = arith.constant 0 : index
    %c0_331 = arith.constant 0 : index
    %c0_332 = arith.constant 0 : index
    %c1_333 = arith.constant 1 : index
    %c64_334 = arith.constant 64 : index
    %304 = vector.load %arg3[%c0_330, %c0_331, %c0_332, %c1_333, %c64_334] : memref<1x1x2x2x256xf32, #tpu.memory_space<vmem>>, vector<1x1x1x1x4xf32>
    %305 = vector.shape_cast %304 : vector<1x1x1x1x4xf32> to vector<1x4xf32>
    %306 = vector.shape_cast %303 : vector<1x4xf32> to vector<1x1x1x1x4xf32>
    tpu.vector_store %arg3[%c0_330, %c0_331, %c0_332, %c1_333, %c64_334], %306 {strides = array<i32>} : memref<1x1x2x2x256xf32, #tpu.memory_space<vmem>>, vector<1x1x1x1x4xf32>,
    %307 = vector.extract_strided_slice %297 {offsets = [1, 0], sizes = [1, 8], strides = [1, 1]} : vector<8x8xf32> to vector<1x8xf32>
    %308 = vector.extract_strided_slice %307 {offsets = [0, 0], sizes = [1, 4], strides = [1, 1]} : vector<1x8xf32> to vector<1x4xf32>
    %c0_335 = arith.constant 0 : index
    %c0_336 = arith.constant 0 : index
    %c0_337 = arith.constant 0 : index
    %c0_338 = arith.constant 0 : index
    %c68 = arith.constant 68 : index
    %309 = vector.load %arg3[%c0_335, %c0_336, %c0_337, %c0_338, %c68] : memref<1x1x2x2x256xf32, #tpu.memory_space<vmem>>, vector<1x1x1x1x4xf32>
    %310 = vector.shape_cast %309 : vector<1x1x1x1x4xf32> to vector<1x4xf32>
    %311 = vector.shape_cast %308 : vector<1x4xf32> to vector<1x1x1x1x4xf32>
    tpu.vector_store %arg3[%c0_335, %c0_336, %c0_337, %c0_338, %c68], %311 {strides = array<i32>} : memref<1x1x2x2x256xf32, #tpu.memory_space<vmem>>, vector<1x1x1x1x4xf32>,
    %312 = vector.extract_strided_slice %307 {offsets = [0, 4], sizes = [1, 4], strides = [1, 1]} : vector<1x8xf32> to vector<1x4xf32>
    %c0_339 = arith.constant 0 : index
    %c0_340 = arith.constant 0 : index
    %c0_341 = arith.constant 0 : index
    %c1_342 = arith.constant 1 : index
    %c68_343 = arith.constant 68 : index
    %313 = vector.load %arg3[%c0_339, %c0_340, %c0_341, %c1_342, %c68_343] : memref<1x1x2x2x256xf32, #tpu.memory_space<vmem>>, vector<1x1x1x1x4xf32>
    %314 = vector.shape_cast %313 : vector<1x1x1x1x4xf32> to vector<1x4xf32>
    %315 = vector.shape_cast %312 : vector<1x4xf32> to vector<1x1x1x1x4xf32>
    tpu.vector_store %arg3[%c0_339, %c0_340, %c0_341, %c1_342, %c68_343], %315 {strides = array<i32>} : memref<1x1x2x2x256xf32, #tpu.memory_space<vmem>>, vector<1x1x1x1x4xf32>,
    %316 = vector.extract_strided_slice %297 {offsets = [2, 0], sizes = [1, 8], strides = [1, 1]} : vector<8x8xf32> to vector<1x8xf32>
    %317 = vector.extract_strided_slice %316 {offsets = [0, 0], sizes = [1, 4], strides = [1, 1]} : vector<1x8xf32> to vector<1x4xf32>
    %c0_344 = arith.constant 0 : index
    %c0_345 = arith.constant 0 : index
    %c0_346 = arith.constant 0 : index
    %c0_347 = arith.constant 0 : index
    %c72 = arith.constant 72 : index
    %318 = vector.load %arg3[%c0_344, %c0_345, %c0_346, %c0_347, %c72] : memref<1x1x2x2x256xf32, #tpu.memory_space<vmem>>, vector<1x1x1x1x4xf32>
    %319 = vector.shape_cast %318 : vector<1x1x1x1x4xf32> to vector<1x4xf32>
    %320 = vector.shape_cast %317 : vector<1x4xf32> to vector<1x1x1x1x4xf32>
    tpu.vector_store %arg3[%c0_344, %c0_345, %c0_346, %c0_347, %c72], %320 {strides = array<i32>} : memref<1x1x2x2x256xf32, #tpu.memory_space<vmem>>, vector<1x1x1x1x4xf32>,
    %321 = vector.extract_strided_slice %316 {offsets = [0, 4], sizes = [1, 4], strides = [1, 1]} : vector<1x8xf32> to vector<1x4xf32>
    %c0_348 = arith.constant 0 : index
    %c0_349 = arith.constant 0 : index
    %c0_350 = arith.constant 0 : index
    %c1_351 = arith.constant 1 : index
    %c72_352 = arith.constant 72 : index
    %322 = vector.load %arg3[%c0_348, %c0_349, %c0_350, %c1_351, %c72_352] : memref<1x1x2x2x256xf32, #tpu.memory_space<vmem>>, vector<1x1x1x1x4xf32>
    %323 = vector.shape_cast %322 : vector<1x1x1x1x4xf32> to vector<1x4xf32>
    %324 = vector.shape_cast %321 : vector<1x4xf32> to vector<1x1x1x1x4xf32>
    tpu.vector_store %arg3[%c0_348, %c0_349, %c0_350, %c1_351, %c72_352], %324 {strides = array<i32>} : memref<1x1x2x2x256xf32, #tpu.memory_space<vmem>>, vector<1x1x1x1x4xf32>,
    %325 = vector.extract_strided_slice %297 {offsets = [3, 0], sizes = [1, 8], strides = [1, 1]} : vector<8x8xf32> to vector<1x8xf32>
    %326 = vector.extract_strided_slice %325 {offsets = [0, 0], sizes = [1, 4], strides = [1, 1]} : vector<1x8xf32> to vector<1x4xf32>
    %c0_353 = arith.constant 0 : index
    %c0_354 = arith.constant 0 : index
    %c0_355 = arith.constant 0 : index
    %c0_356 = arith.constant 0 : index
    %c76 = arith.constant 76 : index
    %327 = vector.load %arg3[%c0_353, %c0_354, %c0_355, %c0_356, %c76] : memref<1x1x2x2x256xf32, #tpu.memory_space<vmem>>, vector<1x1x1x1x4xf32>
    %328 = vector.shape_cast %327 : vector<1x1x1x1x4xf32> to vector<1x4xf32>
    %329 = vector.shape_cast %326 : vector<1x4xf32> to vector<1x1x1x1x4xf32>
    tpu.vector_store %arg3[%c0_353, %c0_354, %c0_355, %c0_356, %c76], %329 {strides = array<i32>} : memref<1x1x2x2x256xf32, #tpu.memory_space<vmem>>, vector<1x1x1x1x4xf32>,
    %330 = vector.extract_strided_slice %325 {offsets = [0, 4], sizes = [1, 4], strides = [1, 1]} : vector<1x8xf32> to vector<1x4xf32>
    %c0_357 = arith.constant 0 : index
    %c0_358 = arith.constant 0 : index
    %c0_359 = arith.constant 0 : index
    %c1_360 = arith.constant 1 : index
    %c76_361 = arith.constant 76 : index
    %331 = vector.load %arg3[%c0_357, %c0_358, %c0_359, %c1_360, %c76_361] : memref<1x1x2x2x256xf32, #tpu.memory_space<vmem>>, vector<1x1x1x1x4xf32>
    %332 = vector.shape_cast %331 : vector<1x1x1x1x4xf32> to vector<1x4xf32>
    %333 = vector.shape_cast %330 : vector<1x4xf32> to vector<1x1x1x1x4xf32>
    tpu.vector_store %arg3[%c0_357, %c0_358, %c0_359, %c1_360, %c76_361], %333 {strides = array<i32>} : memref<1x1x2x2x256xf32, #tpu.memory_space<vmem>>, vector<1x1x1x1x4xf32>,
    %334 = vector.extract_strided_slice %297 {offsets = [4, 0], sizes = [1, 8], strides = [1, 1]} : vector<8x8xf32> to vector<1x8xf32>
    %335 = vector.extract_strided_slice %334 {offsets = [0, 0], sizes = [1, 4], strides = [1, 1]} : vector<1x8xf32> to vector<1x4xf32>
    %c0_362 = arith.constant 0 : index
    %c0_363 = arith.constant 0 : index
    %c1_364 = arith.constant 1 : index
    %c0_365 = arith.constant 0 : index
    %c64_366 = arith.constant 64 : index
    %336 = vector.load %arg3[%c0_362, %c0_363, %c1_364, %c0_365, %c64_366] : memref<1x1x2x2x256xf32, #tpu.memory_space<vmem>>, vector<1x1x1x1x4xf32>
    %337 = vector.shape_cast %336 : vector<1x1x1x1x4xf32> to vector<1x4xf32>
    %338 = vector.shape_cast %335 : vector<1x4xf32> to vector<1x1x1x1x4xf32>
    tpu.vector_store %arg3[%c0_362, %c0_363, %c1_364, %c0_365, %c64_366], %338 {strides = array<i32>} : memref<1x1x2x2x256xf32, #tpu.memory_space<vmem>>, vector<1x1x1x1x4xf32>,
    %339 = vector.extract_strided_slice %334 {offsets = [0, 4], sizes = [1, 4], strides = [1, 1]} : vector<1x8xf32> to vector<1x4xf32>
    %c0_367 = arith.constant 0 : index
    %c0_368 = arith.constant 0 : index
    %c1_369 = arith.constant 1 : index
    %c1_370 = arith.constant 1 : index
    %c64_371 = arith.constant 64 : index
    %340 = vector.load %arg3[%c0_367, %c0_368, %c1_369, %c1_370, %c64_371] : memref<1x1x2x2x256xf32, #tpu.memory_space<vmem>>, vector<1x1x1x1x4xf32>
    %341 = vector.shape_cast %340 : vector<1x1x1x1x4xf32> to vector<1x4xf32>
    %342 = vector.shape_cast %339 : vector<1x4xf32> to vector<1x1x1x1x4xf32>
    tpu.vector_store %arg3[%c0_367, %c0_368, %c1_369, %c1_370, %c64_371], %342 {strides = array<i32>} : memref<1x1x2x2x256xf32, #tpu.memory_space<vmem>>, vector<1x1x1x1x4xf32>,
    %343 = vector.extract_strided_slice %297 {offsets = [5, 0], sizes = [1, 8], strides = [1, 1]} : vector<8x8xf32> to vector<1x8xf32>
    %344 = vector.extract_strided_slice %343 {offsets = [0, 0], sizes = [1, 4], strides = [1, 1]} : vector<1x8xf32> to vector<1x4xf32>
    %c0_372 = arith.constant 0 : index
    %c0_373 = arith.constant 0 : index
    %c1_374 = arith.constant 1 : index
    %c0_375 = arith.constant 0 : index
    %c68_376 = arith.constant 68 : index
    %345 = vector.load %arg3[%c0_372, %c0_373, %c1_374, %c0_375, %c68_376] : memref<1x1x2x2x256xf32, #tpu.memory_space<vmem>>, vector<1x1x1x1x4xf32>
    %346 = vector.shape_cast %345 : vector<1x1x1x1x4xf32> to vector<1x4xf32>
    %347 = vector.shape_cast %344 : vector<1x4xf32> to vector<1x1x1x1x4xf32>
    tpu.vector_store %arg3[%c0_372, %c0_373, %c1_374, %c0_375, %c68_376], %347 {strides = array<i32>} : memref<1x1x2x2x256xf32, #tpu.memory_space<vmem>>, vector<1x1x1x1x4xf32>,
    %348 = vector.extract_strided_slice %343 {offsets = [0, 4], sizes = [1, 4], strides = [1, 1]} : vector<1x8xf32> to vector<1x4xf32>
    %c0_377 = arith.constant 0 : index
    %c0_378 = arith.constant 0 : index
    %c1_379 = arith.constant 1 : index
    %c1_380 = arith.constant 1 : index
    %c68_381 = arith.constant 68 : index
    %349 = vector.load %arg3[%c0_377, %c0_378, %c1_379, %c1_380, %c68_381] : memref<1x1x2x2x256xf32, #tpu.memory_space<vmem>>, vector<1x1x1x1x4xf32>
    %350 = vector.shape_cast %349 : vector<1x1x1x1x4xf32> to vector<1x4xf32>
    %351 = vector.shape_cast %348 : vector<1x4xf32> to vector<1x1x1x1x4xf32>
    tpu.vector_store %arg3[%c0_377, %c0_378, %c1_379, %c1_380, %c68_381], %351 {strides = array<i32>} : memref<1x1x2x2x256xf32, #tpu.memory_space<vmem>>, vector<1x1x1x1x4xf32>,
    %352 = vector.extract_strided_slice %297 {offsets = [6, 0], sizes = [1, 8], strides = [1, 1]} : vector<8x8xf32> to vector<1x8xf32>
    %353 = vector.extract_strided_slice %352 {offsets = [0, 0], sizes = [1, 4], strides = [1, 1]} : vector<1x8xf32> to vector<1x4xf32>
    %c0_382 = arith.constant 0 : index
    %c0_383 = arith.constant 0 : index
    %c1_384 = arith.constant 1 : index
    %c0_385 = arith.constant 0 : index
    %c72_386 = arith.constant 72 : index
    %354 = vector.load %arg3[%c0_382, %c0_383, %c1_384, %c0_385, %c72_386] : memref<1x1x2x2x256xf32, #tpu.memory_space<vmem>>, vector<1x1x1x1x4xf32>
    %355 = vector.shape_cast %354 : vector<1x1x1x1x4xf32> to vector<1x4xf32>
    %356 = vector.shape_cast %353 : vector<1x4xf32> to vector<1x1x1x1x4xf32>
    tpu.vector_store %arg3[%c0_382, %c0_383, %c1_384, %c0_385, %c72_386], %356 {strides = array<i32>} : memref<1x1x2x2x256xf32, #tpu.memory_space<vmem>>, vector<1x1x1x1x4xf32>,
    %357 = vector.extract_strided_slice %352 {offsets = [0, 4], sizes = [1, 4], strides = [1, 1]} : vector<1x8xf32> to vector<1x4xf32>
    %c0_387 = arith.constant 0 : index
    %c0_388 = arith.constant 0 : index
    %c1_389 = arith.constant 1 : index
    %c1_390 = arith.constant 1 : index
    %c72_391 = arith.constant 72 : index
    %358 = vector.load %arg3[%c0_387, %c0_388, %c1_389, %c1_390, %c72_391] : memref<1x1x2x2x256xf32, #tpu.memory_space<vmem>>, vector<1x1x1x1x4xf32>
    %359 = vector.shape_cast %358 : vector<1x1x1x1x4xf32> to vector<1x4xf32>
    %360 = vector.shape_cast %357 : vector<1x4xf32> to vector<1x1x1x1x4xf32>
    tpu.vector_store %arg3[%c0_387, %c0_388, %c1_389, %c1_390, %c72_391], %360 {strides = array<i32>} : memref<1x1x2x2x256xf32, #tpu.memory_space<vmem>>, vector<1x1x1x1x4xf32>,
    %361 = vector.extract_strided_slice %297 {offsets = [7, 0], sizes = [1, 8], strides = [1, 1]} : vector<8x8xf32> to vector<1x8xf32>
    %362 = vector.extract_strided_slice %361 {offsets = [0, 0], sizes = [1, 4], strides = [1, 1]} : vector<1x8xf32> to vector<1x4xf32>
    %c0_392 = arith.constant 0 : index
    %c0_393 = arith.constant 0 : index
    %c1_394 = arith.constant 1 : index
    %c0_395 = arith.constant 0 : index
    %c76_396 = arith.constant 76 : index
    %363 = vector.load %arg3[%c0_392, %c0_393, %c1_394, %c0_395, %c76_396] : memref<1x1x2x2x256xf32, #tpu.memory_space<vmem>>, vector<1x1x1x1x4xf32>
    %364 = vector.shape_cast %363 : vector<1x1x1x1x4xf32> to vector<1x4xf32>
    %365 = vector.shape_cast %362 : vector<1x4xf32> to vector<1x1x1x1x4xf32>
    tpu.vector_store %arg3[%c0_392, %c0_393, %c1_394, %c0_395, %c76_396], %365 {strides = array<i32>} : memref<1x1x2x2x256xf32, #tpu.memory_space<vmem>>, vector<1x1x1x1x4xf32>,
    %366 = vector.extract_strided_slice %361 {offsets = [0, 4], sizes = [1, 4], strides = [1, 1]} : vector<1x8xf32> to vector<1x4xf32>
    %c0_397 = arith.constant 0 : index
    %c0_398 = arith.constant 0 : index
    %c1_399 = arith.constant 1 : index
    %c1_400 = arith.constant 1 : index
    %c76_401 = arith.constant 76 : index
    %367 = vector.load %arg3[%c0_397, %c0_398, %c1_399, %c1_400, %c76_401] : memref<1x1x2x2x256xf32, #tpu.memory_space<vmem>>, vector<1x1x1x1x4xf32>
    %368 = vector.shape_cast %367 : vector<1x1x1x1x4xf32> to vector<1x4xf32>
    %369 = vector.shape_cast %366 : vector<1x4xf32> to vector<1x1x1x1x4xf32>
    tpu.vector_store %arg3[%c0_397, %c0_398, %c1_399, %c1_400, %c76_401], %369 {strides = array<i32>} : memref<1x1x2x2x256xf32, #tpu.memory_space<vmem>>, vector<1x1x1x1x4xf32>,
    %c0_402 = arith.constant 0 : index
    %c1_403 = arith.constant 1 : index
    %c1_404 = arith.constant 1 : index
    %c0_405 = arith.constant 0 : index
    %c0_406 = arith.constant 0 : index
    %370 = vector.load %arg2[%c0_402, %c1_403, %c1_404, %c0_405, %c0_406] : memref<1x4x4x8x8xf32, #tpu.memory_space<vmem>>, vector<1x1x1x8x8xf32>
    %371 = vector.shape_cast %370 : vector<1x1x1x8x8xf32> to vector<8x8xf32>
    %372 = vector.extract_strided_slice %371 {offsets = [0, 0], sizes = [1, 8], strides = [1, 1]} : vector<8x8xf32> to vector<1x8xf32>
    %373 = vector.extract_strided_slice %372 {offsets = [0, 0], sizes = [1, 4], strides = [1, 1]} : vector<1x8xf32> to vector<1x4xf32>
    %c0_407 = arith.constant 0 : index
    %c0_408 = arith.constant 0 : index
    %c0_409 = arith.constant 0 : index
    %c0_410 = arith.constant 0 : index
    %c80 = arith.constant 80 : index
    %374 = vector.load %arg3[%c0_407, %c0_408, %c0_409, %c0_410, %c80] : memref<1x1x2x2x256xf32, #tpu.memory_space<vmem>>, vector<1x1x1x1x4xf32>
    %375 = vector.shape_cast %374 : vector<1x1x1x1x4xf32> to vector<1x4xf32>
    %376 = vector.shape_cast %373 : vector<1x4xf32> to vector<1x1x1x1x4xf32>
    tpu.vector_store %arg3[%c0_407, %c0_408, %c0_409, %c0_410, %c80], %376 {strides = array<i32>} : memref<1x1x2x2x256xf32, #tpu.memory_space<vmem>>, vector<1x1x1x1x4xf32>,
    %377 = vector.extract_strided_slice %372 {offsets = [0, 4], sizes = [1, 4], strides = [1, 1]} : vector<1x8xf32> to vector<1x4xf32>
    %c0_411 = arith.constant 0 : index
    %c0_412 = arith.constant 0 : index
    %c0_413 = arith.constant 0 : index
    %c1_414 = arith.constant 1 : index
    %c80_415 = arith.constant 80 : index
    %378 = vector.load %arg3[%c0_411, %c0_412, %c0_413, %c1_414, %c80_415] : memref<1x1x2x2x256xf32, #tpu.memory_space<vmem>>, vector<1x1x1x1x4xf32>
    %379 = vector.shape_cast %378 : vector<1x1x1x1x4xf32> to vector<1x4xf32>
    %380 = vector.shape_cast %377 : vector<1x4xf32> to vector<1x1x1x1x4xf32>
    tpu.vector_store %arg3[%c0_411, %c0_412, %c0_413, %c1_414, %c80_415], %380 {strides = array<i32>} : memref<1x1x2x2x256xf32, #tpu.memory_space<vmem>>, vector<1x1x1x1x4xf32>,
    %381 = vector.extract_strided_slice %371 {offsets = [1, 0], sizes = [1, 8], strides = [1, 1]} : vector<8x8xf32> to vector<1x8xf32>
    %382 = vector.extract_strided_slice %381 {offsets = [0, 0], sizes = [1, 4], strides = [1, 1]} : vector<1x8xf32> to vector<1x4xf32>
    %c0_416 = arith.constant 0 : index
    %c0_417 = arith.constant 0 : index
    %c0_418 = arith.constant 0 : index
    %c0_419 = arith.constant 0 : index
    %c84 = arith.constant 84 : index
    %383 = vector.load %arg3[%c0_416, %c0_417, %c0_418, %c0_419, %c84] : memref<1x1x2x2x256xf32, #tpu.memory_space<vmem>>, vector<1x1x1x1x4xf32>
    %384 = vector.shape_cast %383 : vector<1x1x1x1x4xf32> to vector<1x4xf32>
    %385 = vector.shape_cast %382 : vector<1x4xf32> to vector<1x1x1x1x4xf32>
    tpu.vector_store %arg3[%c0_416, %c0_417, %c0_418, %c0_419, %c84], %385 {strides = array<i32>} : memref<1x1x2x2x256xf32, #tpu.memory_space<vmem>>, vector<1x1x1x1x4xf32>,
    %386 = vector.extract_strided_slice %381 {offsets = [0, 4], sizes = [1, 4], strides = [1, 1]} : vector<1x8xf32> to vector<1x4xf32>
    %c0_420 = arith.constant 0 : index
    %c0_421 = arith.constant 0 : index
    %c0_422 = arith.constant 0 : index
    %c1_423 = arith.constant 1 : index
    %c84_424 = arith.constant 84 : index
    %387 = vector.load %arg3[%c0_420, %c0_421, %c0_422, %c1_423, %c84_424] : memref<1x1x2x2x256xf32, #tpu.memory_space<vmem>>, vector<1x1x1x1x4xf32>
    %388 = vector.shape_cast %387 : vector<1x1x1x1x4xf32> to vector<1x4xf32>
    %389 = vector.shape_cast %386 : vector<1x4xf32> to vector<1x1x1x1x4xf32>
    tpu.vector_store %arg3[%c0_420, %c0_421, %c0_422, %c1_423, %c84_424], %389 {strides = array<i32>} : memref<1x1x2x2x256xf32, #tpu.memory_space<vmem>>, vector<1x1x1x1x4xf32>,
    %390 = vector.extract_strided_slice %371 {offsets = [2, 0], sizes = [1, 8], strides = [1, 1]} : vector<8x8xf32> to vector<1x8xf32>
    %391 = vector.extract_strided_slice %390 {offsets = [0, 0], sizes = [1, 4], strides = [1, 1]} : vector<1x8xf32> to vector<1x4xf32>
    %c0_425 = arith.constant 0 : index
    %c0_426 = arith.constant 0 : index
    %c0_427 = arith.constant 0 : index
    %c0_428 = arith.constant 0 : index
    %c88 = arith.constant 88 : index
    %392 = vector.load %arg3[%c0_425, %c0_426, %c0_427, %c0_428, %c88] : memref<1x1x2x2x256xf32, #tpu.memory_space<vmem>>, vector<1x1x1x1x4xf32>
    %393 = vector.shape_cast %392 : vector<1x1x1x1x4xf32> to vector<1x4xf32>
    %394 = vector.shape_cast %391 : vector<1x4xf32> to vector<1x1x1x1x4xf32>
    tpu.vector_store %arg3[%c0_425, %c0_426, %c0_427, %c0_428, %c88], %394 {strides = array<i32>} : memref<1x1x2x2x256xf32, #tpu.memory_space<vmem>>, vector<1x1x1x1x4xf32>,
    %395 = vector.extract_strided_slice %390 {offsets = [0, 4], sizes = [1, 4], strides = [1, 1]} : vector<1x8xf32> to vector<1x4xf32>
    %c0_429 = arith.constant 0 : index
    %c0_430 = arith.constant 0 : index
    %c0_431 = arith.constant 0 : index
    %c1_432 = arith.constant 1 : index
    %c88_433 = arith.constant 88 : index
    %396 = vector.load %arg3[%c0_429, %c0_430, %c0_431, %c1_432, %c88_433] : memref<1x1x2x2x256xf32, #tpu.memory_space<vmem>>, vector<1x1x1x1x4xf32>
    %397 = vector.shape_cast %396 : vector<1x1x1x1x4xf32> to vector<1x4xf32>
    %398 = vector.shape_cast %395 : vector<1x4xf32> to vector<1x1x1x1x4xf32>
    tpu.vector_store %arg3[%c0_429, %c0_430, %c0_431, %c1_432, %c88_433], %398 {strides = array<i32>} : memref<1x1x2x2x256xf32, #tpu.memory_space<vmem>>, vector<1x1x1x1x4xf32>,
    %399 = vector.extract_strided_slice %371 {offsets = [3, 0], sizes = [1, 8], strides = [1, 1]} : vector<8x8xf32> to vector<1x8xf32>
    %400 = vector.extract_strided_slice %399 {offsets = [0, 0], sizes = [1, 4], strides = [1, 1]} : vector<1x8xf32> to vector<1x4xf32>
    %c0_434 = arith.constant 0 : index
    %c0_435 = arith.constant 0 : index
    %c0_436 = arith.constant 0 : index
    %c0_437 = arith.constant 0 : index
    %c92 = arith.constant 92 : index
    %401 = vector.load %arg3[%c0_434, %c0_435, %c0_436, %c0_437, %c92] : memref<1x1x2x2x256xf32, #tpu.memory_space<vmem>>, vector<1x1x1x1x4xf32>
    %402 = vector.shape_cast %401 : vector<1x1x1x1x4xf32> to vector<1x4xf32>
    %403 = vector.shape_cast %400 : vector<1x4xf32> to vector<1x1x1x1x4xf32>
    tpu.vector_store %arg3[%c0_434, %c0_435, %c0_436, %c0_437, %c92], %403 {strides = array<i32>} : memref<1x1x2x2x256xf32, #tpu.memory_space<vmem>>, vector<1x1x1x1x4xf32>,
    %404 = vector.extract_strided_slice %399 {offsets = [0, 4], sizes = [1, 4], strides = [1, 1]} : vector<1x8xf32> to vector<1x4xf32>
    %c0_438 = arith.constant 0 : index
    %c0_439 = arith.constant 0 : index
    %c0_440 = arith.constant 0 : index
    %c1_441 = arith.constant 1 : index
    %c92_442 = arith.constant 92 : index
    %405 = vector.load %arg3[%c0_438, %c0_439, %c0_440, %c1_441, %c92_442] : memref<1x1x2x2x256xf32, #tpu.memory_space<vmem>>, vector<1x1x1x1x4xf32>
    %406 = vector.shape_cast %405 : vector<1x1x1x1x4xf32> to vector<1x4xf32>
    %407 = vector.shape_cast %404 : vector<1x4xf32> to vector<1x1x1x1x4xf32>
    tpu.vector_store %arg3[%c0_438, %c0_439, %c0_440, %c1_441, %c92_442], %407 {strides = array<i32>} : memref<1x1x2x2x256xf32, #tpu.memory_space<vmem>>, vector<1x1x1x1x4xf32>,
    %408 = vector.extract_strided_slice %371 {offsets = [4, 0], sizes = [1, 8], strides = [1, 1]} : vector<8x8xf32> to vector<1x8xf32>
    %409 = vector.extract_strided_slice %408 {offsets = [0, 0], sizes = [1, 4], strides = [1, 1]} : vector<1x8xf32> to vector<1x4xf32>
    %c0_443 = arith.constant 0 : index
    %c0_444 = arith.constant 0 : index
    %c1_445 = arith.constant 1 : index
    %c0_446 = arith.constant 0 : index
    %c80_447 = arith.constant 80 : index
    %410 = vector.load %arg3[%c0_443, %c0_444, %c1_445, %c0_446, %c80_447] : memref<1x1x2x2x256xf32, #tpu.memory_space<vmem>>, vector<1x1x1x1x4xf32>
    %411 = vector.shape_cast %410 : vector<1x1x1x1x4xf32> to vector<1x4xf32>
    %412 = vector.shape_cast %409 : vector<1x4xf32> to vector<1x1x1x1x4xf32>
    tpu.vector_store %arg3[%c0_443, %c0_444, %c1_445, %c0_446, %c80_447], %412 {strides = array<i32>} : memref<1x1x2x2x256xf32, #tpu.memory_space<vmem>>, vector<1x1x1x1x4xf32>,
    %413 = vector.extract_strided_slice %408 {offsets = [0, 4], sizes = [1, 4], strides = [1, 1]} : vector<1x8xf32> to vector<1x4xf32>
    %c0_448 = arith.constant 0 : index
    %c0_449 = arith.constant 0 : index
    %c1_450 = arith.constant 1 : index
    %c1_451 = arith.constant 1 : index
    %c80_452 = arith.constant 80 : index
    %414 = vector.load %arg3[%c0_448, %c0_449, %c1_450, %c1_451, %c80_452] : memref<1x1x2x2x256xf32, #tpu.memory_space<vmem>>, vector<1x1x1x1x4xf32>
    %415 = vector.shape_cast %414 : vector<1x1x1x1x4xf32> to vector<1x4xf32>
    %416 = vector.shape_cast %413 : vector<1x4xf32> to vector<1x1x1x1x4xf32>
    tpu.vector_store %arg3[%c0_448, %c0_449, %c1_450, %c1_451, %c80_452], %416 {strides = array<i32>} : memref<1x1x2x2x256xf32, #tpu.memory_space<vmem>>, vector<1x1x1x1x4xf32>,
    %417 = vector.extract_strided_slice %371 {offsets = [5, 0], sizes = [1, 8], strides = [1, 1]} : vector<8x8xf32> to vector<1x8xf32>
    %418 = vector.extract_strided_slice %417 {offsets = [0, 0], sizes = [1, 4], strides = [1, 1]} : vector<1x8xf32> to vector<1x4xf32>
    %c0_453 = arith.constant 0 : index
    %c0_454 = arith.constant 0 : index
    %c1_455 = arith.constant 1 : index
    %c0_456 = arith.constant 0 : index
    %c84_457 = arith.constant 84 : index
    %419 = vector.load %arg3[%c0_453, %c0_454, %c1_455, %c0_456, %c84_457] : memref<1x1x2x2x256xf32, #tpu.memory_space<vmem>>, vector<1x1x1x1x4xf32>
    %420 = vector.shape_cast %419 : vector<1x1x1x1x4xf32> to vector<1x4xf32>
    %421 = vector.shape_cast %418 : vector<1x4xf32> to vector<1x1x1x1x4xf32>
    tpu.vector_store %arg3[%c0_453, %c0_454, %c1_455, %c0_456, %c84_457], %421 {strides = array<i32>} : memref<1x1x2x2x256xf32, #tpu.memory_space<vmem>>, vector<1x1x1x1x4xf32>,
    %422 = vector.extract_strided_slice %417 {offsets = [0, 4], sizes = [1, 4], strides = [1, 1]} : vector<1x8xf32> to vector<1x4xf32>
    %c0_458 = arith.constant 0 : index
    %c0_459 = arith.constant 0 : index
    %c1_460 = arith.constant 1 : index
    %c1_461 = arith.constant 1 : index
    %c84_462 = arith.constant 84 : index
    %423 = vector.load %arg3[%c0_458, %c0_459, %c1_460, %c1_461, %c84_462] : memref<1x1x2x2x256xf32, #tpu.memory_space<vmem>>, vector<1x1x1x1x4xf32>
    %424 = vector.shape_cast %423 : vector<1x1x1x1x4xf32> to vector<1x4xf32>
    %425 = vector.shape_cast %422 : vector<1x4xf32> to vector<1x1x1x1x4xf32>
    tpu.vector_store %arg3[%c0_458, %c0_459, %c1_460, %c1_461, %c84_462], %425 {strides = array<i32>} : memref<1x1x2x2x256xf32, #tpu.memory_space<vmem>>, vector<1x1x1x1x4xf32>,
    %426 = vector.extract_strided_slice %371 {offsets = [6, 0], sizes = [1, 8], strides = [1, 1]} : vector<8x8xf32> to vector<1x8xf32>
    %427 = vector.extract_strided_slice %426 {offsets = [0, 0], sizes = [1, 4], strides = [1, 1]} : vector<1x8xf32> to vector<1x4xf32>
    %c0_463 = arith.constant 0 : index
    %c0_464 = arith.constant 0 : index
    %c1_465 = arith.constant 1 : index
    %c0_466 = arith.constant 0 : index
    %c88_467 = arith.constant 88 : index
    %428 = vector.load %arg3[%c0_463, %c0_464, %c1_465, %c0_466, %c88_467] : memref<1x1x2x2x256xf32, #tpu.memory_space<vmem>>, vector<1x1x1x1x4xf32>
    %429 = vector.shape_cast %428 : vector<1x1x1x1x4xf32> to vector<1x4xf32>
    %430 = vector.shape_cast %427 : vector<1x4xf32> to vector<1x1x1x1x4xf32>
    tpu.vector_store %arg3[%c0_463, %c0_464, %c1_465, %c0_466, %c88_467], %430 {strides = array<i32>} : memref<1x1x2x2x256xf32, #tpu.memory_space<vmem>>, vector<1x1x1x1x4xf32>,
    %431 = vector.extract_strided_slice %426 {offsets = [0, 4], sizes = [1, 4], strides = [1, 1]} : vector<1x8xf32> to vector<1x4xf32>
    %c0_468 = arith.constant 0 : index
    %c0_469 = arith.constant 0 : index
    %c1_470 = arith.constant 1 : index
    %c1_471 = arith.constant 1 : index
    %c88_472 = arith.constant 88 : index
    %432 = vector.load %arg3[%c0_468, %c0_469, %c1_470, %c1_471, %c88_472] : memref<1x1x2x2x256xf32, #tpu.memory_space<vmem>>, vector<1x1x1x1x4xf32>
    %433 = vector.shape_cast %432 : vector<1x1x1x1x4xf32> to vector<1x4xf32>
    %434 = vector.shape_cast %431 : vector<1x4xf32> to vector<1x1x1x1x4xf32>
    tpu.vector_store %arg3[%c0_468, %c0_469, %c1_470, %c1_471, %c88_472], %434 {strides = array<i32>} : memref<1x1x2x2x256xf32, #tpu.memory_space<vmem>>, vector<1x1x1x1x4xf32>,
    %435 = vector.extract_strided_slice %371 {offsets = [7, 0], sizes = [1, 8], strides = [1, 1]} : vector<8x8xf32> to vector<1x8xf32>
    %436 = vector.extract_strided_slice %435 {offsets = [0, 0], sizes = [1, 4], strides = [1, 1]} : vector<1x8xf32> to vector<1x4xf32>
    %c0_473 = arith.constant 0 : index
    %c0_474 = arith.constant 0 : index
    %c1_475 = arith.constant 1 : index
    %c0_476 = arith.constant 0 : index
    %c92_477 = arith.constant 92 : index
    %437 = vector.load %arg3[%c0_473, %c0_474, %c1_475, %c0_476, %c92_477] : memref<1x1x2x2x256xf32, #tpu.memory_space<vmem>>, vector<1x1x1x1x4xf32>
    %438 = vector.shape_cast %437 : vector<1x1x1x1x4xf32> to vector<1x4xf32>
    %439 = vector.shape_cast %436 : vector<1x4xf32> to vector<1x1x1x1x4xf32>
    tpu.vector_store %arg3[%c0_473, %c0_474, %c1_475, %c0_476, %c92_477], %439 {strides = array<i32>} : memref<1x1x2x2x256xf32, #tpu.memory_space<vmem>>, vector<1x1x1x1x4xf32>,
    %440 = vector.extract_strided_slice %435 {offsets = [0, 4], sizes = [1, 4], strides = [1, 1]} : vector<1x8xf32> to vector<1x4xf32>
    %c0_478 = arith.constant 0 : index
    %c0_479 = arith.constant 0 : index
    %c1_480 = arith.constant 1 : index
    %c1_481 = arith.constant 1 : index
    %c92_482 = arith.constant 92 : index
    %441 = vector.load %arg3[%c0_478, %c0_479, %c1_480, %c1_481, %c92_482] : memref<1x1x2x2x256xf32, #tpu.memory_space<vmem>>, vector<1x1x1x1x4xf32>
    %442 = vector.shape_cast %441 : vector<1x1x1x1x4xf32> to vector<1x4xf32>
    %443 = vector.shape_cast %440 : vector<1x4xf32> to vector<1x1x1x1x4xf32>
    tpu.vector_store %arg3[%c0_478, %c0_479, %c1_480, %c1_481, %c92_482], %443 {strides = array<i32>} : memref<1x1x2x2x256xf32, #tpu.memory_space<vmem>>, vector<1x1x1x1x4xf32>,
    %c0_483 = arith.constant 0 : index
    %c1_484 = arith.constant 1 : index
    %c2_485 = arith.constant 2 : index
    %c0_486 = arith.constant 0 : index
    %c0_487 = arith.constant 0 : index
    %444 = vector.load %arg2[%c0_483, %c1_484, %c2_485, %c0_486, %c0_487] : memref<1x4x4x8x8xf32, #tpu.memory_space<vmem>>, vector<1x1x1x8x8xf32>
    %445 = vector.shape_cast %444 : vector<1x1x1x8x8xf32> to vector<8x8xf32>
    %446 = vector.extract_strided_slice %445 {offsets = [0, 0], sizes = [1, 8], strides = [1, 1]} : vector<8x8xf32> to vector<1x8xf32>
    %447 = vector.extract_strided_slice %446 {offsets = [0, 0], sizes = [1, 4], strides = [1, 1]} : vector<1x8xf32> to vector<1x4xf32>
    %c0_488 = arith.constant 0 : index
    %c0_489 = arith.constant 0 : index
    %c0_490 = arith.constant 0 : index
    %c0_491 = arith.constant 0 : index
    %c96 = arith.constant 96 : index
    %448 = vector.load %arg3[%c0_488, %c0_489, %c0_490, %c0_491, %c96] : memref<1x1x2x2x256xf32, #tpu.memory_space<vmem>>, vector<1x1x1x1x4xf32>
    %449 = vector.shape_cast %448 : vector<1x1x1x1x4xf32> to vector<1x4xf32>
    %450 = vector.shape_cast %447 : vector<1x4xf32> to vector<1x1x1x1x4xf32>
    tpu.vector_store %arg3[%c0_488, %c0_489, %c0_490, %c0_491, %c96], %450 {strides = array<i32>} : memref<1x1x2x2x256xf32, #tpu.memory_space<vmem>>, vector<1x1x1x1x4xf32>,
    %451 = vector.extract_strided_slice %446 {offsets = [0, 4], sizes = [1, 4], strides = [1, 1]} : vector<1x8xf32> to vector<1x4xf32>
    %c0_492 = arith.constant 0 : index
    %c0_493 = arith.constant 0 : index
    %c0_494 = arith.constant 0 : index
    %c1_495 = arith.constant 1 : index
    %c96_496 = arith.constant 96 : index
    %452 = vector.load %arg3[%c0_492, %c0_493, %c0_494, %c1_495, %c96_496] : memref<1x1x2x2x256xf32, #tpu.memory_space<vmem>>, vector<1x1x1x1x4xf32>
    %453 = vector.shape_cast %452 : vector<1x1x1x1x4xf32> to vector<1x4xf32>
    %454 = vector.shape_cast %451 : vector<1x4xf32> to vector<1x1x1x1x4xf32>
    tpu.vector_store %arg3[%c0_492, %c0_493, %c0_494, %c1_495, %c96_496], %454 {strides = array<i32>} : memref<1x1x2x2x256xf32, #tpu.memory_space<vmem>>, vector<1x1x1x1x4xf32>,
    %455 = vector.extract_strided_slice %445 {offsets = [1, 0], sizes = [1, 8], strides = [1, 1]} : vector<8x8xf32> to vector<1x8xf32>
    %456 = vector.extract_strided_slice %455 {offsets = [0, 0], sizes = [1, 4], strides = [1, 1]} : vector<1x8xf32> to vector<1x4xf32>
    %c0_497 = arith.constant 0 : index
    %c0_498 = arith.constant 0 : index
    %c0_499 = arith.constant 0 : index
    %c0_500 = arith.constant 0 : index
    %c100 = arith.constant 100 : index
    %457 = vector.load %arg3[%c0_497, %c0_498, %c0_499, %c0_500, %c100] : memref<1x1x2x2x256xf32, #tpu.memory_space<vmem>>, vector<1x1x1x1x4xf32>
    %458 = vector.shape_cast %457 : vector<1x1x1x1x4xf32> to vector<1x4xf32>
    %459 = vector.shape_cast %456 : vector<1x4xf32> to vector<1x1x1x1x4xf32>
    tpu.vector_store %arg3[%c0_497, %c0_498, %c0_499, %c0_500, %c100], %459 {strides = array<i32>} : memref<1x1x2x2x256xf32, #tpu.memory_space<vmem>>, vector<1x1x1x1x4xf32>,
    %460 = vector.extract_strided_slice %455 {offsets = [0, 4], sizes = [1, 4], strides = [1, 1]} : vector<1x8xf32> to vector<1x4xf32>
    %c0_501 = arith.constant 0 : index
    %c0_502 = arith.constant 0 : index
    %c0_503 = arith.constant 0 : index
    %c1_504 = arith.constant 1 : index
    %c100_505 = arith.constant 100 : index
    %461 = vector.load %arg3[%c0_501, %c0_502, %c0_503, %c1_504, %c100_505] : memref<1x1x2x2x256xf32, #tpu.memory_space<vmem>>, vector<1x1x1x1x4xf32>
    %462 = vector.shape_cast %461 : vector<1x1x1x1x4xf32> to vector<1x4xf32>
    %463 = vector.shape_cast %460 : vector<1x4xf32> to vector<1x1x1x1x4xf32>
    tpu.vector_store %arg3[%c0_501, %c0_502, %c0_503, %c1_504, %c100_505], %463 {strides = array<i32>} : memref<1x1x2x2x256xf32, #tpu.memory_space<vmem>>, vector<1x1x1x1x4xf32>,
    %464 = vector.extract_strided_slice %445 {offsets = [2, 0], sizes = [1, 8], strides = [1, 1]} : vector<8x8xf32> to vector<1x8xf32>
    %465 = vector.extract_strided_slice %464 {offsets = [0, 0], sizes = [1, 4], strides = [1, 1]} : vector<1x8xf32> to vector<1x4xf32>
    %c0_506 = arith.constant 0 : index
    %c0_507 = arith.constant 0 : index
    %c0_508 = arith.constant 0 : index
    %c0_509 = arith.constant 0 : index
    %c104 = arith.constant 104 : index
    %466 = vector.load %arg3[%c0_506, %c0_507, %c0_508, %c0_509, %c104] : memref<1x1x2x2x256xf32, #tpu.memory_space<vmem>>, vector<1x1x1x1x4xf32>
    %467 = vector.shape_cast %466 : vector<1x1x1x1x4xf32> to vector<1x4xf32>
    %468 = vector.shape_cast %465 : vector<1x4xf32> to vector<1x1x1x1x4xf32>
    tpu.vector_store %arg3[%c0_506, %c0_507, %c0_508, %c0_509, %c104], %468 {strides = array<i32>} : memref<1x1x2x2x256xf32, #tpu.memory_space<vmem>>, vector<1x1x1x1x4xf32>,
    %469 = vector.extract_strided_slice %464 {offsets = [0, 4], sizes = [1, 4], strides = [1, 1]} : vector<1x8xf32> to vector<1x4xf32>
    %c0_510 = arith.constant 0 : index
    %c0_511 = arith.constant 0 : index
    %c0_512 = arith.constant 0 : index
    %c1_513 = arith.constant 1 : index
    %c104_514 = arith.constant 104 : index
    %470 = vector.load %arg3[%c0_510, %c0_511, %c0_512, %c1_513, %c104_514] : memref<1x1x2x2x256xf32, #tpu.memory_space<vmem>>, vector<1x1x1x1x4xf32>
    %471 = vector.shape_cast %470 : vector<1x1x1x1x4xf32> to vector<1x4xf32>
    %472 = vector.shape_cast %469 : vector<1x4xf32> to vector<1x1x1x1x4xf32>
    tpu.vector_store %arg3[%c0_510, %c0_511, %c0_512, %c1_513, %c104_514], %472 {strides = array<i32>} : memref<1x1x2x2x256xf32, #tpu.memory_space<vmem>>, vector<1x1x1x1x4xf32>,
    %473 = vector.extract_strided_slice %445 {offsets = [3, 0], sizes = [1, 8], strides = [1, 1]} : vector<8x8xf32> to vector<1x8xf32>
    %474 = vector.extract_strided_slice %473 {offsets = [0, 0], sizes = [1, 4], strides = [1, 1]} : vector<1x8xf32> to vector<1x4xf32>
    %c0_515 = arith.constant 0 : index
    %c0_516 = arith.constant 0 : index
    %c0_517 = arith.constant 0 : index
    %c0_518 = arith.constant 0 : index
    %c108 = arith.constant 108 : index
    %475 = vector.load %arg3[%c0_515, %c0_516, %c0_517, %c0_518, %c108] : memref<1x1x2x2x256xf32, #tpu.memory_space<vmem>>, vector<1x1x1x1x4xf32>
    %476 = vector.shape_cast %475 : vector<1x1x1x1x4xf32> to vector<1x4xf32>
    %477 = vector.shape_cast %474 : vector<1x4xf32> to vector<1x1x1x1x4xf32>
    tpu.vector_store %arg3[%c0_515, %c0_516, %c0_517, %c0_518, %c108], %477 {strides = array<i32>} : memref<1x1x2x2x256xf32, #tpu.memory_space<vmem>>, vector<1x1x1x1x4xf32>,
    %478 = vector.extract_strided_slice %473 {offsets = [0, 4], sizes = [1, 4], strides = [1, 1]} : vector<1x8xf32> to vector<1x4xf32>
    %c0_519 = arith.constant 0 : index
    %c0_520 = arith.constant 0 : index
    %c0_521 = arith.constant 0 : index
    %c1_522 = arith.constant 1 : index
    %c108_523 = arith.constant 108 : index
    %479 = vector.load %arg3[%c0_519, %c0_520, %c0_521, %c1_522, %c108_523] : memref<1x1x2x2x256xf32, #tpu.memory_space<vmem>>, vector<1x1x1x1x4xf32>
    %480 = vector.shape_cast %479 : vector<1x1x1x1x4xf32> to vector<1x4xf32>
    %481 = vector.shape_cast %478 : vector<1x4xf32> to vector<1x1x1x1x4xf32>
    tpu.vector_store %arg3[%c0_519, %c0_520, %c0_521, %c1_522, %c108_523], %481 {strides = array<i32>} : memref<1x1x2x2x256xf32, #tpu.memory_space<vmem>>, vector<1x1x1x1x4xf32>,
    %482 = vector.extract_strided_slice %445 {offsets = [4, 0], sizes = [1, 8], strides = [1, 1]} : vector<8x8xf32> to vector<1x8xf32>
    %483 = vector.extract_strided_slice %482 {offsets = [0, 0], sizes = [1, 4], strides = [1, 1]} : vector<1x8xf32> to vector<1x4xf32>
    %c0_524 = arith.constant 0 : index
    %c0_525 = arith.constant 0 : index
    %c1_526 = arith.constant 1 : index
    %c0_527 = arith.constant 0 : index
    %c96_528 = arith.constant 96 : index
    %484 = vector.load %arg3[%c0_524, %c0_525, %c1_526, %c0_527, %c96_528] : memref<1x1x2x2x256xf32, #tpu.memory_space<vmem>>, vector<1x1x1x1x4xf32>
    %485 = vector.shape_cast %484 : vector<1x1x1x1x4xf32> to vector<1x4xf32>
    %486 = vector.shape_cast %483 : vector<1x4xf32> to vector<1x1x1x1x4xf32>
    tpu.vector_store %arg3[%c0_524, %c0_525, %c1_526, %c0_527, %c96_528], %486 {strides = array<i32>} : memref<1x1x2x2x256xf32, #tpu.memory_space<vmem>>, vector<1x1x1x1x4xf32>,
    %487 = vector.extract_strided_slice %482 {offsets = [0, 4], sizes = [1, 4], strides = [1, 1]} : vector<1x8xf32> to vector<1x4xf32>
    %c0_529 = arith.constant 0 : index
    %c0_530 = arith.constant 0 : index
    %c1_531 = arith.constant 1 : index
    %c1_532 = arith.constant 1 : index
    %c96_533 = arith.constant 96 : index
    %488 = vector.load %arg3[%c0_529, %c0_530, %c1_531, %c1_532, %c96_533] : memref<1x1x2x2x256xf32, #tpu.memory_space<vmem>>, vector<1x1x1x1x4xf32>
    %489 = vector.shape_cast %488 : vector<1x1x1x1x4xf32> to vector<1x4xf32>
    %490 = vector.shape_cast %487 : vector<1x4xf32> to vector<1x1x1x1x4xf32>
    tpu.vector_store %arg3[%c0_529, %c0_530, %c1_531, %c1_532, %c96_533], %490 {strides = array<i32>} : memref<1x1x2x2x256xf32, #tpu.memory_space<vmem>>, vector<1x1x1x1x4xf32>,
    %491 = vector.extract_strided_slice %445 {offsets = [5, 0], sizes = [1, 8], strides = [1, 1]} : vector<8x8xf32> to vector<1x8xf32>
    %492 = vector.extract_strided_slice %491 {offsets = [0, 0], sizes = [1, 4], strides = [1, 1]} : vector<1x8xf32> to vector<1x4xf32>
    %c0_534 = arith.constant 0 : index
    %c0_535 = arith.constant 0 : index
    %c1_536 = arith.constant 1 : index
    %c0_537 = arith.constant 0 : index
    %c100_538 = arith.constant 100 : index
    %493 = vector.load %arg3[%c0_534, %c0_535, %c1_536, %c0_537, %c100_538] : memref<1x1x2x2x256xf32, #tpu.memory_space<vmem>>, vector<1x1x1x1x4xf32>
    %494 = vector.shape_cast %493 : vector<1x1x1x1x4xf32> to vector<1x4xf32>
    %495 = vector.shape_cast %492 : vector<1x4xf32> to vector<1x1x1x1x4xf32>
    tpu.vector_store %arg3[%c0_534, %c0_535, %c1_536, %c0_537, %c100_538], %495 {strides = array<i32>} : memref<1x1x2x2x256xf32, #tpu.memory_space<vmem>>, vector<1x1x1x1x4xf32>,
    %496 = vector.extract_strided_slice %491 {offsets = [0, 4], sizes = [1, 4], strides = [1, 1]} : vector<1x8xf32> to vector<1x4xf32>
    %c0_539 = arith.constant 0 : index
    %c0_540 = arith.constant 0 : index
    %c1_541 = arith.constant 1 : index
    %c1_542 = arith.constant 1 : index
    %c100_543 = arith.constant 100 : index
    %497 = vector.load %arg3[%c0_539, %c0_540, %c1_541, %c1_542, %c100_543] : memref<1x1x2x2x256xf32, #tpu.memory_space<vmem>>, vector<1x1x1x1x4xf32>
    %498 = vector.shape_cast %497 : vector<1x1x1x1x4xf32> to vector<1x4xf32>
    %499 = vector.shape_cast %496 : vector<1x4xf32> to vector<1x1x1x1x4xf32>
    tpu.vector_store %arg3[%c0_539, %c0_540, %c1_541, %c1_542, %c100_543], %499 {strides = array<i32>} : memref<1x1x2x2x256xf32, #tpu.memory_space<vmem>>, vector<1x1x1x1x4xf32>,
    %500 = vector.extract_strided_slice %445 {offsets = [6, 0], sizes = [1, 8], strides = [1, 1]} : vector<8x8xf32> to vector<1x8xf32>
    %501 = vector.extract_strided_slice %500 {offsets = [0, 0], sizes = [1, 4], strides = [1, 1]} : vector<1x8xf32> to vector<1x4xf32>
    %c0_544 = arith.constant 0 : index
    %c0_545 = arith.constant 0 : index
    %c1_546 = arith.constant 1 : index
    %c0_547 = arith.constant 0 : index
    %c104_548 = arith.constant 104 : index
    %502 = vector.load %arg3[%c0_544, %c0_545, %c1_546, %c0_547, %c104_548] : memref<1x1x2x2x256xf32, #tpu.memory_space<vmem>>, vector<1x1x1x1x4xf32>
    %503 = vector.shape_cast %502 : vector<1x1x1x1x4xf32> to vector<1x4xf32>
    %504 = vector.shape_cast %501 : vector<1x4xf32> to vector<1x1x1x1x4xf32>
    tpu.vector_store %arg3[%c0_544, %c0_545, %c1_546, %c0_547, %c104_548], %504 {strides = array<i32>} : memref<1x1x2x2x256xf32, #tpu.memory_space<vmem>>, vector<1x1x1x1x4xf32>,
    %505 = vector.extract_strided_slice %500 {offsets = [0, 4], sizes = [1, 4], strides = [1, 1]} : vector<1x8xf32> to vector<1x4xf32>
    %c0_549 = arith.constant 0 : index
    %c0_550 = arith.constant 0 : index
    %c1_551 = arith.constant 1 : index
    %c1_552 = arith.constant 1 : index
    %c104_553 = arith.constant 104 : index
    %506 = vector.load %arg3[%c0_549, %c0_550, %c1_551, %c1_552, %c104_553] : memref<1x1x2x2x256xf32, #tpu.memory_space<vmem>>, vector<1x1x1x1x4xf32>
    %507 = vector.shape_cast %506 : vector<1x1x1x1x4xf32> to vector<1x4xf32>
    %508 = vector.shape_cast %505 : vector<1x4xf32> to vector<1x1x1x1x4xf32>
    tpu.vector_store %arg3[%c0_549, %c0_550, %c1_551, %c1_552, %c104_553], %508 {strides = array<i32>} : memref<1x1x2x2x256xf32, #tpu.memory_space<vmem>>, vector<1x1x1x1x4xf32>,
    %509 = vector.extract_strided_slice %445 {offsets = [7, 0], sizes = [1, 8], strides = [1, 1]} : vector<8x8xf32> to vector<1x8xf32>
    %510 = vector.extract_strided_slice %509 {offsets = [0, 0], sizes = [1, 4], strides = [1, 1]} : vector<1x8xf32> to vector<1x4xf32>
    %c0_554 = arith.constant 0 : index
    %c0_555 = arith.constant 0 : index
    %c1_556 = arith.constant 1 : index
    %c0_557 = arith.constant 0 : index
    %c108_558 = arith.constant 108 : index
    %511 = vector.load %arg3[%c0_554, %c0_555, %c1_556, %c0_557, %c108_558] : memref<1x1x2x2x256xf32, #tpu.memory_space<vmem>>, vector<1x1x1x1x4xf32>
    %512 = vector.shape_cast %511 : vector<1x1x1x1x4xf32> to vector<1x4xf32>
    %513 = vector.shape_cast %510 : vector<1x4xf32> to vector<1x1x1x1x4xf32>
    tpu.vector_store %arg3[%c0_554, %c0_555, %c1_556, %c0_557, %c108_558], %513 {strides = array<i32>} : memref<1x1x2x2x256xf32, #tpu.memory_space<vmem>>, vector<1x1x1x1x4xf32>,
    %514 = vector.extract_strided_slice %509 {offsets = [0, 4], sizes = [1, 4], strides = [1, 1]} : vector<1x8xf32> to vector<1x4xf32>
    %c0_559 = arith.constant 0 : index
    %c0_560 = arith.constant 0 : index
    %c1_561 = arith.constant 1 : index
    %c1_562 = arith.constant 1 : index
    %c108_563 = arith.constant 108 : index
    %515 = vector.load %arg3[%c0_559, %c0_560, %c1_561, %c1_562, %c108_563] : memref<1x1x2x2x256xf32, #tpu.memory_space<vmem>>, vector<1x1x1x1x4xf32>
    %516 = vector.shape_cast %515 : vector<1x1x1x1x4xf32> to vector<1x4xf32>
    %517 = vector.shape_cast %514 : vector<1x4xf32> to vector<1x1x1x1x4xf32>
    tpu.vector_store %arg3[%c0_559, %c0_560, %c1_561, %c1_562, %c108_563], %517 {strides = array<i32>} : memref<1x1x2x2x256xf32, #tpu.memory_space<vmem>>, vector<1x1x1x1x4xf32>,
    %c0_564 = arith.constant 0 : index
    %c1_565 = arith.constant 1 : index
    %c3_566 = arith.constant 3 : index
    %c0_567 = arith.constant 0 : index
    %c0_568 = arith.constant 0 : index
    %518 = vector.load %arg2[%c0_564, %c1_565, %c3_566, %c0_567, %c0_568] : memref<1x4x4x8x8xf32, #tpu.memory_space<vmem>>, vector<1x1x1x8x8xf32>
    %519 = vector.shape_cast %518 : vector<1x1x1x8x8xf32> to vector<8x8xf32>
    %520 = vector.extract_strided_slice %519 {offsets = [0, 0], sizes = [1, 8], strides = [1, 1]} : vector<8x8xf32> to vector<1x8xf32>
    %521 = vector.extract_strided_slice %520 {offsets = [0, 0], sizes = [1, 4], strides = [1, 1]} : vector<1x8xf32> to vector<1x4xf32>
    %c0_569 = arith.constant 0 : index
    %c0_570 = arith.constant 0 : index
    %c0_571 = arith.constant 0 : index
    %c0_572 = arith.constant 0 : index
    %c112 = arith.constant 112 : index
    %522 = vector.load %arg3[%c0_569, %c0_570, %c0_571, %c0_572, %c112] : memref<1x1x2x2x256xf32, #tpu.memory_space<vmem>>, vector<1x1x1x1x4xf32>
    %523 = vector.shape_cast %522 : vector<1x1x1x1x4xf32> to vector<1x4xf32>
    %524 = vector.shape_cast %521 : vector<1x4xf32> to vector<1x1x1x1x4xf32>
    tpu.vector_store %arg3[%c0_569, %c0_570, %c0_571, %c0_572, %c112], %524 {strides = array<i32>} : memref<1x1x2x2x256xf32, #tpu.memory_space<vmem>>, vector<1x1x1x1x4xf32>,
    %525 = vector.extract_strided_slice %520 {offsets = [0, 4], sizes = [1, 4], strides = [1, 1]} : vector<1x8xf32> to vector<1x4xf32>
    %c0_573 = arith.constant 0 : index
    %c0_574 = arith.constant 0 : index
    %c0_575 = arith.constant 0 : index
    %c1_576 = arith.constant 1 : index
    %c112_577 = arith.constant 112 : index
    %526 = vector.load %arg3[%c0_573, %c0_574, %c0_575, %c1_576, %c112_577] : memref<1x1x2x2x256xf32, #tpu.memory_space<vmem>>, vector<1x1x1x1x4xf32>
    %527 = vector.shape_cast %526 : vector<1x1x1x1x4xf32> to vector<1x4xf32>
    %528 = vector.shape_cast %525 : vector<1x4xf32> to vector<1x1x1x1x4xf32>
    tpu.vector_store %arg3[%c0_573, %c0_574, %c0_575, %c1_576, %c112_577], %528 {strides = array<i32>} : memref<1x1x2x2x256xf32, #tpu.memory_space<vmem>>, vector<1x1x1x1x4xf32>,
    %529 = vector.extract_strided_slice %519 {offsets = [1, 0], sizes = [1, 8], strides = [1, 1]} : vector<8x8xf32> to vector<1x8xf32>
    %530 = vector.extract_strided_slice %529 {offsets = [0, 0], sizes = [1, 4], strides = [1, 1]} : vector<1x8xf32> to vector<1x4xf32>
    %c0_578 = arith.constant 0 : index
    %c0_579 = arith.constant 0 : index
    %c0_580 = arith.constant 0 : index
    %c0_581 = arith.constant 0 : index
    %c116 = arith.constant 116 : index
    %531 = vector.load %arg3[%c0_578, %c0_579, %c0_580, %c0_581, %c116] : memref<1x1x2x2x256xf32, #tpu.memory_space<vmem>>, vector<1x1x1x1x4xf32>
    %532 = vector.shape_cast %531 : vector<1x1x1x1x4xf32> to vector<1x4xf32>
    %533 = vector.shape_cast %530 : vector<1x4xf32> to vector<1x1x1x1x4xf32>
    tpu.vector_store %arg3[%c0_578, %c0_579, %c0_580, %c0_581, %c116], %533 {strides = array<i32>} : memref<1x1x2x2x256xf32, #tpu.memory_space<vmem>>, vector<1x1x1x1x4xf32>,
    %534 = vector.extract_strided_slice %529 {offsets = [0, 4], sizes = [1, 4], strides = [1, 1]} : vector<1x8xf32> to vector<1x4xf32>
    %c0_582 = arith.constant 0 : index
    %c0_583 = arith.constant 0 : index
    %c0_584 = arith.constant 0 : index
    %c1_585 = arith.constant 1 : index
    %c116_586 = arith.constant 116 : index
    %535 = vector.load %arg3[%c0_582, %c0_583, %c0_584, %c1_585, %c116_586] : memref<1x1x2x2x256xf32, #tpu.memory_space<vmem>>, vector<1x1x1x1x4xf32>
    %536 = vector.shape_cast %535 : vector<1x1x1x1x4xf32> to vector<1x4xf32>
    %537 = vector.shape_cast %534 : vector<1x4xf32> to vector<1x1x1x1x4xf32>
    tpu.vector_store %arg3[%c0_582, %c0_583, %c0_584, %c1_585, %c116_586], %537 {strides = array<i32>} : memref<1x1x2x2x256xf32, #tpu.memory_space<vmem>>, vector<1x1x1x1x4xf32>,
    %538 = vector.extract_strided_slice %519 {offsets = [2, 0], sizes = [1, 8], strides = [1, 1]} : vector<8x8xf32> to vector<1x8xf32>
    %539 = vector.extract_strided_slice %538 {offsets = [0, 0], sizes = [1, 4], strides = [1, 1]} : vector<1x8xf32> to vector<1x4xf32>
    %c0_587 = arith.constant 0 : index
    %c0_588 = arith.constant 0 : index
    %c0_589 = arith.constant 0 : index
    %c0_590 = arith.constant 0 : index
    %c120 = arith.constant 120 : index
    %540 = vector.load %arg3[%c0_587, %c0_588, %c0_589, %c0_590, %c120] : memref<1x1x2x2x256xf32, #tpu.memory_space<vmem>>, vector<1x1x1x1x4xf32>
    %541 = vector.shape_cast %540 : vector<1x1x1x1x4xf32> to vector<1x4xf32>
    %542 = vector.shape_cast %539 : vector<1x4xf32> to vector<1x1x1x1x4xf32>
    tpu.vector_store %arg3[%c0_587, %c0_588, %c0_589, %c0_590, %c120], %542 {strides = array<i32>} : memref<1x1x2x2x256xf32, #tpu.memory_space<vmem>>, vector<1x1x1x1x4xf32>,
    %543 = vector.extract_strided_slice %538 {offsets = [0, 4], sizes = [1, 4], strides = [1, 1]} : vector<1x8xf32> to vector<1x4xf32>
    %c0_591 = arith.constant 0 : index
    %c0_592 = arith.constant 0 : index
    %c0_593 = arith.constant 0 : index
    %c1_594 = arith.constant 1 : index
    %c120_595 = arith.constant 120 : index
    %544 = vector.load %arg3[%c0_591, %c0_592, %c0_593, %c1_594, %c120_595] : memref<1x1x2x2x256xf32, #tpu.memory_space<vmem>>, vector<1x1x1x1x4xf32>
    %545 = vector.shape_cast %544 : vector<1x1x1x1x4xf32> to vector<1x4xf32>
    %546 = vector.shape_cast %543 : vector<1x4xf32> to vector<1x1x1x1x4xf32>
    tpu.vector_store %arg3[%c0_591, %c0_592, %c0_593, %c1_594, %c120_595], %546 {strides = array<i32>} : memref<1x1x2x2x256xf32, #tpu.memory_space<vmem>>, vector<1x1x1x1x4xf32>,
    %547 = vector.extract_strided_slice %519 {offsets = [3, 0], sizes = [1, 8], strides = [1, 1]} : vector<8x8xf32> to vector<1x8xf32>
    %548 = vector.extract_strided_slice %547 {offsets = [0, 0], sizes = [1, 4], strides = [1, 1]} : vector<1x8xf32> to vector<1x4xf32>
    %c0_596 = arith.constant 0 : index
    %c0_597 = arith.constant 0 : index
    %c0_598 = arith.constant 0 : index
    %c0_599 = arith.constant 0 : index
    %c124 = arith.constant 124 : index
    %549 = vector.load %arg3[%c0_596, %c0_597, %c0_598, %c0_599, %c124] : memref<1x1x2x2x256xf32, #tpu.memory_space<vmem>>, vector<1x1x1x1x4xf32>
    %550 = vector.shape_cast %549 : vector<1x1x1x1x4xf32> to vector<1x4xf32>
    %551 = vector.shape_cast %548 : vector<1x4xf32> to vector<1x1x1x1x4xf32>
    tpu.vector_store %arg3[%c0_596, %c0_597, %c0_598, %c0_599, %c124], %551 {strides = array<i32>} : memref<1x1x2x2x256xf32, #tpu.memory_space<vmem>>, vector<1x1x1x1x4xf32>,
    %552 = vector.extract_strided_slice %547 {offsets = [0, 4], sizes = [1, 4], strides = [1, 1]} : vector<1x8xf32> to vector<1x4xf32>
    %c0_600 = arith.constant 0 : index
    %c0_601 = arith.constant 0 : index
    %c0_602 = arith.constant 0 : index
    %c1_603 = arith.constant 1 : index
    %c124_604 = arith.constant 124 : index
    %553 = vector.load %arg3[%c0_600, %c0_601, %c0_602, %c1_603, %c124_604] : memref<1x1x2x2x256xf32, #tpu.memory_space<vmem>>, vector<1x1x1x1x4xf32>
    %554 = vector.shape_cast %553 : vector<1x1x1x1x4xf32> to vector<1x4xf32>
    %555 = vector.shape_cast %552 : vector<1x4xf32> to vector<1x1x1x1x4xf32>
    tpu.vector_store %arg3[%c0_600, %c0_601, %c0_602, %c1_603, %c124_604], %555 {strides = array<i32>} : memref<1x1x2x2x256xf32, #tpu.memory_space<vmem>>, vector<1x1x1x1x4xf32>,
    %556 = vector.extract_strided_slice %519 {offsets = [4, 0], sizes = [1, 8], strides = [1, 1]} : vector<8x8xf32> to vector<1x8xf32>
    %557 = vector.extract_strided_slice %556 {offsets = [0, 0], sizes = [1, 4], strides = [1, 1]} : vector<1x8xf32> to vector<1x4xf32>
    %c0_605 = arith.constant 0 : index
    %c0_606 = arith.constant 0 : index
    %c1_607 = arith.constant 1 : index
    %c0_608 = arith.constant 0 : index
    %c112_609 = arith.constant 112 : index
    %558 = vector.load %arg3[%c0_605, %c0_606, %c1_607, %c0_608, %c112_609] : memref<1x1x2x2x256xf32, #tpu.memory_space<vmem>>, vector<1x1x1x1x4xf32>
    %559 = vector.shape_cast %558 : vector<1x1x1x1x4xf32> to vector<1x4xf32>
    %560 = vector.shape_cast %557 : vector<1x4xf32> to vector<1x1x1x1x4xf32>
    tpu.vector_store %arg3[%c0_605, %c0_606, %c1_607, %c0_608, %c112_609], %560 {strides = array<i32>} : memref<1x1x2x2x256xf32, #tpu.memory_space<vmem>>, vector<1x1x1x1x4xf32>,
    %561 = vector.extract_strided_slice %556 {offsets = [0, 4], sizes = [1, 4], strides = [1, 1]} : vector<1x8xf32> to vector<1x4xf32>
    %c0_610 = arith.constant 0 : index
    %c0_611 = arith.constant 0 : index
    %c1_612 = arith.constant 1 : index
    %c1_613 = arith.constant 1 : index
    %c112_614 = arith.constant 112 : index
    %562 = vector.load %arg3[%c0_610, %c0_611, %c1_612, %c1_613, %c112_614] : memref<1x1x2x2x256xf32, #tpu.memory_space<vmem>>, vector<1x1x1x1x4xf32>
    %563 = vector.shape_cast %562 : vector<1x1x1x1x4xf32> to vector<1x4xf32>
    %564 = vector.shape_cast %561 : vector<1x4xf32> to vector<1x1x1x1x4xf32>
    tpu.vector_store %arg3[%c0_610, %c0_611, %c1_612, %c1_613, %c112_614], %564 {strides = array<i32>} : memref<1x1x2x2x256xf32, #tpu.memory_space<vmem>>, vector<1x1x1x1x4xf32>,
    %565 = vector.extract_strided_slice %519 {offsets = [5, 0], sizes = [1, 8], strides = [1, 1]} : vector<8x8xf32> to vector<1x8xf32>
    %566 = vector.extract_strided_slice %565 {offsets = [0, 0], sizes = [1, 4], strides = [1, 1]} : vector<1x8xf32> to vector<1x4xf32>
    %c0_615 = arith.constant 0 : index
    %c0_616 = arith.constant 0 : index
    %c1_617 = arith.constant 1 : index
    %c0_618 = arith.constant 0 : index
    %c116_619 = arith.constant 116 : index
    %567 = vector.load %arg3[%c0_615, %c0_616, %c1_617, %c0_618, %c116_619] : memref<1x1x2x2x256xf32, #tpu.memory_space<vmem>>, vector<1x1x1x1x4xf32>
    %568 = vector.shape_cast %567 : vector<1x1x1x1x4xf32> to vector<1x4xf32>
    %569 = vector.shape_cast %566 : vector<1x4xf32> to vector<1x1x1x1x4xf32>
    tpu.vector_store %arg3[%c0_615, %c0_616, %c1_617, %c0_618, %c116_619], %569 {strides = array<i32>} : memref<1x1x2x2x256xf32, #tpu.memory_space<vmem>>, vector<1x1x1x1x4xf32>,
    %570 = vector.extract_strided_slice %565 {offsets = [0, 4], sizes = [1, 4], strides = [1, 1]} : vector<1x8xf32> to vector<1x4xf32>
    %c0_620 = arith.constant 0 : index
    %c0_621 = arith.constant 0 : index
    %c1_622 = arith.constant 1 : index
    %c1_623 = arith.constant 1 : index
    %c116_624 = arith.constant 116 : index
    %571 = vector.load %arg3[%c0_620, %c0_621, %c1_622, %c1_623, %c116_624] : memref<1x1x2x2x256xf32, #tpu.memory_space<vmem>>, vector<1x1x1x1x4xf32>
    %572 = vector.shape_cast %571 : vector<1x1x1x1x4xf32> to vector<1x4xf32>
    %573 = vector.shape_cast %570 : vector<1x4xf32> to vector<1x1x1x1x4xf32>
    tpu.vector_store %arg3[%c0_620, %c0_621, %c1_622, %c1_623, %c116_624], %573 {strides = array<i32>} : memref<1x1x2x2x256xf32, #tpu.memory_space<vmem>>, vector<1x1x1x1x4xf32>,
    %574 = vector.extract_strided_slice %519 {offsets = [6, 0], sizes = [1, 8], strides = [1, 1]} : vector<8x8xf32> to vector<1x8xf32>
    %575 = vector.extract_strided_slice %574 {offsets = [0, 0], sizes = [1, 4], strides = [1, 1]} : vector<1x8xf32> to vector<1x4xf32>
    %c0_625 = arith.constant 0 : index
    %c0_626 = arith.constant 0 : index
    %c1_627 = arith.constant 1 : index
    %c0_628 = arith.constant 0 : index
    %c120_629 = arith.constant 120 : index
    %576 = vector.load %arg3[%c0_625, %c0_626, %c1_627, %c0_628, %c120_629] : memref<1x1x2x2x256xf32, #tpu.memory_space<vmem>>, vector<1x1x1x1x4xf32>
    %577 = vector.shape_cast %576 : vector<1x1x1x1x4xf32> to vector<1x4xf32>
    %578 = vector.shape_cast %575 : vector<1x4xf32> to vector<1x1x1x1x4xf32>
    tpu.vector_store %arg3[%c0_625, %c0_626, %c1_627, %c0_628, %c120_629], %578 {strides = array<i32>} : memref<1x1x2x2x256xf32, #tpu.memory_space<vmem>>, vector<1x1x1x1x4xf32>,
    %579 = vector.extract_strided_slice %574 {offsets = [0, 4], sizes = [1, 4], strides = [1, 1]} : vector<1x8xf32> to vector<1x4xf32>
    %c0_630 = arith.constant 0 : index
    %c0_631 = arith.constant 0 : index
    %c1_632 = arith.constant 1 : index
    %c1_633 = arith.constant 1 : index
    %c120_634 = arith.constant 120 : index
    %580 = vector.load %arg3[%c0_630, %c0_631, %c1_632, %c1_633, %c120_634] : memref<1x1x2x2x256xf32, #tpu.memory_space<vmem>>, vector<1x1x1x1x4xf32>
    %581 = vector.shape_cast %580 : vector<1x1x1x1x4xf32> to vector<1x4xf32>
    %582 = vector.shape_cast %579 : vector<1x4xf32> to vector<1x1x1x1x4xf32>
    tpu.vector_store %arg3[%c0_630, %c0_631, %c1_632, %c1_633, %c120_634], %582 {strides = array<i32>} : memref<1x1x2x2x256xf32, #tpu.memory_space<vmem>>, vector<1x1x1x1x4xf32>,
    %583 = vector.extract_strided_slice %519 {offsets = [7, 0], sizes = [1, 8], strides = [1, 1]} : vector<8x8xf32> to vector<1x8xf32>
    %584 = vector.extract_strided_slice %583 {offsets = [0, 0], sizes = [1, 4], strides = [1, 1]} : vector<1x8xf32> to vector<1x4xf32>
    %c0_635 = arith.constant 0 : index
    %c0_636 = arith.constant 0 : index
    %c1_637 = arith.constant 1 : index
    %c0_638 = arith.constant 0 : index
    %c124_639 = arith.constant 124 : index
    %585 = vector.load %arg3[%c0_635, %c0_636, %c1_637, %c0_638, %c124_639] : memref<1x1x2x2x256xf32, #tpu.memory_space<vmem>>, vector<1x1x1x1x4xf32>
    %586 = vector.shape_cast %585 : vector<1x1x1x1x4xf32> to vector<1x4xf32>
    %587 = vector.shape_cast %584 : vector<1x4xf32> to vector<1x1x1x1x4xf32>
    tpu.vector_store %arg3[%c0_635, %c0_636, %c1_637, %c0_638, %c124_639], %587 {strides = array<i32>} : memref<1x1x2x2x256xf32, #tpu.memory_space<vmem>>, vector<1x1x1x1x4xf32>,
    %588 = vector.extract_strided_slice %583 {offsets = [0, 4], sizes = [1, 4], strides = [1, 1]} : vector<1x8xf32> to vector<1x4xf32>
    %c0_640 = arith.constant 0 : index
    %c0_641 = arith.constant 0 : index
    %c1_642 = arith.constant 1 : index
    %c1_643 = arith.constant 1 : index
    %c124_644 = arith.constant 124 : index
    %589 = vector.load %arg3[%c0_640, %c0_641, %c1_642, %c1_643, %c124_644] : memref<1x1x2x2x256xf32, #tpu.memory_space<vmem>>, vector<1x1x1x1x4xf32>
    %590 = vector.shape_cast %589 : vector<1x1x1x1x4xf32> to vector<1x4xf32>
    %591 = vector.shape_cast %588 : vector<1x4xf32> to vector<1x1x1x1x4xf32>
    tpu.vector_store %arg3[%c0_640, %c0_641, %c1_642, %c1_643, %c124_644], %591 {strides = array<i32>} : memref<1x1x2x2x256xf32, #tpu.memory_space<vmem>>, vector<1x1x1x1x4xf32>,
    %c0_645 = arith.constant 0 : index
    %c2_646 = arith.constant 2 : index
    %c0_647 = arith.constant 0 : index
    %c0_648 = arith.constant 0 : index
    %c0_649 = arith.constant 0 : index
    %592 = vector.load %arg2[%c0_645, %c2_646, %c0_647, %c0_648, %c0_649] : memref<1x4x4x8x8xf32, #tpu.memory_space<vmem>>, vector<1x1x1x8x8xf32>
    %593 = vector.shape_cast %592 : vector<1x1x1x8x8xf32> to vector<8x8xf32>
    %594 = vector.extract_strided_slice %593 {offsets = [0, 0], sizes = [1, 8], strides = [1, 1]} : vector<8x8xf32> to vector<1x8xf32>
    %595 = vector.extract_strided_slice %594 {offsets = [0, 0], sizes = [1, 4], strides = [1, 1]} : vector<1x8xf32> to vector<1x4xf32>
    %c0_650 = arith.constant 0 : index
    %c0_651 = arith.constant 0 : index
    %c0_652 = arith.constant 0 : index
    %c0_653 = arith.constant 0 : index
    %c128 = arith.constant 128 : index
    %596 = vector.load %arg3[%c0_650, %c0_651, %c0_652, %c0_653, %c128] : memref<1x1x2x2x256xf32, #tpu.memory_space<vmem>>, vector<1x1x1x1x4xf32>
    %597 = vector.shape_cast %596 : vector<1x1x1x1x4xf32> to vector<1x4xf32>
    %598 = vector.shape_cast %595 : vector<1x4xf32> to vector<1x1x1x1x4xf32>
    tpu.vector_store %arg3[%c0_650, %c0_651, %c0_652, %c0_653, %c128], %598 {strides = array<i32>} : memref<1x1x2x2x256xf32, #tpu.memory_space<vmem>>, vector<1x1x1x1x4xf32>,
    %599 = vector.extract_strided_slice %594 {offsets = [0, 4], sizes = [1, 4], strides = [1, 1]} : vector<1x8xf32> to vector<1x4xf32>
    %c0_654 = arith.constant 0 : index
    %c0_655 = arith.constant 0 : index
    %c0_656 = arith.constant 0 : index
    %c1_657 = arith.constant 1 : index
    %c128_658 = arith.constant 128 : index
    %600 = vector.load %arg3[%c0_654, %c0_655, %c0_656, %c1_657, %c128_658] : memref<1x1x2x2x256xf32, #tpu.memory_space<vmem>>, vector<1x1x1x1x4xf32>
    %601 = vector.shape_cast %600 : vector<1x1x1x1x4xf32> to vector<1x4xf32>
    %602 = vector.shape_cast %599 : vector<1x4xf32> to vector<1x1x1x1x4xf32>
    tpu.vector_store %arg3[%c0_654, %c0_655, %c0_656, %c1_657, %c128_658], %602 {strides = array<i32>} : memref<1x1x2x2x256xf32, #tpu.memory_space<vmem>>, vector<1x1x1x1x4xf32>,
    %603 = vector.extract_strided_slice %593 {offsets = [1, 0], sizes = [1, 8], strides = [1, 1]} : vector<8x8xf32> to vector<1x8xf32>
    %604 = vector.extract_strided_slice %603 {offsets = [0, 0], sizes = [1, 4], strides = [1, 1]} : vector<1x8xf32> to vector<1x4xf32>
    %c0_659 = arith.constant 0 : index
    %c0_660 = arith.constant 0 : index
    %c0_661 = arith.constant 0 : index
    %c0_662 = arith.constant 0 : index
    %c132 = arith.constant 132 : index
    %605 = vector.load %arg3[%c0_659, %c0_660, %c0_661, %c0_662, %c132] : memref<1x1x2x2x256xf32, #tpu.memory_space<vmem>>, vector<1x1x1x1x4xf32>
    %606 = vector.shape_cast %605 : vector<1x1x1x1x4xf32> to vector<1x4xf32>
    %607 = vector.shape_cast %604 : vector<1x4xf32> to vector<1x1x1x1x4xf32>
    tpu.vector_store %arg3[%c0_659, %c0_660, %c0_661, %c0_662, %c132], %607 {strides = array<i32>} : memref<1x1x2x2x256xf32, #tpu.memory_space<vmem>>, vector<1x1x1x1x4xf32>,
    %608 = vector.extract_strided_slice %603 {offsets = [0, 4], sizes = [1, 4], strides = [1, 1]} : vector<1x8xf32> to vector<1x4xf32>
    %c0_663 = arith.constant 0 : index
    %c0_664 = arith.constant 0 : index
    %c0_665 = arith.constant 0 : index
    %c1_666 = arith.constant 1 : index
    %c132_667 = arith.constant 132 : index
    %609 = vector.load %arg3[%c0_663, %c0_664, %c0_665, %c1_666, %c132_667] : memref<1x1x2x2x256xf32, #tpu.memory_space<vmem>>, vector<1x1x1x1x4xf32>
    %610 = vector.shape_cast %609 : vector<1x1x1x1x4xf32> to vector<1x4xf32>
    %611 = vector.shape_cast %608 : vector<1x4xf32> to vector<1x1x1x1x4xf32>
    tpu.vector_store %arg3[%c0_663, %c0_664, %c0_665, %c1_666, %c132_667], %611 {strides = array<i32>} : memref<1x1x2x2x256xf32, #tpu.memory_space<vmem>>, vector<1x1x1x1x4xf32>,
    %612 = vector.extract_strided_slice %593 {offsets = [2, 0], sizes = [1, 8], strides = [1, 1]} : vector<8x8xf32> to vector<1x8xf32>
    %613 = vector.extract_strided_slice %612 {offsets = [0, 0], sizes = [1, 4], strides = [1, 1]} : vector<1x8xf32> to vector<1x4xf32>
    %c0_668 = arith.constant 0 : index
    %c0_669 = arith.constant 0 : index
    %c0_670 = arith.constant 0 : index
    %c0_671 = arith.constant 0 : index
    %c136 = arith.constant 136 : index
    %614 = vector.load %arg3[%c0_668, %c0_669, %c0_670, %c0_671, %c136] : memref<1x1x2x2x256xf32, #tpu.memory_space<vmem>>, vector<1x1x1x1x4xf32>
    %615 = vector.shape_cast %614 : vector<1x1x1x1x4xf32> to vector<1x4xf32>
    %616 = vector.shape_cast %613 : vector<1x4xf32> to vector<1x1x1x1x4xf32>
    tpu.vector_store %arg3[%c0_668, %c0_669, %c0_670, %c0_671, %c136], %616 {strides = array<i32>} : memref<1x1x2x2x256xf32, #tpu.memory_space<vmem>>, vector<1x1x1x1x4xf32>,
    %617 = vector.extract_strided_slice %612 {offsets = [0, 4], sizes = [1, 4], strides = [1, 1]} : vector<1x8xf32> to vector<1x4xf32>
    %c0_672 = arith.constant 0 : index
    %c0_673 = arith.constant 0 : index
    %c0_674 = arith.constant 0 : index
    %c1_675 = arith.constant 1 : index
    %c136_676 = arith.constant 136 : index
    %618 = vector.load %arg3[%c0_672, %c0_673, %c0_674, %c1_675, %c136_676] : memref<1x1x2x2x256xf32, #tpu.memory_space<vmem>>, vector<1x1x1x1x4xf32>
    %619 = vector.shape_cast %618 : vector<1x1x1x1x4xf32> to vector<1x4xf32>
    %620 = vector.shape_cast %617 : vector<1x4xf32> to vector<1x1x1x1x4xf32>
    tpu.vector_store %arg3[%c0_672, %c0_673, %c0_674, %c1_675, %c136_676], %620 {strides = array<i32>} : memref<1x1x2x2x256xf32, #tpu.memory_space<vmem>>, vector<1x1x1x1x4xf32>,
    %621 = vector.extract_strided_slice %593 {offsets = [3, 0], sizes = [1, 8], strides = [1, 1]} : vector<8x8xf32> to vector<1x8xf32>
    %622 = vector.extract_strided_slice %621 {offsets = [0, 0], sizes = [1, 4], strides = [1, 1]} : vector<1x8xf32> to vector<1x4xf32>
    %c0_677 = arith.constant 0 : index
    %c0_678 = arith.constant 0 : index
    %c0_679 = arith.constant 0 : index
    %c0_680 = arith.constant 0 : index
    %c140 = arith.constant 140 : index
    %623 = vector.load %arg3[%c0_677, %c0_678, %c0_679, %c0_680, %c140] : memref<1x1x2x2x256xf32, #tpu.memory_space<vmem>>, vector<1x1x1x1x4xf32>
    %624 = vector.shape_cast %623 : vector<1x1x1x1x4xf32> to vector<1x4xf32>
    %625 = vector.shape_cast %622 : vector<1x4xf32> to vector<1x1x1x1x4xf32>
    tpu.vector_store %arg3[%c0_677, %c0_678, %c0_679, %c0_680, %c140], %625 {strides = array<i32>} : memref<1x1x2x2x256xf32, #tpu.memory_space<vmem>>, vector<1x1x1x1x4xf32>,
    %626 = vector.extract_strided_slice %621 {offsets = [0, 4], sizes = [1, 4], strides = [1, 1]} : vector<1x8xf32> to vector<1x4xf32>
    %c0_681 = arith.constant 0 : index
    %c0_682 = arith.constant 0 : index
    %c0_683 = arith.constant 0 : index
    %c1_684 = arith.constant 1 : index
    %c140_685 = arith.constant 140 : index
    %627 = vector.load %arg3[%c0_681, %c0_682, %c0_683, %c1_684, %c140_685] : memref<1x1x2x2x256xf32, #tpu.memory_space<vmem>>, vector<1x1x1x1x4xf32>
    %628 = vector.shape_cast %627 : vector<1x1x1x1x4xf32> to vector<1x4xf32>
    %629 = vector.shape_cast %626 : vector<1x4xf32> to vector<1x1x1x1x4xf32>
    tpu.vector_store %arg3[%c0_681, %c0_682, %c0_683, %c1_684, %c140_685], %629 {strides = array<i32>} : memref<1x1x2x2x256xf32, #tpu.memory_space<vmem>>, vector<1x1x1x1x4xf32>,
    %630 = vector.extract_strided_slice %593 {offsets = [4, 0], sizes = [1, 8], strides = [1, 1]} : vector<8x8xf32> to vector<1x8xf32>
    %631 = vector.extract_strided_slice %630 {offsets = [0, 0], sizes = [1, 4], strides = [1, 1]} : vector<1x8xf32> to vector<1x4xf32>
    %c0_686 = arith.constant 0 : index
    %c0_687 = arith.constant 0 : index
    %c1_688 = arith.constant 1 : index
    %c0_689 = arith.constant 0 : index
    %c128_690 = arith.constant 128 : index
    %632 = vector.load %arg3[%c0_686, %c0_687, %c1_688, %c0_689, %c128_690] : memref<1x1x2x2x256xf32, #tpu.memory_space<vmem>>, vector<1x1x1x1x4xf32>
    %633 = vector.shape_cast %632 : vector<1x1x1x1x4xf32> to vector<1x4xf32>
    %634 = vector.shape_cast %631 : vector<1x4xf32> to vector<1x1x1x1x4xf32>
    tpu.vector_store %arg3[%c0_686, %c0_687, %c1_688, %c0_689, %c128_690], %634 {strides = array<i32>} : memref<1x1x2x2x256xf32, #tpu.memory_space<vmem>>, vector<1x1x1x1x4xf32>,
    %635 = vector.extract_strided_slice %630 {offsets = [0, 4], sizes = [1, 4], strides = [1, 1]} : vector<1x8xf32> to vector<1x4xf32>
    %c0_691 = arith.constant 0 : index
    %c0_692 = arith.constant 0 : index
    %c1_693 = arith.constant 1 : index
    %c1_694 = arith.constant 1 : index
    %c128_695 = arith.constant 128 : index
    %636 = vector.load %arg3[%c0_691, %c0_692, %c1_693, %c1_694, %c128_695] : memref<1x1x2x2x256xf32, #tpu.memory_space<vmem>>, vector<1x1x1x1x4xf32>
    %637 = vector.shape_cast %636 : vector<1x1x1x1x4xf32> to vector<1x4xf32>
    %638 = vector.shape_cast %635 : vector<1x4xf32> to vector<1x1x1x1x4xf32>
    tpu.vector_store %arg3[%c0_691, %c0_692, %c1_693, %c1_694, %c128_695], %638 {strides = array<i32>} : memref<1x1x2x2x256xf32, #tpu.memory_space<vmem>>, vector<1x1x1x1x4xf32>,
    %639 = vector.extract_strided_slice %593 {offsets = [5, 0], sizes = [1, 8], strides = [1, 1]} : vector<8x8xf32> to vector<1x8xf32>
    %640 = vector.extract_strided_slice %639 {offsets = [0, 0], sizes = [1, 4], strides = [1, 1]} : vector<1x8xf32> to vector<1x4xf32>
    %c0_696 = arith.constant 0 : index
    %c0_697 = arith.constant 0 : index
    %c1_698 = arith.constant 1 : index
    %c0_699 = arith.constant 0 : index
    %c132_700 = arith.constant 132 : index
    %641 = vector.load %arg3[%c0_696, %c0_697, %c1_698, %c0_699, %c132_700] : memref<1x1x2x2x256xf32, #tpu.memory_space<vmem>>, vector<1x1x1x1x4xf32>
    %642 = vector.shape_cast %641 : vector<1x1x1x1x4xf32> to vector<1x4xf32>
    %643 = vector.shape_cast %640 : vector<1x4xf32> to vector<1x1x1x1x4xf32>
    tpu.vector_store %arg3[%c0_696, %c0_697, %c1_698, %c0_699, %c132_700], %643 {strides = array<i32>} : memref<1x1x2x2x256xf32, #tpu.memory_space<vmem>>, vector<1x1x1x1x4xf32>,
    %644 = vector.extract_strided_slice %639 {offsets = [0, 4], sizes = [1, 4], strides = [1, 1]} : vector<1x8xf32> to vector<1x4xf32>
    %c0_701 = arith.constant 0 : index
    %c0_702 = arith.constant 0 : index
    %c1_703 = arith.constant 1 : index
    %c1_704 = arith.constant 1 : index
    %c132_705 = arith.constant 132 : index
    %645 = vector.load %arg3[%c0_701, %c0_702, %c1_703, %c1_704, %c132_705] : memref<1x1x2x2x256xf32, #tpu.memory_space<vmem>>, vector<1x1x1x1x4xf32>
    %646 = vector.shape_cast %645 : vector<1x1x1x1x4xf32> to vector<1x4xf32>
    %647 = vector.shape_cast %644 : vector<1x4xf32> to vector<1x1x1x1x4xf32>
    tpu.vector_store %arg3[%c0_701, %c0_702, %c1_703, %c1_704, %c132_705], %647 {strides = array<i32>} : memref<1x1x2x2x256xf32, #tpu.memory_space<vmem>>, vector<1x1x1x1x4xf32>,
    %648 = vector.extract_strided_slice %593 {offsets = [6, 0], sizes = [1, 8], strides = [1, 1]} : vector<8x8xf32> to vector<1x8xf32>
    %649 = vector.extract_strided_slice %648 {offsets = [0, 0], sizes = [1, 4], strides = [1, 1]} : vector<1x8xf32> to vector<1x4xf32>
    %c0_706 = arith.constant 0 : index
    %c0_707 = arith.constant 0 : index
    %c1_708 = arith.constant 1 : index
    %c0_709 = arith.constant 0 : index
    %c136_710 = arith.constant 136 : index
    %650 = vector.load %arg3[%c0_706, %c0_707, %c1_708, %c0_709, %c136_710] : memref<1x1x2x2x256xf32, #tpu.memory_space<vmem>>, vector<1x1x1x1x4xf32>
    %651 = vector.shape_cast %650 : vector<1x1x1x1x4xf32> to vector<1x4xf32>
    %652 = vector.shape_cast %649 : vector<1x4xf32> to vector<1x1x1x1x4xf32>
    tpu.vector_store %arg3[%c0_706, %c0_707, %c1_708, %c0_709, %c136_710], %652 {strides = array<i32>} : memref<1x1x2x2x256xf32, #tpu.memory_space<vmem>>, vector<1x1x1x1x4xf32>,
    %653 = vector.extract_strided_slice %648 {offsets = [0, 4], sizes = [1, 4], strides = [1, 1]} : vector<1x8xf32> to vector<1x4xf32>
    %c0_711 = arith.constant 0 : index
    %c0_712 = arith.constant 0 : index
    %c1_713 = arith.constant 1 : index
    %c1_714 = arith.constant 1 : index
    %c136_715 = arith.constant 136 : index
    %654 = vector.load %arg3[%c0_711, %c0_712, %c1_713, %c1_714, %c136_715] : memref<1x1x2x2x256xf32, #tpu.memory_space<vmem>>, vector<1x1x1x1x4xf32>
    %655 = vector.shape_cast %654 : vector<1x1x1x1x4xf32> to vector<1x4xf32>
    %656 = vector.shape_cast %653 : vector<1x4xf32> to vector<1x1x1x1x4xf32>
    tpu.vector_store %arg3[%c0_711, %c0_712, %c1_713, %c1_714, %c136_715], %656 {strides = array<i32>} : memref<1x1x2x2x256xf32, #tpu.memory_space<vmem>>, vector<1x1x1x1x4xf32>,
    %657 = vector.extract_strided_slice %593 {offsets = [7, 0], sizes = [1, 8], strides = [1, 1]} : vector<8x8xf32> to vector<1x8xf32>
    %658 = vector.extract_strided_slice %657 {offsets = [0, 0], sizes = [1, 4], strides = [1, 1]} : vector<1x8xf32> to vector<1x4xf32>
    %c0_716 = arith.constant 0 : index
    %c0_717 = arith.constant 0 : index
    %c1_718 = arith.constant 1 : index
    %c0_719 = arith.constant 0 : index
    %c140_720 = arith.constant 140 : index
    %659 = vector.load %arg3[%c0_716, %c0_717, %c1_718, %c0_719, %c140_720] : memref<1x1x2x2x256xf32, #tpu.memory_space<vmem>>, vector<1x1x1x1x4xf32>
    %660 = vector.shape_cast %659 : vector<1x1x1x1x4xf32> to vector<1x4xf32>
    %661 = vector.shape_cast %658 : vector<1x4xf32> to vector<1x1x1x1x4xf32>
    tpu.vector_store %arg3[%c0_716, %c0_717, %c1_718, %c0_719, %c140_720], %661 {strides = array<i32>} : memref<1x1x2x2x256xf32, #tpu.memory_space<vmem>>, vector<1x1x1x1x4xf32>,
    %662 = vector.extract_strided_slice %657 {offsets = [0, 4], sizes = [1, 4], strides = [1, 1]} : vector<1x8xf32> to vector<1x4xf32>
    %c0_721 = arith.constant 0 : index
    %c0_722 = arith.constant 0 : index
    %c1_723 = arith.constant 1 : index
    %c1_724 = arith.constant 1 : index
    %c140_725 = arith.constant 140 : index
    %663 = vector.load %arg3[%c0_721, %c0_722, %c1_723, %c1_724, %c140_725] : memref<1x1x2x2x256xf32, #tpu.memory_space<vmem>>, vector<1x1x1x1x4xf32>
    %664 = vector.shape_cast %663 : vector<1x1x1x1x4xf32> to vector<1x4xf32>
    %665 = vector.shape_cast %662 : vector<1x4xf32> to vector<1x1x1x1x4xf32>
    tpu.vector_store %arg3[%c0_721, %c0_722, %c1_723, %c1_724, %c140_725], %665 {strides = array<i32>} : memref<1x1x2x2x256xf32, #tpu.memory_space<vmem>>, vector<1x1x1x1x4xf32>,
    %c0_726 = arith.constant 0 : index
    %c2_727 = arith.constant 2 : index
    %c1_728 = arith.constant 1 : index
    %c0_729 = arith.constant 0 : index
    %c0_730 = arith.constant 0 : index
    %666 = vector.load %arg2[%c0_726, %c2_727, %c1_728, %c0_729, %c0_730] : memref<1x4x4x8x8xf32, #tpu.memory_space<vmem>>, vector<1x1x1x8x8xf32>
    %667 = vector.shape_cast %666 : vector<1x1x1x8x8xf32> to vector<8x8xf32>
    %668 = vector.extract_strided_slice %667 {offsets = [0, 0], sizes = [1, 8], strides = [1, 1]} : vector<8x8xf32> to vector<1x8xf32>
    %669 = vector.extract_strided_slice %668 {offsets = [0, 0], sizes = [1, 4], strides = [1, 1]} : vector<1x8xf32> to vector<1x4xf32>
    %c0_731 = arith.constant 0 : index
    %c0_732 = arith.constant 0 : index
    %c0_733 = arith.constant 0 : index
    %c0_734 = arith.constant 0 : index
    %c144 = arith.constant 144 : index
    %670 = vector.load %arg3[%c0_731, %c0_732, %c0_733, %c0_734, %c144] : memref<1x1x2x2x256xf32, #tpu.memory_space<vmem>>, vector<1x1x1x1x4xf32>
    %671 = vector.shape_cast %670 : vector<1x1x1x1x4xf32> to vector<1x4xf32>
    %672 = vector.shape_cast %669 : vector<1x4xf32> to vector<1x1x1x1x4xf32>
    tpu.vector_store %arg3[%c0_731, %c0_732, %c0_733, %c0_734, %c144], %672 {strides = array<i32>} : memref<1x1x2x2x256xf32, #tpu.memory_space<vmem>>, vector<1x1x1x1x4xf32>,
    %673 = vector.extract_strided_slice %668 {offsets = [0, 4], sizes = [1, 4], strides = [1, 1]} : vector<1x8xf32> to vector<1x4xf32>
    %c0_735 = arith.constant 0 : index
    %c0_736 = arith.constant 0 : index
    %c0_737 = arith.constant 0 : index
    %c1_738 = arith.constant 1 : index
    %c144_739 = arith.constant 144 : index
    %674 = vector.load %arg3[%c0_735, %c0_736, %c0_737, %c1_738, %c144_739] : memref<1x1x2x2x256xf32, #tpu.memory_space<vmem>>, vector<1x1x1x1x4xf32>
    %675 = vector.shape_cast %674 : vector<1x1x1x1x4xf32> to vector<1x4xf32>
    %676 = vector.shape_cast %673 : vector<1x4xf32> to vector<1x1x1x1x4xf32>
    tpu.vector_store %arg3[%c0_735, %c0_736, %c0_737, %c1_738, %c144_739], %676 {strides = array<i32>} : memref<1x1x2x2x256xf32, #tpu.memory_space<vmem>>, vector<1x1x1x1x4xf32>,
    %677 = vector.extract_strided_slice %667 {offsets = [1, 0], sizes = [1, 8], strides = [1, 1]} : vector<8x8xf32> to vector<1x8xf32>
    %678 = vector.extract_strided_slice %677 {offsets = [0, 0], sizes = [1, 4], strides = [1, 1]} : vector<1x8xf32> to vector<1x4xf32>
    %c0_740 = arith.constant 0 : index
    %c0_741 = arith.constant 0 : index
    %c0_742 = arith.constant 0 : index
    %c0_743 = arith.constant 0 : index
    %c148 = arith.constant 148 : index
    %679 = vector.load %arg3[%c0_740, %c0_741, %c0_742, %c0_743, %c148] : memref<1x1x2x2x256xf32, #tpu.memory_space<vmem>>, vector<1x1x1x1x4xf32>
    %680 = vector.shape_cast %679 : vector<1x1x1x1x4xf32> to vector<1x4xf32>
    %681 = vector.shape_cast %678 : vector<1x4xf32> to vector<1x1x1x1x4xf32>
    tpu.vector_store %arg3[%c0_740, %c0_741, %c0_742, %c0_743, %c148], %681 {strides = array<i32>} : memref<1x1x2x2x256xf32, #tpu.memory_space<vmem>>, vector<1x1x1x1x4xf32>,
    %682 = vector.extract_strided_slice %677 {offsets = [0, 4], sizes = [1, 4], strides = [1, 1]} : vector<1x8xf32> to vector<1x4xf32>
    %c0_744 = arith.constant 0 : index
    %c0_745 = arith.constant 0 : index
    %c0_746 = arith.constant 0 : index
    %c1_747 = arith.constant 1 : index
    %c148_748 = arith.constant 148 : index
    %683 = vector.load %arg3[%c0_744, %c0_745, %c0_746, %c1_747, %c148_748] : memref<1x1x2x2x256xf32, #tpu.memory_space<vmem>>, vector<1x1x1x1x4xf32>
    %684 = vector.shape_cast %683 : vector<1x1x1x1x4xf32> to vector<1x4xf32>
    %685 = vector.shape_cast %682 : vector<1x4xf32> to vector<1x1x1x1x4xf32>
    tpu.vector_store %arg3[%c0_744, %c0_745, %c0_746, %c1_747, %c148_748], %685 {strides = array<i32>} : memref<1x1x2x2x256xf32, #tpu.memory_space<vmem>>, vector<1x1x1x1x4xf32>,
    %686 = vector.extract_strided_slice %667 {offsets = [2, 0], sizes = [1, 8], strides = [1, 1]} : vector<8x8xf32> to vector<1x8xf32>
    %687 = vector.extract_strided_slice %686 {offsets = [0, 0], sizes = [1, 4], strides = [1, 1]} : vector<1x8xf32> to vector<1x4xf32>
    %c0_749 = arith.constant 0 : index
    %c0_750 = arith.constant 0 : index
    %c0_751 = arith.constant 0 : index
    %c0_752 = arith.constant 0 : index
    %c152 = arith.constant 152 : index
    %688 = vector.load %arg3[%c0_749, %c0_750, %c0_751, %c0_752, %c152] : memref<1x1x2x2x256xf32, #tpu.memory_space<vmem>>, vector<1x1x1x1x4xf32>
    %689 = vector.shape_cast %688 : vector<1x1x1x1x4xf32> to vector<1x4xf32>
    %690 = vector.shape_cast %687 : vector<1x4xf32> to vector<1x1x1x1x4xf32>
    tpu.vector_store %arg3[%c0_749, %c0_750, %c0_751, %c0_752, %c152], %690 {strides = array<i32>} : memref<1x1x2x2x256xf32, #tpu.memory_space<vmem>>, vector<1x1x1x1x4xf32>,
    %691 = vector.extract_strided_slice %686 {offsets = [0, 4], sizes = [1, 4], strides = [1, 1]} : vector<1x8xf32> to vector<1x4xf32>
    %c0_753 = arith.constant 0 : index
    %c0_754 = arith.constant 0 : index
    %c0_755 = arith.constant 0 : index
    %c1_756 = arith.constant 1 : index
    %c152_757 = arith.constant 152 : index
    %692 = vector.load %arg3[%c0_753, %c0_754, %c0_755, %c1_756, %c152_757] : memref<1x1x2x2x256xf32, #tpu.memory_space<vmem>>, vector<1x1x1x1x4xf32>
    %693 = vector.shape_cast %692 : vector<1x1x1x1x4xf32> to vector<1x4xf32>
    %694 = vector.shape_cast %691 : vector<1x4xf32> to vector<1x1x1x1x4xf32>
    tpu.vector_store %arg3[%c0_753, %c0_754, %c0_755, %c1_756, %c152_757], %694 {strides = array<i32>} : memref<1x1x2x2x256xf32, #tpu.memory_space<vmem>>, vector<1x1x1x1x4xf32>,
    %695 = vector.extract_strided_slice %667 {offsets = [3, 0], sizes = [1, 8], strides = [1, 1]} : vector<8x8xf32> to vector<1x8xf32>
    %696 = vector.extract_strided_slice %695 {offsets = [0, 0], sizes = [1, 4], strides = [1, 1]} : vector<1x8xf32> to vector<1x4xf32>
    %c0_758 = arith.constant 0 : index
    %c0_759 = arith.constant 0 : index
    %c0_760 = arith.constant 0 : index
    %c0_761 = arith.constant 0 : index
    %c156 = arith.constant 156 : index
    %697 = vector.load %arg3[%c0_758, %c0_759, %c0_760, %c0_761, %c156] : memref<1x1x2x2x256xf32, #tpu.memory_space<vmem>>, vector<1x1x1x1x4xf32>
    %698 = vector.shape_cast %697 : vector<1x1x1x1x4xf32> to vector<1x4xf32>
    %699 = vector.shape_cast %696 : vector<1x4xf32> to vector<1x1x1x1x4xf32>
    tpu.vector_store %arg3[%c0_758, %c0_759, %c0_760, %c0_761, %c156], %699 {strides = array<i32>} : memref<1x1x2x2x256xf32, #tpu.memory_space<vmem>>, vector<1x1x1x1x4xf32>,
    %700 = vector.extract_strided_slice %695 {offsets = [0, 4], sizes = [1, 4], strides = [1, 1]} : vector<1x8xf32> to vector<1x4xf32>
    %c0_762 = arith.constant 0 : index
    %c0_763 = arith.constant 0 : index
    %c0_764 = arith.constant 0 : index
    %c1_765 = arith.constant 1 : index
    %c156_766 = arith.constant 156 : index
    %701 = vector.load %arg3[%c0_762, %c0_763, %c0_764, %c1_765, %c156_766] : memref<1x1x2x2x256xf32, #tpu.memory_space<vmem>>, vector<1x1x1x1x4xf32>
    %702 = vector.shape_cast %701 : vector<1x1x1x1x4xf32> to vector<1x4xf32>
    %703 = vector.shape_cast %700 : vector<1x4xf32> to vector<1x1x1x1x4xf32>
    tpu.vector_store %arg3[%c0_762, %c0_763, %c0_764, %c1_765, %c156_766], %703 {strides = array<i32>} : memref<1x1x2x2x256xf32, #tpu.memory_space<vmem>>, vector<1x1x1x1x4xf32>,
    %704 = vector.extract_strided_slice %667 {offsets = [4, 0], sizes = [1, 8], strides = [1, 1]} : vector<8x8xf32> to vector<1x8xf32>
    %705 = vector.extract_strided_slice %704 {offsets = [0, 0], sizes = [1, 4], strides = [1, 1]} : vector<1x8xf32> to vector<1x4xf32>
    %c0_767 = arith.constant 0 : index
    %c0_768 = arith.constant 0 : index
    %c1_769 = arith.constant 1 : index
    %c0_770 = arith.constant 0 : index
    %c144_771 = arith.constant 144 : index
    %706 = vector.load %arg3[%c0_767, %c0_768, %c1_769, %c0_770, %c144_771] : memref<1x1x2x2x256xf32, #tpu.memory_space<vmem>>, vector<1x1x1x1x4xf32>
    %707 = vector.shape_cast %706 : vector<1x1x1x1x4xf32> to vector<1x4xf32>
    %708 = vector.shape_cast %705 : vector<1x4xf32> to vector<1x1x1x1x4xf32>
    tpu.vector_store %arg3[%c0_767, %c0_768, %c1_769, %c0_770, %c144_771], %708 {strides = array<i32>} : memref<1x1x2x2x256xf32, #tpu.memory_space<vmem>>, vector<1x1x1x1x4xf32>,
    %709 = vector.extract_strided_slice %704 {offsets = [0, 4], sizes = [1, 4], strides = [1, 1]} : vector<1x8xf32> to vector<1x4xf32>
    %c0_772 = arith.constant 0 : index
    %c0_773 = arith.constant 0 : index
    %c1_774 = arith.constant 1 : index
    %c1_775 = arith.constant 1 : index
    %c144_776 = arith.constant 144 : index
    %710 = vector.load %arg3[%c0_772, %c0_773, %c1_774, %c1_775, %c144_776] : memref<1x1x2x2x256xf32, #tpu.memory_space<vmem>>, vector<1x1x1x1x4xf32>
    %711 = vector.shape_cast %710 : vector<1x1x1x1x4xf32> to vector<1x4xf32>
    %712 = vector.shape_cast %709 : vector<1x4xf32> to vector<1x1x1x1x4xf32>
    tpu.vector_store %arg3[%c0_772, %c0_773, %c1_774, %c1_775, %c144_776], %712 {strides = array<i32>} : memref<1x1x2x2x256xf32, #tpu.memory_space<vmem>>, vector<1x1x1x1x4xf32>,
    %713 = vector.extract_strided_slice %667 {offsets = [5, 0], sizes = [1, 8], strides = [1, 1]} : vector<8x8xf32> to vector<1x8xf32>
    %714 = vector.extract_strided_slice %713 {offsets = [0, 0], sizes = [1, 4], strides = [1, 1]} : vector<1x8xf32> to vector<1x4xf32>
    %c0_777 = arith.constant 0 : index
    %c0_778 = arith.constant 0 : index
    %c1_779 = arith.constant 1 : index
    %c0_780 = arith.constant 0 : index
    %c148_781 = arith.constant 148 : index
    %715 = vector.load %arg3[%c0_777, %c0_778, %c1_779, %c0_780, %c148_781] : memref<1x1x2x2x256xf32, #tpu.memory_space<vmem>>, vector<1x1x1x1x4xf32>
    %716 = vector.shape_cast %715 : vector<1x1x1x1x4xf32> to vector<1x4xf32>
    %717 = vector.shape_cast %714 : vector<1x4xf32> to vector<1x1x1x1x4xf32>
    tpu.vector_store %arg3[%c0_777, %c0_778, %c1_779, %c0_780, %c148_781], %717 {strides = array<i32>} : memref<1x1x2x2x256xf32, #tpu.memory_space<vmem>>, vector<1x1x1x1x4xf32>,
    %718 = vector.extract_strided_slice %713 {offsets = [0, 4], sizes = [1, 4], strides = [1, 1]} : vector<1x8xf32> to vector<1x4xf32>
    %c0_782 = arith.constant 0 : index
    %c0_783 = arith.constant 0 : index
    %c1_784 = arith.constant 1 : index
    %c1_785 = arith.constant 1 : index
    %c148_786 = arith.constant 148 : index
    %719 = vector.load %arg3[%c0_782, %c0_783, %c1_784, %c1_785, %c148_786] : memref<1x1x2x2x256xf32, #tpu.memory_space<vmem>>, vector<1x1x1x1x4xf32>
    %720 = vector.shape_cast %719 : vector<1x1x1x1x4xf32> to vector<1x4xf32>
    %721 = vector.shape_cast %718 : vector<1x4xf32> to vector<1x1x1x1x4xf32>
    tpu.vector_store %arg3[%c0_782, %c0_783, %c1_784, %c1_785, %c148_786], %721 {strides = array<i32>} : memref<1x1x2x2x256xf32, #tpu.memory_space<vmem>>, vector<1x1x1x1x4xf32>,
    %722 = vector.extract_strided_slice %667 {offsets = [6, 0], sizes = [1, 8], strides = [1, 1]} : vector<8x8xf32> to vector<1x8xf32>
    %723 = vector.extract_strided_slice %722 {offsets = [0, 0], sizes = [1, 4], strides = [1, 1]} : vector<1x8xf32> to vector<1x4xf32>
    %c0_787 = arith.constant 0 : index
    %c0_788 = arith.constant 0 : index
    %c1_789 = arith.constant 1 : index
    %c0_790 = arith.constant 0 : index
    %c152_791 = arith.constant 152 : index
    %724 = vector.load %arg3[%c0_787, %c0_788, %c1_789, %c0_790, %c152_791] : memref<1x1x2x2x256xf32, #tpu.memory_space<vmem>>, vector<1x1x1x1x4xf32>
    %725 = vector.shape_cast %724 : vector<1x1x1x1x4xf32> to vector<1x4xf32>
    %726 = vector.shape_cast %723 : vector<1x4xf32> to vector<1x1x1x1x4xf32>
    tpu.vector_store %arg3[%c0_787, %c0_788, %c1_789, %c0_790, %c152_791], %726 {strides = array<i32>} : memref<1x1x2x2x256xf32, #tpu.memory_space<vmem>>, vector<1x1x1x1x4xf32>,
    %727 = vector.extract_strided_slice %722 {offsets = [0, 4], sizes = [1, 4], strides = [1, 1]} : vector<1x8xf32> to vector<1x4xf32>
    %c0_792 = arith.constant 0 : index
    %c0_793 = arith.constant 0 : index
    %c1_794 = arith.constant 1 : index
    %c1_795 = arith.constant 1 : index
    %c152_796 = arith.constant 152 : index
    %728 = vector.load %arg3[%c0_792, %c0_793, %c1_794, %c1_795, %c152_796] : memref<1x1x2x2x256xf32, #tpu.memory_space<vmem>>, vector<1x1x1x1x4xf32>
    %729 = vector.shape_cast %728 : vector<1x1x1x1x4xf32> to vector<1x4xf32>
    %730 = vector.shape_cast %727 : vector<1x4xf32> to vector<1x1x1x1x4xf32>
    tpu.vector_store %arg3[%c0_792, %c0_793, %c1_794, %c1_795, %c152_796], %730 {strides = array<i32>} : memref<1x1x2x2x256xf32, #tpu.memory_space<vmem>>, vector<1x1x1x1x4xf32>,
    %731 = vector.extract_strided_slice %667 {offsets = [7, 0], sizes = [1, 8], strides = [1, 1]} : vector<8x8xf32> to vector<1x8xf32>
    %732 = vector.extract_strided_slice %731 {offsets = [0, 0], sizes = [1, 4], strides = [1, 1]} : vector<1x8xf32> to vector<1x4xf32>
    %c0_797 = arith.constant 0 : index
    %c0_798 = arith.constant 0 : index
    %c1_799 = arith.constant 1 : index
    %c0_800 = arith.constant 0 : index
    %c156_801 = arith.constant 156 : index
    %733 = vector.load %arg3[%c0_797, %c0_798, %c1_799, %c0_800, %c156_801] : memref<1x1x2x2x256xf32, #tpu.memory_space<vmem>>, vector<1x1x1x1x4xf32>
    %734 = vector.shape_cast %733 : vector<1x1x1x1x4xf32> to vector<1x4xf32>
    %735 = vector.shape_cast %732 : vector<1x4xf32> to vector<1x1x1x1x4xf32>
    tpu.vector_store %arg3[%c0_797, %c0_798, %c1_799, %c0_800, %c156_801], %735 {strides = array<i32>} : memref<1x1x2x2x256xf32, #tpu.memory_space<vmem>>, vector<1x1x1x1x4xf32>,
    %736 = vector.extract_strided_slice %731 {offsets = [0, 4], sizes = [1, 4], strides = [1, 1]} : vector<1x8xf32> to vector<1x4xf32>
    %c0_802 = arith.constant 0 : index
    %c0_803 = arith.constant 0 : index
    %c1_804 = arith.constant 1 : index
    %c1_805 = arith.constant 1 : index
    %c156_806 = arith.constant 156 : index
    %737 = vector.load %arg3[%c0_802, %c0_803, %c1_804, %c1_805, %c156_806] : memref<1x1x2x2x256xf32, #tpu.memory_space<vmem>>, vector<1x1x1x1x4xf32>
    %738 = vector.shape_cast %737 : vector<1x1x1x1x4xf32> to vector<1x4xf32>
    %739 = vector.shape_cast %736 : vector<1x4xf32> to vector<1x1x1x1x4xf32>
    tpu.vector_store %arg3[%c0_802, %c0_803, %c1_804, %c1_805, %c156_806], %739 {strides = array<i32>} : memref<1x1x2x2x256xf32, #tpu.memory_space<vmem>>, vector<1x1x1x1x4xf32>,
    %c0_807 = arith.constant 0 : index
    %c2_808 = arith.constant 2 : index
    %c2_809 = arith.constant 2 : index
    %c0_810 = arith.constant 0 : index
    %c0_811 = arith.constant 0 : index
    %740 = vector.load %arg2[%c0_807, %c2_808, %c2_809, %c0_810, %c0_811] : memref<1x4x4x8x8xf32, #tpu.memory_space<vmem>>, vector<1x1x1x8x8xf32>
    %741 = vector.shape_cast %740 : vector<1x1x1x8x8xf32> to vector<8x8xf32>
    %742 = vector.extract_strided_slice %741 {offsets = [0, 0], sizes = [1, 8], strides = [1, 1]} : vector<8x8xf32> to vector<1x8xf32>
    %743 = vector.extract_strided_slice %742 {offsets = [0, 0], sizes = [1, 4], strides = [1, 1]} : vector<1x8xf32> to vector<1x4xf32>
    %c0_812 = arith.constant 0 : index
    %c0_813 = arith.constant 0 : index
    %c0_814 = arith.constant 0 : index
    %c0_815 = arith.constant 0 : index
    %c160 = arith.constant 160 : index
    %744 = vector.load %arg3[%c0_812, %c0_813, %c0_814, %c0_815, %c160] : memref<1x1x2x2x256xf32, #tpu.memory_space<vmem>>, vector<1x1x1x1x4xf32>
    %745 = vector.shape_cast %744 : vector<1x1x1x1x4xf32> to vector<1x4xf32>
    %746 = vector.shape_cast %743 : vector<1x4xf32> to vector<1x1x1x1x4xf32>
    tpu.vector_store %arg3[%c0_812, %c0_813, %c0_814, %c0_815, %c160], %746 {strides = array<i32>} : memref<1x1x2x2x256xf32, #tpu.memory_space<vmem>>, vector<1x1x1x1x4xf32>,
    %747 = vector.extract_strided_slice %742 {offsets = [0, 4], sizes = [1, 4], strides = [1, 1]} : vector<1x8xf32> to vector<1x4xf32>
    %c0_816 = arith.constant 0 : index
    %c0_817 = arith.constant 0 : index
    %c0_818 = arith.constant 0 : index
    %c1_819 = arith.constant 1 : index
    %c160_820 = arith.constant 160 : index
    %748 = vector.load %arg3[%c0_816, %c0_817, %c0_818, %c1_819, %c160_820] : memref<1x1x2x2x256xf32, #tpu.memory_space<vmem>>, vector<1x1x1x1x4xf32>
    %749 = vector.shape_cast %748 : vector<1x1x1x1x4xf32> to vector<1x4xf32>
    %750 = vector.shape_cast %747 : vector<1x4xf32> to vector<1x1x1x1x4xf32>
    tpu.vector_store %arg3[%c0_816, %c0_817, %c0_818, %c1_819, %c160_820], %750 {strides = array<i32>} : memref<1x1x2x2x256xf32, #tpu.memory_space<vmem>>, vector<1x1x1x1x4xf32>,
    %751 = vector.extract_strided_slice %741 {offsets = [1, 0], sizes = [1, 8], strides = [1, 1]} : vector<8x8xf32> to vector<1x8xf32>
    %752 = vector.extract_strided_slice %751 {offsets = [0, 0], sizes = [1, 4], strides = [1, 1]} : vector<1x8xf32> to vector<1x4xf32>
    %c0_821 = arith.constant 0 : index
    %c0_822 = arith.constant 0 : index
    %c0_823 = arith.constant 0 : index
    %c0_824 = arith.constant 0 : index
    %c164 = arith.constant 164 : index
    %753 = vector.load %arg3[%c0_821, %c0_822, %c0_823, %c0_824, %c164] : memref<1x1x2x2x256xf32, #tpu.memory_space<vmem>>, vector<1x1x1x1x4xf32>
    %754 = vector.shape_cast %753 : vector<1x1x1x1x4xf32> to vector<1x4xf32>
    %755 = vector.shape_cast %752 : vector<1x4xf32> to vector<1x1x1x1x4xf32>
    tpu.vector_store %arg3[%c0_821, %c0_822, %c0_823, %c0_824, %c164], %755 {strides = array<i32>} : memref<1x1x2x2x256xf32, #tpu.memory_space<vmem>>, vector<1x1x1x1x4xf32>,
    %756 = vector.extract_strided_slice %751 {offsets = [0, 4], sizes = [1, 4], strides = [1, 1]} : vector<1x8xf32> to vector<1x4xf32>
    %c0_825 = arith.constant 0 : index
    %c0_826 = arith.constant 0 : index
    %c0_827 = arith.constant 0 : index
    %c1_828 = arith.constant 1 : index
    %c164_829 = arith.constant 164 : index
    %757 = vector.load %arg3[%c0_825, %c0_826, %c0_827, %c1_828, %c164_829] : memref<1x1x2x2x256xf32, #tpu.memory_space<vmem>>, vector<1x1x1x1x4xf32>
    %758 = vector.shape_cast %757 : vector<1x1x1x1x4xf32> to vector<1x4xf32>
    %759 = vector.shape_cast %756 : vector<1x4xf32> to vector<1x1x1x1x4xf32>
    tpu.vector_store %arg3[%c0_825, %c0_826, %c0_827, %c1_828, %c164_829], %759 {strides = array<i32>} : memref<1x1x2x2x256xf32, #tpu.memory_space<vmem>>, vector<1x1x1x1x4xf32>,
    %760 = vector.extract_strided_slice %741 {offsets = [2, 0], sizes = [1, 8], strides = [1, 1]} : vector<8x8xf32> to vector<1x8xf32>
    %761 = vector.extract_strided_slice %760 {offsets = [0, 0], sizes = [1, 4], strides = [1, 1]} : vector<1x8xf32> to vector<1x4xf32>
    %c0_830 = arith.constant 0 : index
    %c0_831 = arith.constant 0 : index
    %c0_832 = arith.constant 0 : index
    %c0_833 = arith.constant 0 : index
    %c168 = arith.constant 168 : index
    %762 = vector.load %arg3[%c0_830, %c0_831, %c0_832, %c0_833, %c168] : memref<1x1x2x2x256xf32, #tpu.memory_space<vmem>>, vector<1x1x1x1x4xf32>
    %763 = vector.shape_cast %762 : vector<1x1x1x1x4xf32> to vector<1x4xf32>
    %764 = vector.shape_cast %761 : vector<1x4xf32> to vector<1x1x1x1x4xf32>
    tpu.vector_store %arg3[%c0_830, %c0_831, %c0_832, %c0_833, %c168], %764 {strides = array<i32>} : memref<1x1x2x2x256xf32, #tpu.memory_space<vmem>>, vector<1x1x1x1x4xf32>,
    %765 = vector.extract_strided_slice %760 {offsets = [0, 4], sizes = [1, 4], strides = [1, 1]} : vector<1x8xf32> to vector<1x4xf32>
    %c0_834 = arith.constant 0 : index
    %c0_835 = arith.constant 0 : index
    %c0_836 = arith.constant 0 : index
    %c1_837 = arith.constant 1 : index
    %c168_838 = arith.constant 168 : index
    %766 = vector.load %arg3[%c0_834, %c0_835, %c0_836, %c1_837, %c168_838] : memref<1x1x2x2x256xf32, #tpu.memory_space<vmem>>, vector<1x1x1x1x4xf32>
    %767 = vector.shape_cast %766 : vector<1x1x1x1x4xf32> to vector<1x4xf32>
    %768 = vector.shape_cast %765 : vector<1x4xf32> to vector<1x1x1x1x4xf32>
    tpu.vector_store %arg3[%c0_834, %c0_835, %c0_836, %c1_837, %c168_838], %768 {strides = array<i32>} : memref<1x1x2x2x256xf32, #tpu.memory_space<vmem>>, vector<1x1x1x1x4xf32>,
    %769 = vector.extract_strided_slice %741 {offsets = [3, 0], sizes = [1, 8], strides = [1, 1]} : vector<8x8xf32> to vector<1x8xf32>
    %770 = vector.extract_strided_slice %769 {offsets = [0, 0], sizes = [1, 4], strides = [1, 1]} : vector<1x8xf32> to vector<1x4xf32>
    %c0_839 = arith.constant 0 : index
    %c0_840 = arith.constant 0 : index
    %c0_841 = arith.constant 0 : index
    %c0_842 = arith.constant 0 : index
    %c172 = arith.constant 172 : index
    %771 = vector.load %arg3[%c0_839, %c0_840, %c0_841, %c0_842, %c172] : memref<1x1x2x2x256xf32, #tpu.memory_space<vmem>>, vector<1x1x1x1x4xf32>
    %772 = vector.shape_cast %771 : vector<1x1x1x1x4xf32> to vector<1x4xf32>
    %773 = vector.shape_cast %770 : vector<1x4xf32> to vector<1x1x1x1x4xf32>
    tpu.vector_store %arg3[%c0_839, %c0_840, %c0_841, %c0_842, %c172], %773 {strides = array<i32>} : memref<1x1x2x2x256xf32, #tpu.memory_space<vmem>>, vector<1x1x1x1x4xf32>,
    %774 = vector.extract_strided_slice %769 {offsets = [0, 4], sizes = [1, 4], strides = [1, 1]} : vector<1x8xf32> to vector<1x4xf32>
    %c0_843 = arith.constant 0 : index
    %c0_844 = arith.constant 0 : index
    %c0_845 = arith.constant 0 : index
    %c1_846 = arith.constant 1 : index
    %c172_847 = arith.constant 172 : index
    %775 = vector.load %arg3[%c0_843, %c0_844, %c0_845, %c1_846, %c172_847] : memref<1x1x2x2x256xf32, #tpu.memory_space<vmem>>, vector<1x1x1x1x4xf32>
    %776 = vector.shape_cast %775 : vector<1x1x1x1x4xf32> to vector<1x4xf32>
    %777 = vector.shape_cast %774 : vector<1x4xf32> to vector<1x1x1x1x4xf32>
    tpu.vector_store %arg3[%c0_843, %c0_844, %c0_845, %c1_846, %c172_847], %777 {strides = array<i32>} : memref<1x1x2x2x256xf32, #tpu.memory_space<vmem>>, vector<1x1x1x1x4xf32>,
    %778 = vector.extract_strided_slice %741 {offsets = [4, 0], sizes = [1, 8], strides = [1, 1]} : vector<8x8xf32> to vector<1x8xf32>
    %779 = vector.extract_strided_slice %778 {offsets = [0, 0], sizes = [1, 4], strides = [1, 1]} : vector<1x8xf32> to vector<1x4xf32>
    %c0_848 = arith.constant 0 : index
    %c0_849 = arith.constant 0 : index
    %c1_850 = arith.constant 1 : index
    %c0_851 = arith.constant 0 : index
    %c160_852 = arith.constant 160 : index
    %780 = vector.load %arg3[%c0_848, %c0_849, %c1_850, %c0_851, %c160_852] : memref<1x1x2x2x256xf32, #tpu.memory_space<vmem>>, vector<1x1x1x1x4xf32>
    %781 = vector.shape_cast %780 : vector<1x1x1x1x4xf32> to vector<1x4xf32>
    %782 = vector.shape_cast %779 : vector<1x4xf32> to vector<1x1x1x1x4xf32>
    tpu.vector_store %arg3[%c0_848, %c0_849, %c1_850, %c0_851, %c160_852], %782 {strides = array<i32>} : memref<1x1x2x2x256xf32, #tpu.memory_space<vmem>>, vector<1x1x1x1x4xf32>,
    %783 = vector.extract_strided_slice %778 {offsets = [0, 4], sizes = [1, 4], strides = [1, 1]} : vector<1x8xf32> to vector<1x4xf32>
    %c0_853 = arith.constant 0 : index
    %c0_854 = arith.constant 0 : index
    %c1_855 = arith.constant 1 : index
    %c1_856 = arith.constant 1 : index
    %c160_857 = arith.constant 160 : index
    %784 = vector.load %arg3[%c0_853, %c0_854, %c1_855, %c1_856, %c160_857] : memref<1x1x2x2x256xf32, #tpu.memory_space<vmem>>, vector<1x1x1x1x4xf32>
    %785 = vector.shape_cast %784 : vector<1x1x1x1x4xf32> to vector<1x4xf32>
    %786 = vector.shape_cast %783 : vector<1x4xf32> to vector<1x1x1x1x4xf32>
    tpu.vector_store %arg3[%c0_853, %c0_854, %c1_855, %c1_856, %c160_857], %786 {strides = array<i32>} : memref<1x1x2x2x256xf32, #tpu.memory_space<vmem>>, vector<1x1x1x1x4xf32>,
    %787 = vector.extract_strided_slice %741 {offsets = [5, 0], sizes = [1, 8], strides = [1, 1]} : vector<8x8xf32> to vector<1x8xf32>
    %788 = vector.extract_strided_slice %787 {offsets = [0, 0], sizes = [1, 4], strides = [1, 1]} : vector<1x8xf32> to vector<1x4xf32>
    %c0_858 = arith.constant 0 : index
    %c0_859 = arith.constant 0 : index
    %c1_860 = arith.constant 1 : index
    %c0_861 = arith.constant 0 : index
    %c164_862 = arith.constant 164 : index
    %789 = vector.load %arg3[%c0_858, %c0_859, %c1_860, %c0_861, %c164_862] : memref<1x1x2x2x256xf32, #tpu.memory_space<vmem>>, vector<1x1x1x1x4xf32>
    %790 = vector.shape_cast %789 : vector<1x1x1x1x4xf32> to vector<1x4xf32>
    %791 = vector.shape_cast %788 : vector<1x4xf32> to vector<1x1x1x1x4xf32>
    tpu.vector_store %arg3[%c0_858, %c0_859, %c1_860, %c0_861, %c164_862], %791 {strides = array<i32>} : memref<1x1x2x2x256xf32, #tpu.memory_space<vmem>>, vector<1x1x1x1x4xf32>,
    %792 = vector.extract_strided_slice %787 {offsets = [0, 4], sizes = [1, 4], strides = [1, 1]} : vector<1x8xf32> to vector<1x4xf32>
    %c0_863 = arith.constant 0 : index
    %c0_864 = arith.constant 0 : index
    %c1_865 = arith.constant 1 : index
    %c1_866 = arith.constant 1 : index
    %c164_867 = arith.constant 164 : index
    %793 = vector.load %arg3[%c0_863, %c0_864, %c1_865, %c1_866, %c164_867] : memref<1x1x2x2x256xf32, #tpu.memory_space<vmem>>, vector<1x1x1x1x4xf32>
    %794 = vector.shape_cast %793 : vector<1x1x1x1x4xf32> to vector<1x4xf32>
    %795 = vector.shape_cast %792 : vector<1x4xf32> to vector<1x1x1x1x4xf32>
    tpu.vector_store %arg3[%c0_863, %c0_864, %c1_865, %c1_866, %c164_867], %795 {strides = array<i32>} : memref<1x1x2x2x256xf32, #tpu.memory_space<vmem>>, vector<1x1x1x1x4xf32>,
    %796 = vector.extract_strided_slice %741 {offsets = [6, 0], sizes = [1, 8], strides = [1, 1]} : vector<8x8xf32> to vector<1x8xf32>
    %797 = vector.extract_strided_slice %796 {offsets = [0, 0], sizes = [1, 4], strides = [1, 1]} : vector<1x8xf32> to vector<1x4xf32>
    %c0_868 = arith.constant 0 : index
    %c0_869 = arith.constant 0 : index
    %c1_870 = arith.constant 1 : index
    %c0_871 = arith.constant 0 : index
    %c168_872 = arith.constant 168 : index
    %798 = vector.load %arg3[%c0_868, %c0_869, %c1_870, %c0_871, %c168_872] : memref<1x1x2x2x256xf32, #tpu.memory_space<vmem>>, vector<1x1x1x1x4xf32>
    %799 = vector.shape_cast %798 : vector<1x1x1x1x4xf32> to vector<1x4xf32>
    %800 = vector.shape_cast %797 : vector<1x4xf32> to vector<1x1x1x1x4xf32>
    tpu.vector_store %arg3[%c0_868, %c0_869, %c1_870, %c0_871, %c168_872], %800 {strides = array<i32>} : memref<1x1x2x2x256xf32, #tpu.memory_space<vmem>>, vector<1x1x1x1x4xf32>,
    %801 = vector.extract_strided_slice %796 {offsets = [0, 4], sizes = [1, 4], strides = [1, 1]} : vector<1x8xf32> to vector<1x4xf32>
    %c0_873 = arith.constant 0 : index
    %c0_874 = arith.constant 0 : index
    %c1_875 = arith.constant 1 : index
    %c1_876 = arith.constant 1 : index
    %c168_877 = arith.constant 168 : index
    %802 = vector.load %arg3[%c0_873, %c0_874, %c1_875, %c1_876, %c168_877] : memref<1x1x2x2x256xf32, #tpu.memory_space<vmem>>, vector<1x1x1x1x4xf32>
    %803 = vector.shape_cast %802 : vector<1x1x1x1x4xf32> to vector<1x4xf32>
    %804 = vector.shape_cast %801 : vector<1x4xf32> to vector<1x1x1x1x4xf32>
    tpu.vector_store %arg3[%c0_873, %c0_874, %c1_875, %c1_876, %c168_877], %804 {strides = array<i32>} : memref<1x1x2x2x256xf32, #tpu.memory_space<vmem>>, vector<1x1x1x1x4xf32>,
    %805 = vector.extract_strided_slice %741 {offsets = [7, 0], sizes = [1, 8], strides = [1, 1]} : vector<8x8xf32> to vector<1x8xf32>
    %806 = vector.extract_strided_slice %805 {offsets = [0, 0], sizes = [1, 4], strides = [1, 1]} : vector<1x8xf32> to vector<1x4xf32>
    %c0_878 = arith.constant 0 : index
    %c0_879 = arith.constant 0 : index
    %c1_880 = arith.constant 1 : index
    %c0_881 = arith.constant 0 : index
    %c172_882 = arith.constant 172 : index
    %807 = vector.load %arg3[%c0_878, %c0_879, %c1_880, %c0_881, %c172_882] : memref<1x1x2x2x256xf32, #tpu.memory_space<vmem>>, vector<1x1x1x1x4xf32>
    %808 = vector.shape_cast %807 : vector<1x1x1x1x4xf32> to vector<1x4xf32>
    %809 = vector.shape_cast %806 : vector<1x4xf32> to vector<1x1x1x1x4xf32>
    tpu.vector_store %arg3[%c0_878, %c0_879, %c1_880, %c0_881, %c172_882], %809 {strides = array<i32>} : memref<1x1x2x2x256xf32, #tpu.memory_space<vmem>>, vector<1x1x1x1x4xf32>,
    %810 = vector.extract_strided_slice %805 {offsets = [0, 4], sizes = [1, 4], strides = [1, 1]} : vector<1x8xf32> to vector<1x4xf32>
    %c0_883 = arith.constant 0 : index
    %c0_884 = arith.constant 0 : index
    %c1_885 = arith.constant 1 : index
    %c1_886 = arith.constant 1 : index
    %c172_887 = arith.constant 172 : index
    %811 = vector.load %arg3[%c0_883, %c0_884, %c1_885, %c1_886, %c172_887] : memref<1x1x2x2x256xf32, #tpu.memory_space<vmem>>, vector<1x1x1x1x4xf32>
    %812 = vector.shape_cast %811 : vector<1x1x1x1x4xf32> to vector<1x4xf32>
    %813 = vector.shape_cast %810 : vector<1x4xf32> to vector<1x1x1x1x4xf32>
    tpu.vector_store %arg3[%c0_883, %c0_884, %c1_885, %c1_886, %c172_887], %813 {strides = array<i32>} : memref<1x1x2x2x256xf32, #tpu.memory_space<vmem>>, vector<1x1x1x1x4xf32>,
    %c0_888 = arith.constant 0 : index
    %c2_889 = arith.constant 2 : index
    %c3_890 = arith.constant 3 : index
    %c0_891 = arith.constant 0 : index
    %c0_892 = arith.constant 0 : index
    %814 = vector.load %arg2[%c0_888, %c2_889, %c3_890, %c0_891, %c0_892] : memref<1x4x4x8x8xf32, #tpu.memory_space<vmem>>, vector<1x1x1x8x8xf32>
    %815 = vector.shape_cast %814 : vector<1x1x1x8x8xf32> to vector<8x8xf32>
    %816 = vector.extract_strided_slice %815 {offsets = [0, 0], sizes = [1, 8], strides = [1, 1]} : vector<8x8xf32> to vector<1x8xf32>
    %817 = vector.extract_strided_slice %816 {offsets = [0, 0], sizes = [1, 4], strides = [1, 1]} : vector<1x8xf32> to vector<1x4xf32>
    %c0_893 = arith.constant 0 : index
    %c0_894 = arith.constant 0 : index
    %c0_895 = arith.constant 0 : index
    %c0_896 = arith.constant 0 : index
    %c176 = arith.constant 176 : index
    %818 = vector.load %arg3[%c0_893, %c0_894, %c0_895, %c0_896, %c176] : memref<1x1x2x2x256xf32, #tpu.memory_space<vmem>>, vector<1x1x1x1x4xf32>
    %819 = vector.shape_cast %818 : vector<1x1x1x1x4xf32> to vector<1x4xf32>
    %820 = vector.shape_cast %817 : vector<1x4xf32> to vector<1x1x1x1x4xf32>
    tpu.vector_store %arg3[%c0_893, %c0_894, %c0_895, %c0_896, %c176], %820 {strides = array<i32>} : memref<1x1x2x2x256xf32, #tpu.memory_space<vmem>>, vector<1x1x1x1x4xf32>,
    %821 = vector.extract_strided_slice %816 {offsets = [0, 4], sizes = [1, 4], strides = [1, 1]} : vector<1x8xf32> to vector<1x4xf32>
    %c0_897 = arith.constant 0 : index
    %c0_898 = arith.constant 0 : index
    %c0_899 = arith.constant 0 : index
    %c1_900 = arith.constant 1 : index
    %c176_901 = arith.constant 176 : index
    %822 = vector.load %arg3[%c0_897, %c0_898, %c0_899, %c1_900, %c176_901] : memref<1x1x2x2x256xf32, #tpu.memory_space<vmem>>, vector<1x1x1x1x4xf32>
    %823 = vector.shape_cast %822 : vector<1x1x1x1x4xf32> to vector<1x4xf32>
    %824 = vector.shape_cast %821 : vector<1x4xf32> to vector<1x1x1x1x4xf32>
    tpu.vector_store %arg3[%c0_897, %c0_898, %c0_899, %c1_900, %c176_901], %824 {strides = array<i32>} : memref<1x1x2x2x256xf32, #tpu.memory_space<vmem>>, vector<1x1x1x1x4xf32>,
    %825 = vector.extract_strided_slice %815 {offsets = [1, 0], sizes = [1, 8], strides = [1, 1]} : vector<8x8xf32> to vector<1x8xf32>
    %826 = vector.extract_strided_slice %825 {offsets = [0, 0], sizes = [1, 4], strides = [1, 1]} : vector<1x8xf32> to vector<1x4xf32>
    %c0_902 = arith.constant 0 : index
    %c0_903 = arith.constant 0 : index
    %c0_904 = arith.constant 0 : index
    %c0_905 = arith.constant 0 : index
    %c180 = arith.constant 180 : index
    %827 = vector.load %arg3[%c0_902, %c0_903, %c0_904, %c0_905, %c180] : memref<1x1x2x2x256xf32, #tpu.memory_space<vmem>>, vector<1x1x1x1x4xf32>
    %828 = vector.shape_cast %827 : vector<1x1x1x1x4xf32> to vector<1x4xf32>
    %829 = vector.shape_cast %826 : vector<1x4xf32> to vector<1x1x1x1x4xf32>
    tpu.vector_store %arg3[%c0_902, %c0_903, %c0_904, %c0_905, %c180], %829 {strides = array<i32>} : memref<1x1x2x2x256xf32, #tpu.memory_space<vmem>>, vector<1x1x1x1x4xf32>,
    %830 = vector.extract_strided_slice %825 {offsets = [0, 4], sizes = [1, 4], strides = [1, 1]} : vector<1x8xf32> to vector<1x4xf32>
    %c0_906 = arith.constant 0 : index
    %c0_907 = arith.constant 0 : index
    %c0_908 = arith.constant 0 : index
    %c1_909 = arith.constant 1 : index
    %c180_910 = arith.constant 180 : index
    %831 = vector.load %arg3[%c0_906, %c0_907, %c0_908, %c1_909, %c180_910] : memref<1x1x2x2x256xf32, #tpu.memory_space<vmem>>, vector<1x1x1x1x4xf32>
    %832 = vector.shape_cast %831 : vector<1x1x1x1x4xf32> to vector<1x4xf32>
    %833 = vector.shape_cast %830 : vector<1x4xf32> to vector<1x1x1x1x4xf32>
    tpu.vector_store %arg3[%c0_906, %c0_907, %c0_908, %c1_909, %c180_910], %833 {strides = array<i32>} : memref<1x1x2x2x256xf32, #tpu.memory_space<vmem>>, vector<1x1x1x1x4xf32>,
    %834 = vector.extract_strided_slice %815 {offsets = [2, 0], sizes = [1, 8], strides = [1, 1]} : vector<8x8xf32> to vector<1x8xf32>
    %835 = vector.extract_strided_slice %834 {offsets = [0, 0], sizes = [1, 4], strides = [1, 1]} : vector<1x8xf32> to vector<1x4xf32>
    %c0_911 = arith.constant 0 : index
    %c0_912 = arith.constant 0 : index
    %c0_913 = arith.constant 0 : index
    %c0_914 = arith.constant 0 : index
    %c184 = arith.constant 184 : index
    %836 = vector.load %arg3[%c0_911, %c0_912, %c0_913, %c0_914, %c184] : memref<1x1x2x2x256xf32, #tpu.memory_space<vmem>>, vector<1x1x1x1x4xf32>
    %837 = vector.shape_cast %836 : vector<1x1x1x1x4xf32> to vector<1x4xf32>
    %838 = vector.shape_cast %835 : vector<1x4xf32> to vector<1x1x1x1x4xf32>
    tpu.vector_store %arg3[%c0_911, %c0_912, %c0_913, %c0_914, %c184], %838 {strides = array<i32>} : memref<1x1x2x2x256xf32, #tpu.memory_space<vmem>>, vector<1x1x1x1x4xf32>,
    %839 = vector.extract_strided_slice %834 {offsets = [0, 4], sizes = [1, 4], strides = [1, 1]} : vector<1x8xf32> to vector<1x4xf32>
    %c0_915 = arith.constant 0 : index
    %c0_916 = arith.constant 0 : index
    %c0_917 = arith.constant 0 : index
    %c1_918 = arith.constant 1 : index
    %c184_919 = arith.constant 184 : index
    %840 = vector.load %arg3[%c0_915, %c0_916, %c0_917, %c1_918, %c184_919] : memref<1x1x2x2x256xf32, #tpu.memory_space<vmem>>, vector<1x1x1x1x4xf32>
    %841 = vector.shape_cast %840 : vector<1x1x1x1x4xf32> to vector<1x4xf32>
    %842 = vector.shape_cast %839 : vector<1x4xf32> to vector<1x1x1x1x4xf32>
    tpu.vector_store %arg3[%c0_915, %c0_916, %c0_917, %c1_918, %c184_919], %842 {strides = array<i32>} : memref<1x1x2x2x256xf32, #tpu.memory_space<vmem>>, vector<1x1x1x1x4xf32>,
    %843 = vector.extract_strided_slice %815 {offsets = [3, 0], sizes = [1, 8], strides = [1, 1]} : vector<8x8xf32> to vector<1x8xf32>
    %844 = vector.extract_strided_slice %843 {offsets = [0, 0], sizes = [1, 4], strides = [1, 1]} : vector<1x8xf32> to vector<1x4xf32>
    %c0_920 = arith.constant 0 : index
    %c0_921 = arith.constant 0 : index
    %c0_922 = arith.constant 0 : index
    %c0_923 = arith.constant 0 : index
    %c188 = arith.constant 188 : index
    %845 = vector.load %arg3[%c0_920, %c0_921, %c0_922, %c0_923, %c188] : memref<1x1x2x2x256xf32, #tpu.memory_space<vmem>>, vector<1x1x1x1x4xf32>
    %846 = vector.shape_cast %845 : vector<1x1x1x1x4xf32> to vector<1x4xf32>
    %847 = vector.shape_cast %844 : vector<1x4xf32> to vector<1x1x1x1x4xf32>
    tpu.vector_store %arg3[%c0_920, %c0_921, %c0_922, %c0_923, %c188], %847 {strides = array<i32>} : memref<1x1x2x2x256xf32, #tpu.memory_space<vmem>>, vector<1x1x1x1x4xf32>,
    %848 = vector.extract_strided_slice %843 {offsets = [0, 4], sizes = [1, 4], strides = [1, 1]} : vector<1x8xf32> to vector<1x4xf32>
    %c0_924 = arith.constant 0 : index
    %c0_925 = arith.constant 0 : index
    %c0_926 = arith.constant 0 : index
    %c1_927 = arith.constant 1 : index
    %c188_928 = arith.constant 188 : index
    %849 = vector.load %arg3[%c0_924, %c0_925, %c0_926, %c1_927, %c188_928] : memref<1x1x2x2x256xf32, #tpu.memory_space<vmem>>, vector<1x1x1x1x4xf32>
    %850 = vector.shape_cast %849 : vector<1x1x1x1x4xf32> to vector<1x4xf32>
    %851 = vector.shape_cast %848 : vector<1x4xf32> to vector<1x1x1x1x4xf32>
    tpu.vector_store %arg3[%c0_924, %c0_925, %c0_926, %c1_927, %c188_928], %851 {strides = array<i32>} : memref<1x1x2x2x256xf32, #tpu.memory_space<vmem>>, vector<1x1x1x1x4xf32>,
    %852 = vector.extract_strided_slice %815 {offsets = [4, 0], sizes = [1, 8], strides = [1, 1]} : vector<8x8xf32> to vector<1x8xf32>
    %853 = vector.extract_strided_slice %852 {offsets = [0, 0], sizes = [1, 4], strides = [1, 1]} : vector<1x8xf32> to vector<1x4xf32>
    %c0_929 = arith.constant 0 : index
    %c0_930 = arith.constant 0 : index
    %c1_931 = arith.constant 1 : index
    %c0_932 = arith.constant 0 : index
    %c176_933 = arith.constant 176 : index
    %854 = vector.load %arg3[%c0_929, %c0_930, %c1_931, %c0_932, %c176_933] : memref<1x1x2x2x256xf32, #tpu.memory_space<vmem>>, vector<1x1x1x1x4xf32>
    %855 = vector.shape_cast %854 : vector<1x1x1x1x4xf32> to vector<1x4xf32>
    %856 = vector.shape_cast %853 : vector<1x4xf32> to vector<1x1x1x1x4xf32>
    tpu.vector_store %arg3[%c0_929, %c0_930, %c1_931, %c0_932, %c176_933], %856 {strides = array<i32>} : memref<1x1x2x2x256xf32, #tpu.memory_space<vmem>>, vector<1x1x1x1x4xf32>,
    %857 = vector.extract_strided_slice %852 {offsets = [0, 4], sizes = [1, 4], strides = [1, 1]} : vector<1x8xf32> to vector<1x4xf32>
    %c0_934 = arith.constant 0 : index
    %c0_935 = arith.constant 0 : index
    %c1_936 = arith.constant 1 : index
    %c1_937 = arith.constant 1 : index
    %c176_938 = arith.constant 176 : index
    %858 = vector.load %arg3[%c0_934, %c0_935, %c1_936, %c1_937, %c176_938] : memref<1x1x2x2x256xf32, #tpu.memory_space<vmem>>, vector<1x1x1x1x4xf32>
    %859 = vector.shape_cast %858 : vector<1x1x1x1x4xf32> to vector<1x4xf32>
    %860 = vector.shape_cast %857 : vector<1x4xf32> to vector<1x1x1x1x4xf32>
    tpu.vector_store %arg3[%c0_934, %c0_935, %c1_936, %c1_937, %c176_938], %860 {strides = array<i32>} : memref<1x1x2x2x256xf32, #tpu.memory_space<vmem>>, vector<1x1x1x1x4xf32>,
    %861 = vector.extract_strided_slice %815 {offsets = [5, 0], sizes = [1, 8], strides = [1, 1]} : vector<8x8xf32> to vector<1x8xf32>
    %862 = vector.extract_strided_slice %861 {offsets = [0, 0], sizes = [1, 4], strides = [1, 1]} : vector<1x8xf32> to vector<1x4xf32>
    %c0_939 = arith.constant 0 : index
    %c0_940 = arith.constant 0 : index
    %c1_941 = arith.constant 1 : index
    %c0_942 = arith.constant 0 : index
    %c180_943 = arith.constant 180 : index
    %863 = vector.load %arg3[%c0_939, %c0_940, %c1_941, %c0_942, %c180_943] : memref<1x1x2x2x256xf32, #tpu.memory_space<vmem>>, vector<1x1x1x1x4xf32>
    %864 = vector.shape_cast %863 : vector<1x1x1x1x4xf32> to vector<1x4xf32>
    %865 = vector.shape_cast %862 : vector<1x4xf32> to vector<1x1x1x1x4xf32>
    tpu.vector_store %arg3[%c0_939, %c0_940, %c1_941, %c0_942, %c180_943], %865 {strides = array<i32>} : memref<1x1x2x2x256xf32, #tpu.memory_space<vmem>>, vector<1x1x1x1x4xf32>,
    %866 = vector.extract_strided_slice %861 {offsets = [0, 4], sizes = [1, 4], strides = [1, 1]} : vector<1x8xf32> to vector<1x4xf32>
    %c0_944 = arith.constant 0 : index
    %c0_945 = arith.constant 0 : index
    %c1_946 = arith.constant 1 : index
    %c1_947 = arith.constant 1 : index
    %c180_948 = arith.constant 180 : index
    %867 = vector.load %arg3[%c0_944, %c0_945, %c1_946, %c1_947, %c180_948] : memref<1x1x2x2x256xf32, #tpu.memory_space<vmem>>, vector<1x1x1x1x4xf32>
    %868 = vector.shape_cast %867 : vector<1x1x1x1x4xf32> to vector<1x4xf32>
    %869 = vector.shape_cast %866 : vector<1x4xf32> to vector<1x1x1x1x4xf32>
    tpu.vector_store %arg3[%c0_944, %c0_945, %c1_946, %c1_947, %c180_948], %869 {strides = array<i32>} : memref<1x1x2x2x256xf32, #tpu.memory_space<vmem>>, vector<1x1x1x1x4xf32>,
    %870 = vector.extract_strided_slice %815 {offsets = [6, 0], sizes = [1, 8], strides = [1, 1]} : vector<8x8xf32> to vector<1x8xf32>
    %871 = vector.extract_strided_slice %870 {offsets = [0, 0], sizes = [1, 4], strides = [1, 1]} : vector<1x8xf32> to vector<1x4xf32>
    %c0_949 = arith.constant 0 : index
    %c0_950 = arith.constant 0 : index
    %c1_951 = arith.constant 1 : index
    %c0_952 = arith.constant 0 : index
    %c184_953 = arith.constant 184 : index
    %872 = vector.load %arg3[%c0_949, %c0_950, %c1_951, %c0_952, %c184_953] : memref<1x1x2x2x256xf32, #tpu.memory_space<vmem>>, vector<1x1x1x1x4xf32>
    %873 = vector.shape_cast %872 : vector<1x1x1x1x4xf32> to vector<1x4xf32>
    %874 = vector.shape_cast %871 : vector<1x4xf32> to vector<1x1x1x1x4xf32>
    tpu.vector_store %arg3[%c0_949, %c0_950, %c1_951, %c0_952, %c184_953], %874 {strides = array<i32>} : memref<1x1x2x2x256xf32, #tpu.memory_space<vmem>>, vector<1x1x1x1x4xf32>,
    %875 = vector.extract_strided_slice %870 {offsets = [0, 4], sizes = [1, 4], strides = [1, 1]} : vector<1x8xf32> to vector<1x4xf32>
    %c0_954 = arith.constant 0 : index
    %c0_955 = arith.constant 0 : index
    %c1_956 = arith.constant 1 : index
    %c1_957 = arith.constant 1 : index
    %c184_958 = arith.constant 184 : index
    %876 = vector.load %arg3[%c0_954, %c0_955, %c1_956, %c1_957, %c184_958] : memref<1x1x2x2x256xf32, #tpu.memory_space<vmem>>, vector<1x1x1x1x4xf32>
    %877 = vector.shape_cast %876 : vector<1x1x1x1x4xf32> to vector<1x4xf32>
    %878 = vector.shape_cast %875 : vector<1x4xf32> to vector<1x1x1x1x4xf32>
    tpu.vector_store %arg3[%c0_954, %c0_955, %c1_956, %c1_957, %c184_958], %878 {strides = array<i32>} : memref<1x1x2x2x256xf32, #tpu.memory_space<vmem>>, vector<1x1x1x1x4xf32>,
    %879 = vector.extract_strided_slice %815 {offsets = [7, 0], sizes = [1, 8], strides = [1, 1]} : vector<8x8xf32> to vector<1x8xf32>
    %880 = vector.extract_strided_slice %879 {offsets = [0, 0], sizes = [1, 4], strides = [1, 1]} : vector<1x8xf32> to vector<1x4xf32>
    %c0_959 = arith.constant 0 : index
    %c0_960 = arith.constant 0 : index
    %c1_961 = arith.constant 1 : index
    %c0_962 = arith.constant 0 : index
    %c188_963 = arith.constant 188 : index
    %881 = vector.load %arg3[%c0_959, %c0_960, %c1_961, %c0_962, %c188_963] : memref<1x1x2x2x256xf32, #tpu.memory_space<vmem>>, vector<1x1x1x1x4xf32>
    %882 = vector.shape_cast %881 : vector<1x1x1x1x4xf32> to vector<1x4xf32>
    %883 = vector.shape_cast %880 : vector<1x4xf32> to vector<1x1x1x1x4xf32>
    tpu.vector_store %arg3[%c0_959, %c0_960, %c1_961, %c0_962, %c188_963], %883 {strides = array<i32>} : memref<1x1x2x2x256xf32, #tpu.memory_space<vmem>>, vector<1x1x1x1x4xf32>,
    %884 = vector.extract_strided_slice %879 {offsets = [0, 4], sizes = [1, 4], strides = [1, 1]} : vector<1x8xf32> to vector<1x4xf32>
    %c0_964 = arith.constant 0 : index
    %c0_965 = arith.constant 0 : index
    %c1_966 = arith.constant 1 : index
    %c1_967 = arith.constant 1 : index
    %c188_968 = arith.constant 188 : index
    %885 = vector.load %arg3[%c0_964, %c0_965, %c1_966, %c1_967, %c188_968] : memref<1x1x2x2x256xf32, #tpu.memory_space<vmem>>, vector<1x1x1x1x4xf32>
    %886 = vector.shape_cast %885 : vector<1x1x1x1x4xf32> to vector<1x4xf32>
    %887 = vector.shape_cast %884 : vector<1x4xf32> to vector<1x1x1x1x4xf32>
    tpu.vector_store %arg3[%c0_964, %c0_965, %c1_966, %c1_967, %c188_968], %887 {strides = array<i32>} : memref<1x1x2x2x256xf32, #tpu.memory_space<vmem>>, vector<1x1x1x1x4xf32>,
    %c0_969 = arith.constant 0 : index
    %c3_970 = arith.constant 3 : index
    %c0_971 = arith.constant 0 : index
    %c0_972 = arith.constant 0 : index
    %c0_973 = arith.constant 0 : index
    %888 = vector.load %arg2[%c0_969, %c3_970, %c0_971, %c0_972, %c0_973] : memref<1x4x4x8x8xf32, #tpu.memory_space<vmem>>, vector<1x1x1x8x8xf32>
    %889 = vector.shape_cast %888 : vector<1x1x1x8x8xf32> to vector<8x8xf32>
    %890 = vector.extract_strided_slice %889 {offsets = [0, 0], sizes = [1, 8], strides = [1, 1]} : vector<8x8xf32> to vector<1x8xf32>
    %891 = vector.extract_strided_slice %890 {offsets = [0, 0], sizes = [1, 4], strides = [1, 1]} : vector<1x8xf32> to vector<1x4xf32>
    %c0_974 = arith.constant 0 : index
    %c0_975 = arith.constant 0 : index
    %c0_976 = arith.constant 0 : index
    %c0_977 = arith.constant 0 : index
    %c192 = arith.constant 192 : index
    %892 = vector.load %arg3[%c0_974, %c0_975, %c0_976, %c0_977, %c192] : memref<1x1x2x2x256xf32, #tpu.memory_space<vmem>>, vector<1x1x1x1x4xf32>
    %893 = vector.shape_cast %892 : vector<1x1x1x1x4xf32> to vector<1x4xf32>
    %894 = vector.shape_cast %891 : vector<1x4xf32> to vector<1x1x1x1x4xf32>
    tpu.vector_store %arg3[%c0_974, %c0_975, %c0_976, %c0_977, %c192], %894 {strides = array<i32>} : memref<1x1x2x2x256xf32, #tpu.memory_space<vmem>>, vector<1x1x1x1x4xf32>,
    %895 = vector.extract_strided_slice %890 {offsets = [0, 4], sizes = [1, 4], strides = [1, 1]} : vector<1x8xf32> to vector<1x4xf32>
    %c0_978 = arith.constant 0 : index
    %c0_979 = arith.constant 0 : index
    %c0_980 = arith.constant 0 : index
    %c1_981 = arith.constant 1 : index
    %c192_982 = arith.constant 192 : index
    %896 = vector.load %arg3[%c0_978, %c0_979, %c0_980, %c1_981, %c192_982] : memref<1x1x2x2x256xf32, #tpu.memory_space<vmem>>, vector<1x1x1x1x4xf32>
    %897 = vector.shape_cast %896 : vector<1x1x1x1x4xf32> to vector<1x4xf32>
    %898 = vector.shape_cast %895 : vector<1x4xf32> to vector<1x1x1x1x4xf32>
    tpu.vector_store %arg3[%c0_978, %c0_979, %c0_980, %c1_981, %c192_982], %898 {strides = array<i32>} : memref<1x1x2x2x256xf32, #tpu.memory_space<vmem>>, vector<1x1x1x1x4xf32>,
    %899 = vector.extract_strided_slice %889 {offsets = [1, 0], sizes = [1, 8], strides = [1, 1]} : vector<8x8xf32> to vector<1x8xf32>
    %900 = vector.extract_strided_slice %899 {offsets = [0, 0], sizes = [1, 4], strides = [1, 1]} : vector<1x8xf32> to vector<1x4xf32>
    %c0_983 = arith.constant 0 : index
    %c0_984 = arith.constant 0 : index
    %c0_985 = arith.constant 0 : index
    %c0_986 = arith.constant 0 : index
    %c196 = arith.constant 196 : index
    %901 = vector.load %arg3[%c0_983, %c0_984, %c0_985, %c0_986, %c196] : memref<1x1x2x2x256xf32, #tpu.memory_space<vmem>>, vector<1x1x1x1x4xf32>
    %902 = vector.shape_cast %901 : vector<1x1x1x1x4xf32> to vector<1x4xf32>
    %903 = vector.shape_cast %900 : vector<1x4xf32> to vector<1x1x1x1x4xf32>
    tpu.vector_store %arg3[%c0_983, %c0_984, %c0_985, %c0_986, %c196], %903 {strides = array<i32>} : memref<1x1x2x2x256xf32, #tpu.memory_space<vmem>>, vector<1x1x1x1x4xf32>,
    %904 = vector.extract_strided_slice %899 {offsets = [0, 4], sizes = [1, 4], strides = [1, 1]} : vector<1x8xf32> to vector<1x4xf32>
    %c0_987 = arith.constant 0 : index
    %c0_988 = arith.constant 0 : index
    %c0_989 = arith.constant 0 : index
    %c1_990 = arith.constant 1 : index
    %c196_991 = arith.constant 196 : index
    %905 = vector.load %arg3[%c0_987, %c0_988, %c0_989, %c1_990, %c196_991] : memref<1x1x2x2x256xf32, #tpu.memory_space<vmem>>, vector<1x1x1x1x4xf32>
    %906 = vector.shape_cast %905 : vector<1x1x1x1x4xf32> to vector<1x4xf32>
    %907 = vector.shape_cast %904 : vector<1x4xf32> to vector<1x1x1x1x4xf32>
    tpu.vector_store %arg3[%c0_987, %c0_988, %c0_989, %c1_990, %c196_991], %907 {strides = array<i32>} : memref<1x1x2x2x256xf32, #tpu.memory_space<vmem>>, vector<1x1x1x1x4xf32>,
    %908 = vector.extract_strided_slice %889 {offsets = [2, 0], sizes = [1, 8], strides = [1, 1]} : vector<8x8xf32> to vector<1x8xf32>
    %909 = vector.extract_strided_slice %908 {offsets = [0, 0], sizes = [1, 4], strides = [1, 1]} : vector<1x8xf32> to vector<1x4xf32>
    %c0_992 = arith.constant 0 : index
    %c0_993 = arith.constant 0 : index
    %c0_994 = arith.constant 0 : index
    %c0_995 = arith.constant 0 : index
    %c200 = arith.constant 200 : index
    %910 = vector.load %arg3[%c0_992, %c0_993, %c0_994, %c0_995, %c200] : memref<1x1x2x2x256xf32, #tpu.memory_space<vmem>>, vector<1x1x1x1x4xf32>
    %911 = vector.shape_cast %910 : vector<1x1x1x1x4xf32> to vector<1x4xf32>
    %912 = vector.shape_cast %909 : vector<1x4xf32> to vector<1x1x1x1x4xf32>
    tpu.vector_store %arg3[%c0_992, %c0_993, %c0_994, %c0_995, %c200], %912 {strides = array<i32>} : memref<1x1x2x2x256xf32, #tpu.memory_space<vmem>>, vector<1x1x1x1x4xf32>,
    %913 = vector.extract_strided_slice %908 {offsets = [0, 4], sizes = [1, 4], strides = [1, 1]} : vector<1x8xf32> to vector<1x4xf32>
    %c0_996 = arith.constant 0 : index
    %c0_997 = arith.constant 0 : index
    %c0_998 = arith.constant 0 : index
    %c1_999 = arith.constant 1 : index
    %c200_1000 = arith.constant 200 : index
    %914 = vector.load %arg3[%c0_996, %c0_997, %c0_998, %c1_999, %c200_1000] : memref<1x1x2x2x256xf32, #tpu.memory_space<vmem>>, vector<1x1x1x1x4xf32>
    %915 = vector.shape_cast %914 : vector<1x1x1x1x4xf32> to vector<1x4xf32>
    %916 = vector.shape_cast %913 : vector<1x4xf32> to vector<1x1x1x1x4xf32>
    tpu.vector_store %arg3[%c0_996, %c0_997, %c0_998, %c1_999, %c200_1000], %916 {strides = array<i32>} : memref<1x1x2x2x256xf32, #tpu.memory_space<vmem>>, vector<1x1x1x1x4xf32>,
    %917 = vector.extract_strided_slice %889 {offsets = [3, 0], sizes = [1, 8], strides = [1, 1]} : vector<8x8xf32> to vector<1x8xf32>
    %918 = vector.extract_strided_slice %917 {offsets = [0, 0], sizes = [1, 4], strides = [1, 1]} : vector<1x8xf32> to vector<1x4xf32>
    %c0_1001 = arith.constant 0 : index
    %c0_1002 = arith.constant 0 : index
    %c0_1003 = arith.constant 0 : index
    %c0_1004 = arith.constant 0 : index
    %c204 = arith.constant 204 : index
    %919 = vector.load %arg3[%c0_1001, %c0_1002, %c0_1003, %c0_1004, %c204] : memref<1x1x2x2x256xf32, #tpu.memory_space<vmem>>, vector<1x1x1x1x4xf32>
    %920 = vector.shape_cast %919 : vector<1x1x1x1x4xf32> to vector<1x4xf32>
    %921 = vector.shape_cast %918 : vector<1x4xf32> to vector<1x1x1x1x4xf32>
    tpu.vector_store %arg3[%c0_1001, %c0_1002, %c0_1003, %c0_1004, %c204], %921 {strides = array<i32>} : memref<1x1x2x2x256xf32, #tpu.memory_space<vmem>>, vector<1x1x1x1x4xf32>,
    %922 = vector.extract_strided_slice %917 {offsets = [0, 4], sizes = [1, 4], strides = [1, 1]} : vector<1x8xf32> to vector<1x4xf32>
    %c0_1005 = arith.constant 0 : index
    %c0_1006 = arith.constant 0 : index
    %c0_1007 = arith.constant 0 : index
    %c1_1008 = arith.constant 1 : index
    %c204_1009 = arith.constant 204 : index
    %923 = vector.load %arg3[%c0_1005, %c0_1006, %c0_1007, %c1_1008, %c204_1009] : memref<1x1x2x2x256xf32, #tpu.memory_space<vmem>>, vector<1x1x1x1x4xf32>
    %924 = vector.shape_cast %923 : vector<1x1x1x1x4xf32> to vector<1x4xf32>
    %925 = vector.shape_cast %922 : vector<1x4xf32> to vector<1x1x1x1x4xf32>
    tpu.vector_store %arg3[%c0_1005, %c0_1006, %c0_1007, %c1_1008, %c204_1009], %925 {strides = array<i32>} : memref<1x1x2x2x256xf32, #tpu.memory_space<vmem>>, vector<1x1x1x1x4xf32>,
    %926 = vector.extract_strided_slice %889 {offsets = [4, 0], sizes = [1, 8], strides = [1, 1]} : vector<8x8xf32> to vector<1x8xf32>
    %927 = vector.extract_strided_slice %926 {offsets = [0, 0], sizes = [1, 4], strides = [1, 1]} : vector<1x8xf32> to vector<1x4xf32>
    %c0_1010 = arith.constant 0 : index
    %c0_1011 = arith.constant 0 : index
    %c1_1012 = arith.constant 1 : index
    %c0_1013 = arith.constant 0 : index
    %c192_1014 = arith.constant 192 : index
    %928 = vector.load %arg3[%c0_1010, %c0_1011, %c1_1012, %c0_1013, %c192_1014] : memref<1x1x2x2x256xf32, #tpu.memory_space<vmem>>, vector<1x1x1x1x4xf32>
    %929 = vector.shape_cast %928 : vector<1x1x1x1x4xf32> to vector<1x4xf32>
    %930 = vector.shape_cast %927 : vector<1x4xf32> to vector<1x1x1x1x4xf32>
    tpu.vector_store %arg3[%c0_1010, %c0_1011, %c1_1012, %c0_1013, %c192_1014], %930 {strides = array<i32>} : memref<1x1x2x2x256xf32, #tpu.memory_space<vmem>>, vector<1x1x1x1x4xf32>,
    %931 = vector.extract_strided_slice %926 {offsets = [0, 4], sizes = [1, 4], strides = [1, 1]} : vector<1x8xf32> to vector<1x4xf32>
    %c0_1015 = arith.constant 0 : index
    %c0_1016 = arith.constant 0 : index
    %c1_1017 = arith.constant 1 : index
    %c1_1018 = arith.constant 1 : index
    %c192_1019 = arith.constant 192 : index
    %932 = vector.load %arg3[%c0_1015, %c0_1016, %c1_1017, %c1_1018, %c192_1019] : memref<1x1x2x2x256xf32, #tpu.memory_space<vmem>>, vector<1x1x1x1x4xf32>
    %933 = vector.shape_cast %932 : vector<1x1x1x1x4xf32> to vector<1x4xf32>
    %934 = vector.shape_cast %931 : vector<1x4xf32> to vector<1x1x1x1x4xf32>
    tpu.vector_store %arg3[%c0_1015, %c0_1016, %c1_1017, %c1_1018, %c192_1019], %934 {strides = array<i32>} : memref<1x1x2x2x256xf32, #tpu.memory_space<vmem>>, vector<1x1x1x1x4xf32>,
    %935 = vector.extract_strided_slice %889 {offsets = [5, 0], sizes = [1, 8], strides = [1, 1]} : vector<8x8xf32> to vector<1x8xf32>
    %936 = vector.extract_strided_slice %935 {offsets = [0, 0], sizes = [1, 4], strides = [1, 1]} : vector<1x8xf32> to vector<1x4xf32>
    %c0_1020 = arith.constant 0 : index
    %c0_1021 = arith.constant 0 : index
    %c1_1022 = arith.constant 1 : index
    %c0_1023 = arith.constant 0 : index
    %c196_1024 = arith.constant 196 : index
    %937 = vector.load %arg3[%c0_1020, %c0_1021, %c1_1022, %c0_1023, %c196_1024] : memref<1x1x2x2x256xf32, #tpu.memory_space<vmem>>, vector<1x1x1x1x4xf32>
    %938 = vector.shape_cast %937 : vector<1x1x1x1x4xf32> to vector<1x4xf32>
    %939 = vector.shape_cast %936 : vector<1x4xf32> to vector<1x1x1x1x4xf32>
    tpu.vector_store %arg3[%c0_1020, %c0_1021, %c1_1022, %c0_1023, %c196_1024], %939 {strides = array<i32>} : memref<1x1x2x2x256xf32, #tpu.memory_space<vmem>>, vector<1x1x1x1x4xf32>,
    %940 = vector.extract_strided_slice %935 {offsets = [0, 4], sizes = [1, 4], strides = [1, 1]} : vector<1x8xf32> to vector<1x4xf32>
    %c0_1025 = arith.constant 0 : index
    %c0_1026 = arith.constant 0 : index
    %c1_1027 = arith.constant 1 : index
    %c1_1028 = arith.constant 1 : index
    %c196_1029 = arith.constant 196 : index
    %941 = vector.load %arg3[%c0_1025, %c0_1026, %c1_1027, %c1_1028, %c196_1029] : memref<1x1x2x2x256xf32, #tpu.memory_space<vmem>>, vector<1x1x1x1x4xf32>
    %942 = vector.shape_cast %941 : vector<1x1x1x1x4xf32> to vector<1x4xf32>
    %943 = vector.shape_cast %940 : vector<1x4xf32> to vector<1x1x1x1x4xf32>
    tpu.vector_store %arg3[%c0_1025, %c0_1026, %c1_1027, %c1_1028, %c196_1029], %943 {strides = array<i32>} : memref<1x1x2x2x256xf32, #tpu.memory_space<vmem>>, vector<1x1x1x1x4xf32>,
    %944 = vector.extract_strided_slice %889 {offsets = [6, 0], sizes = [1, 8], strides = [1, 1]} : vector<8x8xf32> to vector<1x8xf32>
    %945 = vector.extract_strided_slice %944 {offsets = [0, 0], sizes = [1, 4], strides = [1, 1]} : vector<1x8xf32> to vector<1x4xf32>
    %c0_1030 = arith.constant 0 : index
    %c0_1031 = arith.constant 0 : index
    %c1_1032 = arith.constant 1 : index
    %c0_1033 = arith.constant 0 : index
    %c200_1034 = arith.constant 200 : index
    %946 = vector.load %arg3[%c0_1030, %c0_1031, %c1_1032, %c0_1033, %c200_1034] : memref<1x1x2x2x256xf32, #tpu.memory_space<vmem>>, vector<1x1x1x1x4xf32>
    %947 = vector.shape_cast %946 : vector<1x1x1x1x4xf32> to vector<1x4xf32>
    %948 = vector.shape_cast %945 : vector<1x4xf32> to vector<1x1x1x1x4xf32>
    tpu.vector_store %arg3[%c0_1030, %c0_1031, %c1_1032, %c0_1033, %c200_1034], %948 {strides = array<i32>} : memref<1x1x2x2x256xf32, #tpu.memory_space<vmem>>, vector<1x1x1x1x4xf32>,
    %949 = vector.extract_strided_slice %944 {offsets = [0, 4], sizes = [1, 4], strides = [1, 1]} : vector<1x8xf32> to vector<1x4xf32>
    %c0_1035 = arith.constant 0 : index
    %c0_1036 = arith.constant 0 : index
    %c1_1037 = arith.constant 1 : index
    %c1_1038 = arith.constant 1 : index
    %c200_1039 = arith.constant 200 : index
    %950 = vector.load %arg3[%c0_1035, %c0_1036, %c1_1037, %c1_1038, %c200_1039] : memref<1x1x2x2x256xf32, #tpu.memory_space<vmem>>, vector<1x1x1x1x4xf32>
    %951 = vector.shape_cast %950 : vector<1x1x1x1x4xf32> to vector<1x4xf32>
    %952 = vector.shape_cast %949 : vector<1x4xf32> to vector<1x1x1x1x4xf32>
    tpu.vector_store %arg3[%c0_1035, %c0_1036, %c1_1037, %c1_1038, %c200_1039], %952 {strides = array<i32>} : memref<1x1x2x2x256xf32, #tpu.memory_space<vmem>>, vector<1x1x1x1x4xf32>,
    %953 = vector.extract_strided_slice %889 {offsets = [7, 0], sizes = [1, 8], strides = [1, 1]} : vector<8x8xf32> to vector<1x8xf32>
    %954 = vector.extract_strided_slice %953 {offsets = [0, 0], sizes = [1, 4], strides = [1, 1]} : vector<1x8xf32> to vector<1x4xf32>
    %c0_1040 = arith.constant 0 : index
    %c0_1041 = arith.constant 0 : index
    %c1_1042 = arith.constant 1 : index
    %c0_1043 = arith.constant 0 : index
    %c204_1044 = arith.constant 204 : index
    %955 = vector.load %arg3[%c0_1040, %c0_1041, %c1_1042, %c0_1043, %c204_1044] : memref<1x1x2x2x256xf32, #tpu.memory_space<vmem>>, vector<1x1x1x1x4xf32>
    %956 = vector.shape_cast %955 : vector<1x1x1x1x4xf32> to vector<1x4xf32>
    %957 = vector.shape_cast %954 : vector<1x4xf32> to vector<1x1x1x1x4xf32>
    tpu.vector_store %arg3[%c0_1040, %c0_1041, %c1_1042, %c0_1043, %c204_1044], %957 {strides = array<i32>} : memref<1x1x2x2x256xf32, #tpu.memory_space<vmem>>, vector<1x1x1x1x4xf32>,
    %958 = vector.extract_strided_slice %953 {offsets = [0, 4], sizes = [1, 4], strides = [1, 1]} : vector<1x8xf32> to vector<1x4xf32>
    %c0_1045 = arith.constant 0 : index
    %c0_1046 = arith.constant 0 : index
    %c1_1047 = arith.constant 1 : index
    %c1_1048 = arith.constant 1 : index
    %c204_1049 = arith.constant 204 : index
    %959 = vector.load %arg3[%c0_1045, %c0_1046, %c1_1047, %c1_1048, %c204_1049] : memref<1x1x2x2x256xf32, #tpu.memory_space<vmem>>, vector<1x1x1x1x4xf32>
    %960 = vector.shape_cast %959 : vector<1x1x1x1x4xf32> to vector<1x4xf32>
    %961 = vector.shape_cast %958 : vector<1x4xf32> to vector<1x1x1x1x4xf32>
    tpu.vector_store %arg3[%c0_1045, %c0_1046, %c1_1047, %c1_1048, %c204_1049], %961 {strides = array<i32>} : memref<1x1x2x2x256xf32, #tpu.memory_space<vmem>>, vector<1x1x1x1x4xf32>,
    %c0_1050 = arith.constant 0 : index
    %c3_1051 = arith.constant 3 : index
    %c1_1052 = arith.constant 1 : index
    %c0_1053 = arith.constant 0 : index
    %c0_1054 = arith.constant 0 : index
    %962 = vector.load %arg2[%c0_1050, %c3_1051, %c1_1052, %c0_1053, %c0_1054] : memref<1x4x4x8x8xf32, #tpu.memory_space<vmem>>, vector<1x1x1x8x8xf32>
    %963 = vector.shape_cast %962 : vector<1x1x1x8x8xf32> to vector<8x8xf32>
    %964 = vector.extract_strided_slice %963 {offsets = [0, 0], sizes = [1, 8], strides = [1, 1]} : vector<8x8xf32> to vector<1x8xf32>
    %965 = vector.extract_strided_slice %964 {offsets = [0, 0], sizes = [1, 4], strides = [1, 1]} : vector<1x8xf32> to vector<1x4xf32>
    %c0_1055 = arith.constant 0 : index
    %c0_1056 = arith.constant 0 : index
    %c0_1057 = arith.constant 0 : index
    %c0_1058 = arith.constant 0 : index
    %c208 = arith.constant 208 : index
    %966 = vector.load %arg3[%c0_1055, %c0_1056, %c0_1057, %c0_1058, %c208] : memref<1x1x2x2x256xf32, #tpu.memory_space<vmem>>, vector<1x1x1x1x4xf32>
    %967 = vector.shape_cast %966 : vector<1x1x1x1x4xf32> to vector<1x4xf32>
    %968 = vector.shape_cast %965 : vector<1x4xf32> to vector<1x1x1x1x4xf32>
    tpu.vector_store %arg3[%c0_1055, %c0_1056, %c0_1057, %c0_1058, %c208], %968 {strides = array<i32>} : memref<1x1x2x2x256xf32, #tpu.memory_space<vmem>>, vector<1x1x1x1x4xf32>,
    %969 = vector.extract_strided_slice %964 {offsets = [0, 4], sizes = [1, 4], strides = [1, 1]} : vector<1x8xf32> to vector<1x4xf32>
    %c0_1059 = arith.constant 0 : index
    %c0_1060 = arith.constant 0 : index
    %c0_1061 = arith.constant 0 : index
    %c1_1062 = arith.constant 1 : index
    %c208_1063 = arith.constant 208 : index
    %970 = vector.load %arg3[%c0_1059, %c0_1060, %c0_1061, %c1_1062, %c208_1063] : memref<1x1x2x2x256xf32, #tpu.memory_space<vmem>>, vector<1x1x1x1x4xf32>
    %971 = vector.shape_cast %970 : vector<1x1x1x1x4xf32> to vector<1x4xf32>
    %972 = vector.shape_cast %969 : vector<1x4xf32> to vector<1x1x1x1x4xf32>
    tpu.vector_store %arg3[%c0_1059, %c0_1060, %c0_1061, %c1_1062, %c208_1063], %972 {strides = array<i32>} : memref<1x1x2x2x256xf32, #tpu.memory_space<vmem>>, vector<1x1x1x1x4xf32>,
    %973 = vector.extract_strided_slice %963 {offsets = [1, 0], sizes = [1, 8], strides = [1, 1]} : vector<8x8xf32> to vector<1x8xf32>
    %974 = vector.extract_strided_slice %973 {offsets = [0, 0], sizes = [1, 4], strides = [1, 1]} : vector<1x8xf32> to vector<1x4xf32>
    %c0_1064 = arith.constant 0 : index
    %c0_1065 = arith.constant 0 : index
    %c0_1066 = arith.constant 0 : index
    %c0_1067 = arith.constant 0 : index
    %c212 = arith.constant 212 : index
    %975 = vector.load %arg3[%c0_1064, %c0_1065, %c0_1066, %c0_1067, %c212] : memref<1x1x2x2x256xf32, #tpu.memory_space<vmem>>, vector<1x1x1x1x4xf32>
    %976 = vector.shape_cast %975 : vector<1x1x1x1x4xf32> to vector<1x4xf32>
    %977 = vector.shape_cast %974 : vector<1x4xf32> to vector<1x1x1x1x4xf32>
    tpu.vector_store %arg3[%c0_1064, %c0_1065, %c0_1066, %c0_1067, %c212], %977 {strides = array<i32>} : memref<1x1x2x2x256xf32, #tpu.memory_space<vmem>>, vector<1x1x1x1x4xf32>,
    %978 = vector.extract_strided_slice %973 {offsets = [0, 4], sizes = [1, 4], strides = [1, 1]} : vector<1x8xf32> to vector<1x4xf32>
    %c0_1068 = arith.constant 0 : index
    %c0_1069 = arith.constant 0 : index
    %c0_1070 = arith.constant 0 : index
    %c1_1071 = arith.constant 1 : index
    %c212_1072 = arith.constant 212 : index
    %979 = vector.load %arg3[%c0_1068, %c0_1069, %c0_1070, %c1_1071, %c212_1072] : memref<1x1x2x2x256xf32, #tpu.memory_space<vmem>>, vector<1x1x1x1x4xf32>
    %980 = vector.shape_cast %979 : vector<1x1x1x1x4xf32> to vector<1x4xf32>
    %981 = vector.shape_cast %978 : vector<1x4xf32> to vector<1x1x1x1x4xf32>
    tpu.vector_store %arg3[%c0_1068, %c0_1069, %c0_1070, %c1_1071, %c212_1072], %981 {strides = array<i32>} : memref<1x1x2x2x256xf32, #tpu.memory_space<vmem>>, vector<1x1x1x1x4xf32>,
    %982 = vector.extract_strided_slice %963 {offsets = [2, 0], sizes = [1, 8], strides = [1, 1]} : vector<8x8xf32> to vector<1x8xf32>
    %983 = vector.extract_strided_slice %982 {offsets = [0, 0], sizes = [1, 4], strides = [1, 1]} : vector<1x8xf32> to vector<1x4xf32>
    %c0_1073 = arith.constant 0 : index
    %c0_1074 = arith.constant 0 : index
    %c0_1075 = arith.constant 0 : index
    %c0_1076 = arith.constant 0 : index
    %c216 = arith.constant 216 : index
    %984 = vector.load %arg3[%c0_1073, %c0_1074, %c0_1075, %c0_1076, %c216] : memref<1x1x2x2x256xf32, #tpu.memory_space<vmem>>, vector<1x1x1x1x4xf32>
    %985 = vector.shape_cast %984 : vector<1x1x1x1x4xf32> to vector<1x4xf32>
    %986 = vector.shape_cast %983 : vector<1x4xf32> to vector<1x1x1x1x4xf32>
    tpu.vector_store %arg3[%c0_1073, %c0_1074, %c0_1075, %c0_1076, %c216], %986 {strides = array<i32>} : memref<1x1x2x2x256xf32, #tpu.memory_space<vmem>>, vector<1x1x1x1x4xf32>,
    %987 = vector.extract_strided_slice %982 {offsets = [0, 4], sizes = [1, 4], strides = [1, 1]} : vector<1x8xf32> to vector<1x4xf32>
    %c0_1077 = arith.constant 0 : index
    %c0_1078 = arith.constant 0 : index
    %c0_1079 = arith.constant 0 : index
    %c1_1080 = arith.constant 1 : index
    %c216_1081 = arith.constant 216 : index
    %988 = vector.load %arg3[%c0_1077, %c0_1078, %c0_1079, %c1_1080, %c216_1081] : memref<1x1x2x2x256xf32, #tpu.memory_space<vmem>>, vector<1x1x1x1x4xf32>
    %989 = vector.shape_cast %988 : vector<1x1x1x1x4xf32> to vector<1x4xf32>
    %990 = vector.shape_cast %987 : vector<1x4xf32> to vector<1x1x1x1x4xf32>
    tpu.vector_store %arg3[%c0_1077, %c0_1078, %c0_1079, %c1_1080, %c216_1081], %990 {strides = array<i32>} : memref<1x1x2x2x256xf32, #tpu.memory_space<vmem>>, vector<1x1x1x1x4xf32>,
    %991 = vector.extract_strided_slice %963 {offsets = [3, 0], sizes = [1, 8], strides = [1, 1]} : vector<8x8xf32> to vector<1x8xf32>
    %992 = vector.extract_strided_slice %991 {offsets = [0, 0], sizes = [1, 4], strides = [1, 1]} : vector<1x8xf32> to vector<1x4xf32>
    %c0_1082 = arith.constant 0 : index
    %c0_1083 = arith.constant 0 : index
    %c0_1084 = arith.constant 0 : index
    %c0_1085 = arith.constant 0 : index
    %c220 = arith.constant 220 : index
    %993 = vector.load %arg3[%c0_1082, %c0_1083, %c0_1084, %c0_1085, %c220] : memref<1x1x2x2x256xf32, #tpu.memory_space<vmem>>, vector<1x1x1x1x4xf32>
    %994 = vector.shape_cast %993 : vector<1x1x1x1x4xf32> to vector<1x4xf32>
    %995 = vector.shape_cast %992 : vector<1x4xf32> to vector<1x1x1x1x4xf32>
    tpu.vector_store %arg3[%c0_1082, %c0_1083, %c0_1084, %c0_1085, %c220], %995 {strides = array<i32>} : memref<1x1x2x2x256xf32, #tpu.memory_space<vmem>>, vector<1x1x1x1x4xf32>,
    %996 = vector.extract_strided_slice %991 {offsets = [0, 4], sizes = [1, 4], strides = [1, 1]} : vector<1x8xf32> to vector<1x4xf32>
    %c0_1086 = arith.constant 0 : index
    %c0_1087 = arith.constant 0 : index
    %c0_1088 = arith.constant 0 : index
    %c1_1089 = arith.constant 1 : index
    %c220_1090 = arith.constant 220 : index
    %997 = vector.load %arg3[%c0_1086, %c0_1087, %c0_1088, %c1_1089, %c220_1090] : memref<1x1x2x2x256xf32, #tpu.memory_space<vmem>>, vector<1x1x1x1x4xf32>
    %998 = vector.shape_cast %997 : vector<1x1x1x1x4xf32> to vector<1x4xf32>
    %999 = vector.shape_cast %996 : vector<1x4xf32> to vector<1x1x1x1x4xf32>
    tpu.vector_store %arg3[%c0_1086, %c0_1087, %c0_1088, %c1_1089, %c220_1090], %999 {strides = array<i32>} : memref<1x1x2x2x256xf32, #tpu.memory_space<vmem>>, vector<1x1x1x1x4xf32>,
    %1000 = vector.extract_strided_slice %963 {offsets = [4, 0], sizes = [1, 8], strides = [1, 1]} : vector<8x8xf32> to vector<1x8xf32>
    %1001 = vector.extract_strided_slice %1000 {offsets = [0, 0], sizes = [1, 4], strides = [1, 1]} : vector<1x8xf32> to vector<1x4xf32>
    %c0_1091 = arith.constant 0 : index
    %c0_1092 = arith.constant 0 : index
    %c1_1093 = arith.constant 1 : index
    %c0_1094 = arith.constant 0 : index
    %c208_1095 = arith.constant 208 : index
    %1002 = vector.load %arg3[%c0_1091, %c0_1092, %c1_1093, %c0_1094, %c208_1095] : memref<1x1x2x2x256xf32, #tpu.memory_space<vmem>>, vector<1x1x1x1x4xf32>
    %1003 = vector.shape_cast %1002 : vector<1x1x1x1x4xf32> to vector<1x4xf32>
    %1004 = vector.shape_cast %1001 : vector<1x4xf32> to vector<1x1x1x1x4xf32>
    tpu.vector_store %arg3[%c0_1091, %c0_1092, %c1_1093, %c0_1094, %c208_1095], %1004 {strides = array<i32>} : memref<1x1x2x2x256xf32, #tpu.memory_space<vmem>>, vector<1x1x1x1x4xf32>,
    %1005 = vector.extract_strided_slice %1000 {offsets = [0, 4], sizes = [1, 4], strides = [1, 1]} : vector<1x8xf32> to vector<1x4xf32>
    %c0_1096 = arith.constant 0 : index
    %c0_1097 = arith.constant 0 : index
    %c1_1098 = arith.constant 1 : index
    %c1_1099 = arith.constant 1 : index
    %c208_1100 = arith.constant 208 : index
    %1006 = vector.load %arg3[%c0_1096, %c0_1097, %c1_1098, %c1_1099, %c208_1100] : memref<1x1x2x2x256xf32, #tpu.memory_space<vmem>>, vector<1x1x1x1x4xf32>
    %1007 = vector.shape_cast %1006 : vector<1x1x1x1x4xf32> to vector<1x4xf32>
    %1008 = vector.shape_cast %1005 : vector<1x4xf32> to vector<1x1x1x1x4xf32>
    tpu.vector_store %arg3[%c0_1096, %c0_1097, %c1_1098, %c1_1099, %c208_1100], %1008 {strides = array<i32>} : memref<1x1x2x2x256xf32, #tpu.memory_space<vmem>>, vector<1x1x1x1x4xf32>,
    %1009 = vector.extract_strided_slice %963 {offsets = [5, 0], sizes = [1, 8], strides = [1, 1]} : vector<8x8xf32> to vector<1x8xf32>
    %1010 = vector.extract_strided_slice %1009 {offsets = [0, 0], sizes = [1, 4], strides = [1, 1]} : vector<1x8xf32> to vector<1x4xf32>
    %c0_1101 = arith.constant 0 : index
    %c0_1102 = arith.constant 0 : index
    %c1_1103 = arith.constant 1 : index
    %c0_1104 = arith.constant 0 : index
    %c212_1105 = arith.constant 212 : index
    %1011 = vector.load %arg3[%c0_1101, %c0_1102, %c1_1103, %c0_1104, %c212_1105] : memref<1x1x2x2x256xf32, #tpu.memory_space<vmem>>, vector<1x1x1x1x4xf32>
    %1012 = vector.shape_cast %1011 : vector<1x1x1x1x4xf32> to vector<1x4xf32>
    %1013 = vector.shape_cast %1010 : vector<1x4xf32> to vector<1x1x1x1x4xf32>
    tpu.vector_store %arg3[%c0_1101, %c0_1102, %c1_1103, %c0_1104, %c212_1105], %1013 {strides = array<i32>} : memref<1x1x2x2x256xf32, #tpu.memory_space<vmem>>, vector<1x1x1x1x4xf32>,
    %1014 = vector.extract_strided_slice %1009 {offsets = [0, 4], sizes = [1, 4], strides = [1, 1]} : vector<1x8xf32> to vector<1x4xf32>
    %c0_1106 = arith.constant 0 : index
    %c0_1107 = arith.constant 0 : index
    %c1_1108 = arith.constant 1 : index
    %c1_1109 = arith.constant 1 : index
    %c212_1110 = arith.constant 212 : index
    %1015 = vector.load %arg3[%c0_1106, %c0_1107, %c1_1108, %c1_1109, %c212_1110] : memref<1x1x2x2x256xf32, #tpu.memory_space<vmem>>, vector<1x1x1x1x4xf32>
    %1016 = vector.shape_cast %1015 : vector<1x1x1x1x4xf32> to vector<1x4xf32>
    %1017 = vector.shape_cast %1014 : vector<1x4xf32> to vector<1x1x1x1x4xf32>
    tpu.vector_store %arg3[%c0_1106, %c0_1107, %c1_1108, %c1_1109, %c212_1110], %1017 {strides = array<i32>} : memref<1x1x2x2x256xf32, #tpu.memory_space<vmem>>, vector<1x1x1x1x4xf32>,
    %1018 = vector.extract_strided_slice %963 {offsets = [6, 0], sizes = [1, 8], strides = [1, 1]} : vector<8x8xf32> to vector<1x8xf32>
    %1019 = vector.extract_strided_slice %1018 {offsets = [0, 0], sizes = [1, 4], strides = [1, 1]} : vector<1x8xf32> to vector<1x4xf32>
    %c0_1111 = arith.constant 0 : index
    %c0_1112 = arith.constant 0 : index
    %c1_1113 = arith.constant 1 : index
    %c0_1114 = arith.constant 0 : index
    %c216_1115 = arith.constant 216 : index
    %1020 = vector.load %arg3[%c0_1111, %c0_1112, %c1_1113, %c0_1114, %c216_1115] : memref<1x1x2x2x256xf32, #tpu.memory_space<vmem>>, vector<1x1x1x1x4xf32>
    %1021 = vector.shape_cast %1020 : vector<1x1x1x1x4xf32> to vector<1x4xf32>
    %1022 = vector.shape_cast %1019 : vector<1x4xf32> to vector<1x1x1x1x4xf32>
    tpu.vector_store %arg3[%c0_1111, %c0_1112, %c1_1113, %c0_1114, %c216_1115], %1022 {strides = array<i32>} : memref<1x1x2x2x256xf32, #tpu.memory_space<vmem>>, vector<1x1x1x1x4xf32>,
    %1023 = vector.extract_strided_slice %1018 {offsets = [0, 4], sizes = [1, 4], strides = [1, 1]} : vector<1x8xf32> to vector<1x4xf32>
    %c0_1116 = arith.constant 0 : index
    %c0_1117 = arith.constant 0 : index
    %c1_1118 = arith.constant 1 : index
    %c1_1119 = arith.constant 1 : index
    %c216_1120 = arith.constant 216 : index
    %1024 = vector.load %arg3[%c0_1116, %c0_1117, %c1_1118, %c1_1119, %c216_1120] : memref<1x1x2x2x256xf32, #tpu.memory_space<vmem>>, vector<1x1x1x1x4xf32>
    %1025 = vector.shape_cast %1024 : vector<1x1x1x1x4xf32> to vector<1x4xf32>
    %1026 = vector.shape_cast %1023 : vector<1x4xf32> to vector<1x1x1x1x4xf32>
    tpu.vector_store %arg3[%c0_1116, %c0_1117, %c1_1118, %c1_1119, %c216_1120], %1026 {strides = array<i32>} : memref<1x1x2x2x256xf32, #tpu.memory_space<vmem>>, vector<1x1x1x1x4xf32>,
    %1027 = vector.extract_strided_slice %963 {offsets = [7, 0], sizes = [1, 8], strides = [1, 1]} : vector<8x8xf32> to vector<1x8xf32>
    %1028 = vector.extract_strided_slice %1027 {offsets = [0, 0], sizes = [1, 4], strides = [1, 1]} : vector<1x8xf32> to vector<1x4xf32>
    %c0_1121 = arith.constant 0 : index
    %c0_1122 = arith.constant 0 : index
    %c1_1123 = arith.constant 1 : index
    %c0_1124 = arith.constant 0 : index
    %c220_1125 = arith.constant 220 : index
    %1029 = vector.load %arg3[%c0_1121, %c0_1122, %c1_1123, %c0_1124, %c220_1125] : memref<1x1x2x2x256xf32, #tpu.memory_space<vmem>>, vector<1x1x1x1x4xf32>
    %1030 = vector.shape_cast %1029 : vector<1x1x1x1x4xf32> to vector<1x4xf32>
    %1031 = vector.shape_cast %1028 : vector<1x4xf32> to vector<1x1x1x1x4xf32>
    tpu.vector_store %arg3[%c0_1121, %c0_1122, %c1_1123, %c0_1124, %c220_1125], %1031 {strides = array<i32>} : memref<1x1x2x2x256xf32, #tpu.memory_space<vmem>>, vector<1x1x1x1x4xf32>,
    %1032 = vector.extract_strided_slice %1027 {offsets = [0, 4], sizes = [1, 4], strides = [1, 1]} : vector<1x8xf32> to vector<1x4xf32>
    %c0_1126 = arith.constant 0 : index
    %c0_1127 = arith.constant 0 : index
    %c1_1128 = arith.constant 1 : index
    %c1_1129 = arith.constant 1 : index
    %c220_1130 = arith.constant 220 : index
    %1033 = vector.load %arg3[%c0_1126, %c0_1127, %c1_1128, %c1_1129, %c220_1130] : memref<1x1x2x2x256xf32, #tpu.memory_space<vmem>>, vector<1x1x1x1x4xf32>
    %1034 = vector.shape_cast %1033 : vector<1x1x1x1x4xf32> to vector<1x4xf32>
    %1035 = vector.shape_cast %1032 : vector<1x4xf32> to vector<1x1x1x1x4xf32>
    tpu.vector_store %arg3[%c0_1126, %c0_1127, %c1_1128, %c1_1129, %c220_1130], %1035 {strides = array<i32>} : memref<1x1x2x2x256xf32, #tpu.memory_space<vmem>>, vector<1x1x1x1x4xf32>,
    %c0_1131 = arith.constant 0 : index
    %c3_1132 = arith.constant 3 : index
    %c2_1133 = arith.constant 2 : index
    %c0_1134 = arith.constant 0 : index
    %c0_1135 = arith.constant 0 : index
    %1036 = vector.load %arg2[%c0_1131, %c3_1132, %c2_1133, %c0_1134, %c0_1135] : memref<1x4x4x8x8xf32, #tpu.memory_space<vmem>>, vector<1x1x1x8x8xf32>
    %1037 = vector.shape_cast %1036 : vector<1x1x1x8x8xf32> to vector<8x8xf32>
    %1038 = vector.extract_strided_slice %1037 {offsets = [0, 0], sizes = [1, 8], strides = [1, 1]} : vector<8x8xf32> to vector<1x8xf32>
    %1039 = vector.extract_strided_slice %1038 {offsets = [0, 0], sizes = [1, 4], strides = [1, 1]} : vector<1x8xf32> to vector<1x4xf32>
    %c0_1136 = arith.constant 0 : index
    %c0_1137 = arith.constant 0 : index
    %c0_1138 = arith.constant 0 : index
    %c0_1139 = arith.constant 0 : index
    %c224 = arith.constant 224 : index
    %1040 = vector.load %arg3[%c0_1136, %c0_1137, %c0_1138, %c0_1139, %c224] : memref<1x1x2x2x256xf32, #tpu.memory_space<vmem>>, vector<1x1x1x1x4xf32>
    %1041 = vector.shape_cast %1040 : vector<1x1x1x1x4xf32> to vector<1x4xf32>
    %1042 = vector.shape_cast %1039 : vector<1x4xf32> to vector<1x1x1x1x4xf32>
    tpu.vector_store %arg3[%c0_1136, %c0_1137, %c0_1138, %c0_1139, %c224], %1042 {strides = array<i32>} : memref<1x1x2x2x256xf32, #tpu.memory_space<vmem>>, vector<1x1x1x1x4xf32>,
    %1043 = vector.extract_strided_slice %1038 {offsets = [0, 4], sizes = [1, 4], strides = [1, 1]} : vector<1x8xf32> to vector<1x4xf32>
    %c0_1140 = arith.constant 0 : index
    %c0_1141 = arith.constant 0 : index
    %c0_1142 = arith.constant 0 : index
    %c1_1143 = arith.constant 1 : index
    %c224_1144 = arith.constant 224 : index
    %1044 = vector.load %arg3[%c0_1140, %c0_1141, %c0_1142, %c1_1143, %c224_1144] : memref<1x1x2x2x256xf32, #tpu.memory_space<vmem>>, vector<1x1x1x1x4xf32>
    %1045 = vector.shape_cast %1044 : vector<1x1x1x1x4xf32> to vector<1x4xf32>
    %1046 = vector.shape_cast %1043 : vector<1x4xf32> to vector<1x1x1x1x4xf32>
    tpu.vector_store %arg3[%c0_1140, %c0_1141, %c0_1142, %c1_1143, %c224_1144], %1046 {strides = array<i32>} : memref<1x1x2x2x256xf32, #tpu.memory_space<vmem>>, vector<1x1x1x1x4xf32>,
    %1047 = vector.extract_strided_slice %1037 {offsets = [1, 0], sizes = [1, 8], strides = [1, 1]} : vector<8x8xf32> to vector<1x8xf32>
    %1048 = vector.extract_strided_slice %1047 {offsets = [0, 0], sizes = [1, 4], strides = [1, 1]} : vector<1x8xf32> to vector<1x4xf32>
    %c0_1145 = arith.constant 0 : index
    %c0_1146 = arith.constant 0 : index
    %c0_1147 = arith.constant 0 : index
    %c0_1148 = arith.constant 0 : index
    %c228 = arith.constant 228 : index
    %1049 = vector.load %arg3[%c0_1145, %c0_1146, %c0_1147, %c0_1148, %c228] : memref<1x1x2x2x256xf32, #tpu.memory_space<vmem>>, vector<1x1x1x1x4xf32>
    %1050 = vector.shape_cast %1049 : vector<1x1x1x1x4xf32> to vector<1x4xf32>
    %1051 = vector.shape_cast %1048 : vector<1x4xf32> to vector<1x1x1x1x4xf32>
    tpu.vector_store %arg3[%c0_1145, %c0_1146, %c0_1147, %c0_1148, %c228], %1051 {strides = array<i32>} : memref<1x1x2x2x256xf32, #tpu.memory_space<vmem>>, vector<1x1x1x1x4xf32>,
    %1052 = vector.extract_strided_slice %1047 {offsets = [0, 4], sizes = [1, 4], strides = [1, 1]} : vector<1x8xf32> to vector<1x4xf32>
    %c0_1149 = arith.constant 0 : index
    %c0_1150 = arith.constant 0 : index
    %c0_1151 = arith.constant 0 : index
    %c1_1152 = arith.constant 1 : index
    %c228_1153 = arith.constant 228 : index
    %1053 = vector.load %arg3[%c0_1149, %c0_1150, %c0_1151, %c1_1152, %c228_1153] : memref<1x1x2x2x256xf32, #tpu.memory_space<vmem>>, vector<1x1x1x1x4xf32>
    %1054 = vector.shape_cast %1053 : vector<1x1x1x1x4xf32> to vector<1x4xf32>
    %1055 = vector.shape_cast %1052 : vector<1x4xf32> to vector<1x1x1x1x4xf32>
    tpu.vector_store %arg3[%c0_1149, %c0_1150, %c0_1151, %c1_1152, %c228_1153], %1055 {strides = array<i32>} : memref<1x1x2x2x256xf32, #tpu.memory_space<vmem>>, vector<1x1x1x1x4xf32>,
    %1056 = vector.extract_strided_slice %1037 {offsets = [2, 0], sizes = [1, 8], strides = [1, 1]} : vector<8x8xf32> to vector<1x8xf32>
    %1057 = vector.extract_strided_slice %1056 {offsets = [0, 0], sizes = [1, 4], strides = [1, 1]} : vector<1x8xf32> to vector<1x4xf32>
    %c0_1154 = arith.constant 0 : index
    %c0_1155 = arith.constant 0 : index
    %c0_1156 = arith.constant 0 : index
    %c0_1157 = arith.constant 0 : index
    %c232 = arith.constant 232 : index
    %1058 = vector.load %arg3[%c0_1154, %c0_1155, %c0_1156, %c0_1157, %c232] : memref<1x1x2x2x256xf32, #tpu.memory_space<vmem>>, vector<1x1x1x1x4xf32>
    %1059 = vector.shape_cast %1058 : vector<1x1x1x1x4xf32> to vector<1x4xf32>
    %1060 = vector.shape_cast %1057 : vector<1x4xf32> to vector<1x1x1x1x4xf32>
    tpu.vector_store %arg3[%c0_1154, %c0_1155, %c0_1156, %c0_1157, %c232], %1060 {strides = array<i32>} : memref<1x1x2x2x256xf32, #tpu.memory_space<vmem>>, vector<1x1x1x1x4xf32>,
    %1061 = vector.extract_strided_slice %1056 {offsets = [0, 4], sizes = [1, 4], strides = [1, 1]} : vector<1x8xf32> to vector<1x4xf32>
    %c0_1158 = arith.constant 0 : index
    %c0_1159 = arith.constant 0 : index
    %c0_1160 = arith.constant 0 : index
    %c1_1161 = arith.constant 1 : index
    %c232_1162 = arith.constant 232 : index
    %1062 = vector.load %arg3[%c0_1158, %c0_1159, %c0_1160, %c1_1161, %c232_1162] : memref<1x1x2x2x256xf32, #tpu.memory_space<vmem>>, vector<1x1x1x1x4xf32>
    %1063 = vector.shape_cast %1062 : vector<1x1x1x1x4xf32> to vector<1x4xf32>
    %1064 = vector.shape_cast %1061 : vector<1x4xf32> to vector<1x1x1x1x4xf32>
    tpu.vector_store %arg3[%c0_1158, %c0_1159, %c0_1160, %c1_1161, %c232_1162], %1064 {strides = array<i32>} : memref<1x1x2x2x256xf32, #tpu.memory_space<vmem>>, vector<1x1x1x1x4xf32>,
    %1065 = vector.extract_strided_slice %1037 {offsets = [3, 0], sizes = [1, 8], strides = [1, 1]} : vector<8x8xf32> to vector<1x8xf32>
    %1066 = vector.extract_strided_slice %1065 {offsets = [0, 0], sizes = [1, 4], strides = [1, 1]} : vector<1x8xf32> to vector<1x4xf32>
    %c0_1163 = arith.constant 0 : index
    %c0_1164 = arith.constant 0 : index
    %c0_1165 = arith.constant 0 : index
    %c0_1166 = arith.constant 0 : index
    %c236 = arith.constant 236 : index
    %1067 = vector.load %arg3[%c0_1163, %c0_1164, %c0_1165, %c0_1166, %c236] : memref<1x1x2x2x256xf32, #tpu.memory_space<vmem>>, vector<1x1x1x1x4xf32>
    %1068 = vector.shape_cast %1067 : vector<1x1x1x1x4xf32> to vector<1x4xf32>
    %1069 = vector.shape_cast %1066 : vector<1x4xf32> to vector<1x1x1x1x4xf32>
    tpu.vector_store %arg3[%c0_1163, %c0_1164, %c0_1165, %c0_1166, %c236], %1069 {strides = array<i32>} : memref<1x1x2x2x256xf32, #tpu.memory_space<vmem>>, vector<1x1x1x1x4xf32>,
    %1070 = vector.extract_strided_slice %1065 {offsets = [0, 4], sizes = [1, 4], strides = [1, 1]} : vector<1x8xf32> to vector<1x4xf32>
    %c0_1167 = arith.constant 0 : index
    %c0_1168 = arith.constant 0 : index
    %c0_1169 = arith.constant 0 : index
    %c1_1170 = arith.constant 1 : index
    %c236_1171 = arith.constant 236 : index
    %1071 = vector.load %arg3[%c0_1167, %c0_1168, %c0_1169, %c1_1170, %c236_1171] : memref<1x1x2x2x256xf32, #tpu.memory_space<vmem>>, vector<1x1x1x1x4xf32>
    %1072 = vector.shape_cast %1071 : vector<1x1x1x1x4xf32> to vector<1x4xf32>
    %1073 = vector.shape_cast %1070 : vector<1x4xf32> to vector<1x1x1x1x4xf32>
    tpu.vector_store %arg3[%c0_1167, %c0_1168, %c0_1169, %c1_1170, %c236_1171], %1073 {strides = array<i32>} : memref<1x1x2x2x256xf32, #tpu.memory_space<vmem>>, vector<1x1x1x1x4xf32>,
    %1074 = vector.extract_strided_slice %1037 {offsets = [4, 0], sizes = [1, 8], strides = [1, 1]} : vector<8x8xf32> to vector<1x8xf32>
    %1075 = vector.extract_strided_slice %1074 {offsets = [0, 0], sizes = [1, 4], strides = [1, 1]} : vector<1x8xf32> to vector<1x4xf32>
    %c0_1172 = arith.constant 0 : index
    %c0_1173 = arith.constant 0 : index
    %c1_1174 = arith.constant 1 : index
    %c0_1175 = arith.constant 0 : index
    %c224_1176 = arith.constant 224 : index
    %1076 = vector.load %arg3[%c0_1172, %c0_1173, %c1_1174, %c0_1175, %c224_1176] : memref<1x1x2x2x256xf32, #tpu.memory_space<vmem>>, vector<1x1x1x1x4xf32>
    %1077 = vector.shape_cast %1076 : vector<1x1x1x1x4xf32> to vector<1x4xf32>
    %1078 = vector.shape_cast %1075 : vector<1x4xf32> to vector<1x1x1x1x4xf32>
    tpu.vector_store %arg3[%c0_1172, %c0_1173, %c1_1174, %c0_1175, %c224_1176], %1078 {strides = array<i32>} : memref<1x1x2x2x256xf32, #tpu.memory_space<vmem>>, vector<1x1x1x1x4xf32>,
    %1079 = vector.extract_strided_slice %1074 {offsets = [0, 4], sizes = [1, 4], strides = [1, 1]} : vector<1x8xf32> to vector<1x4xf32>
    %c0_1177 = arith.constant 0 : index
    %c0_1178 = arith.constant 0 : index
    %c1_1179 = arith.constant 1 : index
    %c1_1180 = arith.constant 1 : index
    %c224_1181 = arith.constant 224 : index
    %1080 = vector.load %arg3[%c0_1177, %c0_1178, %c1_1179, %c1_1180, %c224_1181] : memref<1x1x2x2x256xf32, #tpu.memory_space<vmem>>, vector<1x1x1x1x4xf32>
    %1081 = vector.shape_cast %1080 : vector<1x1x1x1x4xf32> to vector<1x4xf32>
    %1082 = vector.shape_cast %1079 : vector<1x4xf32> to vector<1x1x1x1x4xf32>
    tpu.vector_store %arg3[%c0_1177, %c0_1178, %c1_1179, %c1_1180, %c224_1181], %1082 {strides = array<i32>} : memref<1x1x2x2x256xf32, #tpu.memory_space<vmem>>, vector<1x1x1x1x4xf32>,
    %1083 = vector.extract_strided_slice %1037 {offsets = [5, 0], sizes = [1, 8], strides = [1, 1]} : vector<8x8xf32> to vector<1x8xf32>
    %1084 = vector.extract_strided_slice %1083 {offsets = [0, 0], sizes = [1, 4], strides = [1, 1]} : vector<1x8xf32> to vector<1x4xf32>
    %c0_1182 = arith.constant 0 : index
    %c0_1183 = arith.constant 0 : index
    %c1_1184 = arith.constant 1 : index
    %c0_1185 = arith.constant 0 : index
    %c228_1186 = arith.constant 228 : index
    %1085 = vector.load %arg3[%c0_1182, %c0_1183, %c1_1184, %c0_1185, %c228_1186] : memref<1x1x2x2x256xf32, #tpu.memory_space<vmem>>, vector<1x1x1x1x4xf32>
    %1086 = vector.shape_cast %1085 : vector<1x1x1x1x4xf32> to vector<1x4xf32>
    %1087 = vector.shape_cast %1084 : vector<1x4xf32> to vector<1x1x1x1x4xf32>
    tpu.vector_store %arg3[%c0_1182, %c0_1183, %c1_1184, %c0_1185, %c228_1186], %1087 {strides = array<i32>} : memref<1x1x2x2x256xf32, #tpu.memory_space<vmem>>, vector<1x1x1x1x4xf32>,
    %1088 = vector.extract_strided_slice %1083 {offsets = [0, 4], sizes = [1, 4], strides = [1, 1]} : vector<1x8xf32> to vector<1x4xf32>
    %c0_1187 = arith.constant 0 : index
    %c0_1188 = arith.constant 0 : index
    %c1_1189 = arith.constant 1 : index
    %c1_1190 = arith.constant 1 : index
    %c228_1191 = arith.constant 228 : index
    %1089 = vector.load %arg3[%c0_1187, %c0_1188, %c1_1189, %c1_1190, %c228_1191] : memref<1x1x2x2x256xf32, #tpu.memory_space<vmem>>, vector<1x1x1x1x4xf32>
    %1090 = vector.shape_cast %1089 : vector<1x1x1x1x4xf32> to vector<1x4xf32>
    %1091 = vector.shape_cast %1088 : vector<1x4xf32> to vector<1x1x1x1x4xf32>
    tpu.vector_store %arg3[%c0_1187, %c0_1188, %c1_1189, %c1_1190, %c228_1191], %1091 {strides = array<i32>} : memref<1x1x2x2x256xf32, #tpu.memory_space<vmem>>, vector<1x1x1x1x4xf32>,
    %1092 = vector.extract_strided_slice %1037 {offsets = [6, 0], sizes = [1, 8], strides = [1, 1]} : vector<8x8xf32> to vector<1x8xf32>
    %1093 = vector.extract_strided_slice %1092 {offsets = [0, 0], sizes = [1, 4], strides = [1, 1]} : vector<1x8xf32> to vector<1x4xf32>
    %c0_1192 = arith.constant 0 : index
    %c0_1193 = arith.constant 0 : index
    %c1_1194 = arith.constant 1 : index
    %c0_1195 = arith.constant 0 : index
    %c232_1196 = arith.constant 232 : index
    %1094 = vector.load %arg3[%c0_1192, %c0_1193, %c1_1194, %c0_1195, %c232_1196] : memref<1x1x2x2x256xf32, #tpu.memory_space<vmem>>, vector<1x1x1x1x4xf32>
    %1095 = vector.shape_cast %1094 : vector<1x1x1x1x4xf32> to vector<1x4xf32>
    %1096 = vector.shape_cast %1093 : vector<1x4xf32> to vector<1x1x1x1x4xf32>
    tpu.vector_store %arg3[%c0_1192, %c0_1193, %c1_1194, %c0_1195, %c232_1196], %1096 {strides = array<i32>} : memref<1x1x2x2x256xf32, #tpu.memory_space<vmem>>, vector<1x1x1x1x4xf32>,
    %1097 = vector.extract_strided_slice %1092 {offsets = [0, 4], sizes = [1, 4], strides = [1, 1]} : vector<1x8xf32> to vector<1x4xf32>
    %c0_1197 = arith.constant 0 : index
    %c0_1198 = arith.constant 0 : index
    %c1_1199 = arith.constant 1 : index
    %c1_1200 = arith.constant 1 : index
    %c232_1201 = arith.constant 232 : index
    %1098 = vector.load %arg3[%c0_1197, %c0_1198, %c1_1199, %c1_1200, %c232_1201] : memref<1x1x2x2x256xf32, #tpu.memory_space<vmem>>, vector<1x1x1x1x4xf32>
    %1099 = vector.shape_cast %1098 : vector<1x1x1x1x4xf32> to vector<1x4xf32>
    %1100 = vector.shape_cast %1097 : vector<1x4xf32> to vector<1x1x1x1x4xf32>
    tpu.vector_store %arg3[%c0_1197, %c0_1198, %c1_1199, %c1_1200, %c232_1201], %1100 {strides = array<i32>} : memref<1x1x2x2x256xf32, #tpu.memory_space<vmem>>, vector<1x1x1x1x4xf32>,
    %1101 = vector.extract_strided_slice %1037 {offsets = [7, 0], sizes = [1, 8], strides = [1, 1]} : vector<8x8xf32> to vector<1x8xf32>
    %1102 = vector.extract_strided_slice %1101 {offsets = [0, 0], sizes = [1, 4], strides = [1, 1]} : vector<1x8xf32> to vector<1x4xf32>
    %c0_1202 = arith.constant 0 : index
    %c0_1203 = arith.constant 0 : index
    %c1_1204 = arith.constant 1 : index
    %c0_1205 = arith.constant 0 : index
    %c236_1206 = arith.constant 236 : index
    %1103 = vector.load %arg3[%c0_1202, %c0_1203, %c1_1204, %c0_1205, %c236_1206] : memref<1x1x2x2x256xf32, #tpu.memory_space<vmem>>, vector<1x1x1x1x4xf32>
    %1104 = vector.shape_cast %1103 : vector<1x1x1x1x4xf32> to vector<1x4xf32>
    %1105 = vector.shape_cast %1102 : vector<1x4xf32> to vector<1x1x1x1x4xf32>
    tpu.vector_store %arg3[%c0_1202, %c0_1203, %c1_1204, %c0_1205, %c236_1206], %1105 {strides = array<i32>} : memref<1x1x2x2x256xf32, #tpu.memory_space<vmem>>, vector<1x1x1x1x4xf32>,
    %1106 = vector.extract_strided_slice %1101 {offsets = [0, 4], sizes = [1, 4], strides = [1, 1]} : vector<1x8xf32> to vector<1x4xf32>
    %c0_1207 = arith.constant 0 : index
    %c0_1208 = arith.constant 0 : index
    %c1_1209 = arith.constant 1 : index
    %c1_1210 = arith.constant 1 : index
    %c236_1211 = arith.constant 236 : index
    %1107 = vector.load %arg3[%c0_1207, %c0_1208, %c1_1209, %c1_1210, %c236_1211] : memref<1x1x2x2x256xf32, #tpu.memory_space<vmem>>, vector<1x1x1x1x4xf32>
    %1108 = vector.shape_cast %1107 : vector<1x1x1x1x4xf32> to vector<1x4xf32>
    %1109 = vector.shape_cast %1106 : vector<1x4xf32> to vector<1x1x1x1x4xf32>
    tpu.vector_store %arg3[%c0_1207, %c0_1208, %c1_1209, %c1_1210, %c236_1211], %1109 {strides = array<i32>} : memref<1x1x2x2x256xf32, #tpu.memory_space<vmem>>, vector<1x1x1x1x4xf32>,
    %c0_1212 = arith.constant 0 : index
    %c3_1213 = arith.constant 3 : index
    %c3_1214 = arith.constant 3 : index
    %c0_1215 = arith.constant 0 : index
    %c0_1216 = arith.constant 0 : index
    %1110 = vector.load %arg2[%c0_1212, %c3_1213, %c3_1214, %c0_1215, %c0_1216] : memref<1x4x4x8x8xf32, #tpu.memory_space<vmem>>, vector<1x1x1x8x8xf32>
    %1111 = vector.shape_cast %1110 : vector<1x1x1x8x8xf32> to vector<8x8xf32>
    %1112 = vector.extract_strided_slice %1111 {offsets = [0, 0], sizes = [1, 8], strides = [1, 1]} : vector<8x8xf32> to vector<1x8xf32>
    %1113 = vector.extract_strided_slice %1112 {offsets = [0, 0], sizes = [1, 4], strides = [1, 1]} : vector<1x8xf32> to vector<1x4xf32>
    %c0_1217 = arith.constant 0 : index
    %c0_1218 = arith.constant 0 : index
    %c0_1219 = arith.constant 0 : index
    %c0_1220 = arith.constant 0 : index
    %c240 = arith.constant 240 : index
    %1114 = vector.load %arg3[%c0_1217, %c0_1218, %c0_1219, %c0_1220, %c240] : memref<1x1x2x2x256xf32, #tpu.memory_space<vmem>>, vector<1x1x1x1x4xf32>
    %1115 = vector.shape_cast %1114 : vector<1x1x1x1x4xf32> to vector<1x4xf32>
    %1116 = vector.shape_cast %1113 : vector<1x4xf32> to vector<1x1x1x1x4xf32>
    tpu.vector_store %arg3[%c0_1217, %c0_1218, %c0_1219, %c0_1220, %c240], %1116 {strides = array<i32>} : memref<1x1x2x2x256xf32, #tpu.memory_space<vmem>>, vector<1x1x1x1x4xf32>,
    %1117 = vector.extract_strided_slice %1112 {offsets = [0, 4], sizes = [1, 4], strides = [1, 1]} : vector<1x8xf32> to vector<1x4xf32>
    %c0_1221 = arith.constant 0 : index
    %c0_1222 = arith.constant 0 : index
    %c0_1223 = arith.constant 0 : index
    %c1_1224 = arith.constant 1 : index
    %c240_1225 = arith.constant 240 : index
    %1118 = vector.load %arg3[%c0_1221, %c0_1222, %c0_1223, %c1_1224, %c240_1225] : memref<1x1x2x2x256xf32, #tpu.memory_space<vmem>>, vector<1x1x1x1x4xf32>
    %1119 = vector.shape_cast %1118 : vector<1x1x1x1x4xf32> to vector<1x4xf32>
    %1120 = vector.shape_cast %1117 : vector<1x4xf32> to vector<1x1x1x1x4xf32>
    tpu.vector_store %arg3[%c0_1221, %c0_1222, %c0_1223, %c1_1224, %c240_1225], %1120 {strides = array<i32>} : memref<1x1x2x2x256xf32, #tpu.memory_space<vmem>>, vector<1x1x1x1x4xf32>,
    %1121 = vector.extract_strided_slice %1111 {offsets = [1, 0], sizes = [1, 8], strides = [1, 1]} : vector<8x8xf32> to vector<1x8xf32>
    %1122 = vector.extract_strided_slice %1121 {offsets = [0, 0], sizes = [1, 4], strides = [1, 1]} : vector<1x8xf32> to vector<1x4xf32>
    %c0_1226 = arith.constant 0 : index
    %c0_1227 = arith.constant 0 : index
    %c0_1228 = arith.constant 0 : index
    %c0_1229 = arith.constant 0 : index
    %c244 = arith.constant 244 : index
    %1123 = vector.load %arg3[%c0_1226, %c0_1227, %c0_1228, %c0_1229, %c244] : memref<1x1x2x2x256xf32, #tpu.memory_space<vmem>>, vector<1x1x1x1x4xf32>
    %1124 = vector.shape_cast %1123 : vector<1x1x1x1x4xf32> to vector<1x4xf32>
    %1125 = vector.shape_cast %1122 : vector<1x4xf32> to vector<1x1x1x1x4xf32>
    tpu.vector_store %arg3[%c0_1226, %c0_1227, %c0_1228, %c0_1229, %c244], %1125 {strides = array<i32>} : memref<1x1x2x2x256xf32, #tpu.memory_space<vmem>>, vector<1x1x1x1x4xf32>,
    %1126 = vector.extract_strided_slice %1121 {offsets = [0, 4], sizes = [1, 4], strides = [1, 1]} : vector<1x8xf32> to vector<1x4xf32>
    %c0_1230 = arith.constant 0 : index
    %c0_1231 = arith.constant 0 : index
    %c0_1232 = arith.constant 0 : index
    %c1_1233 = arith.constant 1 : index
    %c244_1234 = arith.constant 244 : index
    %1127 = vector.load %arg3[%c0_1230, %c0_1231, %c0_1232, %c1_1233, %c244_1234] : memref<1x1x2x2x256xf32, #tpu.memory_space<vmem>>, vector<1x1x1x1x4xf32>
    %1128 = vector.shape_cast %1127 : vector<1x1x1x1x4xf32> to vector<1x4xf32>
    %1129 = vector.shape_cast %1126 : vector<1x4xf32> to vector<1x1x1x1x4xf32>
    tpu.vector_store %arg3[%c0_1230, %c0_1231, %c0_1232, %c1_1233, %c244_1234], %1129 {strides = array<i32>} : memref<1x1x2x2x256xf32, #tpu.memory_space<vmem>>, vector<1x1x1x1x4xf32>,
    %1130 = vector.extract_strided_slice %1111 {offsets = [2, 0], sizes = [1, 8], strides = [1, 1]} : vector<8x8xf32> to vector<1x8xf32>
    %1131 = vector.extract_strided_slice %1130 {offsets = [0, 0], sizes = [1, 4], strides = [1, 1]} : vector<1x8xf32> to vector<1x4xf32>
    %c0_1235 = arith.constant 0 : index
    %c0_1236 = arith.constant 0 : index
    %c0_1237 = arith.constant 0 : index
    %c0_1238 = arith.constant 0 : index
    %c248 = arith.constant 248 : index
    %1132 = vector.load %arg3[%c0_1235, %c0_1236, %c0_1237, %c0_1238, %c248] : memref<1x1x2x2x256xf32, #tpu.memory_space<vmem>>, vector<1x1x1x1x4xf32>
    %1133 = vector.shape_cast %1132 : vector<1x1x1x1x4xf32> to vector<1x4xf32>
    %1134 = vector.shape_cast %1131 : vector<1x4xf32> to vector<1x1x1x1x4xf32>
    tpu.vector_store %arg3[%c0_1235, %c0_1236, %c0_1237, %c0_1238, %c248], %1134 {strides = array<i32>} : memref<1x1x2x2x256xf32, #tpu.memory_space<vmem>>, vector<1x1x1x1x4xf32>,
    %1135 = vector.extract_strided_slice %1130 {offsets = [0, 4], sizes = [1, 4], strides = [1, 1]} : vector<1x8xf32> to vector<1x4xf32>
    %c0_1239 = arith.constant 0 : index
    %c0_1240 = arith.constant 0 : index
    %c0_1241 = arith.constant 0 : index
    %c1_1242 = arith.constant 1 : index
    %c248_1243 = arith.constant 248 : index
    %1136 = vector.load %arg3[%c0_1239, %c0_1240, %c0_1241, %c1_1242, %c248_1243] : memref<1x1x2x2x256xf32, #tpu.memory_space<vmem>>, vector<1x1x1x1x4xf32>
    %1137 = vector.shape_cast %1136 : vector<1x1x1x1x4xf32> to vector<1x4xf32>
    %1138 = vector.shape_cast %1135 : vector<1x4xf32> to vector<1x1x1x1x4xf32>
    tpu.vector_store %arg3[%c0_1239, %c0_1240, %c0_1241, %c1_1242, %c248_1243], %1138 {strides = array<i32>} : memref<1x1x2x2x256xf32, #tpu.memory_space<vmem>>, vector<1x1x1x1x4xf32>,
    %1139 = vector.extract_strided_slice %1111 {offsets = [3, 0], sizes = [1, 8], strides = [1, 1]} : vector<8x8xf32> to vector<1x8xf32>
    %1140 = vector.extract_strided_slice %1139 {offsets = [0, 0], sizes = [1, 4], strides = [1, 1]} : vector<1x8xf32> to vector<1x4xf32>
    %c0_1244 = arith.constant 0 : index
    %c0_1245 = arith.constant 0 : index
    %c0_1246 = arith.constant 0 : index
    %c0_1247 = arith.constant 0 : index
    %c252 = arith.constant 252 : index
    %1141 = vector.load %arg3[%c0_1244, %c0_1245, %c0_1246, %c0_1247, %c252] : memref<1x1x2x2x256xf32, #tpu.memory_space<vmem>>, vector<1x1x1x1x4xf32>
    %1142 = vector.shape_cast %1141 : vector<1x1x1x1x4xf32> to vector<1x4xf32>
    %1143 = vector.shape_cast %1140 : vector<1x4xf32> to vector<1x1x1x1x4xf32>
    tpu.vector_store %arg3[%c0_1244, %c0_1245, %c0_1246, %c0_1247, %c252], %1143 {strides = array<i32>} : memref<1x1x2x2x256xf32, #tpu.memory_space<vmem>>, vector<1x1x1x1x4xf32>,
    %1144 = vector.extract_strided_slice %1139 {offsets = [0, 4], sizes = [1, 4], strides = [1, 1]} : vector<1x8xf32> to vector<1x4xf32>
    %c0_1248 = arith.constant 0 : index
    %c0_1249 = arith.constant 0 : index
    %c0_1250 = arith.constant 0 : index
    %c1_1251 = arith.constant 1 : index
    %c252_1252 = arith.constant 252 : index
    %1145 = vector.load %arg3[%c0_1248, %c0_1249, %c0_1250, %c1_1251, %c252_1252] : memref<1x1x2x2x256xf32, #tpu.memory_space<vmem>>, vector<1x1x1x1x4xf32>
    %1146 = vector.shape_cast %1145 : vector<1x1x1x1x4xf32> to vector<1x4xf32>
    %1147 = vector.shape_cast %1144 : vector<1x4xf32> to vector<1x1x1x1x4xf32>
    tpu.vector_store %arg3[%c0_1248, %c0_1249, %c0_1250, %c1_1251, %c252_1252], %1147 {strides = array<i32>} : memref<1x1x2x2x256xf32, #tpu.memory_space<vmem>>, vector<1x1x1x1x4xf32>,
    %1148 = vector.extract_strided_slice %1111 {offsets = [4, 0], sizes = [1, 8], strides = [1, 1]} : vector<8x8xf32> to vector<1x8xf32>
    %1149 = vector.extract_strided_slice %1148 {offsets = [0, 0], sizes = [1, 4], strides = [1, 1]} : vector<1x8xf32> to vector<1x4xf32>
    %c0_1253 = arith.constant 0 : index
    %c0_1254 = arith.constant 0 : index
    %c1_1255 = arith.constant 1 : index
    %c0_1256 = arith.constant 0 : index
    %c240_1257 = arith.constant 240 : index
    %1150 = vector.load %arg3[%c0_1253, %c0_1254, %c1_1255, %c0_1256, %c240_1257] : memref<1x1x2x2x256xf32, #tpu.memory_space<vmem>>, vector<1x1x1x1x4xf32>
    %1151 = vector.shape_cast %1150 : vector<1x1x1x1x4xf32> to vector<1x4xf32>
    %1152 = vector.shape_cast %1149 : vector<1x4xf32> to vector<1x1x1x1x4xf32>
    tpu.vector_store %arg3[%c0_1253, %c0_1254, %c1_1255, %c0_1256, %c240_1257], %1152 {strides = array<i32>} : memref<1x1x2x2x256xf32, #tpu.memory_space<vmem>>, vector<1x1x1x1x4xf32>,
    %1153 = vector.extract_strided_slice %1148 {offsets = [0, 4], sizes = [1, 4], strides = [1, 1]} : vector<1x8xf32> to vector<1x4xf32>
    %c0_1258 = arith.constant 0 : index
    %c0_1259 = arith.constant 0 : index
    %c1_1260 = arith.constant 1 : index
    %c1_1261 = arith.constant 1 : index
    %c240_1262 = arith.constant 240 : index
    %1154 = vector.load %arg3[%c0_1258, %c0_1259, %c1_1260, %c1_1261, %c240_1262] : memref<1x1x2x2x256xf32, #tpu.memory_space<vmem>>, vector<1x1x1x1x4xf32>
    %1155 = vector.shape_cast %1154 : vector<1x1x1x1x4xf32> to vector<1x4xf32>
    %1156 = vector.shape_cast %1153 : vector<1x4xf32> to vector<1x1x1x1x4xf32>
    tpu.vector_store %arg3[%c0_1258, %c0_1259, %c1_1260, %c1_1261, %c240_1262], %1156 {strides = array<i32>} : memref<1x1x2x2x256xf32, #tpu.memory_space<vmem>>, vector<1x1x1x1x4xf32>,
    %1157 = vector.extract_strided_slice %1111 {offsets = [5, 0], sizes = [1, 8], strides = [1, 1]} : vector<8x8xf32> to vector<1x8xf32>
    %1158 = vector.extract_strided_slice %1157 {offsets = [0, 0], sizes = [1, 4], strides = [1, 1]} : vector<1x8xf32> to vector<1x4xf32>
    %c0_1263 = arith.constant 0 : index
    %c0_1264 = arith.constant 0 : index
    %c1_1265 = arith.constant 1 : index
    %c0_1266 = arith.constant 0 : index
    %c244_1267 = arith.constant 244 : index
    %1159 = vector.load %arg3[%c0_1263, %c0_1264, %c1_1265, %c0_1266, %c244_1267] : memref<1x1x2x2x256xf32, #tpu.memory_space<vmem>>, vector<1x1x1x1x4xf32>
    %1160 = vector.shape_cast %1159 : vector<1x1x1x1x4xf32> to vector<1x4xf32>
    %1161 = vector.shape_cast %1158 : vector<1x4xf32> to vector<1x1x1x1x4xf32>
    tpu.vector_store %arg3[%c0_1263, %c0_1264, %c1_1265, %c0_1266, %c244_1267], %1161 {strides = array<i32>} : memref<1x1x2x2x256xf32, #tpu.memory_space<vmem>>, vector<1x1x1x1x4xf32>,
    %1162 = vector.extract_strided_slice %1157 {offsets = [0, 4], sizes = [1, 4], strides = [1, 1]} : vector<1x8xf32> to vector<1x4xf32>
    %c0_1268 = arith.constant 0 : index
    %c0_1269 = arith.constant 0 : index
    %c1_1270 = arith.constant 1 : index
    %c1_1271 = arith.constant 1 : index
    %c244_1272 = arith.constant 244 : index
    %1163 = vector.load %arg3[%c0_1268, %c0_1269, %c1_1270, %c1_1271, %c244_1272] : memref<1x1x2x2x256xf32, #tpu.memory_space<vmem>>, vector<1x1x1x1x4xf32>
    %1164 = vector.shape_cast %1163 : vector<1x1x1x1x4xf32> to vector<1x4xf32>
    %1165 = vector.shape_cast %1162 : vector<1x4xf32> to vector<1x1x1x1x4xf32>
    tpu.vector_store %arg3[%c0_1268, %c0_1269, %c1_1270, %c1_1271, %c244_1272], %1165 {strides = array<i32>} : memref<1x1x2x2x256xf32, #tpu.memory_space<vmem>>, vector<1x1x1x1x4xf32>,
    %1166 = vector.extract_strided_slice %1111 {offsets = [6, 0], sizes = [1, 8], strides = [1, 1]} : vector<8x8xf32> to vector<1x8xf32>
    %1167 = vector.extract_strided_slice %1166 {offsets = [0, 0], sizes = [1, 4], strides = [1, 1]} : vector<1x8xf32> to vector<1x4xf32>
    %c0_1273 = arith.constant 0 : index
    %c0_1274 = arith.constant 0 : index
    %c1_1275 = arith.constant 1 : index
    %c0_1276 = arith.constant 0 : index
    %c248_1277 = arith.constant 248 : index
    %1168 = vector.load %arg3[%c0_1273, %c0_1274, %c1_1275, %c0_1276, %c248_1277] : memref<1x1x2x2x256xf32, #tpu.memory_space<vmem>>, vector<1x1x1x1x4xf32>
    %1169 = vector.shape_cast %1168 : vector<1x1x1x1x4xf32> to vector<1x4xf32>
    %1170 = vector.shape_cast %1167 : vector<1x4xf32> to vector<1x1x1x1x4xf32>
    tpu.vector_store %arg3[%c0_1273, %c0_1274, %c1_1275, %c0_1276, %c248_1277], %1170 {strides = array<i32>} : memref<1x1x2x2x256xf32, #tpu.memory_space<vmem>>, vector<1x1x1x1x4xf32>,
    %1171 = vector.extract_strided_slice %1166 {offsets = [0, 4], sizes = [1, 4], strides = [1, 1]} : vector<1x8xf32> to vector<1x4xf32>
    %c0_1278 = arith.constant 0 : index
    %c0_1279 = arith.constant 0 : index
    %c1_1280 = arith.constant 1 : index
    %c1_1281 = arith.constant 1 : index
    %c248_1282 = arith.constant 248 : index
    %1172 = vector.load %arg3[%c0_1278, %c0_1279, %c1_1280, %c1_1281, %c248_1282] : memref<1x1x2x2x256xf32, #tpu.memory_space<vmem>>, vector<1x1x1x1x4xf32>
    %1173 = vector.shape_cast %1172 : vector<1x1x1x1x4xf32> to vector<1x4xf32>
    %1174 = vector.shape_cast %1171 : vector<1x4xf32> to vector<1x1x1x1x4xf32>
    tpu.vector_store %arg3[%c0_1278, %c0_1279, %c1_1280, %c1_1281, %c248_1282], %1174 {strides = array<i32>} : memref<1x1x2x2x256xf32, #tpu.memory_space<vmem>>, vector<1x1x1x1x4xf32>,
    %1175 = vector.extract_strided_slice %1111 {offsets = [7, 0], sizes = [1, 8], strides = [1, 1]} : vector<8x8xf32> to vector<1x8xf32>
    %1176 = vector.extract_strided_slice %1175 {offsets = [0, 0], sizes = [1, 4], strides = [1, 1]} : vector<1x8xf32> to vector<1x4xf32>
    %c0_1283 = arith.constant 0 : index
    %c0_1284 = arith.constant 0 : index
    %c1_1285 = arith.constant 1 : index
    %c0_1286 = arith.constant 0 : index
    %c252_1287 = arith.constant 252 : index
    %1177 = vector.load %arg3[%c0_1283, %c0_1284, %c1_1285, %c0_1286, %c252_1287] : memref<1x1x2x2x256xf32, #tpu.memory_space<vmem>>, vector<1x1x1x1x4xf32>
    %1178 = vector.shape_cast %1177 : vector<1x1x1x1x4xf32> to vector<1x4xf32>
    %1179 = vector.shape_cast %1176 : vector<1x4xf32> to vector<1x1x1x1x4xf32>
    tpu.vector_store %arg3[%c0_1283, %c0_1284, %c1_1285, %c0_1286, %c252_1287], %1179 {strides = array<i32>} : memref<1x1x2x2x256xf32, #tpu.memory_space<vmem>>, vector<1x1x1x1x4xf32>,
    %1180 = vector.extract_strided_slice %1175 {offsets = [0, 4], sizes = [1, 4], strides = [1, 1]} : vector<1x8xf32> to vector<1x4xf32>
    %c0_1288 = arith.constant 0 : index
    %c0_1289 = arith.constant 0 : index
    %c1_1290 = arith.constant 1 : index
    %c1_1291 = arith.constant 1 : index
    %c252_1292 = arith.constant 252 : index
    %1181 = vector.load %arg3[%c0_1288, %c0_1289, %c1_1290, %c1_1291, %c252_1292] : memref<1x1x2x2x256xf32, #tpu.memory_space<vmem>>, vector<1x1x1x1x4xf32>
    %1182 = vector.shape_cast %1181 : vector<1x1x1x1x4xf32> to vector<1x4xf32>
    %1183 = vector.shape_cast %1180 : vector<1x4xf32> to vector<1x1x1x1x4xf32>
    tpu.vector_store %arg3[%c0_1288, %c0_1289, %c1_1290, %c1_1291, %c252_1292], %1183 {strides = array<i32>} : memref<1x1x2x2x256xf32, #tpu.memory_space<vmem>>, vector<1x1x1x1x4xf32>,
    return
  }
  func.func @transform_0(%arg0: i32, %arg1: i32) -> (i32, i32, i32, i32, i32) {
    %c0_i32 = arith.constant 0 : i32
    %c0_i32_0 = arith.constant 0 : i32
    %c0_i32_1 = arith.constant 0 : i32
    %c0_i32_2 = arith.constant 0 : i32
    return %arg0, %c0_i32, %arg1, %c0_i32_0, %c0_i32_1 : i32, i32, i32, i32, i32
  }
  func.func @transform_1(%arg0: i32, %arg1: i32) -> (i32, i32, i32, i32, i32) {
    %c0_i32 = arith.constant 0 : i32
    %c0_i32_0 = arith.constant 0 : i32
    %c0_i32_1 = arith.constant 0 : i32
    %c0_i32_2 = arith.constant 0 : i32
    return %arg0, %arg1, %c0_i32, %c0_i32_0, %c0_i32_1 : i32, i32, i32, i32, i32
  }
}

</mosaic_0001>

<llo_original>
// kernel: tpu_custom_call.1
$region0: #{tpu_custom_call.1}
  #allocation0 [shape = 'u32[]', space=smem, size = 0x4, offset = 0x4, fixed_abs, tag = 'smem constant byte address 0x4 - core index']
  #allocation1 [shape = 'u32[144,128]{1,0:T(1,128)}', space=vmem, size = 0x12000, scoped, tag = 'internal scratch']
  #allocation6 [shape = 's32[]', space=sflag, size = 0x4, offset = 0, fixed_abs, tag = 'sflag constant byte address 0x0 - dummy sync flag']
  %s0 = inlined_call_operand.hbm [shape: f32[2,4,8,8,8], index: 0, kind: input, shape index: {}]
  %s1 = inlined_call_operand.hbm [shape: f32[2,2,2,2,256], index: 1, kind: output, shape index: {}]
  %s2 = sld [smem:[#allocation0]]
  $region41: #{tpu_custom_call.1} parent=0
    _
  %s4 = ssub.s32 1, %s2
  %s5 = scalar_select 0, %s4, %s2
  $region1: #{tpu_custom_call.1} parent=0
    #allocation2 [shape = 'u8[131072]{0}', space=vmem, size = 0x20000, scoped, tag = 'input window, operand 0']
    #allocation3 [shape = 's32[2]{0}', space=sflag, size = 0x8, scoped, tag = 'scoped memory for tpu_custom_call.1']
    #allocation4 [shape = 's32[2]{0}', space=sflag, size = 0x8, scoped, tag = 'scoped memory for tpu_custom_call.1']
    #allocation5 [shape = 'u8[8192]{0}', space=vmem, size = 0x2000, scoped, tag = 'output window, operand 0']
    %6 = vsyncpa [#allocation3], 0
    %s7 = scalar_lea.sflag [#allocation3], 1
    %8 = vsyncpa %s7, 0
    %9 = vsyncpa [#allocation4], 0
    %s10 = scalar_lea.sflag [#allocation4], 1
    %11 = vsyncpa %s10, 0
    loop: start=0, step=1, limit=6
    $region2: #{tpu_custom_call.1} parent=1 // loop_pre_header
      _
    $region3: #{tpu_custom_call.1} parent=1 // loop_header
      %s13 = sphi 0, %s17
      %p14 = scmp.ge.s32.totalorder %s13, 6
      %s20 = sphi 0, %s32
      %s21 = sphi 0, %s28
      %s22 = sphi 0, %s20
      %s23 = sphi 0, %s21
      %s24 = sphi 0, %s22
      %s25 = sphi 0, %s23
      %s37 = sphi 0, %s39
      %s40 = sphi 0, %s37
      %s41 = sphi 0, %s40
      %s57 = sphi 0, %s41
      %s65 = sphi 0, %s67
      %s68 = sphi 0, %s65
      %s69 = sphi 0, %s68
      %s85 = sphi 0, %s69
    $region4: #{tpu_custom_call.1} parent=1 // loop_header_branch
      %16 = sbr.rel (%p14) target = $region8
    $region5: #{tpu_custom_call.1} parent=1 // loop_body
      %s18 = ssub.s32 %s13, 1
      %s19 = ssub.s32 %s13, 2
      %s26 = sadd.s32 1, %s21
      %p27 = scmp.ge.s32.totalorder %s26, 2
      %s28 = scalar_select %p27, 0, %s26
      %s29 = sadd.s32 1, %s20
      %s30 = scalar_select %p27, %s29, %s20
      %p31 = scmp.ge.s32.totalorder %s30, 2
      %s32 = scalar_select %p31, 0, %s30
      %s33 = ssub.s32 %s20, %s32
      %s34 = ssub.s32 %s21, %s28
      %s35 = sor.u32 %s33, %s34
      %p36 = scmp.eq.s32.totalorder %s35, 0
      %s38 = sadd.s32 %s37, 1
      %s39 = scalar_select %p36, %s37, %s38
      %p42 = pneg %p36
      %p43 = scmp.eq.s32.totalorder %s13, 3
      %p44 = por %p42, %p43
      %p45 = scmp.ne.s32.totalorder %s37, %s40
      %p46 = scmp.eq.s32.totalorder %s13, 0
      %p47 = por %p45, %p46
      %p48 = scmp.ne.s32.totalorder %s37, %s40
      %p49 = scmp.eq.s32.totalorder %s18, 3
      %p50 = por %p48, %p49
      %p51 = scmp.ne.s32.totalorder %s40, %s41
      %p52 = scmp.eq.s32.totalorder %s18, 0
      %p53 = por %p51, %p52
      %p54 = scmp.ne.s32.totalorder %s40, %s41
      %p55 = scmp.eq.s32.totalorder %s19, 3
      %p56 = por %p54, %p55
      %p58 = scmp.ne.s32.totalorder %s41, %s57
      %p59 = scmp.eq.s32.totalorder %s19, 0
      %p60 = por %p58, %p59
      %s61 = ssub.s32 %s20, %s32
      %s62 = ssub.s32 %s21, %s28
      %s63 = sor.u32 %s61, %s62
      %p64 = scmp.eq.s32.totalorder %s63, 0
      %s66 = sadd.s32 %s65, 1
      %s67 = scalar_select %p64, %s65, %s66
      %p70 = pneg %p64
      %p71 = scmp.eq.s32.totalorder %s13, 3
      %p72 = por %p70, %p71
      %p73 = scmp.ne.s32.totalorder %s65, %s68
      %p74 = scmp.eq.s32.totalorder %s13, 0
      %p75 = por %p73, %p74
      %p76 = scmp.ne.s32.totalorder %s65, %s68
      %p77 = scmp.eq.s32.totalorder %s18, 3
      %p78 = por %p76, %p77
      %p79 = scmp.ne.s32.totalorder %s68, %s69
      %p80 = scmp.eq.s32.totalorder %s18, 0
      %p81 = por %p79, %p80
      %p82 = scmp.ne.s32.totalorder %s68, %s69
      %p83 = scmp.eq.s32.totalorder %s19, 3
      %p84 = por %p82, %p83
      %p86 = scmp.ne.s32.totalorder %s69, %s85
      %p87 = scmp.eq.s32.totalorder %s19, 0
      %p88 = por %p86, %p87
      %p89 = scmp.le.s32.totalorder 1, %s13
      %p90 = scmp.lt.s32.totalorder %s13, 5
      %p91 = pnand %p89, %p90
      %p92 = pneg %p91
      // Predicated region
      $region9: #{tpu_custom_call.1} parent=5 // pred_check
        _
      $region10: #{tpu_custom_call.1} parent=5 // pred_check_branch
        %94 = sbr.rel (%p91) target = $region12
      $region11: #{tpu_custom_call.1} parent=5 // pred_region
        %s95 = ssub.s32 %s13, 1
      $region12: #{tpu_custom_call.1} parent=5 // pred_fallthru
        _
      %p96 = scmp.lt.s32.totalorder %s13, 4
      // Predicated region
      $region13: #{tpu_custom_call.1} parent=5 // pred_check
        %p97 = pneg %p96
      $region14: #{tpu_custom_call.1} parent=5 // pred_check_branch
        %99 = sbr.rel (%p97) target = $region16
      $region15: #{tpu_custom_call.1} parent=5 // pred_region
        // Predicated region
        $region17: #{tpu_custom_call.1} parent=15 // pred_check
          %p100 = pneg %p47
        $region18: #{tpu_custom_call.1} parent=15 // pred_check_branch
          %102 = sbr.rel (%p100) target = $region20
        $region19: #{tpu_custom_call.1} parent=15 // pred_region
          #allocation7 [shape = 'u32[6]{0}', space=smem, size = 0x18, scoped, tag = 'DMA stride descriptor']
          %s103 = sand.u32 %s37, 1
          %s104 = scalar_lea.sflag [#allocation3], %s103
          %s105 = sand.u32 %s37, 1
          %s106 = smul.addr %s105, 128
          %s107 = scalar_lea.vmem [#allocation2], %s106
          %s108 = smul.u32 4, %s21
          %s110 = ssub.s32 2048, 2048
          %111 = vsyncadd %s104, %s110
          %s112 = smul.addr %s20, 32
          %s113 = sadd.s32 %s108, %s112
          %s114 = smul.addr %s113, 128
          %s115 = scalar_lea.hbm %s0, %s114
          %s117 = sshll.u32 1, 14
          %s118 = sxor.u32 4294967295, %s117
          %s120 = sld [smem:[#allocation0]]
          %s121 = sadd.s32 2, %s120
          %s123 = sshll.u32 7, 26
          %s124 = sxor.u32 4294967295, %s123
          %s125 = sand.u32 0, %s124
          %s126 = sshll.u32 %s121, 26
          %s127 = sor.u32 %s125, %s126
          %s128 = sshll.u32 %s107, 4
          %s129 = int_to_ptr.vmem [resolvable:$true] %s128
          %135 = sst [smem:[#allocation7]] 1024
          %s136 = scalar_lea.smem [#allocation7], 1
          %137 = sst [smem:[%s136]] 512
          %s138 = scalar_lea.smem [#allocation7], 2
          %139 = sst [smem:[%s138]] 4
          %s140 = scalar_lea.smem [#allocation7], 3
          %141 = sst [smem:[%s140]] 128
          %s142 = scalar_lea.smem [#allocation7], 4
          %143 = sst [smem:[%s142]] 128
          %s144 = scalar_lea.smem [#allocation7], 5
          %145 = sst [smem:[%s144]] 8
          %147 = dma.general %s115, 2048, %s129, %s104, [#allocation6], [#allocation7], %s127, 0
        $region20: #{tpu_custom_call.1} parent=15 // pred_fallthru
          _
      $region16: #{tpu_custom_call.1} parent=5 // pred_fallthru
        _
      %p148 = scmp.le.s32.totalorder 1, %s13
      %p149 = scmp.lt.s32.totalorder %s13, 5
      %p150 = pnand %p148, %p149
      %p151 = pneg %p150
      // Predicated region
      $region21: #{tpu_custom_call.1} parent=5 // pred_check
        _
      $region22: #{tpu_custom_call.1} parent=5 // pred_check_branch
        %153 = sbr.rel (%p150) target = $region24
      $region23: #{tpu_custom_call.1} parent=5 // pred_region
        %s154 = ssub.s32 %s13, 1
        %s155 = sand.u32 %s40, 1
        %s156 = scalar_lea.sflag [#allocation3], %s155
        %s157 = sand.u32 %s40, 1
        %s158 = smul.addr %s157, 128
        %s159 = scalar_lea.vmem [#allocation2], %s158
        // Predicated region
        $region25: #{tpu_custom_call.1} parent=23 // pred_check
          %p160 = pneg %p53
        $region26: #{tpu_custom_call.1} parent=23 // pred_check_branch
          %162 = sbr.rel (%p160) target = $region28
        $region27: #{tpu_custom_call.1} parent=23 // pred_region
          %163 = dma.done %s156, 2048
        $region28: #{tpu_custom_call.1} parent=23 // pred_fallthru
          _
        %s164 = sand.u32 %s40, 1
        %s165 = scalar_lea.sflag [#allocation3], %s164
        %s166 = sand.u32 %s40, 1
        %s167 = smul.addr %s166, 128
        %s168 = scalar_lea.vmem [#allocation2], %s167
        %p169 = pneg %p53
        %p170 = pneg %p50
        %p171 = pneg %p81
        %p172 = pneg %p78
        %s173 = sand.u32 %s68, 1
        %s174 = scalar_lea.sflag [#allocation4], %s173
        %s175 = sand.u32 %s68, 1
        %s176 = smul.addr %s175, 8
        %s177 = scalar_lea.vmem [#allocation5], %s176
        %s178 = smul.u32 4, %s23
        %v179 = vld [vmem:[%s159] sm:$0xff]
        %vm180 = vcmask 24576
        %181 = vst.msk [vmem:[%s177] sm:$0x1] %vm180, %v179
        %v184 = vunpack.c.l.s4 1983009808
        %v185 = vunpack.c.0.s8 %v184
        %v186 = vlaneseq
        %v187 = vshrl.u32 %v186, 7
        %v188 = vsub.s32 %v185, %v187
        %v189 = vrot.slane %v179, %v188
        %190 = vrot.lane.b32.xlu0 %v189, 124
        %v191 = vpop.permute.xlu0 %190
        %193 = vst.msk [vmem:[%s177 + $0x1] sm:$0x1] %vm180, %v191
        %v194 = vrot.slane %v189, 7
        %v195 = vrot.slane %v194, 2
        %196 = vrot.lane.b32.xlu0 %v195, 4
        %v197 = vpop.permute.xlu0 %196
        %vm199 = vcmask 57376
        %200 = vst.msk [vmem:[%s177] sm:$0x1] %vm199, %v197
        %202 = vst.msk [vmem:[%s177 + $0x1] sm:$0x1] %vm199, %v195
        %v203 = vcombine.high %v189, %v189
        %204 = vrot.lane.b32.xlu0 %v203, 8
        %v205 = vpop.permute.xlu0 %204
        %vm207 = vcmask 90176
        %208 = vst.msk [vmem:[%s177] sm:$0x1] %vm207, %v205
        %209 = vrot.lane.b32.xlu0 %v203, 4
        %v210 = vpop.permute.xlu0 %209
        %212 = vst.msk [vmem:[%s177 + $0x1] sm:$0x1] %vm207, %v210
        %v213 = vrot.slane %v203, 7
        %v214 = vrot.slane %v213, 2
        %215 = vrot.lane.b32.xlu0 %v214, 12
        %v216 = vpop.permute.xlu0 %215
        %vm218 = vcmask 122976
        %219 = vst.msk [vmem:[%s177] sm:$0x1] %vm218, %v216
        %220 = vrot.lane.b32.xlu0 %v214, 8
        %v221 = vpop.permute.xlu0 %220
        %223 = vst.msk [vmem:[%s177 + $0x1] sm:$0x1] %vm218, %v221
        %v224 = vcombine.high %v179, %v179
        %v226 = vunpack.c.l.s4 1983009808
        %v227 = vunpack.c.0.s8 %v226
        %v228 = vlaneseq
        %v229 = vshrl.u32 %v228, 7
        %v230 = vsub.s32 %v227, %v229
        %v231 = vrot.slane %v224, %v230
        %s233 = scalar_lea.vmem %s177, 4 [#allocation5]
        %234 = vst.msk [vmem:[%s233] sm:$0x1] %vm180, %v231
        %235 = vrot.lane.b32.xlu0 %v231, 124
        %v236 = vpop.permute.xlu0 %235
        %238 = vst.msk [vmem:[%s233 + $0x1] sm:$0x1] %vm180, %v236
        %v239 = vrot.slane %v231, 7
        %v240 = vrot.slane %v239, 2
        %241 = vrot.lane.b32.xlu0 %v240, 4
        %v242 = vpop.permute.xlu0 %241
        %244 = vst.msk [vmem:[%s233] sm:$0x1] %vm199, %v242
        %246 = vst.msk [vmem:[%s233 + $0x1] sm:$0x1] %vm199, %v240
        %v247 = vcombine.high %v231, %v231
        %248 = vrot.lane.b32.xlu0 %v247, 8
        %v249 = vpop.permute.xlu0 %248
        %251 = vst.msk [vmem:[%s233] sm:$0x1] %vm207, %v249
        %252 = vrot.lane.b32.xlu0 %v247, 4
        %v253 = vpop.permute.xlu0 %252
        %255 = vst.msk [vmem:[%s233 + $0x1] sm:$0x1] %vm207, %v253
        %v256 = vrot.slane %v247, 7
        %v257 = vrot.slane %v256, 2
        %258 = vrot.lane.b32.xlu0 %v257, 12
        %v259 = vpop.permute.xlu0 %258
        %261 = vst.msk [vmem:[%s233] sm:$0x1] %vm218, %v259
        %262 = vrot.lane.b32.xlu0 %v257, 8
        %v263 = vpop.permute.xlu0 %262
        %265 = vst.msk [vmem:[%s233 + $0x1] sm:$0x1] %vm218, %v263
        %s266 = scalar_lea.vmem %s159, 8 [#allocation2]
        %v267 = vld [vmem:[%s266] sm:$0xff]
        %v270 = vunpack.c.l.s4 1983009808
        %v271 = vunpack.c.0.s8 %v270
        %v272 = vlaneseq
        %v273 = vshrl.u32 %v272, 7
        %v274 = vsub.s32 %v271, %v273
        %v275 = vrot.slane %v267, %v274
        %276 = vrot.lane.b32.xlu0 %v275, 16
        %v277 = vpop.permute.xlu0 %276
        %vm279 = vcmask 155776
        %280 = vst.msk [vmem:[%s177] sm:$0x1] %vm279, %v277
        %281 = vrot.lane.b32.xlu0 %v275, 12
        %v282 = vpop.permute.xlu0 %281
        %284 = vst.msk [vmem:[%s177 + $0x1] sm:$0x1] %vm279, %v282
        %v285 = vrot.slane %v275, 7
        %v286 = vrot.slane %v285, 2
        %287 = vrot.lane.b32.xlu0 %v286, 20
        %v288 = vpop.permute.xlu0 %287
        %vm290 = vcmask 188576
        %291 = vst.msk [vmem:[%s177] sm:$0x1] %vm290, %v288
        %292 = vrot.lane.b32.xlu0 %v286, 16
        %v293 = vpop.permute.xlu0 %292
        %295 = vst.msk [vmem:[%s177 + $0x1] sm:$0x1] %vm290, %v293
        %v296 = vcombine.high %v275, %v275
        %297 = vrot.lane.b32.xlu0 %v296, 24
        %v298 = vpop.permute.xlu0 %297
        %vm300 = vcmask 221376
        %301 = vst.msk [vmem:[%s177] sm:$0x1] %vm300, %v298
        %302 = vrot.lane.b32.xlu0 %v296, 20
        %v303 = vpop.permute.xlu0 %302
        %305 = vst.msk [vmem:[%s177 + $0x1] sm:$0x1] %vm300, %v303
        %v306 = vrot.slane %v296, 7
        %v307 = vrot.slane %v306, 2
        %308 = vrot.lane.b32.xlu0 %v307, 28
        %v309 = vpop.permute.xlu0 %308
        %vm311 = vcmask 254176
        %312 = vst.msk [vmem:[%s177] sm:$0x1] %vm311, %v309
        %313 = vrot.lane.b32.xlu0 %v307, 24
        %v314 = vpop.permute.xlu0 %313
        %316 = vst.msk [vmem:[%s177 + $0x1] sm:$0x1] %vm311, %v314
        %v317 = vcombine.high %v267, %v267
        %v319 = vunpack.c.l.s4 1983009808
        %v320 = vunpack.c.0.s8 %v319
        %v321 = vlaneseq
        %v322 = vshrl.u32 %v321, 7
        %v323 = vsub.s32 %v320, %v322
        %v324 = vrot.slane %v317, %v323
        %325 = vrot.lane.b32.xlu0 %v324, 16
        %v326 = vpop.permute.xlu0 %325
        %328 = vst.msk [vmem:[%s233] sm:$0x1] %vm279, %v326
        %329 = vrot.lane.b32.xlu0 %v324, 12
        %v330 = vpop.permute.xlu0 %329
        %332 = vst.msk [vmem:[%s233 + $0x1] sm:$0x1] %vm279, %v330
        %v333 = vrot.slane %v324, 7
        %v334 = vrot.slane %v333, 2
        %335 = vrot.lane.b32.xlu0 %v334, 20
        %v336 = vpop.permute.xlu0 %335
        %338 = vst.msk [vmem:[%s233] sm:$0x1] %vm290, %v336
        %339 = vrot.lane.b32.xlu0 %v334, 16
        %v340 = vpop.permute.xlu0 %339
        %342 = vst.msk [vmem:[%s233 + $0x1] sm:$0x1] %vm290, %v340
        %v343 = vcombine.high %v324, %v324
        %344 = vrot.lane.b32.xlu0 %v343, 24
        %v345 = vpop.permute.xlu0 %344
        %347 = vst.msk [vmem:[%s233] sm:$0x1] %vm300, %v345
        %348 = vrot.lane.b32.xlu0 %v343, 20
        %v349 = vpop.permute.xlu0 %348
        %351 = vst.msk [vmem:[%s233 + $0x1] sm:$0x1] %vm300, %v349
        %v352 = vrot.slane %v343, 7
        %v353 = vrot.slane %v352, 2
        %354 = vrot.lane.b32.xlu0 %v353, 28
        %v355 = vpop.permute.xlu0 %354
        %357 = vst.msk [vmem:[%s233] sm:$0x1] %vm311, %v355
        %358 = vrot.lane.b32.xlu0 %v353, 24
        %v359 = vpop.permute.xlu0 %358
        %361 = vst.msk [vmem:[%s233 + $0x1] sm:$0x1] %vm311, %v359
        %s362 = scalar_lea.vmem %s159, 16 [#allocation2]
        %v363 = vld [vmem:[%s362] sm:$0xff]
        %v366 = vunpack.c.l.s4 1983009808
        %v367 = vunpack.c.0.s8 %v366
        %v368 = vlaneseq
        %v369 = vshrl.u32 %v368, 7
        %v370 = vsub.s32 %v367, %v369
        %v371 = vrot.slane %v363, %v370
        %372 = vrot.lane.b32.xlu0 %v371, 32
        %v373 = vpop.permute.xlu0 %372
        %vm375 = vcmask 286976
        %376 = vst.msk [vmem:[%s177] sm:$0x1] %vm375, %v373
        %377 = vrot.lane.b32.xlu0 %v371, 28
        %v378 = vpop.permute.xlu0 %377
        %380 = vst.msk [vmem:[%s177 + $0x1] sm:$0x1] %vm375, %v378
        %v381 = vrot.slane %v371, 7
        %v382 = vrot.slane %v381, 2
        %383 = vrot.lane.b32.xlu0 %v382, 36
        %v384 = vpop.permute.xlu0 %383
        %vm386 = vcmask 319776
        %387 = vst.msk [vmem:[%s177] sm:$0x1] %vm386, %v384
        %388 = vrot.lane.b32.xlu0 %v382, 32
        %v389 = vpop.permute.xlu0 %388
        %391 = vst.msk [vmem:[%s177 + $0x1] sm:$0x1] %vm386, %v389
        %v392 = vcombine.high %v371, %v371
        %393 = vrot.lane.b32.xlu0 %v392, 40
        %v394 = vpop.permute.xlu0 %393
        %vm396 = vcmask 352576
        %397 = vst.msk [vmem:[%s177] sm:$0x1] %vm396, %v394
        %398 = vrot.lane.b32.xlu0 %v392, 36
        %v399 = vpop.permute.xlu0 %398
        %401 = vst.msk [vmem:[%s177 + $0x1] sm:$0x1] %vm396, %v399
        %v402 = vrot.slane %v392, 7
        %v403 = vrot.slane %v402, 2
        %404 = vrot.lane.b32.xlu0 %v403, 44
        %v405 = vpop.permute.xlu0 %404
        %vm407 = vcmask 385376
        %408 = vst.msk [vmem:[%s177] sm:$0x1] %vm407, %v405
        %409 = vrot.lane.b32.xlu0 %v403, 40
        %v410 = vpop.permute.xlu0 %409
        %412 = vst.msk [vmem:[%s177 + $0x1] sm:$0x1] %vm407, %v410
        %v413 = vcombine.high %v363, %v363
        %v415 = vunpack.c.l.s4 1983009808
        %v416 = vunpack.c.0.s8 %v415
        %v417 = vlaneseq
        %v418 = vshrl.u32 %v417, 7
        %v419 = vsub.s32 %v416, %v418
        %v420 = vrot.slane %v413, %v419
        %421 = vrot.lane.b32.xlu0 %v420, 32
        %v422 = vpop.permute.xlu0 %421
        %424 = vst.msk [vmem:[%s233] sm:$0x1] %vm375, %v422
        %425 = vrot.lane.b32.xlu0 %v420, 28
        %v426 = vpop.permute.xlu0 %425
        %428 = vst.msk [vmem:[%s233 + $0x1] sm:$0x1] %vm375, %v426
        %v429 = vrot.slane %v420, 7
        %v430 = vrot.slane %v429, 2
        %431 = vrot.lane.b32.xlu0 %v430, 36
        %v432 = vpop.permute.xlu0 %431
        %434 = vst.msk [vmem:[%s233] sm:$0x1] %vm386, %v432
        %435 = vrot.lane.b32.xlu0 %v430, 32
        %v436 = vpop.permute.xlu0 %435
        %438 = vst.msk [vmem:[%s233 + $0x1] sm:$0x1] %vm386, %v436
        %v439 = vcombine.high %v420, %v420
        %440 = vrot.lane.b32.xlu0 %v439, 40
        %v441 = vpop.permute.xlu0 %440
        %443 = vst.msk [vmem:[%s233] sm:$0x1] %vm396, %v441
        %444 = vrot.lane.b32.xlu0 %v439, 36
        %v445 = vpop.permute.xlu0 %444
        %447 = vst.msk [vmem:[%s233 + $0x1] sm:$0x1] %vm396, %v445
        %v448 = vrot.slane %v439, 7
        %v449 = vrot.slane %v448, 2
        %450 = vrot.lane.b32.xlu0 %v449, 44
        %v451 = vpop.permute.xlu0 %450
        %453 = vst.msk [vmem:[%s233] sm:$0x1] %vm407, %v451
        %454 = vrot.lane.b32.xlu0 %v449, 40
        %v455 = vpop.permute.xlu0 %454
        %457 = vst.msk [vmem:[%s233 + $0x1] sm:$0x1] %vm407, %v455
        %s458 = scalar_lea.vmem %s159, 24 [#allocation2]
        %v459 = vld [vmem:[%s458] sm:$0xff]
        %v462 = vunpack.c.l.s4 1983009808
        %v463 = vunpack.c.0.s8 %v462
        %v464 = vlaneseq
        %v465 = vshrl.u32 %v464, 7
        %v466 = vsub.s32 %v463, %v465
        %v467 = vrot.slane %v459, %v466
        %468 = vrot.lane.b32.xlu0 %v467, 48
        %v469 = vpop.permute.xlu0 %468
        %vm471 = vcmask 418176
        %472 = vst.msk [vmem:[%s177] sm:$0x1] %vm471, %v469
        %473 = vrot.lane.b32.xlu0 %v467, 44
        %v474 = vpop.permute.xlu0 %473
        %476 = vst.msk [vmem:[%s177 + $0x1] sm:$0x1] %vm471, %v474
        %v477 = vrot.slane %v467, 7
        %v478 = vrot.slane %v477, 2
        %479 = vrot.lane.b32.xlu0 %v478, 52
        %v480 = vpop.permute.xlu0 %479
        %vm482 = vcmask 450976
        %483 = vst.msk [vmem:[%s177] sm:$0x1] %vm482, %v480
        %484 = vrot.lane.b32.xlu0 %v478, 48
        %v485 = vpop.permute.xlu0 %484
        %487 = vst.msk [vmem:[%s177 + $0x1] sm:$0x1] %vm482, %v485
        %v488 = vcombine.high %v467, %v467
        %489 = vrot.lane.b32.xlu0 %v488, 56
        %v490 = vpop.permute.xlu0 %489
        %vm492 = vcmask 483776
        %493 = vst.msk [vmem:[%s177] sm:$0x1] %vm492, %v490
        %494 = vrot.lane.b32.xlu0 %v488, 52
        %v495 = vpop.permute.xlu0 %494
        %497 = vst.msk [vmem:[%s177 + $0x1] sm:$0x1] %vm492, %v495
        %v498 = vrot.slane %v488, 7
        %v499 = vrot.slane %v498, 2
        %500 = vrot.lane.b32.xlu0 %v499, 60
        %v501 = vpop.permute.xlu0 %500
        %vm503 = vcmask 516576
        %504 = vst.msk [vmem:[%s177] sm:$0x1] %vm503, %v501
        %505 = vrot.lane.b32.xlu0 %v499, 56
        %v506 = vpop.permute.xlu0 %505
        %508 = vst.msk [vmem:[%s177 + $0x1] sm:$0x1] %vm503, %v506
        %v509 = vcombine.high %v459, %v459
        %v511 = vunpack.c.l.s4 1983009808
        %v512 = vunpack.c.0.s8 %v511
        %v513 = vlaneseq
        %v514 = vshrl.u32 %v513, 7
        %v515 = vsub.s32 %v512, %v514
        %v516 = vrot.slane %v509, %v515
        %517 = vrot.lane.b32.xlu0 %v516, 48
        %v518 = vpop.permute.xlu0 %517
        %520 = vst.msk [vmem:[%s233] sm:$0x1] %vm471, %v518
        %521 = vrot.lane.b32.xlu0 %v516, 44
        %v522 = vpop.permute.xlu0 %521
        %524 = vst.msk [vmem:[%s233 + $0x1] sm:$0x1] %vm471, %v522
        %v525 = vrot.slane %v516, 7
        %v526 = vrot.slane %v525, 2
        %527 = vrot.lane.b32.xlu0 %v526, 52
        %v528 = vpop.permute.xlu0 %527
        %530 = vst.msk [vmem:[%s233] sm:$0x1] %vm482, %v528
        %531 = vrot.lane.b32.xlu0 %v526, 48
        %v532 = vpop.permute.xlu0 %531
        %534 = vst.msk [vmem:[%s233 + $0x1] sm:$0x1] %vm482, %v532
        %v535 = vcombine.high %v516, %v516
        %536 = vrot.lane.b32.xlu0 %v535, 56
        %v537 = vpop.permute.xlu0 %536
        %539 = vst.msk [vmem:[%s233] sm:$0x1] %vm492, %v537
        %540 = vrot.lane.b32.xlu0 %v535, 52
        %v541 = vpop.permute.xlu0 %540
        %543 = vst.msk [vmem:[%s233 + $0x1] sm:$0x1] %vm492, %v541
        %v544 = vrot.slane %v535, 7
        %v545 = vrot.slane %v544, 2
        %546 = vrot.lane.b32.xlu0 %v545, 60
        %v547 = vpop.permute.xlu0 %546
        %549 = vst.msk [vmem:[%s233] sm:$0x1] %vm503, %v547
        %550 = vrot.lane.b32.xlu0 %v545, 56
        %v551 = vpop.permute.xlu0 %550
        %553 = vst.msk [vmem:[%s233 + $0x1] sm:$0x1] %vm503, %v551
        %s554 = scalar_lea.vmem %s159, 32 [#allocation2]
        %v555 = vld [vmem:[%s554] sm:$0xff]
        %v558 = vunpack.c.l.s4 1983009808
        %v559 = vunpack.c.0.s8 %v558
        %v560 = vlaneseq
        %v561 = vshrl.u32 %v560, 7
        %v562 = vsub.s32 %v559, %v561
        %v563 = vrot.slane %v555, %v562
        %564 = vrot.lane.b32.xlu0 %v563, 64
        %v565 = vpop.permute.xlu0 %564
        %vm567 = vcmask 549376
        %568 = vst.msk [vmem:[%s177] sm:$0x1] %vm567, %v565
        %569 = vrot.lane.b32.xlu0 %v563, 60
        %v570 = vpop.permute.xlu0 %569
        %572 = vst.msk [vmem:[%s177 + $0x1] sm:$0x1] %vm567, %v570
        %v573 = vrot.slane %v563, 7
        %v574 = vrot.slane %v573, 2
        %575 = vrot.lane.b32.xlu0 %v574, 68
        %v576 = vpop.permute.xlu0 %575
        %vm578 = vcmask 582176
        %579 = vst.msk [vmem:[%s177] sm:$0x1] %vm578, %v576
        %580 = vrot.lane.b32.xlu0 %v574, 64
        %v581 = vpop.permute.xlu0 %580
        %583 = vst.msk [vmem:[%s177 + $0x1] sm:$0x1] %vm578, %v581
        %v584 = vcombine.high %v563, %v563
        %585 = vrot.lane.b32.xlu0 %v584, 72
        %v586 = vpop.permute.xlu0 %585
        %vm588 = vcmask 614976
        %589 = vst.msk [vmem:[%s177] sm:$0x1] %vm588, %v586
        %590 = vrot.lane.b32.xlu0 %v584, 68
        %v591 = vpop.permute.xlu0 %590
        %593 = vst.msk [vmem:[%s177 + $0x1] sm:$0x1] %vm588, %v591
        %v594 = vrot.slane %v584, 7
        %v595 = vrot.slane %v594, 2
        %596 = vrot.lane.b32.xlu0 %v595, 76
        %v597 = vpop.permute.xlu0 %596
        %vm599 = vcmask 647776
        %600 = vst.msk [vmem:[%s177] sm:$0x1] %vm599, %v597
        %601 = vrot.lane.b32.xlu0 %v595, 72
        %v602 = vpop.permute.xlu0 %601
        %604 = vst.msk [vmem:[%s177 + $0x1] sm:$0x1] %vm599, %v602
        %v605 = vcombine.high %v555, %v555
        %v607 = vunpack.c.l.s4 1983009808
        %v608 = vunpack.c.0.s8 %v607
        %v609 = vlaneseq
        %v610 = vshrl.u32 %v609, 7
        %v611 = vsub.s32 %v608, %v610
        %v612 = vrot.slane %v605, %v611
        %613 = vrot.lane.b32.xlu0 %v612, 64
        %v614 = vpop.permute.xlu0 %613
        %616 = vst.msk [vmem:[%s233] sm:$0x1] %vm567, %v614
        %617 = vrot.lane.b32.xlu0 %v612, 60
        %v618 = vpop.permute.xlu0 %617
        %620 = vst.msk [vmem:[%s233 + $0x1] sm:$0x1] %vm567, %v618
        %v621 = vrot.slane %v612, 7
        %v622 = vrot.slane %v621, 2
        %623 = vrot.lane.b32.xlu0 %v622, 68
        %v624 = vpop.permute.xlu0 %623
        %626 = vst.msk [vmem:[%s233] sm:$0x1] %vm578, %v624
        %627 = vrot.lane.b32.xlu0 %v622, 64
        %v628 = vpop.permute.xlu0 %627
        %630 = vst.msk [vmem:[%s233 + $0x1] sm:$0x1] %vm578, %v628
        %v631 = vcombine.high %v612, %v612
        %632 = vrot.lane.b32.xlu0 %v631, 72
        %v633 = vpop.permute.xlu0 %632
        %635 = vst.msk [vmem:[%s233] sm:$0x1] %vm588, %v633
        %636 = vrot.lane.b32.xlu0 %v631, 68
        %v637 = vpop.permute.xlu0 %636
        %639 = vst.msk [vmem:[%s233 + $0x1] sm:$0x1] %vm588, %v637
        %v640 = vrot.slane %v631, 7
        %v641 = vrot.slane %v640, 2
        %642 = vrot.lane.b32.xlu0 %v641, 76
        %v643 = vpop.permute.xlu0 %642
        %645 = vst.msk [vmem:[%s233] sm:$0x1] %vm599, %v643
        %646 = vrot.lane.b32.xlu0 %v641, 72
        %v647 = vpop.permute.xlu0 %646
        %649 = vst.msk [vmem:[%s233 + $0x1] sm:$0x1] %vm599, %v647
        %s650 = scalar_lea.vmem %s159, 40 [#allocation2]
        %v651 = vld [vmem:[%s650] sm:$0xff]
        %v654 = vunpack.c.l.s4 1983009808
        %v655 = vunpack.c.0.s8 %v654
        %v656 = vlaneseq
        %v657 = vshrl.u32 %v656, 7
        %v658 = vsub.s32 %v655, %v657
        %v659 = vrot.slane %v651, %v658
        %660 = vrot.lane.b32.xlu0 %v659, 80
        %v661 = vpop.permute.xlu0 %660
        %vm663 = vcmask 680576
        %664 = vst.msk [vmem:[%s177] sm:$0x1] %vm663, %v661
        %665 = vrot.lane.b32.xlu0 %v659, 76
        %v666 = vpop.permute.xlu0 %665
        %668 = vst.msk [vmem:[%s177 + $0x1] sm:$0x1] %vm663, %v666
        %v669 = vrot.slane %v659, 7
        %v670 = vrot.slane %v669, 2
        %671 = vrot.lane.b32.xlu0 %v670, 84
        %v672 = vpop.permute.xlu0 %671
        %vm674 = vcmask 713376
        %675 = vst.msk [vmem:[%s177] sm:$0x1] %vm674, %v672
        %676 = vrot.lane.b32.xlu0 %v670, 80
        %v677 = vpop.permute.xlu0 %676
        %679 = vst.msk [vmem:[%s177 + $0x1] sm:$0x1] %vm674, %v677
        %v680 = vcombine.high %v659, %v659
        %681 = vrot.lane.b32.xlu0 %v680, 88
        %v682 = vpop.permute.xlu0 %681
        %vm684 = vcmask 746176
        %685 = vst.msk [vmem:[%s177] sm:$0x1] %vm684, %v682
        %686 = vrot.lane.b32.xlu0 %v680, 84
        %v687 = vpop.permute.xlu0 %686
        %689 = vst.msk [vmem:[%s177 + $0x1] sm:$0x1] %vm684, %v687
        %v690 = vrot.slane %v680, 7
        %v691 = vrot.slane %v690, 2
        %692 = vrot.lane.b32.xlu0 %v691, 92
        %v693 = vpop.permute.xlu0 %692
        %vm695 = vcmask 778976
        %696 = vst.msk [vmem:[%s177] sm:$0x1] %vm695, %v693
        %697 = vrot.lane.b32.xlu0 %v691, 88
        %v698 = vpop.permute.xlu0 %697
        %700 = vst.msk [vmem:[%s177 + $0x1] sm:$0x1] %vm695, %v698
        %v701 = vcombine.high %v651, %v651
        %v703 = vunpack.c.l.s4 1983009808
        %v704 = vunpack.c.0.s8 %v703
        %v705 = vlaneseq
        %v706 = vshrl.u32 %v705, 7
        %v707 = vsub.s32 %v704, %v706
        %v708 = vrot.slane %v701, %v707
        %709 = vrot.lane.b32.xlu0 %v708, 80
        %v710 = vpop.permute.xlu0 %709
        %712 = vst.msk [vmem:[%s233] sm:$0x1] %vm663, %v710
        %713 = vrot.lane.b32.xlu0 %v708, 76
        %v714 = vpop.permute.xlu0 %713
        %716 = vst.msk [vmem:[%s233 + $0x1] sm:$0x1] %vm663, %v714
        %v717 = vrot.slane %v708, 7
        %v718 = vrot.slane %v717, 2
        %719 = vrot.lane.b32.xlu0 %v718, 84
        %v720 = vpop.permute.xlu0 %719
        %722 = vst.msk [vmem:[%s233] sm:$0x1] %vm674, %v720
        %723 = vrot.lane.b32.xlu0 %v718, 80
        %v724 = vpop.permute.xlu0 %723
        %726 = vst.msk [vmem:[%s233 + $0x1] sm:$0x1] %vm674, %v724
        %v727 = vcombine.high %v708, %v708
        %728 = vrot.lane.b32.xlu0 %v727, 88
        %v729 = vpop.permute.xlu0 %728
        %731 = vst.msk [vmem:[%s233] sm:$0x1] %vm684, %v729
        %732 = vrot.lane.b32.xlu0 %v727, 84
        %v733 = vpop.permute.xlu0 %732
        %735 = vst.msk [vmem:[%s233 + $0x1] sm:$0x1] %vm684, %v733
        %v736 = vrot.slane %v727, 7
        %v737 = vrot.slane %v736, 2
        %738 = vrot.lane.b32.xlu0 %v737, 92
        %v739 = vpop.permute.xlu0 %738
        %741 = vst.msk [vmem:[%s233] sm:$0x1] %vm695, %v739
        %742 = vrot.lane.b32.xlu0 %v737, 88
        %v743 = vpop.permute.xlu0 %742
        %745 = vst.msk [vmem:[%s233 + $0x1] sm:$0x1] %vm695, %v743
        %s746 = scalar_lea.vmem %s159, 48 [#allocation2]
        %v747 = vld [vmem:[%s746] sm:$0xff]
        %v750 = vunpack.c.l.s4 1983009808
        %v751 = vunpack.c.0.s8 %v750
        %v752 = vlaneseq
        %v753 = vshrl.u32 %v752, 7
        %v754 = vsub.s32 %v751, %v753
        %v755 = vrot.slane %v747, %v754
        %756 = vrot.lane.b32.xlu0 %v755, 96
        %v757 = vpop.permute.xlu0 %756
        %vm759 = vcmask 811776
        %760 = vst.msk [vmem:[%s177] sm:$0x1] %vm759, %v757
        %761 = vrot.lane.b32.xlu0 %v755, 92
        %v762 = vpop.permute.xlu0 %761
        %764 = vst.msk [vmem:[%s177 + $0x1] sm:$0x1] %vm759, %v762
        %v765 = vrot.slane %v755, 7
        %v766 = vrot.slane %v765, 2
        %767 = vrot.lane.b32.xlu0 %v766, 100
        %v768 = vpop.permute.xlu0 %767
        %vm770 = vcmask 844576
        %771 = vst.msk [vmem:[%s177] sm:$0x1] %vm770, %v768
        %772 = vrot.lane.b32.xlu0 %v766, 96
        %v773 = vpop.permute.xlu0 %772
        %775 = vst.msk [vmem:[%s177 + $0x1] sm:$0x1] %vm770, %v773
        %v776 = vcombine.high %v755, %v755
        %777 = vrot.lane.b32.xlu0 %v776, 104
        %v778 = vpop.permute.xlu0 %777
        %vm780 = vcmask 877376
        %781 = vst.msk [vmem:[%s177] sm:$0x1] %vm780, %v778
        %782 = vrot.lane.b32.xlu0 %v776, 100
        %v783 = vpop.permute.xlu0 %782
        %785 = vst.msk [vmem:[%s177 + $0x1] sm:$0x1] %vm780, %v783
        %v786 = vrot.slane %v776, 7
        %v787 = vrot.slane %v786, 2
        %788 = vrot.lane.b32.xlu0 %v787, 108
        %v789 = vpop.permute.xlu0 %788
        %vm791 = vcmask 910176
        %792 = vst.msk [vmem:[%s177] sm:$0x1] %vm791, %v789
        %793 = vrot.lane.b32.xlu0 %v787, 104
        %v794 = vpop.permute.xlu0 %793
        %796 = vst.msk [vmem:[%s177 + $0x1] sm:$0x1] %vm791, %v794
        %v797 = vcombine.high %v747, %v747
        %v799 = vunpack.c.l.s4 1983009808
        %v800 = vunpack.c.0.s8 %v799
        %v801 = vlaneseq
        %v802 = vshrl.u32 %v801, 7
        %v803 = vsub.s32 %v800, %v802
        %v804 = vrot.slane %v797, %v803
        %805 = vrot.lane.b32.xlu0 %v804, 96
        %v806 = vpop.permute.xlu0 %805
        %808 = vst.msk [vmem:[%s233] sm:$0x1] %vm759, %v806
        %809 = vrot.lane.b32.xlu0 %v804, 92
        %v810 = vpop.permute.xlu0 %809
        %812 = vst.msk [vmem:[%s233 + $0x1] sm:$0x1] %vm759, %v810
        %v813 = vrot.slane %v804, 7
        %v814 = vrot.slane %v813, 2
        %815 = vrot.lane.b32.xlu0 %v814, 100
        %v816 = vpop.permute.xlu0 %815
        %818 = vst.msk [vmem:[%s233] sm:$0x1] %vm770, %v816
        %819 = vrot.lane.b32.xlu0 %v814, 96
        %v820 = vpop.permute.xlu0 %819
        %822 = vst.msk [vmem:[%s233 + $0x1] sm:$0x1] %vm770, %v820
        %v823 = vcombine.high %v804, %v804
        %824 = vrot.lane.b32.xlu0 %v823, 104
        %v825 = vpop.permute.xlu0 %824
        %827 = vst.msk [vmem:[%s233] sm:$0x1] %vm780, %v825
        %828 = vrot.lane.b32.xlu0 %v823, 100
        %v829 = vpop.permute.xlu0 %828
        %831 = vst.msk [vmem:[%s233 + $0x1] sm:$0x1] %vm780, %v829
        %v832 = vrot.slane %v823, 7
        %v833 = vrot.slane %v832, 2
        %834 = vrot.lane.b32.xlu0 %v833, 108
        %v835 = vpop.permute.xlu0 %834
        %837 = vst.msk [vmem:[%s233] sm:$0x1] %vm791, %v835
        %838 = vrot.lane.b32.xlu0 %v833, 104
        %v839 = vpop.permute.xlu0 %838
        %841 = vst.msk [vmem:[%s233 + $0x1] sm:$0x1] %vm791, %v839
        %s842 = scalar_lea.vmem %s159, 56 [#allocation2]
        %v843 = vld [vmem:[%s842] sm:$0xff]
        %v846 = vunpack.c.l.s4 1983009808
        %v847 = vunpack.c.0.s8 %v846
        %v848 = vlaneseq
        %v849 = vshrl.u32 %v848, 7
        %v850 = vsub.s32 %v847, %v849
        %v851 = vrot.slane %v843, %v850
        %852 = vrot.lane.b32.xlu0 %v851, 112
        %v853 = vpop.permute.xlu0 %852
        %vm855 = vcmask 942976
        %856 = vst.msk [vmem:[%s177] sm:$0x1] %vm855, %v853
        %857 = vrot.lane.b32.xlu0 %v851, 108
        %v858 = vpop.permute.xlu0 %857
        %860 = vst.msk [vmem:[%s177 + $0x1] sm:$0x1] %vm855, %v858
        %v861 = vrot.slane %v851, 7
        %v862 = vrot.slane %v861, 2
        %863 = vrot.lane.b32.xlu0 %v862, 116
        %v864 = vpop.permute.xlu0 %863
        %vm866 = vcmask 975776
        %867 = vst.msk [vmem:[%s177] sm:$0x1] %vm866, %v864
        %868 = vrot.lane.b32.xlu0 %v862, 112
        %v869 = vpop.permute.xlu0 %868
        %871 = vst.msk [vmem:[%s177 + $0x1] sm:$0x1] %vm866, %v869
        %v872 = vcombine.high %v851, %v851
        %873 = vrot.lane.b32.xlu0 %v872, 120
        %v874 = vpop.permute.xlu0 %873
        %vm876 = vcmask 1008576
        %877 = vst.msk [vmem:[%s177] sm:$0x1] %vm876, %v874
        %878 = vrot.lane.b32.xlu0 %v872, 116
        %v879 = vpop.permute.xlu0 %878
        %881 = vst.msk [vmem:[%s177 + $0x1] sm:$0x1] %vm876, %v879
        %v882 = vrot.slane %v872, 7
        %v883 = vrot.slane %v882, 2
        %884 = vrot.lane.b32.xlu0 %v883, 124
        %v885 = vpop.permute.xlu0 %884
        %vm887 = vcmask 1041376
        %888 = vst.msk [vmem:[%s177] sm:$0x1] %vm887, %v885
        %889 = vrot.lane.b32.xlu0 %v883, 120
        %v890 = vpop.permute.xlu0 %889
        %892 = vst.msk [vmem:[%s177 + $0x1] sm:$0x1] %vm887, %v890
        %v893 = vcombine.high %v843, %v843
        %v895 = vunpack.c.l.s4 1983009808
        %v896 = vunpack.c.0.s8 %v895
        %v897 = vlaneseq
        %v898 = vshrl.u32 %v897, 7
        %v899 = vsub.s32 %v896, %v898
        %v900 = vrot.slane %v893, %v899
        %901 = vrot.lane.b32.xlu0 %v900, 112
        %v902 = vpop.permute.xlu0 %901
        %904 = vst.msk [vmem:[%s233] sm:$0x1] %vm855, %v902
        %905 = vrot.lane.b32.xlu0 %v900, 108
        %v906 = vpop.permute.xlu0 %905
        %908 = vst.msk [vmem:[%s233 + $0x1] sm:$0x1] %vm855, %v906
        %v909 = vrot.slane %v900, 7
        %v910 = vrot.slane %v909, 2
        %911 = vrot.lane.b32.xlu0 %v910, 116
        %v912 = vpop.permute.xlu0 %911
        %914 = vst.msk [vmem:[%s233] sm:$0x1] %vm866, %v912
        %915 = vrot.lane.b32.xlu0 %v910, 112
        %v916 = vpop.permute.xlu0 %915
        %918 = vst.msk [vmem:[%s233 + $0x1] sm:$0x1] %vm866, %v916
        %v919 = vcombine.high %v900, %v900
        %920 = vrot.lane.b32.xlu0 %v919, 120
        %v921 = vpop.permute.xlu0 %920
        %923 = vst.msk [vmem:[%s233] sm:$0x1] %vm876, %v921
        %924 = vrot.lane.b32.xlu0 %v919, 116
        %v925 = vpop.permute.xlu0 %924
        %927 = vst.msk [vmem:[%s233 + $0x1] sm:$0x1] %vm876, %v925
        %v928 = vrot.slane %v919, 7
        %v929 = vrot.slane %v928, 2
        %930 = vrot.lane.b32.xlu0 %v929, 124
        %v931 = vpop.permute.xlu0 %930
        %933 = vst.msk [vmem:[%s233] sm:$0x1] %vm887, %v931
        %934 = vrot.lane.b32.xlu0 %v929, 120
        %v935 = vpop.permute.xlu0 %934
        %937 = vst.msk [vmem:[%s233 + $0x1] sm:$0x1] %vm887, %v935
        %s938 = scalar_lea.vmem %s159, 64 [#allocation2]
        %v939 = vld [vmem:[%s938] sm:$0xff]
        %940 = vst.msk [vmem:[%s177 + $0x2] sm:$0x1] %vm180, %v939
        %v943 = vunpack.c.l.s4 1983009808
        %v944 = vunpack.c.0.s8 %v943
        %v945 = vlaneseq
        %v946 = vshrl.u32 %v945, 7
        %v947 = vsub.s32 %v944, %v946
        %v948 = vrot.slane %v939, %v947
        %949 = vrot.lane.b32.xlu0 %v948, 124
        %v950 = vpop.permute.xlu0 %949
        %952 = vst.msk [vmem:[%s177 + $0x3] sm:$0x1] %vm180, %v950
        %v953 = vrot.slane %v948, 7
        %v954 = vrot.slane %v953, 2
        %955 = vrot.lane.b32.xlu0 %v954, 4
        %v956 = vpop.permute.xlu0 %955
        %958 = vst.msk [vmem:[%s177 + $0x2] sm:$0x1] %vm199, %v956
        %960 = vst.msk [vmem:[%s177 + $0x3] sm:$0x1] %vm199, %v954
        %v961 = vcombine.high %v948, %v948
        %962 = vrot.lane.b32.xlu0 %v961, 8
        %v963 = vpop.permute.xlu0 %962
        %965 = vst.msk [vmem:[%s177 + $0x2] sm:$0x1] %vm207, %v963
        %966 = vrot.lane.b32.xlu0 %v961, 4
        %v967 = vpop.permute.xlu0 %966
        %969 = vst.msk [vmem:[%s177 + $0x3] sm:$0x1] %vm207, %v967
        %v970 = vrot.slane %v961, 7
        %v971 = vrot.slane %v970, 2
        %972 = vrot.lane.b32.xlu0 %v971, 12
        %v973 = vpop.permute.xlu0 %972
        %975 = vst.msk [vmem:[%s177 + $0x2] sm:$0x1] %vm218, %v973
        %976 = vrot.lane.b32.xlu0 %v971, 8
        %v977 = vpop.permute.xlu0 %976
        %979 = vst.msk [vmem:[%s177 + $0x3] sm:$0x1] %vm218, %v977
        %v980 = vcombine.high %v939, %v939
        %v982 = vunpack.c.l.s4 1983009808
        %v983 = vunpack.c.0.s8 %v982
        %v984 = vlaneseq
        %v985 = vshrl.u32 %v984, 7
        %v986 = vsub.s32 %v983, %v985
        %v987 = vrot.slane %v980, %v986
        %989 = vst.msk [vmem:[%s233 + $0x2] sm:$0x1] %vm180, %v987
        %990 = vrot.lane.b32.xlu0 %v987, 124
        %v991 = vpop.permute.xlu0 %990
        %993 = vst.msk [vmem:[%s233 + $0x3] sm:$0x1] %vm180, %v991
        %v994 = vrot.slane %v987, 7
        %v995 = vrot.slane %v994, 2
        %996 = vrot.lane.b32.xlu0 %v995, 4
        %v997 = vpop.permute.xlu0 %996
        %999 = vst.msk [vmem:[%s233 + $0x2] sm:$0x1] %vm199, %v997
        %1001 = vst.msk [vmem:[%s233 + $0x3] sm:$0x1] %vm199, %v995
        %v1002 = vcombine.high %v987, %v987
        %1003 = vrot.lane.b32.xlu0 %v1002, 8
        %v1004 = vpop.permute.xlu0 %1003
        %1006 = vst.msk [vmem:[%s233 + $0x2] sm:$0x1] %vm207, %v1004
        %1007 = vrot.lane.b32.xlu0 %v1002, 4
        %v1008 = vpop.permute.xlu0 %1007
        %1010 = vst.msk [vmem:[%s233 + $0x3] sm:$0x1] %vm207, %v1008
        %v1011 = vrot.slane %v1002, 7
        %v1012 = vrot.slane %v1011, 2
        %1013 = vrot.lane.b32.xlu0 %v1012, 12
        %v1014 = vpop.permute.xlu0 %1013
        %1016 = vst.msk [vmem:[%s233 + $0x2] sm:$0x1] %vm218, %v1014
        %1017 = vrot.lane.b32.xlu0 %v1012, 8
        %v1018 = vpop.permute.xlu0 %1017
        %1020 = vst.msk [vmem:[%s233 + $0x3] sm:$0x1] %vm218, %v1018
        %s1021 = scalar_lea.vmem %s159, 72 [#allocation2]
        %v1022 = vld [vmem:[%s1021] sm:$0xff]
        %v1025 = vunpack.c.l.s4 1983009808
        %v1026 = vunpack.c.0.s8 %v1025
        %v1027 = vlaneseq
        %v1028 = vshrl.u32 %v1027, 7
        %v1029 = vsub.s32 %v1026, %v1028
        %v1030 = vrot.slane %v1022, %v1029
        %1031 = vrot.lane.b32.xlu0 %v1030, 16
        %v1032 = vpop.permute.xlu0 %1031
        %1034 = vst.msk [vmem:[%s177 + $0x2] sm:$0x1] %vm279, %v1032
        %1035 = vrot.lane.b32.xlu0 %v1030, 12
        %v1036 = vpop.permute.xlu0 %1035
        %1038 = vst.msk [vmem:[%s177 + $0x3] sm:$0x1] %vm279, %v1036
        %v1039 = vrot.slane %v1030, 7
        %v1040 = vrot.slane %v1039, 2
        %1041 = vrot.lane.b32.xlu0 %v1040, 20
        %v1042 = vpop.permute.xlu0 %1041
        %1044 = vst.msk [vmem:[%s177 + $0x2] sm:$0x1] %vm290, %v1042
        %1045 = vrot.lane.b32.xlu0 %v1040, 16
        %v1046 = vpop.permute.xlu0 %1045
        %1048 = vst.msk [vmem:[%s177 + $0x3] sm:$0x1] %vm290, %v1046
        %v1049 = vcombine.high %v1030, %v1030
        %1050 = vrot.lane.b32.xlu0 %v1049, 24
        %v1051 = vpop.permute.xlu0 %1050
        %1053 = vst.msk [vmem:[%s177 + $0x2] sm:$0x1] %vm300, %v1051
        %1054 = vrot.lane.b32.xlu0 %v1049, 20
        %v1055 = vpop.permute.xlu0 %1054
        %1057 = vst.msk [vmem:[%s177 + $0x3] sm:$0x1] %vm300, %v1055
        %v1058 = vrot.slane %v1049, 7
        %v1059 = vrot.slane %v1058, 2
        %1060 = vrot.lane.b32.xlu0 %v1059, 28
        %v1061 = vpop.permute.xlu0 %1060
        %1063 = vst.msk [vmem:[%s177 + $0x2] sm:$0x1] %vm311, %v1061
        %1064 = vrot.lane.b32.xlu0 %v1059, 24
        %v1065 = vpop.permute.xlu0 %1064
        %1067 = vst.msk [vmem:[%s177 + $0x3] sm:$0x1] %vm311, %v1065
        %v1068 = vcombine.high %v1022, %v1022
        %v1070 = vunpack.c.l.s4 1983009808
        %v1071 = vunpack.c.0.s8 %v1070
        %v1072 = vlaneseq
        %v1073 = vshrl.u32 %v1072, 7
        %v1074 = vsub.s32 %v1071, %v1073
        %v1075 = vrot.slane %v1068, %v1074
        %1076 = vrot.lane.b32.xlu0 %v1075, 16
        %v1077 = vpop.permute.xlu0 %1076
        %1079 = vst.msk [vmem:[%s233 + $0x2] sm:$0x1] %vm279, %v1077
        %1080 = vrot.lane.b32.xlu0 %v1075, 12
        %v1081 = vpop.permute.xlu0 %1080
        %1083 = vst.msk [vmem:[%s233 + $0x3] sm:$0x1] %vm279, %v1081
        %v1084 = vrot.slane %v1075, 7
        %v1085 = vrot.slane %v1084, 2
        %1086 = vrot.lane.b32.xlu0 %v1085, 20
        %v1087 = vpop.permute.xlu0 %1086
        %1089 = vst.msk [vmem:[%s233 + $0x2] sm:$0x1] %vm290, %v1087
        %1090 = vrot.lane.b32.xlu0 %v1085, 16
        %v1091 = vpop.permute.xlu0 %1090
        %1093 = vst.msk [vmem:[%s233 + $0x3] sm:$0x1] %vm290, %v1091
        %v1094 = vcombine.high %v1075, %v1075
        %1095 = vrot.lane.b32.xlu0 %v1094, 24
        %v1096 = vpop.permute.xlu0 %1095
        %1098 = vst.msk [vmem:[%s233 + $0x2] sm:$0x1] %vm300, %v1096
        %1099 = vrot.lane.b32.xlu0 %v1094, 20
        %v1100 = vpop.permute.xlu0 %1099
        %1102 = vst.msk [vmem:[%s233 + $0x3] sm:$0x1] %vm300, %v1100
        %v1103 = vrot.slane %v1094, 7
        %v1104 = vrot.slane %v1103, 2
        %1105 = vrot.lane.b32.xlu0 %v1104, 28
        %v1106 = vpop.permute.xlu0 %1105
        %1108 = vst.msk [vmem:[%s233 + $0x2] sm:$0x1] %vm311, %v1106
        %1109 = vrot.lane.b32.xlu0 %v1104, 24
        %v1110 = vpop.permute.xlu0 %1109
        %1112 = vst.msk [vmem:[%s233 + $0x3] sm:$0x1] %vm311, %v1110
        %s1113 = scalar_lea.vmem %s159, 80 [#allocation2]
        %v1114 = vld [vmem:[%s1113] sm:$0xff]
        %v1117 = vunpack.c.l.s4 1983009808
        %v1118 = vunpack.c.0.s8 %v1117
        %v1119 = vlaneseq
        %v1120 = vshrl.u32 %v1119, 7
        %v1121 = vsub.s32 %v1118, %v1120
        %v1122 = vrot.slane %v1114, %v1121
        %1123 = vrot.lane.b32.xlu0 %v1122, 32
        %v1124 = vpop.permute.xlu0 %1123
        %1126 = vst.msk [vmem:[%s177 + $0x2] sm:$0x1] %vm375, %v1124
        %1127 = vrot.lane.b32.xlu0 %v1122, 28
        %v1128 = vpop.permute.xlu0 %1127
        %1130 = vst.msk [vmem:[%s177 + $0x3] sm:$0x1] %vm375, %v1128
        %v1131 = vrot.slane %v1122, 7
        %v1132 = vrot.slane %v1131, 2
        %1133 = vrot.lane.b32.xlu0 %v1132, 36
        %v1134 = vpop.permute.xlu0 %1133
        %1136 = vst.msk [vmem:[%s177 + $0x2] sm:$0x1] %vm386, %v1134
        %1137 = vrot.lane.b32.xlu0 %v1132, 32
        %v1138 = vpop.permute.xlu0 %1137
        %1140 = vst.msk [vmem:[%s177 + $0x3] sm:$0x1] %vm386, %v1138
        %v1141 = vcombine.high %v1122, %v1122
        %1142 = vrot.lane.b32.xlu0 %v1141, 40
        %v1143 = vpop.permute.xlu0 %1142
        %1145 = vst.msk [vmem:[%s177 + $0x2] sm:$0x1] %vm396, %v1143
        %1146 = vrot.lane.b32.xlu0 %v1141, 36
        %v1147 = vpop.permute.xlu0 %1146
        %1149 = vst.msk [vmem:[%s177 + $0x3] sm:$0x1] %vm396, %v1147
        %v1150 = vrot.slane %v1141, 7
        %v1151 = vrot.slane %v1150, 2
        %1152 = vrot.lane.b32.xlu0 %v1151, 44
        %v1153 = vpop.permute.xlu0 %1152
        %1155 = vst.msk [vmem:[%s177 + $0x2] sm:$0x1] %vm407, %v1153
        %1156 = vrot.lane.b32.xlu0 %v1151, 40
        %v1157 = vpop.permute.xlu0 %1156
        %1159 = vst.msk [vmem:[%s177 + $0x3] sm:$0x1] %vm407, %v1157
        %v1160 = vcombine.high %v1114, %v1114
        %v1162 = vunpack.c.l.s4 1983009808
        %v1163 = vunpack.c.0.s8 %v1162
        %v1164 = vlaneseq
        %v1165 = vshrl.u32 %v1164, 7
        %v1166 = vsub.s32 %v1163, %v1165
        %v1167 = vrot.slane %v1160, %v1166
        %1168 = vrot.lane.b32.xlu0 %v1167, 32
        %v1169 = vpop.permute.xlu0 %1168
        %1171 = vst.msk [vmem:[%s233 + $0x2] sm:$0x1] %vm375, %v1169
        %1172 = vrot.lane.b32.xlu0 %v1167, 28
        %v1173 = vpop.permute.xlu0 %1172
        %1175 = vst.msk [vmem:[%s233 + $0x3] sm:$0x1] %vm375, %v1173
        %v1176 = vrot.slane %v1167, 7
        %v1177 = vrot.slane %v1176, 2
        %1178 = vrot.lane.b32.xlu0 %v1177, 36
        %v1179 = vpop.permute.xlu0 %1178
        %1181 = vst.msk [vmem:[%s233 + $0x2] sm:$0x1] %vm386, %v1179
        %1182 = vrot.lane.b32.xlu0 %v1177, 32
        %v1183 = vpop.permute.xlu0 %1182
        %1185 = vst.msk [vmem:[%s233 + $0x3] sm:$0x1] %vm386, %v1183
        %v1186 = vcombine.high %v1167, %v1167
        %1187 = vrot.lane.b32.xlu0 %v1186, 40
        %v1188 = vpop.permute.xlu0 %1187
        %1190 = vst.msk [vmem:[%s233 + $0x2] sm:$0x1] %vm396, %v1188
        %1191 = vrot.lane.b32.xlu0 %v1186, 36
        %v1192 = vpop.permute.xlu0 %1191
        %1194 = vst.msk [vmem:[%s233 + $0x3] sm:$0x1] %vm396, %v1192
        %v1195 = vrot.slane %v1186, 7
        %v1196 = vrot.slane %v1195, 2
        %1197 = vrot.lane.b32.xlu0 %v1196, 44
        %v1198 = vpop.permute.xlu0 %1197
        %1200 = vst.msk [vmem:[%s233 + $0x2] sm:$0x1] %vm407, %v1198
        %1201 = vrot.lane.b32.xlu0 %v1196, 40
        %v1202 = vpop.permute.xlu0 %1201
        %1204 = vst.msk [vmem:[%s233 + $0x3] sm:$0x1] %vm407, %v1202
        %s1205 = scalar_lea.vmem %s159, 88 [#allocation2]
        %v1206 = vld [vmem:[%s1205] sm:$0xff]
        %v1209 = vunpack.c.l.s4 1983009808
        %v1210 = vunpack.c.0.s8 %v1209
        %v1211 = vlaneseq
        %v1212 = vshrl.u32 %v1211, 7
        %v1213 = vsub.s32 %v1210, %v1212
        %v1214 = vrot.slane %v1206, %v1213
        %1215 = vrot.lane.b32.xlu0 %v1214, 48
        %v1216 = vpop.permute.xlu0 %1215
        %1218 = vst.msk [vmem:[%s177 + $0x2] sm:$0x1] %vm471, %v1216
        %1219 = vrot.lane.b32.xlu0 %v1214, 44
        %v1220 = vpop.permute.xlu0 %1219
        %1222 = vst.msk [vmem:[%s177 + $0x3] sm:$0x1] %vm471, %v1220
        %v1223 = vrot.slane %v1214, 7
        %v1224 = vrot.slane %v1223, 2
        %1225 = vrot.lane.b32.xlu0 %v1224, 52
        %v1226 = vpop.permute.xlu0 %1225
        %1228 = vst.msk [vmem:[%s177 + $0x2] sm:$0x1] %vm482, %v1226
        %1229 = vrot.lane.b32.xlu0 %v1224, 48
        %v1230 = vpop.permute.xlu0 %1229
        %1232 = vst.msk [vmem:[%s177 + $0x3] sm:$0x1] %vm482, %v1230
        %v1233 = vcombine.high %v1214, %v1214
        %1234 = vrot.lane.b32.xlu0 %v1233, 56
        %v1235 = vpop.permute.xlu0 %1234
        %1237 = vst.msk [vmem:[%s177 + $0x2] sm:$0x1] %vm492, %v1235
        %1238 = vrot.lane.b32.xlu0 %v1233, 52
        %v1239 = vpop.permute.xlu0 %1238
        %1241 = vst.msk [vmem:[%s177 + $0x3] sm:$0x1] %vm492, %v1239
        %v1242 = vrot.slane %v1233, 7
        %v1243 = vrot.slane %v1242, 2
        %1244 = vrot.lane.b32.xlu0 %v1243, 60
        %v1245 = vpop.permute.xlu0 %1244
        %1247 = vst.msk [vmem:[%s177 + $0x2] sm:$0x1] %vm503, %v1245
        %1248 = vrot.lane.b32.xlu0 %v1243, 56
        %v1249 = vpop.permute.xlu0 %1248
        %1251 = vst.msk [vmem:[%s177 + $0x3] sm:$0x1] %vm503, %v1249
        %v1252 = vcombine.high %v1206, %v1206
        %v1254 = vunpack.c.l.s4 1983009808
        %v1255 = vunpack.c.0.s8 %v1254
        %v1256 = vlaneseq
        %v1257 = vshrl.u32 %v1256, 7
        %v1258 = vsub.s32 %v1255, %v1257
        %v1259 = vrot.slane %v1252, %v1258
        %1260 = vrot.lane.b32.xlu0 %v1259, 48
        %v1261 = vpop.permute.xlu0 %1260
        %1263 = vst.msk [vmem:[%s233 + $0x2] sm:$0x1] %vm471, %v1261
        %1264 = vrot.lane.b32.xlu0 %v1259, 44
        %v1265 = vpop.permute.xlu0 %1264
        %1267 = vst.msk [vmem:[%s233 + $0x3] sm:$0x1] %vm471, %v1265
        %v1268 = vrot.slane %v1259, 7
        %v1269 = vrot.slane %v1268, 2
        %1270 = vrot.lane.b32.xlu0 %v1269, 52
        %v1271 = vpop.permute.xlu0 %1270
        %1273 = vst.msk [vmem:[%s233 + $0x2] sm:$0x1] %vm482, %v1271
        %1274 = vrot.lane.b32.xlu0 %v1269, 48
        %v1275 = vpop.permute.xlu0 %1274
        %1277 = vst.msk [vmem:[%s233 + $0x3] sm:$0x1] %vm482, %v1275
        %v1278 = vcombine.high %v1259, %v1259
        %1279 = vrot.lane.b32.xlu0 %v1278, 56
        %v1280 = vpop.permute.xlu0 %1279
        %1282 = vst.msk [vmem:[%s233 + $0x2] sm:$0x1] %vm492, %v1280
        %1283 = vrot.lane.b32.xlu0 %v1278, 52
        %v1284 = vpop.permute.xlu0 %1283
        %1286 = vst.msk [vmem:[%s233 + $0x3] sm:$0x1] %vm492, %v1284
        %v1287 = vrot.slane %v1278, 7
        %v1288 = vrot.slane %v1287, 2
        %1289 = vrot.lane.b32.xlu0 %v1288, 60
        %v1290 = vpop.permute.xlu0 %1289
        %1292 = vst.msk [vmem:[%s233 + $0x2] sm:$0x1] %vm503, %v1290
        %1293 = vrot.lane.b32.xlu0 %v1288, 56
        %v1294 = vpop.permute.xlu0 %1293
        %1296 = vst.msk [vmem:[%s233 + $0x3] sm:$0x1] %vm503, %v1294
        %s1297 = scalar_lea.vmem %s159, 96 [#allocation2]
        %v1298 = vld [vmem:[%s1297] sm:$0xff]
        %v1301 = vunpack.c.l.s4 1983009808
        %v1302 = vunpack.c.0.s8 %v1301
        %v1303 = vlaneseq
        %v1304 = vshrl.u32 %v1303, 7
        %v1305 = vsub.s32 %v1302, %v1304
        %v1306 = vrot.slane %v1298, %v1305
        %1307 = vrot.lane.b32.xlu0 %v1306, 64
        %v1308 = vpop.permute.xlu0 %1307
        %1310 = vst.msk [vmem:[%s177 + $0x2] sm:$0x1] %vm567, %v1308
        %1311 = vrot.lane.b32.xlu0 %v1306, 60
        %v1312 = vpop.permute.xlu0 %1311
        %1314 = vst.msk [vmem:[%s177 + $0x3] sm:$0x1] %vm567, %v1312
        %v1315 = vrot.slane %v1306, 7
        %v1316 = vrot.slane %v1315, 2
        %1317 = vrot.lane.b32.xlu0 %v1316, 68
        %v1318 = vpop.permute.xlu0 %1317
        %1320 = vst.msk [vmem:[%s177 + $0x2] sm:$0x1] %vm578, %v1318
        %1321 = vrot.lane.b32.xlu0 %v1316, 64
        %v1322 = vpop.permute.xlu0 %1321
        %1324 = vst.msk [vmem:[%s177 + $0x3] sm:$0x1] %vm578, %v1322
        %v1325 = vcombine.high %v1306, %v1306
        %1326 = vrot.lane.b32.xlu0 %v1325, 72
        %v1327 = vpop.permute.xlu0 %1326
        %1329 = vst.msk [vmem:[%s177 + $0x2] sm:$0x1] %vm588, %v1327
        %1330 = vrot.lane.b32.xlu0 %v1325, 68
        %v1331 = vpop.permute.xlu0 %1330
        %1333 = vst.msk [vmem:[%s177 + $0x3] sm:$0x1] %vm588, %v1331
        %v1334 = vrot.slane %v1325, 7
        %v1335 = vrot.slane %v1334, 2
        %1336 = vrot.lane.b32.xlu0 %v1335, 76
        %v1337 = vpop.permute.xlu0 %1336
        %1339 = vst.msk [vmem:[%s177 + $0x2] sm:$0x1] %vm599, %v1337
        %1340 = vrot.lane.b32.xlu0 %v1335, 72
        %v1341 = vpop.permute.xlu0 %1340
        %1343 = vst.msk [vmem:[%s177 + $0x3] sm:$0x1] %vm599, %v1341
        %v1344 = vcombine.high %v1298, %v1298
        %v1346 = vunpack.c.l.s4 1983009808
        %v1347 = vunpack.c.0.s8 %v1346
        %v1348 = vlaneseq
        %v1349 = vshrl.u32 %v1348, 7
        %v1350 = vsub.s32 %v1347, %v1349
        %v1351 = vrot.slane %v1344, %v1350
        %1352 = vrot.lane.b32.xlu0 %v1351, 64
        %v1353 = vpop.permute.xlu0 %1352
        %1355 = vst.msk [vmem:[%s233 + $0x2] sm:$0x1] %vm567, %v1353
        %1356 = vrot.lane.b32.xlu0 %v1351, 60
        %v1357 = vpop.permute.xlu0 %1356
        %1359 = vst.msk [vmem:[%s233 + $0x3] sm:$0x1] %vm567, %v1357
        %v1360 = vrot.slane %v1351, 7
        %v1361 = vrot.slane %v1360, 2
        %1362 = vrot.lane.b32.xlu0 %v1361, 68
        %v1363 = vpop.permute.xlu0 %1362
        %1365 = vst.msk [vmem:[%s233 + $0x2] sm:$0x1] %vm578, %v1363
        %1366 = vrot.lane.b32.xlu0 %v1361, 64
        %v1367 = vpop.permute.xlu0 %1366
        %1369 = vst.msk [vmem:[%s233 + $0x3] sm:$0x1] %vm578, %v1367
        %v1370 = vcombine.high %v1351, %v1351
        %1371 = vrot.lane.b32.xlu0 %v1370, 72
        %v1372 = vpop.permute.xlu0 %1371
        %1374 = vst.msk [vmem:[%s233 + $0x2] sm:$0x1] %vm588, %v1372
        %1375 = vrot.lane.b32.xlu0 %v1370, 68
        %v1376 = vpop.permute.xlu0 %1375
        %1378 = vst.msk [vmem:[%s233 + $0x3] sm:$0x1] %vm588, %v1376
        %v1379 = vrot.slane %v1370, 7
        %v1380 = vrot.slane %v1379, 2
        %1381 = vrot.lane.b32.xlu0 %v1380, 76
        %v1382 = vpop.permute.xlu0 %1381
        %1384 = vst.msk [vmem:[%s233 + $0x2] sm:$0x1] %vm599, %v1382
        %1385 = vrot.lane.b32.xlu0 %v1380, 72
        %v1386 = vpop.permute.xlu0 %1385
        %1388 = vst.msk [vmem:[%s233 + $0x3] sm:$0x1] %vm599, %v1386
        %s1389 = scalar_lea.vmem %s159, 104 [#allocation2]
        %v1390 = vld [vmem:[%s1389] sm:$0xff]
        %v1393 = vunpack.c.l.s4 1983009808
        %v1394 = vunpack.c.0.s8 %v1393
        %v1395 = vlaneseq
        %v1396 = vshrl.u32 %v1395, 7
        %v1397 = vsub.s32 %v1394, %v1396
        %v1398 = vrot.slane %v1390, %v1397
        %1399 = vrot.lane.b32.xlu0 %v1398, 80
        %v1400 = vpop.permute.xlu0 %1399
        %1402 = vst.msk [vmem:[%s177 + $0x2] sm:$0x1] %vm663, %v1400
        %1403 = vrot.lane.b32.xlu0 %v1398, 76
        %v1404 = vpop.permute.xlu0 %1403
        %1406 = vst.msk [vmem:[%s177 + $0x3] sm:$0x1] %vm663, %v1404
        %v1407 = vrot.slane %v1398, 7
        %v1408 = vrot.slane %v1407, 2
        %1409 = vrot.lane.b32.xlu0 %v1408, 84
        %v1410 = vpop.permute.xlu0 %1409
        %1412 = vst.msk [vmem:[%s177 + $0x2] sm:$0x1] %vm674, %v1410
        %1413 = vrot.lane.b32.xlu0 %v1408, 80
        %v1414 = vpop.permute.xlu0 %1413
        %1416 = vst.msk [vmem:[%s177 + $0x3] sm:$0x1] %vm674, %v1414
        %v1417 = vcombine.high %v1398, %v1398
        %1418 = vrot.lane.b32.xlu0 %v1417, 88
        %v1419 = vpop.permute.xlu0 %1418
        %1421 = vst.msk [vmem:[%s177 + $0x2] sm:$0x1] %vm684, %v1419
        %1422 = vrot.lane.b32.xlu0 %v1417, 84
        %v1423 = vpop.permute.xlu0 %1422
        %1425 = vst.msk [vmem:[%s177 + $0x3] sm:$0x1] %vm684, %v1423
        %v1426 = vrot.slane %v1417, 7
        %v1427 = vrot.slane %v1426, 2
        %1428 = vrot.lane.b32.xlu0 %v1427, 92
        %v1429 = vpop.permute.xlu0 %1428
        %1431 = vst.msk [vmem:[%s177 + $0x2] sm:$0x1] %vm695, %v1429
        %1432 = vrot.lane.b32.xlu0 %v1427, 88
        %v1433 = vpop.permute.xlu0 %1432
        %1435 = vst.msk [vmem:[%s177 + $0x3] sm:$0x1] %vm695, %v1433
        %v1436 = vcombine.high %v1390, %v1390
        %v1438 = vunpack.c.l.s4 1983009808
        %v1439 = vunpack.c.0.s8 %v1438
        %v1440 = vlaneseq
        %v1441 = vshrl.u32 %v1440, 7
        %v1442 = vsub.s32 %v1439, %v1441
        %v1443 = vrot.slane %v1436, %v1442
        %1444 = vrot.lane.b32.xlu0 %v1443, 80
        %v1445 = vpop.permute.xlu0 %1444
        %1447 = vst.msk [vmem:[%s233 + $0x2] sm:$0x1] %vm663, %v1445
        %1448 = vrot.lane.b32.xlu0 %v1443, 76
        %v1449 = vpop.permute.xlu0 %1448
        %1451 = vst.msk [vmem:[%s233 + $0x3] sm:$0x1] %vm663, %v1449
        %v1452 = vrot.slane %v1443, 7
        %v1453 = vrot.slane %v1452, 2
        %1454 = vrot.lane.b32.xlu0 %v1453, 84
        %v1455 = vpop.permute.xlu0 %1454
        %1457 = vst.msk [vmem:[%s233 + $0x2] sm:$0x1] %vm674, %v1455
        %1458 = vrot.lane.b32.xlu0 %v1453, 80
        %v1459 = vpop.permute.xlu0 %1458
        %1461 = vst.msk [vmem:[%s233 + $0x3] sm:$0x1] %vm674, %v1459
        %v1462 = vcombine.high %v1443, %v1443
        %1463 = vrot.lane.b32.xlu0 %v1462, 88
        %v1464 = vpop.permute.xlu0 %1463
        %1466 = vst.msk [vmem:[%s233 + $0x2] sm:$0x1] %vm684, %v1464
        %1467 = vrot.lane.b32.xlu0 %v1462, 84
        %v1468 = vpop.permute.xlu0 %1467
        %1470 = vst.msk [vmem:[%s233 + $0x3] sm:$0x1] %vm684, %v1468
        %v1471 = vrot.slane %v1462, 7
        %v1472 = vrot.slane %v1471, 2
        %1473 = vrot.lane.b32.xlu0 %v1472, 92
        %v1474 = vpop.permute.xlu0 %1473
        %1476 = vst.msk [vmem:[%s233 + $0x2] sm:$0x1] %vm695, %v1474
        %1477 = vrot.lane.b32.xlu0 %v1472, 88
        %v1478 = vpop.permute.xlu0 %1477
        %1480 = vst.msk [vmem:[%s233 + $0x3] sm:$0x1] %vm695, %v1478
        %s1481 = scalar_lea.vmem %s159, 112 [#allocation2]
        %v1482 = vld [vmem:[%s1481] sm:$0xff]
        %v1485 = vunpack.c.l.s4 1983009808
        %v1486 = vunpack.c.0.s8 %v1485
        %v1487 = vlaneseq
        %v1488 = vshrl.u32 %v1487, 7
        %v1489 = vsub.s32 %v1486, %v1488
        %v1490 = vrot.slane %v1482, %v1489
        %1491 = vrot.lane.b32.xlu0 %v1490, 96
        %v1492 = vpop.permute.xlu0 %1491
        %1494 = vst.msk [vmem:[%s177 + $0x2] sm:$0x1] %vm759, %v1492
        %1495 = vrot.lane.b32.xlu0 %v1490, 92
        %v1496 = vpop.permute.xlu0 %1495
        %1498 = vst.msk [vmem:[%s177 + $0x3] sm:$0x1] %vm759, %v1496
        %v1499 = vrot.slane %v1490, 7
        %v1500 = vrot.slane %v1499, 2
        %1501 = vrot.lane.b32.xlu0 %v1500, 100
        %v1502 = vpop.permute.xlu0 %1501
        %1504 = vst.msk [vmem:[%s177 + $0x2] sm:$0x1] %vm770, %v1502
        %1505 = vrot.lane.b32.xlu0 %v1500, 96
        %v1506 = vpop.permute.xlu0 %1505
        %1508 = vst.msk [vmem:[%s177 + $0x3] sm:$0x1] %vm770, %v1506
        %v1509 = vcombine.high %v1490, %v1490
        %1510 = vrot.lane.b32.xlu0 %v1509, 104
        %v1511 = vpop.permute.xlu0 %1510
        %1513 = vst.msk [vmem:[%s177 + $0x2] sm:$0x1] %vm780, %v1511
        %1514 = vrot.lane.b32.xlu0 %v1509, 100
        %v1515 = vpop.permute.xlu0 %1514
        %1517 = vst.msk [vmem:[%s177 + $0x3] sm:$0x1] %vm780, %v1515
        %v1518 = vrot.slane %v1509, 7
        %v1519 = vrot.slane %v1518, 2
        %1520 = vrot.lane.b32.xlu0 %v1519, 108
        %v1521 = vpop.permute.xlu0 %1520
        %1523 = vst.msk [vmem:[%s177 + $0x2] sm:$0x1] %vm791, %v1521
        %1524 = vrot.lane.b32.xlu0 %v1519, 104
        %v1525 = vpop.permute.xlu0 %1524
        %1527 = vst.msk [vmem:[%s177 + $0x3] sm:$0x1] %vm791, %v1525
        %v1528 = vcombine.high %v1482, %v1482
        %v1530 = vunpack.c.l.s4 1983009808
        %v1531 = vunpack.c.0.s8 %v1530
        %v1532 = vlaneseq
        %v1533 = vshrl.u32 %v1532, 7
        %v1534 = vsub.s32 %v1531, %v1533
        %v1535 = vrot.slane %v1528, %v1534
        %1536 = vrot.lane.b32.xlu0 %v1535, 96
        %v1537 = vpop.permute.xlu0 %1536
        %1539 = vst.msk [vmem:[%s233 + $0x2] sm:$0x1] %vm759, %v1537
        %1540 = vrot.lane.b32.xlu0 %v1535, 92
        %v1541 = vpop.permute.xlu0 %1540
        %1543 = vst.msk [vmem:[%s233 + $0x3] sm:$0x1] %vm759, %v1541
        %v1544 = vrot.slane %v1535, 7
        %v1545 = vrot.slane %v1544, 2
        %1546 = vrot.lane.b32.xlu0 %v1545, 100
        %v1547 = vpop.permute.xlu0 %1546
        %1549 = vst.msk [vmem:[%s233 + $0x2] sm:$0x1] %vm770, %v1547
        %1550 = vrot.lane.b32.xlu0 %v1545, 96
        %v1551 = vpop.permute.xlu0 %1550
        %1553 = vst.msk [vmem:[%s233 + $0x3] sm:$0x1] %vm770, %v1551
        %v1554 = vcombine.high %v1535, %v1535
        %1555 = vrot.lane.b32.xlu0 %v1554, 104
        %v1556 = vpop.permute.xlu0 %1555
        %1558 = vst.msk [vmem:[%s233 + $0x2] sm:$0x1] %vm780, %v1556
        %1559 = vrot.lane.b32.xlu0 %v1554, 100
        %v1560 = vpop.permute.xlu0 %1559
        %1562 = vst.msk [vmem:[%s233 + $0x3] sm:$0x1] %vm780, %v1560
        %v1563 = vrot.slane %v1554, 7
        %v1564 = vrot.slane %v1563, 2
        %1565 = vrot.lane.b32.xlu0 %v1564, 108
        %v1566 = vpop.permute.xlu0 %1565
        %1568 = vst.msk [vmem:[%s233 + $0x2] sm:$0x1] %vm791, %v1566
        %1569 = vrot.lane.b32.xlu0 %v1564, 104
        %v1570 = vpop.permute.xlu0 %1569
        %1572 = vst.msk [vmem:[%s233 + $0x3] sm:$0x1] %vm791, %v1570
        %s1573 = scalar_lea.vmem %s159, 120 [#allocation2]
        %v1574 = vld [vmem:[%s1573] sm:$0xff]
        %v1577 = vunpack.c.l.s4 1983009808
        %v1578 = vunpack.c.0.s8 %v1577
        %v1579 = vlaneseq
        %v1580 = vshrl.u32 %v1579, 7
        %v1581 = vsub.s32 %v1578, %v1580
        %v1582 = vrot.slane %v1574, %v1581
        %1583 = vrot.lane.b32.xlu0 %v1582, 112
        %v1584 = vpop.permute.xlu0 %1583
        %1586 = vst.msk [vmem:[%s177 + $0x2] sm:$0x1] %vm855, %v1584
        %1587 = vrot.lane.b32.xlu0 %v1582, 108
        %v1588 = vpop.permute.xlu0 %1587
        %1590 = vst.msk [vmem:[%s177 + $0x3] sm:$0x1] %vm855, %v1588
        %v1591 = vrot.slane %v1582, 7
        %v1592 = vrot.slane %v1591, 2
        %1593 = vrot.lane.b32.xlu0 %v1592, 116
        %v1594 = vpop.permute.xlu0 %1593
        %1596 = vst.msk [vmem:[%s177 + $0x2] sm:$0x1] %vm866, %v1594
        %1597 = vrot.lane.b32.xlu0 %v1592, 112
        %v1598 = vpop.permute.xlu0 %1597
        %1600 = vst.msk [vmem:[%s177 + $0x3] sm:$0x1] %vm866, %v1598
        %v1601 = vcombine.high %v1582, %v1582
        %1602 = vrot.lane.b32.xlu0 %v1601, 120
        %v1603 = vpop.permute.xlu0 %1602
        %1605 = vst.msk [vmem:[%s177 + $0x2] sm:$0x1] %vm876, %v1603
        %1606 = vrot.lane.b32.xlu0 %v1601, 116
        %v1607 = vpop.permute.xlu0 %1606
        %1609 = vst.msk [vmem:[%s177 + $0x3] sm:$0x1] %vm876, %v1607
        %v1610 = vrot.slane %v1601, 7
        %v1611 = vrot.slane %v1610, 2
        %1612 = vrot.lane.b32.xlu0 %v1611, 124
        %v1613 = vpop.permute.xlu0 %1612
        %1615 = vst.msk [vmem:[%s177 + $0x2] sm:$0x1] %vm887, %v1613
        %1616 = vrot.lane.b32.xlu0 %v1611, 120
        %v1617 = vpop.permute.xlu0 %1616
        %1619 = vst.msk [vmem:[%s177 + $0x3] sm:$0x1] %vm887, %v1617
        %v1620 = vcombine.high %v1574, %v1574
        %v1622 = vunpack.c.l.s4 1983009808
        %v1623 = vunpack.c.0.s8 %v1622
        %v1624 = vlaneseq
        %v1625 = vshrl.u32 %v1624, 7
        %v1626 = vsub.s32 %v1623, %v1625
        %v1627 = vrot.slane %v1620, %v1626
        %1628 = vrot.lane.b32.xlu0 %v1627, 112
        %v1629 = vpop.permute.xlu0 %1628
        %1631 = vst.msk [vmem:[%s233 + $0x2] sm:$0x1] %vm855, %v1629
        %1632 = vrot.lane.b32.xlu0 %v1627, 108
        %v1633 = vpop.permute.xlu0 %1632
        %1635 = vst.msk [vmem:[%s233 + $0x3] sm:$0x1] %vm855, %v1633
        %v1636 = vrot.slane %v1627, 7
        %v1637 = vrot.slane %v1636, 2
        %1638 = vrot.lane.b32.xlu0 %v1637, 116
        %v1639 = vpop.permute.xlu0 %1638
        %1641 = vst.msk [vmem:[%s233 + $0x2] sm:$0x1] %vm866, %v1639
        %1642 = vrot.lane.b32.xlu0 %v1637, 112
        %v1643 = vpop.permute.xlu0 %1642
        %1645 = vst.msk [vmem:[%s233 + $0x3] sm:$0x1] %vm866, %v1643
        %v1646 = vcombine.high %v1627, %v1627
        %1647 = vrot.lane.b32.xlu0 %v1646, 120
        %v1648 = vpop.permute.xlu0 %1647
        %1650 = vst.msk [vmem:[%s233 + $0x2] sm:$0x1] %vm876, %v1648
        %1651 = vrot.lane.b32.xlu0 %v1646, 116
        %v1652 = vpop.permute.xlu0 %1651
        %1654 = vst.msk [vmem:[%s233 + $0x3] sm:$0x1] %vm876, %v1652
        %v1655 = vrot.slane %v1646, 7
        %v1656 = vrot.slane %v1655, 2
        %1657 = vrot.lane.b32.xlu0 %v1656, 124
        %v1658 = vpop.permute.xlu0 %1657
        %1660 = vst.msk [vmem:[%s233 + $0x2] sm:$0x1] %vm887, %v1658
        %1661 = vrot.lane.b32.xlu0 %v1656, 120
        %v1662 = vpop.permute.xlu0 %1661
        %1664 = vst.msk [vmem:[%s233 + $0x3] sm:$0x1] %vm887, %v1662
        %s1665 = sand.u32 %s68, 1
        %s1666 = scalar_lea.sflag [#allocation4], %s1665
        %s1667 = sand.u32 %s68, 1
        %s1668 = smul.addr %s1667, 8
        %s1669 = scalar_lea.vmem [#allocation5], %s1668
        // Predicated region
        $region29: #{tpu_custom_call.1} parent=23 // pred_check
          %p1670 = pneg %p78
        $region30: #{tpu_custom_call.1} parent=23 // pred_check_branch
          %1672 = sbr.rel (%p1670) target = $region32
        $region31: #{tpu_custom_call.1} parent=23 // pred_region
          %s1674 = ssub.s32 128, 128
          %1675 = vsyncadd %s1666, %s1674
          %s1676 = smul.addr %s23, 4
          %s1677 = smul.addr %s22, 8
          %s1678 = sadd.s32 %s1676, %s1677
          %s1679 = smul.addr %s1678, 32
          %s1680 = scalar_lea.hbm %s1, %s1679
          %s1681 = sshll.u32 %s1669, 4
          %s1682 = int_to_ptr.vmem [resolvable:$true] %s1681
          %1687 = dma.vmem_to_hbm [thread:$0]  %s1682, 128, %s1680, %s1666, 64, 64, 4
        $region32: #{tpu_custom_call.1} parent=23 // pred_fallthru
          _
      $region24: #{tpu_custom_call.1} parent=5 // pred_fallthru
        _
      %p1688 = scmp.le.s32.totalorder 2, %s13
      // Predicated region
      $region33: #{tpu_custom_call.1} parent=5 // pred_check
        %p1689 = pneg %p1688
      $region34: #{tpu_custom_call.1} parent=5 // pred_check_branch
        %1691 = sbr.rel (%p1689) target = $region36
      $region35: #{tpu_custom_call.1} parent=5 // pred_region
        %s1692 = ssub.s32 %s13, 2
        // Predicated region
        $region37: #{tpu_custom_call.1} parent=35 // pred_check
          %p1693 = pneg %p84
        $region38: #{tpu_custom_call.1} parent=35 // pred_check_branch
          %1695 = sbr.rel (%p1693) target = $region40
        $region39: #{tpu_custom_call.1} parent=35 // pred_region
          %s1696 = sand.u32 %s69, 1
          %s1697 = scalar_lea.sflag [#allocation4], %s1696
          %s1698 = sand.u32 %s69, 1
          %s1699 = smul.addr %s1698, 8
          %s1700 = scalar_lea.vmem [#allocation5], %s1699
          %1701 = dma.done %s1697, 128
        $region40: #{tpu_custom_call.1} parent=35 // pred_fallthru
          _
      $region36: #{tpu_custom_call.1} parent=5 // pred_fallthru
        _
    $region6: #{tpu_custom_call.1} parent=1 // loop_footer
      %s17 = sadd.s32 1, %s13
    $region7: #{tpu_custom_call.1} parent=1 // loop_footer_branch
      %12 = sbr.rel target = $region3
    $region8: #{tpu_custom_call.1} parent=1 // loop_exit
      _
    %1702 = vsyncpa [#allocation3], 1
    %s1703 = scalar_lea.sflag [#allocation3], 1
    %1704 = vsyncpa %s1703, 1
    %1705 = vsyncpa [#allocation4], 1
    %s1706 = scalar_lea.sflag [#allocation4], 1
    %1707 = vsyncpa %s1706, 1

</llo_original>
